<compile_context>
chip_gen: v7x
topology: tpu7x:2x2x1
jax: 0.10.0
libtpu: 0.0.40
codegen_flags: <defaults>
</compile_context>

<pallas_src>
import math
from functools import partial

import numpy as np
import jax
import jax.numpy as jnp
from jax.experimental import pallas as pl
from jax.experimental.pallas import tpu as pltpu  # noqa: F401  (kept per template)

D_FEAT = 6
D_MODEL0 = 8                      # d_model before time2vec concat
TIME_SIZE = 16
D_MODEL = D_MODEL0 + TIME_SIZE    # 24
NHEAD = 4
HEAD_DIM = D_MODEL // NHEAD       # 6
D_FF = D_MODEL                    # EncoderLayer(..., d_model, d_model)
LN_EPS = 1e-5
BN_EPS = 1e-5
NEG_INF = -1e30


# ----------------------------- in-kernel math helpers -----------------------
def _erf(x):
    # Abramowitz & Stegun 7.1.26 rational approximation (float32-exact).
    a1, a2, a3, a4, a5 = (0.254829592, -0.284496736, 1.421413741,
                          -1.453152027, 1.061405429)
    p = 0.3275911
    sgn = jnp.where(x >= 0.0, 1.0, -1.0)
    z = jnp.abs(x)
    t = 1.0 / (1.0 + p * z)
    poly = ((((a5 * t + a4) * t + a3) * t + a2) * t + a1) * t
    return sgn * (1.0 - poly * jnp.exp(-z * z))


def _gelu(x):
    # exact (erf-based) GELU, matching F.gelu default
    return 0.5 * x * (1.0 + _erf(x * (1.0 / math.sqrt(2.0))))


def _layernorm(x, g, b):
    mu = jnp.mean(x, axis=-1, keepdims=True)
    var = jnp.mean((x - mu) ** 2, axis=-1, keepdims=True)
    return (x - mu) * jax.lax.rsqrt(var + LN_EPS) * g + b


def _softmax_last(x):
    m = jnp.max(x, axis=-1, keepdims=True)
    e = jnp.exp(x - m)
    return e / jnp.sum(e, axis=-1, keepdims=True)


# -------------------------- fused-kernel building blocks ---------------------
def _encoder_layer(x, neg, wqkv_ref, bqkv_ref, wo_ref, bo_ref,
                   wffn_ref, bffn_ref, ln_ref):
    """Informer EncoderLayer on a batch-folded (B*T, D) stack.

    `neg` is a (B*T, B*T) additive mask (0 inside a batch block, -1e30 across
    batches) so the softmax normalises each batch independently.
    Per-head weights arrive pre-split: wqkv (3*NHEAD, D, HD), wo (NHEAD, HD, D).
    """
    scale = 1.0 / math.sqrt(HEAD_DIM)
    attn = bo_ref[...]                                      # (1, D), broadcasts
    for h in range(NHEAD):
        qh = jnp.dot(x, wqkv_ref[h],
                     preferred_element_type=jnp.float32) + bqkv_ref[h]
        kh = jnp.dot(x, wqkv_ref[NHEAD + h],
                     preferred_element_type=jnp.float32) + bqkv_ref[NHEAD + h]
        vh = jnp.dot(x, wqkv_ref[2 * NHEAD + h],
                     preferred_element_type=jnp.float32) + bqkv_ref[2 * NHEAD + h]
        s = jax.lax.dot_general(qh, kh, (((1,), (1,)), ((), ())),
                                preferred_element_type=jnp.float32) * scale + neg
        p = _softmax_last(s)
        oh = jnp.dot(p, vh, preferred_element_type=jnp.float32)      # (R, HD)
        attn = attn + jnp.dot(oh, wo_ref[h],
                              preferred_element_type=jnp.float32)     # (R, D)
    x1 = x + attn
    xn = _layernorm(x1, ln_ref[0], ln_ref[1])
    y = _gelu(jnp.dot(xn, wffn_ref[0],
                      preferred_element_type=jnp.float32) + bffn_ref[0])
    y = jnp.dot(y, wffn_ref[1],
                preferred_element_type=jnp.float32) + bffn_ref[1]
    return _layernorm(xn + y, ln_ref[2], ln_ref[3])


def _distil_conv(x, sprev_ref, snext_ref, cw_ref, csh_ref, pmax_ref):
    """ConvLayer: circular Conv1d(k=3) + folded eval-BN + ELU + MaxPool(3,2,1).

    Circular shifts and the strided max-pool are expressed as host-built
    row-selection matrices (MXU matmuls) -> no slices/concats/loops in-kernel.
    """
    xp = jnp.dot(sprev_ref[...], x, preferred_element_type=jnp.float32)
    xn = jnp.dot(snext_ref[...], x, preferred_element_type=jnp.float32)
    y = (jnp.dot(xp, cw_ref[0], preferred_element_type=jnp.float32)
         + jnp.dot(x, cw_ref[1], preferred_element_type=jnp.float32)
         + jnp.dot(xn, cw_ref[2], preferred_element_type=jnp.float32)
         + csh_ref[...])                                    # conv + folded BN
    y = jnp.where(y > 0.0, y, jnp.exp(jnp.minimum(y, 0.0)) - 1.0)   # ELU
    t0 = jnp.dot(pmax_ref[0], y, preferred_element_type=jnp.float32)
    t1 = jnp.dot(pmax_ref[1], y, preferred_element_type=jnp.float32)
    t2 = jnp.dot(pmax_ref[2], y, preferred_element_type=jnp.float32)
    return jnp.maximum(jnp.maximum(t0, t1), t2)             # (B*T2, D)


def _head(x, lnf_ref, fw_ref, fb_ref, wd_ref, bd_ref, nbatch, seq):
    """final encoder LayerNorm + FinalAttentionQKV + decoder Linear(D->1)."""
    # TODO(synk): reference slices output[:, -20:, :]; post-distil seq (=4)
    # is <= 20 here, so the full window is used.  Not implemented for seq>20.
    xn = _layernorm(x, lnf_ref[0], lnf_ref[1])
    q_all = jnp.dot(xn, fw_ref[0], preferred_element_type=jnp.float32) + fb_ref[0]
    k_all = jnp.dot(xn, fw_ref[1], preferred_element_type=jnp.float32) + fb_ref[1]
    v_all = jnp.dot(xn, fw_ref[2], preferred_element_type=jnp.float32) + fb_ref[2]
    wd = wd_ref[...]
    bd = bd_ref[...]
    outs = []
    for b in range(nbatch):
        lo = b * seq
        qb = q_all[lo + seq - 1:lo + seq]                   # (1, D) last step
        kb = k_all[lo:lo + seq]                             # (T2, D)
        vb = v_all[lo:lo + seq]
        # reference FinalAttentionQKV: e = k . q (no scaling), softmax over time
        e = jax.lax.dot_general(qb, kb, (((1,), (1,)), ((), ())),
                                preferred_element_type=jnp.float32)   # (1, T2)
        a = _softmax_last(e)
        ctx = jnp.dot(a, vb, preferred_element_type=jnp.float32)      # (1, D)
        outs.append(jnp.sum(ctx * wd, axis=-1, keepdims=True) + bd)   # (1, 1)
    return jnp.concatenate(outs, axis=0)                    # (B, 1)


# -------------------------------- fused kernel -------------------------------
def fused_transformer_kernel(x_ref, wf_ref, add_ref, neg0_ref, neg1_ref,
                             wqkv0, bqkv0, wo0, bo0, wffn0, bffn0, ln0,
                             cw, csh, sprev, snext, pmax,
                             wqkv1, bqkv1, wo1, bo1, wffn1, bffn1, ln1,
                             lnf, fw, fb, wd, bd,
                             o_ref, *, nbatch, seq):
    # embedding: feature Linear (zero-padded to width D) + (bias + posenc +
    # time2vec) folded into one additive table -> no in-kernel concat.
    x = jnp.dot(x_ref[...], wf_ref[...],
                preferred_element_type=jnp.float32) + add_ref[...]     # (B*T, D)
    # Informer encoder: EncoderLayer -> distil ConvLayer -> EncoderLayer
    x = _encoder_layer(x, neg0_ref[...], wqkv0, bqkv0, wo0, bo0, wffn0, bffn0, ln0)
    x = _distil_conv(x, sprev, snext, cw, csh, pmax)
    seq2 = (seq - 1) // 2 + 1
    x = _encoder_layer(x, neg1_ref[...], wqkv1, bqkv1, wo1, bo1, wffn1, bffn1, ln1)
    # final LayerNorm + FinalAttentionQKV + decoder
    o_ref[...] = _head(x, lnf, fw, fb, wd, bd, nbatch, seq2)


# ---------------------------------- wrapper ----------------------------------
def _transformer_forward(src, params):
    b, t, f = src.shape
    x2 = src.reshape(b * t, f)                              # fold batch -> rows
    out = pl.pallas_call(
        partial(fused_transformer_kernel, nbatch=b, seq=t),
        out_shape=jax.ShapeDtypeStruct((b, 1), jnp.float32),
    )(x2, *params)
    return out[:, 0]                                        # .squeeze() -> (B,)


transformer_forward = jax.jit(_transformer_forward)


# ------------------------------ parameter setup ------------------------------
def init_params(key, batch, seq_len):
    keys = iter(jax.random.split(key, 64))

    def lin(in_dim, out_dim):
        bound = 1.0 / math.sqrt(in_dim)
        w = jax.random.uniform(next(keys), (in_dim, out_dim), jnp.float32, -bound, bound)
        b = jax.random.uniform(next(keys), (1, out_dim), jnp.float32, -bound, bound)
        return w, b

    # ---- embedding: feature Linear + PositionalEncoding + Time2Vec, folded ----
    wf, bf = lin(D_FEAT, D_MODEL0)                          # feature_layer
    pos = jnp.arange(seq_len, dtype=jnp.float32)[:, None]
    div = jnp.exp(jnp.arange(0, D_MODEL0, 2, dtype=jnp.float32)
                  * (-math.log(10000.0) / D_MODEL0))
    pe = jnp.zeros((seq_len, D_MODEL0), jnp.float32)
    pe = pe.at[:, 0::2].set(jnp.sin(pos * div))
    pe = pe.at[:, 1::2].set(jnp.cos(pos * div))
    # Time2Vec('sin', 16)
    # TODO(synk): SineActivation source not provided in the module; standard
    # t2v(sin) parameterisation (w0, b0, w, b) is used.
    tw = jax.random.normal(next(keys), (1, TIME_SIZE - 1), jnp.float32)
    tb = jax.random.normal(next(keys), (1, TIME_SIZE - 1), jnp.float32)
    tw0 = jax.random.normal(next(keys), (1, 1), jnp.float32)
    tb0 = jax.random.normal(next(keys), (1, 1), jnp.float32)
    te = jnp.concatenate([jnp.sin(pos @ tw + tb), pos @ tw0 + tb0], axis=1)

    wf_pad = jnp.pad(wf, ((0, 0), (0, TIME_SIZE)))                      # (6, 24)
    add_tbl = jnp.tile(jnp.concatenate([bf + pe, te], axis=1), (batch, 1))  # (B*T, 24)

    # ---- block-diagonal (per-batch) additive attention masks ----
    seq2 = (seq_len - 1) // 2 + 1
    def batch_mask(t):
        bid = np.repeat(np.arange(batch), t)
        return jnp.asarray(np.where(bid[:, None] == bid[None, :], 0.0, NEG_INF),
                           dtype=jnp.float32)
    neg0 = batch_mask(seq_len)          # (B*T,  B*T)
    neg1 = batch_mask(seq2)             # (B*T2, B*T2)

    # ---- Informer EncoderLayer params (per-head pre-split on the host) ----
    def enc_layer():
        wq, bq = lin(D_MODEL, D_MODEL)
        wk, bk = lin(D_MODEL, D_MODEL)
        wv, bv = lin(D_MODEL, D_MODEL)
        wo, bo = lin(D_MODEL, D_MODEL)
        w1, b1 = lin(D_MODEL, D_FF)     # conv1 (kernel_size=1)
        w2, b2 = lin(D_FF, D_MODEL)     # conv2 (kernel_size=1)
        sw = lambda w: w.reshape(D_MODEL, NHEAD, HEAD_DIM).transpose(1, 0, 2)
        sb = lambda b: b.reshape(NHEAD, 1, HEAD_DIM)
        wqkv = jnp.concatenate([sw(wq), sw(wk), sw(wv)], axis=0)   # (12, D, HD)
        bqkv = jnp.concatenate([sb(bq), sb(bk), sb(bv)], axis=0)   # (12, 1, HD)
        wo_h = wo.reshape(NHEAD, HEAD_DIM, D_MODEL)                # (4, HD, D)
        wffn = jnp.stack([w1, w2])                                 # (2, D, D)
        bffn = jnp.stack([b1, b2])                                 # (2, 1, D)
        ln = jnp.stack([jnp.ones((1, D_MODEL), jnp.float32),
                        jnp.zeros((1, D_MODEL), jnp.float32),
                        jnp.ones((1, D_MODEL), jnp.float32),
                        jnp.zeros((1, D_MODEL), jnp.float32)])     # (4, 1, D)
        return (wqkv, bqkv, wo_h, bo, wffn, bffn, ln)

    enc0 = enc_layer()
    enc1 = enc_layer()

    # ---- distil ConvLayer: Conv1d(24,24,3,circular) + folded eval BatchNorm ----
    fan_in = D_MODEL * 3
    cbound = 1.0 / math.sqrt(fan_in)
    wtaps = jax.random.uniform(next(keys), (3, D_MODEL, D_MODEL), jnp.float32,
                               -cbound, cbound)
    cb = jax.random.uniform(next(keys), (1, D_MODEL), jnp.float32, -cbound, cbound)
    # eval-mode BN with init running stats (mean=0, var=1), folded into the conv
    bn_scale = jnp.full((1, D_MODEL), 1.0 / math.sqrt(1.0 + BN_EPS), jnp.float32)
    bn_shift = jnp.zeros((1, D_MODEL), jnp.float32)
    cw = wtaps * bn_scale[None]                   # per-output-channel scaling
    csh = cb * bn_scale + bn_shift                # (1, D)

    # ---- structural row-selection matrices (circular shift + max-pool taps) ----
    R0 = batch * seq_len
    Rp = batch * seq2
    sprev = np.zeros((R0, R0), np.float32)
    snext = np.zeros((R0, R0), np.float32)
    for b in range(batch):
        for t in range(seq_len):
            i = b * seq_len + t
            sprev[i, b * seq_len + (t - 1) % seq_len] = 1.0
            snext[i, b * seq_len + (t + 1) % seq_len] = 1.0
    pmax = np.zeros((3, Rp, R0), np.float32)
    for b in range(batch):
        for i in range(seq2):
            r = b * seq2 + i
            c = 2 * i
            # out-of-range taps (maxpool padding) are pointed at the centre tap,
            # which leaves the max unchanged (== PyTorch's -inf padding).
            pmax[0, r, b * seq_len + max(c - 1, 0)] = 1.0
            pmax[1, r, b * seq_len + c] = 1.0
            pmax[2, r, b * seq_len + min(c + 1, seq_len - 1)] = 1.0
    sprev = jnp.asarray(sprev)
    snext = jnp.asarray(snext)
    pmax = jnp.asarray(pmax)

    # ---- final encoder LayerNorm + FinalAttentionQKV + decoder Linear ----
    lnf = jnp.stack([jnp.ones((1, D_MODEL), jnp.float32),
                     jnp.zeros((1, D_MODEL), jnp.float32)])        # (2, 1, D)
    fwq, fbq = lin(D_MODEL, D_MODEL)
    fwk, fbk = lin(D_MODEL, D_MODEL)
    fwv, fbv = lin(D_MODEL, D_MODEL)
    fw = jnp.stack([fwq, fwk, fwv])                                # (3, D, D)
    fb = jnp.stack([fbq, fbk, fbv])                                # (3, 1, D)
    dbound = 1.0 / math.sqrt(D_MODEL)
    wd = jax.random.uniform(next(keys), (1, D_MODEL), jnp.float32, -dbound, dbound)
    bd = jax.random.uniform(next(keys), (1, 1), jnp.float32, -dbound, dbound)

    return (wf_pad, add_tbl, neg0, neg1,
            *enc0,
            cw, csh, sprev, snext, pmax,
            *enc1,
            lnf, fw, fb, wd, bd)


if __name__ == "__main__":
    key = jax.random.PRNGKey(0)
    k_in, k_par = jax.random.split(key)
    B, T = 2, 8                                  # (batch, seq) ; d_feat = 6
    src = jax.random.normal(k_in, (B, T, D_FEAT), jnp.float32)
    params = init_params(k_par, B, T)

    out = transformer_forward(src, params)
    out = jax.block_until_ready(out)

    assert out.shape == (B,), out.shape
    assert bool(jnp.all(jnp.isfinite(out)))
    print("KERNEL_OK")
</pallas_src>

<mosaic_0001>
module attributes {stable_mosaic.version = 11 : i64} {
  func.func @fused_transformer_kernel(%arg0: memref<16x6xf32, #tpu.memory_space<vmem>>, %arg1: memref<6x24xf32, #tpu.memory_space<vmem>>, %arg2: memref<16x24xf32, #tpu.memory_space<vmem>>, %arg3: memref<16x16xf32, #tpu.memory_space<vmem>>, %arg4: memref<8x8xf32, #tpu.memory_space<vmem>>, %arg5: memref<12x24x6xf32, #tpu.memory_space<vmem>>, %arg6: memref<12x1x6xf32, #tpu.memory_space<vmem>>, %arg7: memref<4x6x24xf32, #tpu.memory_space<vmem>>, %arg8: memref<1x24xf32, #tpu.memory_space<vmem>>, %arg9: memref<2x24x24xf32, #tpu.memory_space<vmem>>, %arg10: memref<2x1x24xf32, #tpu.memory_space<vmem>>, %arg11: memref<4x1x24xf32, #tpu.memory_space<vmem>>, %arg12: memref<3x24x24xf32, #tpu.memory_space<vmem>>, %arg13: memref<1x24xf32, #tpu.memory_space<vmem>>, %arg14: memref<16x16xf32, #tpu.memory_space<vmem>>, %arg15: memref<16x16xf32, #tpu.memory_space<vmem>>, %arg16: memref<3x8x16xf32, #tpu.memory_space<vmem>>, %arg17: memref<12x24x6xf32, #tpu.memory_space<vmem>>, %arg18: memref<12x1x6xf32, #tpu.memory_space<vmem>>, %arg19: memref<4x6x24xf32, #tpu.memory_space<vmem>>, %arg20: memref<1x24xf32, #tpu.memory_space<vmem>>, %arg21: memref<2x24x24xf32, #tpu.memory_space<vmem>>, %arg22: memref<2x1x24xf32, #tpu.memory_space<vmem>>, %arg23: memref<4x1x24xf32, #tpu.memory_space<vmem>>, %arg24: memref<2x1x24xf32, #tpu.memory_space<vmem>>, %arg25: memref<3x24x24xf32, #tpu.memory_space<vmem>>, %arg26: memref<3x1x24xf32, #tpu.memory_space<vmem>>, %arg27: memref<1x24xf32, #tpu.memory_space<vmem>>, %arg28: memref<1x1xf32, #tpu.memory_space<vmem>>, %arg29: memref<2x1xf32, #tpu.memory_space<vmem>>) attributes {dimension_semantics = [], scalar_prefetch = 0 : i64, scratch_operands = 0 : i64, tpu.core_type = #tpu.core_type<tc>} {
    %c0 = arith.constant 0 : index
    %c0_0 = arith.constant 0 : index
    %0 = vector.load %arg0[%c0, %c0_0] : memref<16x6xf32, #tpu.memory_space<vmem>>, vector<16x6xf32>
    %c0_1 = arith.constant 0 : index
    %c0_2 = arith.constant 0 : index
    %1 = vector.load %arg1[%c0_1, %c0_2] : memref<6x24xf32, #tpu.memory_space<vmem>>, vector<6x24xf32>
    %cst = arith.constant dense<0.000000e+00> : vector<16x24xf32>
    %2 = tpu.matmul %0, %1, %cst {dimension_numbers = #tpu.dot_dimension_numbers<[1], [0], [0], [1], [0, 0, 1, 1], [], []>} : vector<16x6xf32>, vector<6x24xf32>, vector<16x24xf32> -> vector<16x24xf32>
    %c0_3 = arith.constant 0 : index
    %c0_4 = arith.constant 0 : index
    %3 = vector.load %arg2[%c0_3, %c0_4] : memref<16x24xf32, #tpu.memory_space<vmem>>, vector<16x24xf32>
    %4 = arith.addf %2, %3 : vector<16x24xf32>
    %c0_5 = arith.constant 0 : index
    %c0_6 = arith.constant 0 : index
    %5 = vector.load %arg3[%c0_5, %c0_6] : memref<16x16xf32, #tpu.memory_space<vmem>>, vector<16x16xf32>
    %c0_7 = arith.constant 0 : index
    %c0_8 = arith.constant 0 : index
    %6 = vector.load %arg8[%c0_7, %c0_8] : memref<1x24xf32, #tpu.memory_space<vmem>>, vector<1x24xf32>
    %c0_9 = arith.constant 0 : index
    %c0_10 = arith.constant 0 : index
    %c0_11 = arith.constant 0 : index
    %7 = vector.load %arg5[%c0_9, %c0_10, %c0_11] : memref<12x24x6xf32, #tpu.memory_space<vmem>>, vector<1x24x6xf32>
    %8 = vector.shape_cast %7 : vector<1x24x6xf32> to vector<24x6xf32>
    %cst_12 = arith.constant dense<0.000000e+00> : vector<16x6xf32>
    %9 = tpu.matmul %4, %8, %cst_12 {dimension_numbers = #tpu.dot_dimension_numbers<[1], [0], [0], [1], [0, 0, 1, 1], [], []>} : vector<16x24xf32>, vector<24x6xf32>, vector<16x6xf32> -> vector<16x6xf32>
    %c0_13 = arith.constant 0 : index
    %c0_14 = arith.constant 0 : index
    %c0_15 = arith.constant 0 : index
    %10 = vector.load %arg6[%c0_13, %c0_14, %c0_15] : memref<12x1x6xf32, #tpu.memory_space<vmem>>, vector<1x1x6xf32>
    %11 = vector.shape_cast %10 : vector<1x1x6xf32> to vector<1x6xf32>
    %12 = vector.broadcast %11 : vector<1x6xf32> to vector<16x6xf32>
    %13 = arith.addf %9, %12 : vector<16x6xf32>
    %c4 = arith.constant 4 : index
    %c0_16 = arith.constant 0 : index
    %c0_17 = arith.constant 0 : index
    %14 = vector.load %arg5[%c4, %c0_16, %c0_17] : memref<12x24x6xf32, #tpu.memory_space<vmem>>, vector<1x24x6xf32>
    %15 = vector.shape_cast %14 : vector<1x24x6xf32> to vector<24x6xf32>
    %cst_18 = arith.constant dense<0.000000e+00> : vector<16x6xf32>
    %16 = tpu.matmul %4, %15, %cst_18 {dimension_numbers = #tpu.dot_dimension_numbers<[1], [0], [0], [1], [0, 0, 1, 1], [], []>} : vector<16x24xf32>, vector<24x6xf32>, vector<16x6xf32> -> vector<16x6xf32>
    %c4_19 = arith.constant 4 : index
    %c0_20 = arith.constant 0 : index
    %c0_21 = arith.constant 0 : index
    %17 = vector.load %arg6[%c4_19, %c0_20, %c0_21] : memref<12x1x6xf32, #tpu.memory_space<vmem>>, vector<1x1x6xf32>
    %18 = vector.shape_cast %17 : vector<1x1x6xf32> to vector<1x6xf32>
    %19 = vector.broadcast %18 : vector<1x6xf32> to vector<16x6xf32>
    %20 = arith.addf %16, %19 : vector<16x6xf32>
    %c8 = arith.constant 8 : index
    %c0_22 = arith.constant 0 : index
    %c0_23 = arith.constant 0 : index
    %21 = vector.load %arg5[%c8, %c0_22, %c0_23] : memref<12x24x6xf32, #tpu.memory_space<vmem>>, vector<1x24x6xf32>
    %22 = vector.shape_cast %21 : vector<1x24x6xf32> to vector<24x6xf32>
    %cst_24 = arith.constant dense<0.000000e+00> : vector<16x6xf32>
    %23 = tpu.matmul %4, %22, %cst_24 {dimension_numbers = #tpu.dot_dimension_numbers<[1], [0], [0], [1], [0, 0, 1, 1], [], []>} : vector<16x24xf32>, vector<24x6xf32>, vector<16x6xf32> -> vector<16x6xf32>
    %c8_25 = arith.constant 8 : index
    %c0_26 = arith.constant 0 : index
    %c0_27 = arith.constant 0 : index
    %24 = vector.load %arg6[%c8_25, %c0_26, %c0_27] : memref<12x1x6xf32, #tpu.memory_space<vmem>>, vector<1x1x6xf32>
    %25 = vector.shape_cast %24 : vector<1x1x6xf32> to vector<1x6xf32>
    %26 = vector.broadcast %25 : vector<1x6xf32> to vector<16x6xf32>
    %27 = arith.addf %23, %26 : vector<16x6xf32>
    %cst_28 = arith.constant dense<0.000000e+00> : vector<16x16xf32>
    %28 = tpu.matmul %13, %20, %cst_28 {dimension_numbers = #tpu.dot_dimension_numbers<[1], [1], [0], [0], [0, 0, 1, 0], [], []>} : vector<16x6xf32>, vector<16x6xf32>, vector<16x16xf32> -> vector<16x16xf32>
    %cst_29 = arith.constant 0.408248305 : f32
    %29 = vector.broadcast %cst_29 : f32 to vector<16x16xf32>
    %30 = arith.mulf %28, %29 : vector<16x16xf32>
    %31 = arith.addf %30, %5 : vector<16x16xf32>
    %cst_30 = arith.constant dense<0xFF800000> : vector<16xf32>
    %32 = vector.multi_reduction <maximumf>, %31, %cst_30 [1] : vector<16x16xf32> to vector<16xf32>
    %33 = vector.shape_cast %32 : vector<16xf32> to vector<16x1xf32>
    %34 = vector.broadcast %33 : vector<16x1xf32> to vector<16x16xf32>
    %35 = arith.subf %31, %34 : vector<16x16xf32>
    %36 = math.exp %35 : vector<16x16xf32>
    %cst_31 = arith.constant dense<0.000000e+00> : vector<16xf32>
    %37 = vector.multi_reduction <add>, %36, %cst_31 [1] : vector<16x16xf32> to vector<16xf32>
    %38 = vector.shape_cast %37 : vector<16xf32> to vector<16x1xf32>
    %39 = vector.broadcast %38 : vector<16x1xf32> to vector<16x16xf32>
    %40 = arith.divf %36, %39 : vector<16x16xf32>
    %cst_32 = arith.constant dense<0.000000e+00> : vector<16x6xf32>
    %41 = tpu.matmul %40, %27, %cst_32 {dimension_numbers = #tpu.dot_dimension_numbers<[1], [0], [0], [1], [0, 0, 1, 1], [], []>} : vector<16x16xf32>, vector<16x6xf32>, vector<16x6xf32> -> vector<16x6xf32>
    %c0_33 = arith.constant 0 : index
    %c0_34 = arith.constant 0 : index
    %c0_35 = arith.constant 0 : index
    %42 = vector.load %arg7[%c0_33, %c0_34, %c0_35] : memref<4x6x24xf32, #tpu.memory_space<vmem>>, vector<1x6x24xf32>
    %43 = vector.shape_cast %42 : vector<1x6x24xf32> to vector<6x24xf32>
    %cst_36 = arith.constant dense<0.000000e+00> : vector<16x24xf32>
    %44 = tpu.matmul %41, %43, %cst_36 {dimension_numbers = #tpu.dot_dimension_numbers<[1], [0], [0], [1], [0, 0, 1, 1], [], []>} : vector<16x6xf32>, vector<6x24xf32>, vector<16x24xf32> -> vector<16x24xf32>
    %45 = vector.broadcast %6 : vector<1x24xf32> to vector<16x24xf32>
    %46 = arith.addf %45, %44 : vector<16x24xf32>
    %c1 = arith.constant 1 : index
    %c0_37 = arith.constant 0 : index
    %c0_38 = arith.constant 0 : index
    %47 = vector.load %arg5[%c1, %c0_37, %c0_38] : memref<12x24x6xf32, #tpu.memory_space<vmem>>, vector<1x24x6xf32>
    %48 = vector.shape_cast %47 : vector<1x24x6xf32> to vector<24x6xf32>
    %cst_39 = arith.constant dense<0.000000e+00> : vector<16x6xf32>
    %49 = tpu.matmul %4, %48, %cst_39 {dimension_numbers = #tpu.dot_dimension_numbers<[1], [0], [0], [1], [0, 0, 1, 1], [], []>} : vector<16x24xf32>, vector<24x6xf32>, vector<16x6xf32> -> vector<16x6xf32>
    %c1_40 = arith.constant 1 : index
    %c0_41 = arith.constant 0 : index
    %c0_42 = arith.constant 0 : index
    %50 = vector.load %arg6[%c1_40, %c0_41, %c0_42] : memref<12x1x6xf32, #tpu.memory_space<vmem>>, vector<1x1x6xf32>
    %51 = vector.shape_cast %50 : vector<1x1x6xf32> to vector<1x6xf32>
    %52 = vector.broadcast %51 : vector<1x6xf32> to vector<16x6xf32>
    %53 = arith.addf %49, %52 : vector<16x6xf32>
    %c5 = arith.constant 5 : index
    %c0_43 = arith.constant 0 : index
    %c0_44 = arith.constant 0 : index
    %54 = vector.load %arg5[%c5, %c0_43, %c0_44] : memref<12x24x6xf32, #tpu.memory_space<vmem>>, vector<1x24x6xf32>
    %55 = vector.shape_cast %54 : vector<1x24x6xf32> to vector<24x6xf32>
    %cst_45 = arith.constant dense<0.000000e+00> : vector<16x6xf32>
    %56 = tpu.matmul %4, %55, %cst_45 {dimension_numbers = #tpu.dot_dimension_numbers<[1], [0], [0], [1], [0, 0, 1, 1], [], []>} : vector<16x24xf32>, vector<24x6xf32>, vector<16x6xf32> -> vector<16x6xf32>
    %c5_46 = arith.constant 5 : index
    %c0_47 = arith.constant 0 : index
    %c0_48 = arith.constant 0 : index
    %57 = vector.load %arg6[%c5_46, %c0_47, %c0_48] : memref<12x1x6xf32, #tpu.memory_space<vmem>>, vector<1x1x6xf32>
    %58 = vector.shape_cast %57 : vector<1x1x6xf32> to vector<1x6xf32>
    %59 = vector.broadcast %58 : vector<1x6xf32> to vector<16x6xf32>
    %60 = arith.addf %56, %59 : vector<16x6xf32>
    %c9 = arith.constant 9 : index
    %c0_49 = arith.constant 0 : index
    %c0_50 = arith.constant 0 : index
    %61 = vector.load %arg5[%c9, %c0_49, %c0_50] : memref<12x24x6xf32, #tpu.memory_space<vmem>>, vector<1x24x6xf32>
    %62 = vector.shape_cast %61 : vector<1x24x6xf32> to vector<24x6xf32>
    %cst_51 = arith.constant dense<0.000000e+00> : vector<16x6xf32>
    %63 = tpu.matmul %4, %62, %cst_51 {dimension_numbers = #tpu.dot_dimension_numbers<[1], [0], [0], [1], [0, 0, 1, 1], [], []>} : vector<16x24xf32>, vector<24x6xf32>, vector<16x6xf32> -> vector<16x6xf32>
    %c9_52 = arith.constant 9 : index
    %c0_53 = arith.constant 0 : index
    %c0_54 = arith.constant 0 : index
    %64 = vector.load %arg6[%c9_52, %c0_53, %c0_54] : memref<12x1x6xf32, #tpu.memory_space<vmem>>, vector<1x1x6xf32>
    %65 = vector.shape_cast %64 : vector<1x1x6xf32> to vector<1x6xf32>
    %66 = vector.broadcast %65 : vector<1x6xf32> to vector<16x6xf32>
    %67 = arith.addf %63, %66 : vector<16x6xf32>
    %cst_55 = arith.constant dense<0.000000e+00> : vector<16x16xf32>
    %68 = tpu.matmul %53, %60, %cst_55 {dimension_numbers = #tpu.dot_dimension_numbers<[1], [1], [0], [0], [0, 0, 1, 0], [], []>} : vector<16x6xf32>, vector<16x6xf32>, vector<16x16xf32> -> vector<16x16xf32>
    %cst_56 = arith.constant 0.408248305 : f32
    %69 = vector.broadcast %cst_56 : f32 to vector<16x16xf32>
    %70 = arith.mulf %68, %69 : vector<16x16xf32>
    %71 = arith.addf %70, %5 : vector<16x16xf32>
    %cst_57 = arith.constant dense<0xFF800000> : vector<16xf32>
    %72 = vector.multi_reduction <maximumf>, %71, %cst_57 [1] : vector<16x16xf32> to vector<16xf32>
    %73 = vector.shape_cast %72 : vector<16xf32> to vector<16x1xf32>
    %74 = vector.broadcast %73 : vector<16x1xf32> to vector<16x16xf32>
    %75 = arith.subf %71, %74 : vector<16x16xf32>
    %76 = math.exp %75 : vector<16x16xf32>
    %cst_58 = arith.constant dense<0.000000e+00> : vector<16xf32>
    %77 = vector.multi_reduction <add>, %76, %cst_58 [1] : vector<16x16xf32> to vector<16xf32>
    %78 = vector.shape_cast %77 : vector<16xf32> to vector<16x1xf32>
    %79 = vector.broadcast %78 : vector<16x1xf32> to vector<16x16xf32>
    %80 = arith.divf %76, %79 : vector<16x16xf32>
    %cst_59 = arith.constant dense<0.000000e+00> : vector<16x6xf32>
    %81 = tpu.matmul %80, %67, %cst_59 {dimension_numbers = #tpu.dot_dimension_numbers<[1], [0], [0], [1], [0, 0, 1, 1], [], []>} : vector<16x16xf32>, vector<16x6xf32>, vector<16x6xf32> -> vector<16x6xf32>
    %c1_60 = arith.constant 1 : index
    %c0_61 = arith.constant 0 : index
    %c0_62 = arith.constant 0 : index
    %82 = vector.load %arg7[%c1_60, %c0_61, %c0_62] : memref<4x6x24xf32, #tpu.memory_space<vmem>>, vector<1x6x24xf32>
    %83 = vector.shape_cast %82 : vector<1x6x24xf32> to vector<6x24xf32>
    %cst_63 = arith.constant dense<0.000000e+00> : vector<16x24xf32>
    %84 = tpu.matmul %81, %83, %cst_63 {dimension_numbers = #tpu.dot_dimension_numbers<[1], [0], [0], [1], [0, 0, 1, 1], [], []>} : vector<16x6xf32>, vector<6x24xf32>, vector<16x24xf32> -> vector<16x24xf32>
    %85 = arith.addf %46, %84 : vector<16x24xf32>
    %c2 = arith.constant 2 : index
    %c0_64 = arith.constant 0 : index
    %c0_65 = arith.constant 0 : index
    %86 = vector.load %arg5[%c2, %c0_64, %c0_65] : memref<12x24x6xf32, #tpu.memory_space<vmem>>, vector<1x24x6xf32>
    %87 = vector.shape_cast %86 : vector<1x24x6xf32> to vector<24x6xf32>
    %cst_66 = arith.constant dense<0.000000e+00> : vector<16x6xf32>
    %88 = tpu.matmul %4, %87, %cst_66 {dimension_numbers = #tpu.dot_dimension_numbers<[1], [0], [0], [1], [0, 0, 1, 1], [], []>} : vector<16x24xf32>, vector<24x6xf32>, vector<16x6xf32> -> vector<16x6xf32>
    %c2_67 = arith.constant 2 : index
    %c0_68 = arith.constant 0 : index
    %c0_69 = arith.constant 0 : index
    %89 = vector.load %arg6[%c2_67, %c0_68, %c0_69] : memref<12x1x6xf32, #tpu.memory_space<vmem>>, vector<1x1x6xf32>
    %90 = vector.shape_cast %89 : vector<1x1x6xf32> to vector<1x6xf32>
    %91 = vector.broadcast %90 : vector<1x6xf32> to vector<16x6xf32>
    %92 = arith.addf %88, %91 : vector<16x6xf32>
    %c6 = arith.constant 6 : index
    %c0_70 = arith.constant 0 : index
    %c0_71 = arith.constant 0 : index
    %93 = vector.load %arg5[%c6, %c0_70, %c0_71] : memref<12x24x6xf32, #tpu.memory_space<vmem>>, vector<1x24x6xf32>
    %94 = vector.shape_cast %93 : vector<1x24x6xf32> to vector<24x6xf32>
    %cst_72 = arith.constant dense<0.000000e+00> : vector<16x6xf32>
    %95 = tpu.matmul %4, %94, %cst_72 {dimension_numbers = #tpu.dot_dimension_numbers<[1], [0], [0], [1], [0, 0, 1, 1], [], []>} : vector<16x24xf32>, vector<24x6xf32>, vector<16x6xf32> -> vector<16x6xf32>
    %c6_73 = arith.constant 6 : index
    %c0_74 = arith.constant 0 : index
    %c0_75 = arith.constant 0 : index
    %96 = vector.load %arg6[%c6_73, %c0_74, %c0_75] : memref<12x1x6xf32, #tpu.memory_space<vmem>>, vector<1x1x6xf32>
    %97 = vector.shape_cast %96 : vector<1x1x6xf32> to vector<1x6xf32>
    %98 = vector.broadcast %97 : vector<1x6xf32> to vector<16x6xf32>
    %99 = arith.addf %95, %98 : vector<16x6xf32>
    %c10 = arith.constant 10 : index
    %c0_76 = arith.constant 0 : index
    %c0_77 = arith.constant 0 : index
    %100 = vector.load %arg5[%c10, %c0_76, %c0_77] : memref<12x24x6xf32, #tpu.memory_space<vmem>>, vector<1x24x6xf32>
    %101 = vector.shape_cast %100 : vector<1x24x6xf32> to vector<24x6xf32>
    %cst_78 = arith.constant dense<0.000000e+00> : vector<16x6xf32>
    %102 = tpu.matmul %4, %101, %cst_78 {dimension_numbers = #tpu.dot_dimension_numbers<[1], [0], [0], [1], [0, 0, 1, 1], [], []>} : vector<16x24xf32>, vector<24x6xf32>, vector<16x6xf32> -> vector<16x6xf32>
    %c10_79 = arith.constant 10 : index
    %c0_80 = arith.constant 0 : index
    %c0_81 = arith.constant 0 : index
    %103 = vector.load %arg6[%c10_79, %c0_80, %c0_81] : memref<12x1x6xf32, #tpu.memory_space<vmem>>, vector<1x1x6xf32>
    %104 = vector.shape_cast %103 : vector<1x1x6xf32> to vector<1x6xf32>
    %105 = vector.broadcast %104 : vector<1x6xf32> to vector<16x6xf32>
    %106 = arith.addf %102, %105 : vector<16x6xf32>
    %cst_82 = arith.constant dense<0.000000e+00> : vector<16x16xf32>
    %107 = tpu.matmul %92, %99, %cst_82 {dimension_numbers = #tpu.dot_dimension_numbers<[1], [1], [0], [0], [0, 0, 1, 0], [], []>} : vector<16x6xf32>, vector<16x6xf32>, vector<16x16xf32> -> vector<16x16xf32>
    %cst_83 = arith.constant 0.408248305 : f32
    %108 = vector.broadcast %cst_83 : f32 to vector<16x16xf32>
    %109 = arith.mulf %107, %108 : vector<16x16xf32>
    %110 = arith.addf %109, %5 : vector<16x16xf32>
    %cst_84 = arith.constant dense<0xFF800000> : vector<16xf32>
    %111 = vector.multi_reduction <maximumf>, %110, %cst_84 [1] : vector<16x16xf32> to vector<16xf32>
    %112 = vector.shape_cast %111 : vector<16xf32> to vector<16x1xf32>
    %113 = vector.broadcast %112 : vector<16x1xf32> to vector<16x16xf32>
    %114 = arith.subf %110, %113 : vector<16x16xf32>
    %115 = math.exp %114 : vector<16x16xf32>
    %cst_85 = arith.constant dense<0.000000e+00> : vector<16xf32>
    %116 = vector.multi_reduction <add>, %115, %cst_85 [1] : vector<16x16xf32> to vector<16xf32>
    %117 = vector.shape_cast %116 : vector<16xf32> to vector<16x1xf32>
    %118 = vector.broadcast %117 : vector<16x1xf32> to vector<16x16xf32>
    %119 = arith.divf %115, %118 : vector<16x16xf32>
    %cst_86 = arith.constant dense<0.000000e+00> : vector<16x6xf32>
    %120 = tpu.matmul %119, %106, %cst_86 {dimension_numbers = #tpu.dot_dimension_numbers<[1], [0], [0], [1], [0, 0, 1, 1], [], []>} : vector<16x16xf32>, vector<16x6xf32>, vector<16x6xf32> -> vector<16x6xf32>
    %c2_87 = arith.constant 2 : index
    %c0_88 = arith.constant 0 : index
    %c0_89 = arith.constant 0 : index
    %121 = vector.load %arg7[%c2_87, %c0_88, %c0_89] : memref<4x6x24xf32, #tpu.memory_space<vmem>>, vector<1x6x24xf32>
    %122 = vector.shape_cast %121 : vector<1x6x24xf32> to vector<6x24xf32>
    %cst_90 = arith.constant dense<0.000000e+00> : vector<16x24xf32>
    %123 = tpu.matmul %120, %122, %cst_90 {dimension_numbers = #tpu.dot_dimension_numbers<[1], [0], [0], [1], [0, 0, 1, 1], [], []>} : vector<16x6xf32>, vector<6x24xf32>, vector<16x24xf32> -> vector<16x24xf32>
    %124 = arith.addf %85, %123 : vector<16x24xf32>
    %c3 = arith.constant 3 : index
    %c0_91 = arith.constant 0 : index
    %c0_92 = arith.constant 0 : index
    %125 = vector.load %arg5[%c3, %c0_91, %c0_92] : memref<12x24x6xf32, #tpu.memory_space<vmem>>, vector<1x24x6xf32>
    %126 = vector.shape_cast %125 : vector<1x24x6xf32> to vector<24x6xf32>
    %cst_93 = arith.constant dense<0.000000e+00> : vector<16x6xf32>
    %127 = tpu.matmul %4, %126, %cst_93 {dimension_numbers = #tpu.dot_dimension_numbers<[1], [0], [0], [1], [0, 0, 1, 1], [], []>} : vector<16x24xf32>, vector<24x6xf32>, vector<16x6xf32> -> vector<16x6xf32>
    %c3_94 = arith.constant 3 : index
    %c0_95 = arith.constant 0 : index
    %c0_96 = arith.constant 0 : index
    %128 = vector.load %arg6[%c3_94, %c0_95, %c0_96] : memref<12x1x6xf32, #tpu.memory_space<vmem>>, vector<1x1x6xf32>
    %129 = vector.shape_cast %128 : vector<1x1x6xf32> to vector<1x6xf32>
    %130 = vector.broadcast %129 : vector<1x6xf32> to vector<16x6xf32>
    %131 = arith.addf %127, %130 : vector<16x6xf32>
    %c7 = arith.constant 7 : index
    %c0_97 = arith.constant 0 : index
    %c0_98 = arith.constant 0 : index
    %132 = vector.load %arg5[%c7, %c0_97, %c0_98] : memref<12x24x6xf32, #tpu.memory_space<vmem>>, vector<1x24x6xf32>
    %133 = vector.shape_cast %132 : vector<1x24x6xf32> to vector<24x6xf32>
    %cst_99 = arith.constant dense<0.000000e+00> : vector<16x6xf32>
    %134 = tpu.matmul %4, %133, %cst_99 {dimension_numbers = #tpu.dot_dimension_numbers<[1], [0], [0], [1], [0, 0, 1, 1], [], []>} : vector<16x24xf32>, vector<24x6xf32>, vector<16x6xf32> -> vector<16x6xf32>
    %c7_100 = arith.constant 7 : index
    %c0_101 = arith.constant 0 : index
    %c0_102 = arith.constant 0 : index
    %135 = vector.load %arg6[%c7_100, %c0_101, %c0_102] : memref<12x1x6xf32, #tpu.memory_space<vmem>>, vector<1x1x6xf32>
    %136 = vector.shape_cast %135 : vector<1x1x6xf32> to vector<1x6xf32>
    %137 = vector.broadcast %136 : vector<1x6xf32> to vector<16x6xf32>
    %138 = arith.addf %134, %137 : vector<16x6xf32>
    %c11 = arith.constant 11 : index
    %c0_103 = arith.constant 0 : index
    %c0_104 = arith.constant 0 : index
    %139 = vector.load %arg5[%c11, %c0_103, %c0_104] : memref<12x24x6xf32, #tpu.memory_space<vmem>>, vector<1x24x6xf32>
    %140 = vector.shape_cast %139 : vector<1x24x6xf32> to vector<24x6xf32>
    %cst_105 = arith.constant dense<0.000000e+00> : vector<16x6xf32>
    %141 = tpu.matmul %4, %140, %cst_105 {dimension_numbers = #tpu.dot_dimension_numbers<[1], [0], [0], [1], [0, 0, 1, 1], [], []>} : vector<16x24xf32>, vector<24x6xf32>, vector<16x6xf32> -> vector<16x6xf32>
    %c11_106 = arith.constant 11 : index
    %c0_107 = arith.constant 0 : index
    %c0_108 = arith.constant 0 : index
    %142 = vector.load %arg6[%c11_106, %c0_107, %c0_108] : memref<12x1x6xf32, #tpu.memory_space<vmem>>, vector<1x1x6xf32>
    %143 = vector.shape_cast %142 : vector<1x1x6xf32> to vector<1x6xf32>
    %144 = vector.broadcast %143 : vector<1x6xf32> to vector<16x6xf32>
    %145 = arith.addf %141, %144 : vector<16x6xf32>
    %cst_109 = arith.constant dense<0.000000e+00> : vector<16x16xf32>
    %146 = tpu.matmul %131, %138, %cst_109 {dimension_numbers = #tpu.dot_dimension_numbers<[1], [1], [0], [0], [0, 0, 1, 0], [], []>} : vector<16x6xf32>, vector<16x6xf32>, vector<16x16xf32> -> vector<16x16xf32>
    %cst_110 = arith.constant 0.408248305 : f32
    %147 = vector.broadcast %cst_110 : f32 to vector<16x16xf32>
    %148 = arith.mulf %146, %147 : vector<16x16xf32>
    %149 = arith.addf %148, %5 : vector<16x16xf32>
    %cst_111 = arith.constant dense<0xFF800000> : vector<16xf32>
    %150 = vector.multi_reduction <maximumf>, %149, %cst_111 [1] : vector<16x16xf32> to vector<16xf32>
    %151 = vector.shape_cast %150 : vector<16xf32> to vector<16x1xf32>
    %152 = vector.broadcast %151 : vector<16x1xf32> to vector<16x16xf32>
    %153 = arith.subf %149, %152 : vector<16x16xf32>
    %154 = math.exp %153 : vector<16x16xf32>
    %cst_112 = arith.constant dense<0.000000e+00> : vector<16xf32>
    %155 = vector.multi_reduction <add>, %154, %cst_112 [1] : vector<16x16xf32> to vector<16xf32>
    %156 = vector.shape_cast %155 : vector<16xf32> to vector<16x1xf32>
    %157 = vector.broadcast %156 : vector<16x1xf32> to vector<16x16xf32>
    %158 = arith.divf %154, %157 : vector<16x16xf32>
    %cst_113 = arith.constant dense<0.000000e+00> : vector<16x6xf32>
    %159 = tpu.matmul %158, %145, %cst_113 {dimension_numbers = #tpu.dot_dimension_numbers<[1], [0], [0], [1], [0, 0, 1, 1], [], []>} : vector<16x16xf32>, vector<16x6xf32>, vector<16x6xf32> -> vector<16x6xf32>
    %c3_114 = arith.constant 3 : index
    %c0_115 = arith.constant 0 : index
    %c0_116 = arith.constant 0 : index
    %160 = vector.load %arg7[%c3_114, %c0_115, %c0_116] : memref<4x6x24xf32, #tpu.memory_space<vmem>>, vector<1x6x24xf32>
    %161 = vector.shape_cast %160 : vector<1x6x24xf32> to vector<6x24xf32>
    %cst_117 = arith.constant dense<0.000000e+00> : vector<16x24xf32>
    %162 = tpu.matmul %159, %161, %cst_117 {dimension_numbers = #tpu.dot_dimension_numbers<[1], [0], [0], [1], [0, 0, 1, 1], [], []>} : vector<16x6xf32>, vector<6x24xf32>, vector<16x24xf32> -> vector<16x24xf32>
    %163 = arith.addf %124, %162 : vector<16x24xf32>
    %164 = arith.addf %4, %163 : vector<16x24xf32>
    %c0_118 = arith.constant 0 : index
    %c0_119 = arith.constant 0 : index
    %c0_120 = arith.constant 0 : index
    %165 = vector.load %arg11[%c0_118, %c0_119, %c0_120] : memref<4x1x24xf32, #tpu.memory_space<vmem>>, vector<1x1x24xf32>
    %166 = vector.shape_cast %165 : vector<1x1x24xf32> to vector<1x24xf32>
    %c1_121 = arith.constant 1 : index
    %c0_122 = arith.constant 0 : index
    %c0_123 = arith.constant 0 : index
    %167 = vector.load %arg11[%c1_121, %c0_122, %c0_123] : memref<4x1x24xf32, #tpu.memory_space<vmem>>, vector<1x1x24xf32>
    %168 = vector.shape_cast %167 : vector<1x1x24xf32> to vector<1x24xf32>
    %cst_124 = arith.constant dense<0.000000e+00> : vector<16xf32>
    %169 = vector.multi_reduction <add>, %164, %cst_124 [1] : vector<16x24xf32> to vector<16xf32>
    %170 = vector.shape_cast %169 : vector<16xf32> to vector<16x1xf32>
    %cst_125 = arith.constant 2.400000e+01 : f32
    %171 = vector.broadcast %cst_125 : f32 to vector<16x1xf32>
    %172 = arith.divf %170, %171 : vector<16x1xf32>
    %173 = vector.broadcast %172 : vector<16x1xf32> to vector<16x24xf32>
    %174 = arith.subf %164, %173 : vector<16x24xf32>
    %175 = arith.mulf %174, %174 : vector<16x24xf32>
    %cst_126 = arith.constant dense<0.000000e+00> : vector<16xf32>
    %176 = vector.multi_reduction <add>, %175, %cst_126 [1] : vector<16x24xf32> to vector<16xf32>
    %177 = vector.shape_cast %176 : vector<16xf32> to vector<16x1xf32>
    %cst_127 = arith.constant 2.400000e+01 : f32
    %178 = vector.broadcast %cst_127 : f32 to vector<16x1xf32>
    %179 = arith.divf %177, %178 : vector<16x1xf32>
    %180 = vector.broadcast %172 : vector<16x1xf32> to vector<16x24xf32>
    %181 = arith.subf %164, %180 : vector<16x24xf32>
    %cst_128 = arith.constant 9.99999974E-6 : f32
    %182 = vector.broadcast %cst_128 : f32 to vector<16x1xf32>
    %183 = arith.addf %179, %182 : vector<16x1xf32>
    %184 = math.rsqrt %183 : vector<16x1xf32>
    %185 = vector.broadcast %184 : vector<16x1xf32> to vector<16x24xf32>
    %186 = arith.mulf %181, %185 : vector<16x24xf32>
    %187 = vector.broadcast %166 : vector<1x24xf32> to vector<16x24xf32>
    %188 = arith.mulf %186, %187 : vector<16x24xf32>
    %189 = vector.broadcast %168 : vector<1x24xf32> to vector<16x24xf32>
    %190 = arith.addf %188, %189 : vector<16x24xf32>
    %c0_129 = arith.constant 0 : index
    %c0_130 = arith.constant 0 : index
    %c0_131 = arith.constant 0 : index
    %191 = vector.load %arg9[%c0_129, %c0_130, %c0_131] : memref<2x24x24xf32, #tpu.memory_space<vmem>>, vector<1x24x24xf32>
    %192 = vector.shape_cast %191 : vector<1x24x24xf32> to vector<24x24xf32>
    %cst_132 = arith.constant dense<0.000000e+00> : vector<16x24xf32>
    %193 = tpu.matmul %190, %192, %cst_132 {dimension_numbers = #tpu.dot_dimension_numbers<[1], [0], [0], [1], [0, 0, 1, 1], [], []>} : vector<16x24xf32>, vector<24x24xf32>, vector<16x24xf32> -> vector<16x24xf32>
    %c0_133 = arith.constant 0 : index
    %c0_134 = arith.constant 0 : index
    %c0_135 = arith.constant 0 : index
    %194 = vector.load %arg10[%c0_133, %c0_134, %c0_135] : memref<2x1x24xf32, #tpu.memory_space<vmem>>, vector<1x1x24xf32>
    %195 = vector.shape_cast %194 : vector<1x1x24xf32> to vector<1x24xf32>
    %196 = vector.broadcast %195 : vector<1x24xf32> to vector<16x24xf32>
    %197 = arith.addf %193, %196 : vector<16x24xf32>
    %cst_136 = arith.constant 5.000000e-01 : f32
    %198 = vector.broadcast %cst_136 : f32 to vector<16x24xf32>
    %199 = arith.mulf %198, %197 : vector<16x24xf32>
    %cst_137 = arith.constant 0.707106769 : f32
    %200 = vector.broadcast %cst_137 : f32 to vector<16x24xf32>
    %201 = arith.mulf %197, %200 : vector<16x24xf32>
    %cst_138 = arith.constant 0.000000e+00 : f32
    %202 = vector.broadcast %cst_138 : f32 to vector<16x24xf32>
    %203 = arith.cmpf oge, %201, %202 : vector<16x24xf32>
    %cst_139 = arith.constant 1.000000e+00 : f32
    %cst_140 = arith.constant -1.000000e+00 : f32
    %204 = vector.broadcast %cst_139 : f32 to vector<16x24xf32>
    %205 = vector.broadcast %cst_140 : f32 to vector<16x24xf32>
    %206 = arith.select %203, %204, %205 : vector<16x24xi1>, vector<16x24xf32>
    %207 = math.absf %201 : vector<16x24xf32>
    %cst_141 = arith.constant 0.327591091 : f32
    %208 = vector.broadcast %cst_141 : f32 to vector<16x24xf32>
    %209 = arith.mulf %208, %207 : vector<16x24xf32>
    %cst_142 = arith.constant 1.000000e+00 : f32
    %210 = vector.broadcast %cst_142 : f32 to vector<16x24xf32>
    %211 = arith.addf %210, %209 : vector<16x24xf32>
    %cst_143 = arith.constant 1.000000e+00 : f32
    %212 = vector.broadcast %cst_143 : f32 to vector<16x24xf32>
    %213 = arith.divf %212, %211 : vector<16x24xf32>
    %cst_144 = arith.constant 1.06140542 : f32
    %214 = vector.broadcast %cst_144 : f32 to vector<16x24xf32>
    %215 = arith.mulf %214, %213 : vector<16x24xf32>
    %cst_145 = arith.constant -1.45315206 : f32
    %216 = vector.broadcast %cst_145 : f32 to vector<16x24xf32>
    %217 = arith.addf %215, %216 : vector<16x24xf32>
    %218 = arith.mulf %217, %213 : vector<16x24xf32>
    %cst_146 = arith.constant 1.42141378 : f32
    %219 = vector.broadcast %cst_146 : f32 to vector<16x24xf32>
    %220 = arith.addf %218, %219 : vector<16x24xf32>
    %221 = arith.mulf %220, %213 : vector<16x24xf32>
    %cst_147 = arith.constant -0.284496725 : f32
    %222 = vector.broadcast %cst_147 : f32 to vector<16x24xf32>
    %223 = arith.addf %221, %222 : vector<16x24xf32>
    %224 = arith.mulf %223, %213 : vector<16x24xf32>
    %cst_148 = arith.constant 0.254829586 : f32
    %225 = vector.broadcast %cst_148 : f32 to vector<16x24xf32>
    %226 = arith.addf %224, %225 : vector<16x24xf32>
    %227 = arith.mulf %226, %213 : vector<16x24xf32>
    %cst_149 = arith.constant 0.000000e+00 : f32
    %228 = vector.broadcast %cst_149 : f32 to vector<16x24xf32>
    %229 = arith.subf %228, %207 : vector<16x24xf32>
    %230 = arith.mulf %229, %207 : vector<16x24xf32>
    %231 = math.exp %230 : vector<16x24xf32>
    %232 = arith.mulf %227, %231 : vector<16x24xf32>
    %cst_150 = arith.constant 1.000000e+00 : f32
    %233 = vector.broadcast %cst_150 : f32 to vector<16x24xf32>
    %234 = arith.subf %233, %232 : vector<16x24xf32>
    %235 = arith.mulf %206, %234 : vector<16x24xf32>
    %cst_151 = arith.constant 1.000000e+00 : f32
    %236 = vector.broadcast %cst_151 : f32 to vector<16x24xf32>
    %237 = arith.addf %236, %235 : vector<16x24xf32>
    %238 = arith.mulf %199, %237 : vector<16x24xf32>
    %c1_152 = arith.constant 1 : index
    %c0_153 = arith.constant 0 : index
    %c0_154 = arith.constant 0 : index
    %239 = vector.load %arg9[%c1_152, %c0_153, %c0_154] : memref<2x24x24xf32, #tpu.memory_space<vmem>>, vector<1x24x24xf32>
    %240 = vector.shape_cast %239 : vector<1x24x24xf32> to vector<24x24xf32>
    %cst_155 = arith.constant dense<0.000000e+00> : vector<16x24xf32>
    %241 = tpu.matmul %238, %240, %cst_155 {dimension_numbers = #tpu.dot_dimension_numbers<[1], [0], [0], [1], [0, 0, 1, 1], [], []>} : vector<16x24xf32>, vector<24x24xf32>, vector<16x24xf32> -> vector<16x24xf32>
    %c1_156 = arith.constant 1 : index
    %c0_157 = arith.constant 0 : index
    %c0_158 = arith.constant 0 : index
    %242 = vector.load %arg10[%c1_156, %c0_157, %c0_158] : memref<2x1x24xf32, #tpu.memory_space<vmem>>, vector<1x1x24xf32>
    %243 = vector.shape_cast %242 : vector<1x1x24xf32> to vector<1x24xf32>
    %244 = vector.broadcast %243 : vector<1x24xf32> to vector<16x24xf32>
    %245 = arith.addf %241, %244 : vector<16x24xf32>
    %246 = arith.addf %190, %245 : vector<16x24xf32>
    %c2_159 = arith.constant 2 : index
    %c0_160 = arith.constant 0 : index
    %c0_161 = arith.constant 0 : index
    %247 = vector.load %arg11[%c2_159, %c0_160, %c0_161] : memref<4x1x24xf32, #tpu.memory_space<vmem>>, vector<1x1x24xf32>
    %248 = vector.shape_cast %247 : vector<1x1x24xf32> to vector<1x24xf32>
    %c3_162 = arith.constant 3 : index
    %c0_163 = arith.constant 0 : index
    %c0_164 = arith.constant 0 : index
    %249 = vector.load %arg11[%c3_162, %c0_163, %c0_164] : memref<4x1x24xf32, #tpu.memory_space<vmem>>, vector<1x1x24xf32>
    %250 = vector.shape_cast %249 : vector<1x1x24xf32> to vector<1x24xf32>
    %cst_165 = arith.constant dense<0.000000e+00> : vector<16xf32>
    %251 = vector.multi_reduction <add>, %246, %cst_165 [1] : vector<16x24xf32> to vector<16xf32>
    %252 = vector.shape_cast %251 : vector<16xf32> to vector<16x1xf32>
    %cst_166 = arith.constant 2.400000e+01 : f32
    %253 = vector.broadcast %cst_166 : f32 to vector<16x1xf32>
    %254 = arith.divf %252, %253 : vector<16x1xf32>
    %255 = vector.broadcast %254 : vector<16x1xf32> to vector<16x24xf32>
    %256 = arith.subf %246, %255 : vector<16x24xf32>
    %257 = arith.mulf %256, %256 : vector<16x24xf32>
    %cst_167 = arith.constant dense<0.000000e+00> : vector<16xf32>
    %258 = vector.multi_reduction <add>, %257, %cst_167 [1] : vector<16x24xf32> to vector<16xf32>
    %259 = vector.shape_cast %258 : vector<16xf32> to vector<16x1xf32>
    %cst_168 = arith.constant 2.400000e+01 : f32
    %260 = vector.broadcast %cst_168 : f32 to vector<16x1xf32>
    %261 = arith.divf %259, %260 : vector<16x1xf32>
    %262 = vector.broadcast %254 : vector<16x1xf32> to vector<16x24xf32>
    %263 = arith.subf %246, %262 : vector<16x24xf32>
    %cst_169 = arith.constant 9.99999974E-6 : f32
    %264 = vector.broadcast %cst_169 : f32 to vector<16x1xf32>
    %265 = arith.addf %261, %264 : vector<16x1xf32>
    %266 = math.rsqrt %265 : vector<16x1xf32>
    %267 = vector.broadcast %266 : vector<16x1xf32> to vector<16x24xf32>
    %268 = arith.mulf %263, %267 : vector<16x24xf32>
    %269 = vector.broadcast %248 : vector<1x24xf32> to vector<16x24xf32>
    %270 = arith.mulf %268, %269 : vector<16x24xf32>
    %271 = vector.broadcast %250 : vector<1x24xf32> to vector<16x24xf32>
    %272 = arith.addf %270, %271 : vector<16x24xf32>
    %c0_170 = arith.constant 0 : index
    %c0_171 = arith.constant 0 : index
    %273 = vector.load %arg14[%c0_170, %c0_171] : memref<16x16xf32, #tpu.memory_space<vmem>>, vector<16x16xf32>
    %cst_172 = arith.constant dense<0.000000e+00> : vector<16x24xf32>
    %274 = tpu.matmul %273, %272, %cst_172 {dimension_numbers = #tpu.dot_dimension_numbers<[1], [0], [0], [1], [0, 0, 1, 1], [], []>} : vector<16x16xf32>, vector<16x24xf32>, vector<16x24xf32> -> vector<16x24xf32>
    %c0_173 = arith.constant 0 : index
    %c0_174 = arith.constant 0 : index
    %275 = vector.load %arg15[%c0_173, %c0_174] : memref<16x16xf32, #tpu.memory_space<vmem>>, vector<16x16xf32>
    %cst_175 = arith.constant dense<0.000000e+00> : vector<16x24xf32>
    %276 = tpu.matmul %275, %272, %cst_175 {dimension_numbers = #tpu.dot_dimension_numbers<[1], [0], [0], [1], [0, 0, 1, 1], [], []>} : vector<16x16xf32>, vector<16x24xf32>, vector<16x24xf32> -> vector<16x24xf32>
    %c0_176 = arith.constant 0 : index
    %c0_177 = arith.constant 0 : index
    %c0_178 = arith.constant 0 : index
    %277 = vector.load %arg12[%c0_176, %c0_177, %c0_178] : memref<3x24x24xf32, #tpu.memory_space<vmem>>, vector<1x24x24xf32>
    %278 = vector.shape_cast %277 : vector<1x24x24xf32> to vector<24x24xf32>
    %cst_179 = arith.constant dense<0.000000e+00> : vector<16x24xf32>
    %279 = tpu.matmul %274, %278, %cst_179 {dimension_numbers = #tpu.dot_dimension_numbers<[1], [0], [0], [1], [0, 0, 1, 1], [], []>} : vector<16x24xf32>, vector<24x24xf32>, vector<16x24xf32> -> vector<16x24xf32>
    %c1_180 = arith.constant 1 : index
    %c0_181 = arith.constant 0 : index
    %c0_182 = arith.constant 0 : index
    %280 = vector.load %arg12[%c1_180, %c0_181, %c0_182] : memref<3x24x24xf32, #tpu.memory_space<vmem>>, vector<1x24x24xf32>
    %281 = vector.shape_cast %280 : vector<1x24x24xf32> to vector<24x24xf32>
    %cst_183 = arith.constant dense<0.000000e+00> : vector<16x24xf32>
    %282 = tpu.matmul %272, %281, %cst_183 {dimension_numbers = #tpu.dot_dimension_numbers<[1], [0], [0], [1], [0, 0, 1, 1], [], []>} : vector<16x24xf32>, vector<24x24xf32>, vector<16x24xf32> -> vector<16x24xf32>
    %283 = arith.addf %279, %282 : vector<16x24xf32>
    %c2_184 = arith.constant 2 : index
    %c0_185 = arith.constant 0 : index
    %c0_186 = arith.constant 0 : index
    %284 = vector.load %arg12[%c2_184, %c0_185, %c0_186] : memref<3x24x24xf32, #tpu.memory_space<vmem>>, vector<1x24x24xf32>
    %285 = vector.shape_cast %284 : vector<1x24x24xf32> to vector<24x24xf32>
    %cst_187 = arith.constant dense<0.000000e+00> : vector<16x24xf32>
    %286 = tpu.matmul %276, %285, %cst_187 {dimension_numbers = #tpu.dot_dimension_numbers<[1], [0], [0], [1], [0, 0, 1, 1], [], []>} : vector<16x24xf32>, vector<24x24xf32>, vector<16x24xf32> -> vector<16x24xf32>
    %287 = arith.addf %283, %286 : vector<16x24xf32>
    %c0_188 = arith.constant 0 : index
    %c0_189 = arith.constant 0 : index
    %288 = vector.load %arg13[%c0_188, %c0_189] : memref<1x24xf32, #tpu.memory_space<vmem>>, vector<1x24xf32>
    %289 = vector.broadcast %288 : vector<1x24xf32> to vector<16x24xf32>
    %290 = arith.addf %287, %289 : vector<16x24xf32>
    %cst_190 = arith.constant 0.000000e+00 : f32
    %291 = vector.broadcast %cst_190 : f32 to vector<16x24xf32>
    %292 = arith.cmpf ogt, %290, %291 : vector<16x24xf32>
    %cst_191 = arith.constant 0.000000e+00 : f32
    %293 = vector.broadcast %cst_191 : f32 to vector<16x24xf32>
    %294 = arith.minimumf %290, %293 : vector<16x24xf32>
    %295 = math.exp %294 : vector<16x24xf32>
    %cst_192 = arith.constant 1.000000e+00 : f32
    %296 = vector.broadcast %cst_192 : f32 to vector<16x24xf32>
    %297 = arith.subf %295, %296 : vector<16x24xf32>
    %298 = arith.select %292, %290, %297 : vector<16x24xi1>, vector<16x24xf32>
    %c0_193 = arith.constant 0 : index
    %c0_194 = arith.constant 0 : index
    %c0_195 = arith.constant 0 : index
    %299 = vector.load %arg16[%c0_193, %c0_194, %c0_195] : memref<3x8x16xf32, #tpu.memory_space<vmem>>, vector<1x8x16xf32>
    %300 = vector.shape_cast %299 : vector<1x8x16xf32> to vector<8x16xf32>
    %cst_196 = arith.constant dense<0.000000e+00> : vector<8x24xf32>
    %301 = tpu.matmul %300, %298, %cst_196 {dimension_numbers = #tpu.dot_dimension_numbers<[1], [0], [0], [1], [0, 0, 1, 1], [], []>} : vector<8x16xf32>, vector<16x24xf32>, vector<8x24xf32> -> vector<8x24xf32>
    %c1_197 = arith.constant 1 : index
    %c0_198 = arith.constant 0 : index
    %c0_199 = arith.constant 0 : index
    %302 = vector.load %arg16[%c1_197, %c0_198, %c0_199] : memref<3x8x16xf32, #tpu.memory_space<vmem>>, vector<1x8x16xf32>
    %303 = vector.shape_cast %302 : vector<1x8x16xf32> to vector<8x16xf32>
    %cst_200 = arith.constant dense<0.000000e+00> : vector<8x24xf32>
    %304 = tpu.matmul %303, %298, %cst_200 {dimension_numbers = #tpu.dot_dimension_numbers<[1], [0], [0], [1], [0, 0, 1, 1], [], []>} : vector<8x16xf32>, vector<16x24xf32>, vector<8x24xf32> -> vector<8x24xf32>
    %c2_201 = arith.constant 2 : index
    %c0_202 = arith.constant 0 : index
    %c0_203 = arith.constant 0 : index
    %305 = vector.load %arg16[%c2_201, %c0_202, %c0_203] : memref<3x8x16xf32, #tpu.memory_space<vmem>>, vector<1x8x16xf32>
    %306 = vector.shape_cast %305 : vector<1x8x16xf32> to vector<8x16xf32>
    %cst_204 = arith.constant dense<0.000000e+00> : vector<8x24xf32>
    %307 = tpu.matmul %306, %298, %cst_204 {dimension_numbers = #tpu.dot_dimension_numbers<[1], [0], [0], [1], [0, 0, 1, 1], [], []>} : vector<8x16xf32>, vector<16x24xf32>, vector<8x24xf32> -> vector<8x24xf32>
    %308 = arith.maximumf %301, %304 : vector<8x24xf32>
    %309 = arith.maximumf %308, %307 : vector<8x24xf32>
    %c0_205 = arith.constant 0 : index
    %c0_206 = arith.constant 0 : index
    %310 = vector.load %arg4[%c0_205, %c0_206] : memref<8x8xf32, #tpu.memory_space<vmem>>, vector<8x8xf32>
    %c0_207 = arith.constant 0 : index
    %c0_208 = arith.constant 0 : index
    %311 = vector.load %arg20[%c0_207, %c0_208] : memref<1x24xf32, #tpu.memory_space<vmem>>, vector<1x24xf32>
    %c0_209 = arith.constant 0 : index
    %c0_210 = arith.constant 0 : index
    %c0_211 = arith.constant 0 : index
    %312 = vector.load %arg17[%c0_209, %c0_210, %c0_211] : memref<12x24x6xf32, #tpu.memory_space<vmem>>, vector<1x24x6xf32>
    %313 = vector.shape_cast %312 : vector<1x24x6xf32> to vector<24x6xf32>
    %cst_212 = arith.constant dense<0.000000e+00> : vector<8x6xf32>
    %314 = tpu.matmul %309, %313, %cst_212 {dimension_numbers = #tpu.dot_dimension_numbers<[1], [0], [0], [1], [0, 0, 1, 1], [], []>} : vector<8x24xf32>, vector<24x6xf32>, vector<8x6xf32> -> vector<8x6xf32>
    %c0_213 = arith.constant 0 : index
    %c0_214 = arith.constant 0 : index
    %c0_215 = arith.constant 0 : index
    %315 = vector.load %arg18[%c0_213, %c0_214, %c0_215] : memref<12x1x6xf32, #tpu.memory_space<vmem>>, vector<1x1x6xf32>
    %316 = vector.shape_cast %315 : vector<1x1x6xf32> to vector<1x6xf32>
    %317 = vector.broadcast %316 : vector<1x6xf32> to vector<8x6xf32>
    %318 = arith.addf %314, %317 : vector<8x6xf32>
    %c4_216 = arith.constant 4 : index
    %c0_217 = arith.constant 0 : index
    %c0_218 = arith.constant 0 : index
    %319 = vector.load %arg17[%c4_216, %c0_217, %c0_218] : memref<12x24x6xf32, #tpu.memory_space<vmem>>, vector<1x24x6xf32>
    %320 = vector.shape_cast %319 : vector<1x24x6xf32> to vector<24x6xf32>
    %cst_219 = arith.constant dense<0.000000e+00> : vector<8x6xf32>
    %321 = tpu.matmul %309, %320, %cst_219 {dimension_numbers = #tpu.dot_dimension_numbers<[1], [0], [0], [1], [0, 0, 1, 1], [], []>} : vector<8x24xf32>, vector<24x6xf32>, vector<8x6xf32> -> vector<8x6xf32>
    %c4_220 = arith.constant 4 : index
    %c0_221 = arith.constant 0 : index
    %c0_222 = arith.constant 0 : index
    %322 = vector.load %arg18[%c4_220, %c0_221, %c0_222] : memref<12x1x6xf32, #tpu.memory_space<vmem>>, vector<1x1x6xf32>
    %323 = vector.shape_cast %322 : vector<1x1x6xf32> to vector<1x6xf32>
    %324 = vector.broadcast %323 : vector<1x6xf32> to vector<8x6xf32>
    %325 = arith.addf %321, %324 : vector<8x6xf32>
    %c8_223 = arith.constant 8 : index
    %c0_224 = arith.constant 0 : index
    %c0_225 = arith.constant 0 : index
    %326 = vector.load %arg17[%c8_223, %c0_224, %c0_225] : memref<12x24x6xf32, #tpu.memory_space<vmem>>, vector<1x24x6xf32>
    %327 = vector.shape_cast %326 : vector<1x24x6xf32> to vector<24x6xf32>
    %cst_226 = arith.constant dense<0.000000e+00> : vector<8x6xf32>
    %328 = tpu.matmul %309, %327, %cst_226 {dimension_numbers = #tpu.dot_dimension_numbers<[1], [0], [0], [1], [0, 0, 1, 1], [], []>} : vector<8x24xf32>, vector<24x6xf32>, vector<8x6xf32> -> vector<8x6xf32>
    %c8_227 = arith.constant 8 : index
    %c0_228 = arith.constant 0 : index
    %c0_229 = arith.constant 0 : index
    %329 = vector.load %arg18[%c8_227, %c0_228, %c0_229] : memref<12x1x6xf32, #tpu.memory_space<vmem>>, vector<1x1x6xf32>
    %330 = vector.shape_cast %329 : vector<1x1x6xf32> to vector<1x6xf32>
    %331 = vector.broadcast %330 : vector<1x6xf32> to vector<8x6xf32>
    %332 = arith.addf %328, %331 : vector<8x6xf32>
    %cst_230 = arith.constant dense<0.000000e+00> : vector<8x8xf32>
    %333 = tpu.matmul %318, %325, %cst_230 {dimension_numbers = #tpu.dot_dimension_numbers<[1], [1], [0], [0], [0, 0, 1, 0], [], []>} : vector<8x6xf32>, vector<8x6xf32>, vector<8x8xf32> -> vector<8x8xf32>
    %cst_231 = arith.constant 0.408248305 : f32
    %334 = vector.broadcast %cst_231 : f32 to vector<8x8xf32>
    %335 = arith.mulf %333, %334 : vector<8x8xf32>
    %336 = arith.addf %335, %310 : vector<8x8xf32>
    %cst_232 = arith.constant dense<0xFF800000> : vector<8xf32>
    %337 = vector.multi_reduction <maximumf>, %336, %cst_232 [1] : vector<8x8xf32> to vector<8xf32>
    %338 = vector.shape_cast %337 : vector<8xf32> to vector<8x1xf32>
    %339 = vector.broadcast %338 : vector<8x1xf32> to vector<8x8xf32>
    %340 = arith.subf %336, %339 : vector<8x8xf32>
    %341 = math.exp %340 : vector<8x8xf32>
    %cst_233 = arith.constant dense<0.000000e+00> : vector<8xf32>
    %342 = vector.multi_reduction <add>, %341, %cst_233 [1] : vector<8x8xf32> to vector<8xf32>
    %343 = vector.shape_cast %342 : vector<8xf32> to vector<8x1xf32>
    %344 = vector.broadcast %343 : vector<8x1xf32> to vector<8x8xf32>
    %345 = arith.divf %341, %344 : vector<8x8xf32>
    %cst_234 = arith.constant dense<0.000000e+00> : vector<8x6xf32>
    %346 = tpu.matmul %345, %332, %cst_234 {dimension_numbers = #tpu.dot_dimension_numbers<[1], [0], [0], [1], [0, 0, 1, 1], [], []>} : vector<8x8xf32>, vector<8x6xf32>, vector<8x6xf32> -> vector<8x6xf32>
    %c0_235 = arith.constant 0 : index
    %c0_236 = arith.constant 0 : index
    %c0_237 = arith.constant 0 : index
    %347 = vector.load %arg19[%c0_235, %c0_236, %c0_237] : memref<4x6x24xf32, #tpu.memory_space<vmem>>, vector<1x6x24xf32>
    %348 = vector.shape_cast %347 : vector<1x6x24xf32> to vector<6x24xf32>
    %cst_238 = arith.constant dense<0.000000e+00> : vector<8x24xf32>
    %349 = tpu.matmul %346, %348, %cst_238 {dimension_numbers = #tpu.dot_dimension_numbers<[1], [0], [0], [1], [0, 0, 1, 1], [], []>} : vector<8x6xf32>, vector<6x24xf32>, vector<8x24xf32> -> vector<8x24xf32>
    %350 = vector.broadcast %311 : vector<1x24xf32> to vector<8x24xf32>
    %351 = arith.addf %350, %349 : vector<8x24xf32>
    %c1_239 = arith.constant 1 : index
    %c0_240 = arith.constant 0 : index
    %c0_241 = arith.constant 0 : index
    %352 = vector.load %arg17[%c1_239, %c0_240, %c0_241] : memref<12x24x6xf32, #tpu.memory_space<vmem>>, vector<1x24x6xf32>
    %353 = vector.shape_cast %352 : vector<1x24x6xf32> to vector<24x6xf32>
    %cst_242 = arith.constant dense<0.000000e+00> : vector<8x6xf32>
    %354 = tpu.matmul %309, %353, %cst_242 {dimension_numbers = #tpu.dot_dimension_numbers<[1], [0], [0], [1], [0, 0, 1, 1], [], []>} : vector<8x24xf32>, vector<24x6xf32>, vector<8x6xf32> -> vector<8x6xf32>
    %c1_243 = arith.constant 1 : index
    %c0_244 = arith.constant 0 : index
    %c0_245 = arith.constant 0 : index
    %355 = vector.load %arg18[%c1_243, %c0_244, %c0_245] : memref<12x1x6xf32, #tpu.memory_space<vmem>>, vector<1x1x6xf32>
    %356 = vector.shape_cast %355 : vector<1x1x6xf32> to vector<1x6xf32>
    %357 = vector.broadcast %356 : vector<1x6xf32> to vector<8x6xf32>
    %358 = arith.addf %354, %357 : vector<8x6xf32>
    %c5_246 = arith.constant 5 : index
    %c0_247 = arith.constant 0 : index
    %c0_248 = arith.constant 0 : index
    %359 = vector.load %arg17[%c5_246, %c0_247, %c0_248] : memref<12x24x6xf32, #tpu.memory_space<vmem>>, vector<1x24x6xf32>
    %360 = vector.shape_cast %359 : vector<1x24x6xf32> to vector<24x6xf32>
    %cst_249 = arith.constant dense<0.000000e+00> : vector<8x6xf32>
    %361 = tpu.matmul %309, %360, %cst_249 {dimension_numbers = #tpu.dot_dimension_numbers<[1], [0], [0], [1], [0, 0, 1, 1], [], []>} : vector<8x24xf32>, vector<24x6xf32>, vector<8x6xf32> -> vector<8x6xf32>
    %c5_250 = arith.constant 5 : index
    %c0_251 = arith.constant 0 : index
    %c0_252 = arith.constant 0 : index
    %362 = vector.load %arg18[%c5_250, %c0_251, %c0_252] : memref<12x1x6xf32, #tpu.memory_space<vmem>>, vector<1x1x6xf32>
    %363 = vector.shape_cast %362 : vector<1x1x6xf32> to vector<1x6xf32>
    %364 = vector.broadcast %363 : vector<1x6xf32> to vector<8x6xf32>
    %365 = arith.addf %361, %364 : vector<8x6xf32>
    %c9_253 = arith.constant 9 : index
    %c0_254 = arith.constant 0 : index
    %c0_255 = arith.constant 0 : index
    %366 = vector.load %arg17[%c9_253, %c0_254, %c0_255] : memref<12x24x6xf32, #tpu.memory_space<vmem>>, vector<1x24x6xf32>
    %367 = vector.shape_cast %366 : vector<1x24x6xf32> to vector<24x6xf32>
    %cst_256 = arith.constant dense<0.000000e+00> : vector<8x6xf32>
    %368 = tpu.matmul %309, %367, %cst_256 {dimension_numbers = #tpu.dot_dimension_numbers<[1], [0], [0], [1], [0, 0, 1, 1], [], []>} : vector<8x24xf32>, vector<24x6xf32>, vector<8x6xf32> -> vector<8x6xf32>
    %c9_257 = arith.constant 9 : index
    %c0_258 = arith.constant 0 : index
    %c0_259 = arith.constant 0 : index
    %369 = vector.load %arg18[%c9_257, %c0_258, %c0_259] : memref<12x1x6xf32, #tpu.memory_space<vmem>>, vector<1x1x6xf32>
    %370 = vector.shape_cast %369 : vector<1x1x6xf32> to vector<1x6xf32>
    %371 = vector.broadcast %370 : vector<1x6xf32> to vector<8x6xf32>
    %372 = arith.addf %368, %371 : vector<8x6xf32>
    %cst_260 = arith.constant dense<0.000000e+00> : vector<8x8xf32>
    %373 = tpu.matmul %358, %365, %cst_260 {dimension_numbers = #tpu.dot_dimension_numbers<[1], [1], [0], [0], [0, 0, 1, 0], [], []>} : vector<8x6xf32>, vector<8x6xf32>, vector<8x8xf32> -> vector<8x8xf32>
    %cst_261 = arith.constant 0.408248305 : f32
    %374 = vector.broadcast %cst_261 : f32 to vector<8x8xf32>
    %375 = arith.mulf %373, %374 : vector<8x8xf32>
    %376 = arith.addf %375, %310 : vector<8x8xf32>
    %cst_262 = arith.constant dense<0xFF800000> : vector<8xf32>
    %377 = vector.multi_reduction <maximumf>, %376, %cst_262 [1] : vector<8x8xf32> to vector<8xf32>
    %378 = vector.shape_cast %377 : vector<8xf32> to vector<8x1xf32>
    %379 = vector.broadcast %378 : vector<8x1xf32> to vector<8x8xf32>
    %380 = arith.subf %376, %379 : vector<8x8xf32>
    %381 = math.exp %380 : vector<8x8xf32>
    %cst_263 = arith.constant dense<0.000000e+00> : vector<8xf32>
    %382 = vector.multi_reduction <add>, %381, %cst_263 [1] : vector<8x8xf32> to vector<8xf32>
    %383 = vector.shape_cast %382 : vector<8xf32> to vector<8x1xf32>
    %384 = vector.broadcast %383 : vector<8x1xf32> to vector<8x8xf32>
    %385 = arith.divf %381, %384 : vector<8x8xf32>
    %cst_264 = arith.constant dense<0.000000e+00> : vector<8x6xf32>
    %386 = tpu.matmul %385, %372, %cst_264 {dimension_numbers = #tpu.dot_dimension_numbers<[1], [0], [0], [1], [0, 0, 1, 1], [], []>} : vector<8x8xf32>, vector<8x6xf32>, vector<8x6xf32> -> vector<8x6xf32>
    %c1_265 = arith.constant 1 : index
    %c0_266 = arith.constant 0 : index
    %c0_267 = arith.constant 0 : index
    %387 = vector.load %arg19[%c1_265, %c0_266, %c0_267] : memref<4x6x24xf32, #tpu.memory_space<vmem>>, vector<1x6x24xf32>
    %388 = vector.shape_cast %387 : vector<1x6x24xf32> to vector<6x24xf32>
    %cst_268 = arith.constant dense<0.000000e+00> : vector<8x24xf32>
    %389 = tpu.matmul %386, %388, %cst_268 {dimension_numbers = #tpu.dot_dimension_numbers<[1], [0], [0], [1], [0, 0, 1, 1], [], []>} : vector<8x6xf32>, vector<6x24xf32>, vector<8x24xf32> -> vector<8x24xf32>
    %390 = arith.addf %351, %389 : vector<8x24xf32>
    %c2_269 = arith.constant 2 : index
    %c0_270 = arith.constant 0 : index
    %c0_271 = arith.constant 0 : index
    %391 = vector.load %arg17[%c2_269, %c0_270, %c0_271] : memref<12x24x6xf32, #tpu.memory_space<vmem>>, vector<1x24x6xf32>
    %392 = vector.shape_cast %391 : vector<1x24x6xf32> to vector<24x6xf32>
    %cst_272 = arith.constant dense<0.000000e+00> : vector<8x6xf32>
    %393 = tpu.matmul %309, %392, %cst_272 {dimension_numbers = #tpu.dot_dimension_numbers<[1], [0], [0], [1], [0, 0, 1, 1], [], []>} : vector<8x24xf32>, vector<24x6xf32>, vector<8x6xf32> -> vector<8x6xf32>
    %c2_273 = arith.constant 2 : index
    %c0_274 = arith.constant 0 : index
    %c0_275 = arith.constant 0 : index
    %394 = vector.load %arg18[%c2_273, %c0_274, %c0_275] : memref<12x1x6xf32, #tpu.memory_space<vmem>>, vector<1x1x6xf32>
    %395 = vector.shape_cast %394 : vector<1x1x6xf32> to vector<1x6xf32>
    %396 = vector.broadcast %395 : vector<1x6xf32> to vector<8x6xf32>
    %397 = arith.addf %393, %396 : vector<8x6xf32>
    %c6_276 = arith.constant 6 : index
    %c0_277 = arith.constant 0 : index
    %c0_278 = arith.constant 0 : index
    %398 = vector.load %arg17[%c6_276, %c0_277, %c0_278] : memref<12x24x6xf32, #tpu.memory_space<vmem>>, vector<1x24x6xf32>
    %399 = vector.shape_cast %398 : vector<1x24x6xf32> to vector<24x6xf32>
    %cst_279 = arith.constant dense<0.000000e+00> : vector<8x6xf32>
    %400 = tpu.matmul %309, %399, %cst_279 {dimension_numbers = #tpu.dot_dimension_numbers<[1], [0], [0], [1], [0, 0, 1, 1], [], []>} : vector<8x24xf32>, vector<24x6xf32>, vector<8x6xf32> -> vector<8x6xf32>
    %c6_280 = arith.constant 6 : index
    %c0_281 = arith.constant 0 : index
    %c0_282 = arith.constant 0 : index
    %401 = vector.load %arg18[%c6_280, %c0_281, %c0_282] : memref<12x1x6xf32, #tpu.memory_space<vmem>>, vector<1x1x6xf32>
    %402 = vector.shape_cast %401 : vector<1x1x6xf32> to vector<1x6xf32>
    %403 = vector.broadcast %402 : vector<1x6xf32> to vector<8x6xf32>
    %404 = arith.addf %400, %403 : vector<8x6xf32>
    %c10_283 = arith.constant 10 : index
    %c0_284 = arith.constant 0 : index
    %c0_285 = arith.constant 0 : index
    %405 = vector.load %arg17[%c10_283, %c0_284, %c0_285] : memref<12x24x6xf32, #tpu.memory_space<vmem>>, vector<1x24x6xf32>
    %406 = vector.shape_cast %405 : vector<1x24x6xf32> to vector<24x6xf32>
    %cst_286 = arith.constant dense<0.000000e+00> : vector<8x6xf32>
    %407 = tpu.matmul %309, %406, %cst_286 {dimension_numbers = #tpu.dot_dimension_numbers<[1], [0], [0], [1], [0, 0, 1, 1], [], []>} : vector<8x24xf32>, vector<24x6xf32>, vector<8x6xf32> -> vector<8x6xf32>
    %c10_287 = arith.constant 10 : index
    %c0_288 = arith.constant 0 : index
    %c0_289 = arith.constant 0 : index
    %408 = vector.load %arg18[%c10_287, %c0_288, %c0_289] : memref<12x1x6xf32, #tpu.memory_space<vmem>>, vector<1x1x6xf32>
    %409 = vector.shape_cast %408 : vector<1x1x6xf32> to vector<1x6xf32>
    %410 = vector.broadcast %409 : vector<1x6xf32> to vector<8x6xf32>
    %411 = arith.addf %407, %410 : vector<8x6xf32>
    %cst_290 = arith.constant dense<0.000000e+00> : vector<8x8xf32>
    %412 = tpu.matmul %397, %404, %cst_290 {dimension_numbers = #tpu.dot_dimension_numbers<[1], [1], [0], [0], [0, 0, 1, 0], [], []>} : vector<8x6xf32>, vector<8x6xf32>, vector<8x8xf32> -> vector<8x8xf32>
    %cst_291 = arith.constant 0.408248305 : f32
    %413 = vector.broadcast %cst_291 : f32 to vector<8x8xf32>
    %414 = arith.mulf %412, %413 : vector<8x8xf32>
    %415 = arith.addf %414, %310 : vector<8x8xf32>
    %cst_292 = arith.constant dense<0xFF800000> : vector<8xf32>
    %416 = vector.multi_reduction <maximumf>, %415, %cst_292 [1] : vector<8x8xf32> to vector<8xf32>
    %417 = vector.shape_cast %416 : vector<8xf32> to vector<8x1xf32>
    %418 = vector.broadcast %417 : vector<8x1xf32> to vector<8x8xf32>
    %419 = arith.subf %415, %418 : vector<8x8xf32>
    %420 = math.exp %419 : vector<8x8xf32>
    %cst_293 = arith.constant dense<0.000000e+00> : vector<8xf32>
    %421 = vector.multi_reduction <add>, %420, %cst_293 [1] : vector<8x8xf32> to vector<8xf32>
    %422 = vector.shape_cast %421 : vector<8xf32> to vector<8x1xf32>
    %423 = vector.broadcast %422 : vector<8x1xf32> to vector<8x8xf32>
    %424 = arith.divf %420, %423 : vector<8x8xf32>
    %cst_294 = arith.constant dense<0.000000e+00> : vector<8x6xf32>
    %425 = tpu.matmul %424, %411, %cst_294 {dimension_numbers = #tpu.dot_dimension_numbers<[1], [0], [0], [1], [0, 0, 1, 1], [], []>} : vector<8x8xf32>, vector<8x6xf32>, vector<8x6xf32> -> vector<8x6xf32>
    %c2_295 = arith.constant 2 : index
    %c0_296 = arith.constant 0 : index
    %c0_297 = arith.constant 0 : index
    %426 = vector.load %arg19[%c2_295, %c0_296, %c0_297] : memref<4x6x24xf32, #tpu.memory_space<vmem>>, vector<1x6x24xf32>
    %427 = vector.shape_cast %426 : vector<1x6x24xf32> to vector<6x24xf32>
    %cst_298 = arith.constant dense<0.000000e+00> : vector<8x24xf32>
    %428 = tpu.matmul %425, %427, %cst_298 {dimension_numbers = #tpu.dot_dimension_numbers<[1], [0], [0], [1], [0, 0, 1, 1], [], []>} : vector<8x6xf32>, vector<6x24xf32>, vector<8x24xf32> -> vector<8x24xf32>
    %429 = arith.addf %390, %428 : vector<8x24xf32>
    %c3_299 = arith.constant 3 : index
    %c0_300 = arith.constant 0 : index
    %c0_301 = arith.constant 0 : index
    %430 = vector.load %arg17[%c3_299, %c0_300, %c0_301] : memref<12x24x6xf32, #tpu.memory_space<vmem>>, vector<1x24x6xf32>
    %431 = vector.shape_cast %430 : vector<1x24x6xf32> to vector<24x6xf32>
    %cst_302 = arith.constant dense<0.000000e+00> : vector<8x6xf32>
    %432 = tpu.matmul %309, %431, %cst_302 {dimension_numbers = #tpu.dot_dimension_numbers<[1], [0], [0], [1], [0, 0, 1, 1], [], []>} : vector<8x24xf32>, vector<24x6xf32>, vector<8x6xf32> -> vector<8x6xf32>
    %c3_303 = arith.constant 3 : index
    %c0_304 = arith.constant 0 : index
    %c0_305 = arith.constant 0 : index
    %433 = vector.load %arg18[%c3_303, %c0_304, %c0_305] : memref<12x1x6xf32, #tpu.memory_space<vmem>>, vector<1x1x6xf32>
    %434 = vector.shape_cast %433 : vector<1x1x6xf32> to vector<1x6xf32>
    %435 = vector.broadcast %434 : vector<1x6xf32> to vector<8x6xf32>
    %436 = arith.addf %432, %435 : vector<8x6xf32>
    %c7_306 = arith.constant 7 : index
    %c0_307 = arith.constant 0 : index
    %c0_308 = arith.constant 0 : index
    %437 = vector.load %arg17[%c7_306, %c0_307, %c0_308] : memref<12x24x6xf32, #tpu.memory_space<vmem>>, vector<1x24x6xf32>
    %438 = vector.shape_cast %437 : vector<1x24x6xf32> to vector<24x6xf32>
    %cst_309 = arith.constant dense<0.000000e+00> : vector<8x6xf32>
    %439 = tpu.matmul %309, %438, %cst_309 {dimension_numbers = #tpu.dot_dimension_numbers<[1], [0], [0], [1], [0, 0, 1, 1], [], []>} : vector<8x24xf32>, vector<24x6xf32>, vector<8x6xf32> -> vector<8x6xf32>
    %c7_310 = arith.constant 7 : index
    %c0_311 = arith.constant 0 : index
    %c0_312 = arith.constant 0 : index
    %440 = vector.load %arg18[%c7_310, %c0_311, %c0_312] : memref<12x1x6xf32, #tpu.memory_space<vmem>>, vector<1x1x6xf32>
    %441 = vector.shape_cast %440 : vector<1x1x6xf32> to vector<1x6xf32>
    %442 = vector.broadcast %441 : vector<1x6xf32> to vector<8x6xf32>
    %443 = arith.addf %439, %442 : vector<8x6xf32>
    %c11_313 = arith.constant 11 : index
    %c0_314 = arith.constant 0 : index
    %c0_315 = arith.constant 0 : index
    %444 = vector.load %arg17[%c11_313, %c0_314, %c0_315] : memref<12x24x6xf32, #tpu.memory_space<vmem>>, vector<1x24x6xf32>
    %445 = vector.shape_cast %444 : vector<1x24x6xf32> to vector<24x6xf32>
    %cst_316 = arith.constant dense<0.000000e+00> : vector<8x6xf32>
    %446 = tpu.matmul %309, %445, %cst_316 {dimension_numbers = #tpu.dot_dimension_numbers<[1], [0], [0], [1], [0, 0, 1, 1], [], []>} : vector<8x24xf32>, vector<24x6xf32>, vector<8x6xf32> -> vector<8x6xf32>
    %c11_317 = arith.constant 11 : index
    %c0_318 = arith.constant 0 : index
    %c0_319 = arith.constant 0 : index
    %447 = vector.load %arg18[%c11_317, %c0_318, %c0_319] : memref<12x1x6xf32, #tpu.memory_space<vmem>>, vector<1x1x6xf32>
    %448 = vector.shape_cast %447 : vector<1x1x6xf32> to vector<1x6xf32>
    %449 = vector.broadcast %448 : vector<1x6xf32> to vector<8x6xf32>
    %450 = arith.addf %446, %449 : vector<8x6xf32>
    %cst_320 = arith.constant dense<0.000000e+00> : vector<8x8xf32>
    %451 = tpu.matmul %436, %443, %cst_320 {dimension_numbers = #tpu.dot_dimension_numbers<[1], [1], [0], [0], [0, 0, 1, 0], [], []>} : vector<8x6xf32>, vector<8x6xf32>, vector<8x8xf32> -> vector<8x8xf32>
    %cst_321 = arith.constant 0.408248305 : f32
    %452 = vector.broadcast %cst_321 : f32 to vector<8x8xf32>
    %453 = arith.mulf %451, %452 : vector<8x8xf32>
    %454 = arith.addf %453, %310 : vector<8x8xf32>
    %cst_322 = arith.constant dense<0xFF800000> : vector<8xf32>
    %455 = vector.multi_reduction <maximumf>, %454, %cst_322 [1] : vector<8x8xf32> to vector<8xf32>
    %456 = vector.shape_cast %455 : vector<8xf32> to vector<8x1xf32>
    %457 = vector.broadcast %456 : vector<8x1xf32> to vector<8x8xf32>
    %458 = arith.subf %454, %457 : vector<8x8xf32>
    %459 = math.exp %458 : vector<8x8xf32>
    %cst_323 = arith.constant dense<0.000000e+00> : vector<8xf32>
    %460 = vector.multi_reduction <add>, %459, %cst_323 [1] : vector<8x8xf32> to vector<8xf32>
    %461 = vector.shape_cast %460 : vector<8xf32> to vector<8x1xf32>
    %462 = vector.broadcast %461 : vector<8x1xf32> to vector<8x8xf32>
    %463 = arith.divf %459, %462 : vector<8x8xf32>
    %cst_324 = arith.constant dense<0.000000e+00> : vector<8x6xf32>
    %464 = tpu.matmul %463, %450, %cst_324 {dimension_numbers = #tpu.dot_dimension_numbers<[1], [0], [0], [1], [0, 0, 1, 1], [], []>} : vector<8x8xf32>, vector<8x6xf32>, vector<8x6xf32> -> vector<8x6xf32>
    %c3_325 = arith.constant 3 : index
    %c0_326 = arith.constant 0 : index
    %c0_327 = arith.constant 0 : index
    %465 = vector.load %arg19[%c3_325, %c0_326, %c0_327] : memref<4x6x24xf32, #tpu.memory_space<vmem>>, vector<1x6x24xf32>
    %466 = vector.shape_cast %465 : vector<1x6x24xf32> to vector<6x24xf32>
    %cst_328 = arith.constant dense<0.000000e+00> : vector<8x24xf32>
    %467 = tpu.matmul %464, %466, %cst_328 {dimension_numbers = #tpu.dot_dimension_numbers<[1], [0], [0], [1], [0, 0, 1, 1], [], []>} : vector<8x6xf32>, vector<6x24xf32>, vector<8x24xf32> -> vector<8x24xf32>
    %468 = arith.addf %429, %467 : vector<8x24xf32>
    %469 = arith.addf %309, %468 : vector<8x24xf32>
    %c0_329 = arith.constant 0 : index
    %c0_330 = arith.constant 0 : index
    %c0_331 = arith.constant 0 : index
    %470 = vector.load %arg23[%c0_329, %c0_330, %c0_331] : memref<4x1x24xf32, #tpu.memory_space<vmem>>, vector<1x1x24xf32>
    %471 = vector.shape_cast %470 : vector<1x1x24xf32> to vector<1x24xf32>
    %c1_332 = arith.constant 1 : index
    %c0_333 = arith.constant 0 : index
    %c0_334 = arith.constant 0 : index
    %472 = vector.load %arg23[%c1_332, %c0_333, %c0_334] : memref<4x1x24xf32, #tpu.memory_space<vmem>>, vector<1x1x24xf32>
    %473 = vector.shape_cast %472 : vector<1x1x24xf32> to vector<1x24xf32>
    %cst_335 = arith.constant dense<0.000000e+00> : vector<8xf32>
    %474 = vector.multi_reduction <add>, %469, %cst_335 [1] : vector<8x24xf32> to vector<8xf32>
    %475 = vector.shape_cast %474 : vector<8xf32> to vector<8x1xf32>
    %cst_336 = arith.constant 2.400000e+01 : f32
    %476 = vector.broadcast %cst_336 : f32 to vector<8x1xf32>
    %477 = arith.divf %475, %476 : vector<8x1xf32>
    %478 = vector.broadcast %477 : vector<8x1xf32> to vector<8x24xf32>
    %479 = arith.subf %469, %478 : vector<8x24xf32>
    %480 = arith.mulf %479, %479 : vector<8x24xf32>
    %cst_337 = arith.constant dense<0.000000e+00> : vector<8xf32>
    %481 = vector.multi_reduction <add>, %480, %cst_337 [1] : vector<8x24xf32> to vector<8xf32>
    %482 = vector.shape_cast %481 : vector<8xf32> to vector<8x1xf32>
    %cst_338 = arith.constant 2.400000e+01 : f32
    %483 = vector.broadcast %cst_338 : f32 to vector<8x1xf32>
    %484 = arith.divf %482, %483 : vector<8x1xf32>
    %485 = vector.broadcast %477 : vector<8x1xf32> to vector<8x24xf32>
    %486 = arith.subf %469, %485 : vector<8x24xf32>
    %cst_339 = arith.constant 9.99999974E-6 : f32
    %487 = vector.broadcast %cst_339 : f32 to vector<8x1xf32>
    %488 = arith.addf %484, %487 : vector<8x1xf32>
    %489 = math.rsqrt %488 : vector<8x1xf32>
    %490 = vector.broadcast %489 : vector<8x1xf32> to vector<8x24xf32>
    %491 = arith.mulf %486, %490 : vector<8x24xf32>
    %492 = vector.broadcast %471 : vector<1x24xf32> to vector<8x24xf32>
    %493 = arith.mulf %491, %492 : vector<8x24xf32>
    %494 = vector.broadcast %473 : vector<1x24xf32> to vector<8x24xf32>
    %495 = arith.addf %493, %494 : vector<8x24xf32>
    %c0_340 = arith.constant 0 : index
    %c0_341 = arith.constant 0 : index
    %c0_342 = arith.constant 0 : index
    %496 = vector.load %arg21[%c0_340, %c0_341, %c0_342] : memref<2x24x24xf32, #tpu.memory_space<vmem>>, vector<1x24x24xf32>
    %497 = vector.shape_cast %496 : vector<1x24x24xf32> to vector<24x24xf32>
    %cst_343 = arith.constant dense<0.000000e+00> : vector<8x24xf32>
    %498 = tpu.matmul %495, %497, %cst_343 {dimension_numbers = #tpu.dot_dimension_numbers<[1], [0], [0], [1], [0, 0, 1, 1], [], []>} : vector<8x24xf32>, vector<24x24xf32>, vector<8x24xf32> -> vector<8x24xf32>
    %c0_344 = arith.constant 0 : index
    %c0_345 = arith.constant 0 : index
    %c0_346 = arith.constant 0 : index
    %499 = vector.load %arg22[%c0_344, %c0_345, %c0_346] : memref<2x1x24xf32, #tpu.memory_space<vmem>>, vector<1x1x24xf32>
    %500 = vector.shape_cast %499 : vector<1x1x24xf32> to vector<1x24xf32>
    %501 = vector.broadcast %500 : vector<1x24xf32> to vector<8x24xf32>
    %502 = arith.addf %498, %501 : vector<8x24xf32>
    %cst_347 = arith.constant 5.000000e-01 : f32
    %503 = vector.broadcast %cst_347 : f32 to vector<8x24xf32>
    %504 = arith.mulf %503, %502 : vector<8x24xf32>
    %cst_348 = arith.constant 0.707106769 : f32
    %505 = vector.broadcast %cst_348 : f32 to vector<8x24xf32>
    %506 = arith.mulf %502, %505 : vector<8x24xf32>
    %cst_349 = arith.constant 0.000000e+00 : f32
    %507 = vector.broadcast %cst_349 : f32 to vector<8x24xf32>
    %508 = arith.cmpf oge, %506, %507 : vector<8x24xf32>
    %cst_350 = arith.constant 1.000000e+00 : f32
    %cst_351 = arith.constant -1.000000e+00 : f32
    %509 = vector.broadcast %cst_350 : f32 to vector<8x24xf32>
    %510 = vector.broadcast %cst_351 : f32 to vector<8x24xf32>
    %511 = arith.select %508, %509, %510 : vector<8x24xi1>, vector<8x24xf32>
    %512 = math.absf %506 : vector<8x24xf32>
    %cst_352 = arith.constant 0.327591091 : f32
    %513 = vector.broadcast %cst_352 : f32 to vector<8x24xf32>
    %514 = arith.mulf %513, %512 : vector<8x24xf32>
    %cst_353 = arith.constant 1.000000e+00 : f32
    %515 = vector.broadcast %cst_353 : f32 to vector<8x24xf32>
    %516 = arith.addf %515, %514 : vector<8x24xf32>
    %cst_354 = arith.constant 1.000000e+00 : f32
    %517 = vector.broadcast %cst_354 : f32 to vector<8x24xf32>
    %518 = arith.divf %517, %516 : vector<8x24xf32>
    %cst_355 = arith.constant 1.06140542 : f32
    %519 = vector.broadcast %cst_355 : f32 to vector<8x24xf32>
    %520 = arith.mulf %519, %518 : vector<8x24xf32>
    %cst_356 = arith.constant -1.45315206 : f32
    %521 = vector.broadcast %cst_356 : f32 to vector<8x24xf32>
    %522 = arith.addf %520, %521 : vector<8x24xf32>
    %523 = arith.mulf %522, %518 : vector<8x24xf32>
    %cst_357 = arith.constant 1.42141378 : f32
    %524 = vector.broadcast %cst_357 : f32 to vector<8x24xf32>
    %525 = arith.addf %523, %524 : vector<8x24xf32>
    %526 = arith.mulf %525, %518 : vector<8x24xf32>
    %cst_358 = arith.constant -0.284496725 : f32
    %527 = vector.broadcast %cst_358 : f32 to vector<8x24xf32>
    %528 = arith.addf %526, %527 : vector<8x24xf32>
    %529 = arith.mulf %528, %518 : vector<8x24xf32>
    %cst_359 = arith.constant 0.254829586 : f32
    %530 = vector.broadcast %cst_359 : f32 to vector<8x24xf32>
    %531 = arith.addf %529, %530 : vector<8x24xf32>
    %532 = arith.mulf %531, %518 : vector<8x24xf32>
    %cst_360 = arith.constant 0.000000e+00 : f32
    %533 = vector.broadcast %cst_360 : f32 to vector<8x24xf32>
    %534 = arith.subf %533, %512 : vector<8x24xf32>
    %535 = arith.mulf %534, %512 : vector<8x24xf32>
    %536 = math.exp %535 : vector<8x24xf32>
    %537 = arith.mulf %532, %536 : vector<8x24xf32>
    %cst_361 = arith.constant 1.000000e+00 : f32
    %538 = vector.broadcast %cst_361 : f32 to vector<8x24xf32>
    %539 = arith.subf %538, %537 : vector<8x24xf32>
    %540 = arith.mulf %511, %539 : vector<8x24xf32>
    %cst_362 = arith.constant 1.000000e+00 : f32
    %541 = vector.broadcast %cst_362 : f32 to vector<8x24xf32>
    %542 = arith.addf %541, %540 : vector<8x24xf32>
    %543 = arith.mulf %504, %542 : vector<8x24xf32>
    %c1_363 = arith.constant 1 : index
    %c0_364 = arith.constant 0 : index
    %c0_365 = arith.constant 0 : index
    %544 = vector.load %arg21[%c1_363, %c0_364, %c0_365] : memref<2x24x24xf32, #tpu.memory_space<vmem>>, vector<1x24x24xf32>
    %545 = vector.shape_cast %544 : vector<1x24x24xf32> to vector<24x24xf32>
    %cst_366 = arith.constant dense<0.000000e+00> : vector<8x24xf32>
    %546 = tpu.matmul %543, %545, %cst_366 {dimension_numbers = #tpu.dot_dimension_numbers<[1], [0], [0], [1], [0, 0, 1, 1], [], []>} : vector<8x24xf32>, vector<24x24xf32>, vector<8x24xf32> -> vector<8x24xf32>
    %c1_367 = arith.constant 1 : index
    %c0_368 = arith.constant 0 : index
    %c0_369 = arith.constant 0 : index
    %547 = vector.load %arg22[%c1_367, %c0_368, %c0_369] : memref<2x1x24xf32, #tpu.memory_space<vmem>>, vector<1x1x24xf32>
    %548 = vector.shape_cast %547 : vector<1x1x24xf32> to vector<1x24xf32>
    %549 = vector.broadcast %548 : vector<1x24xf32> to vector<8x24xf32>
    %550 = arith.addf %546, %549 : vector<8x24xf32>
    %551 = arith.addf %495, %550 : vector<8x24xf32>
    %c2_370 = arith.constant 2 : index
    %c0_371 = arith.constant 0 : index
    %c0_372 = arith.constant 0 : index
    %552 = vector.load %arg23[%c2_370, %c0_371, %c0_372] : memref<4x1x24xf32, #tpu.memory_space<vmem>>, vector<1x1x24xf32>
    %553 = vector.shape_cast %552 : vector<1x1x24xf32> to vector<1x24xf32>
    %c3_373 = arith.constant 3 : index
    %c0_374 = arith.constant 0 : index
    %c0_375 = arith.constant 0 : index
    %554 = vector.load %arg23[%c3_373, %c0_374, %c0_375] : memref<4x1x24xf32, #tpu.memory_space<vmem>>, vector<1x1x24xf32>
    %555 = vector.shape_cast %554 : vector<1x1x24xf32> to vector<1x24xf32>
    %cst_376 = arith.constant dense<0.000000e+00> : vector<8xf32>
    %556 = vector.multi_reduction <add>, %551, %cst_376 [1] : vector<8x24xf32> to vector<8xf32>
    %557 = vector.shape_cast %556 : vector<8xf32> to vector<8x1xf32>
    %cst_377 = arith.constant 2.400000e+01 : f32
    %558 = vector.broadcast %cst_377 : f32 to vector<8x1xf32>
    %559 = arith.divf %557, %558 : vector<8x1xf32>
    %560 = vector.broadcast %559 : vector<8x1xf32> to vector<8x24xf32>
    %561 = arith.subf %551, %560 : vector<8x24xf32>
    %562 = arith.mulf %561, %561 : vector<8x24xf32>
    %cst_378 = arith.constant dense<0.000000e+00> : vector<8xf32>
    %563 = vector.multi_reduction <add>, %562, %cst_378 [1] : vector<8x24xf32> to vector<8xf32>
    %564 = vector.shape_cast %563 : vector<8xf32> to vector<8x1xf32>
    %cst_379 = arith.constant 2.400000e+01 : f32
    %565 = vector.broadcast %cst_379 : f32 to vector<8x1xf32>
    %566 = arith.divf %564, %565 : vector<8x1xf32>
    %567 = vector.broadcast %559 : vector<8x1xf32> to vector<8x24xf32>
    %568 = arith.subf %551, %567 : vector<8x24xf32>
    %cst_380 = arith.constant 9.99999974E-6 : f32
    %569 = vector.broadcast %cst_380 : f32 to vector<8x1xf32>
    %570 = arith.addf %566, %569 : vector<8x1xf32>
    %571 = math.rsqrt %570 : vector<8x1xf32>
    %572 = vector.broadcast %571 : vector<8x1xf32> to vector<8x24xf32>
    %573 = arith.mulf %568, %572 : vector<8x24xf32>
    %574 = vector.broadcast %553 : vector<1x24xf32> to vector<8x24xf32>
    %575 = arith.mulf %573, %574 : vector<8x24xf32>
    %576 = vector.broadcast %555 : vector<1x24xf32> to vector<8x24xf32>
    %577 = arith.addf %575, %576 : vector<8x24xf32>
    %c0_381 = arith.constant 0 : index
    %c0_382 = arith.constant 0 : index
    %c0_383 = arith.constant 0 : index
    %578 = vector.load %arg24[%c0_381, %c0_382, %c0_383] : memref<2x1x24xf32, #tpu.memory_space<vmem>>, vector<1x1x24xf32>
    %579 = vector.shape_cast %578 : vector<1x1x24xf32> to vector<1x24xf32>
    %c1_384 = arith.constant 1 : index
    %c0_385 = arith.constant 0 : index
    %c0_386 = arith.constant 0 : index
    %580 = vector.load %arg24[%c1_384, %c0_385, %c0_386] : memref<2x1x24xf32, #tpu.memory_space<vmem>>, vector<1x1x24xf32>
    %581 = vector.shape_cast %580 : vector<1x1x24xf32> to vector<1x24xf32>
    %cst_387 = arith.constant dense<0.000000e+00> : vector<8xf32>
    %582 = vector.multi_reduction <add>, %577, %cst_387 [1] : vector<8x24xf32> to vector<8xf32>
    %583 = vector.shape_cast %582 : vector<8xf32> to vector<8x1xf32>
    %cst_388 = arith.constant 2.400000e+01 : f32
    %584 = vector.broadcast %cst_388 : f32 to vector<8x1xf32>
    %585 = arith.divf %583, %584 : vector<8x1xf32>
    %586 = vector.broadcast %585 : vector<8x1xf32> to vector<8x24xf32>
    %587 = arith.subf %577, %586 : vector<8x24xf32>
    %588 = arith.mulf %587, %587 : vector<8x24xf32>
    %cst_389 = arith.constant dense<0.000000e+00> : vector<8xf32>
    %589 = vector.multi_reduction <add>, %588, %cst_389 [1] : vector<8x24xf32> to vector<8xf32>
    %590 = vector.shape_cast %589 : vector<8xf32> to vector<8x1xf32>
    %cst_390 = arith.constant 2.400000e+01 : f32
    %591 = vector.broadcast %cst_390 : f32 to vector<8x1xf32>
    %592 = arith.divf %590, %591 : vector<8x1xf32>
    %593 = vector.broadcast %585 : vector<8x1xf32> to vector<8x24xf32>
    %594 = arith.subf %577, %593 : vector<8x24xf32>
    %cst_391 = arith.constant 9.99999974E-6 : f32
    %595 = vector.broadcast %cst_391 : f32 to vector<8x1xf32>
    %596 = arith.addf %592, %595 : vector<8x1xf32>
    %597 = math.rsqrt %596 : vector<8x1xf32>
    %598 = vector.broadcast %597 : vector<8x1xf32> to vector<8x24xf32>
    %599 = arith.mulf %594, %598 : vector<8x24xf32>
    %600 = vector.broadcast %579 : vector<1x24xf32> to vector<8x24xf32>
    %601 = arith.mulf %599, %600 : vector<8x24xf32>
    %602 = vector.broadcast %581 : vector<1x24xf32> to vector<8x24xf32>
    %603 = arith.addf %601, %602 : vector<8x24xf32>
    %c0_392 = arith.constant 0 : index
    %c0_393 = arith.constant 0 : index
    %c0_394 = arith.constant 0 : index
    %604 = vector.load %arg25[%c0_392, %c0_393, %c0_394] : memref<3x24x24xf32, #tpu.memory_space<vmem>>, vector<1x24x24xf32>
    %605 = vector.shape_cast %604 : vector<1x24x24xf32> to vector<24x24xf32>
    %cst_395 = arith.constant dense<0.000000e+00> : vector<8x24xf32>
    %606 = tpu.matmul %603, %605, %cst_395 {dimension_numbers = #tpu.dot_dimension_numbers<[1], [0], [0], [1], [0, 0, 1, 1], [], []>} : vector<8x24xf32>, vector<24x24xf32>, vector<8x24xf32> -> vector<8x24xf32>
    %c0_396 = arith.constant 0 : index
    %c0_397 = arith.constant 0 : index
    %c0_398 = arith.constant 0 : index
    %607 = vector.load %arg26[%c0_396, %c0_397, %c0_398] : memref<3x1x24xf32, #tpu.memory_space<vmem>>, vector<1x1x24xf32>
    %608 = vector.shape_cast %607 : vector<1x1x24xf32> to vector<1x24xf32>
    %609 = vector.broadcast %608 : vector<1x24xf32> to vector<8x24xf32>
    %610 = arith.addf %606, %609 : vector<8x24xf32>
    %c1_399 = arith.constant 1 : index
    %c0_400 = arith.constant 0 : index
    %c0_401 = arith.constant 0 : index
    %611 = vector.load %arg25[%c1_399, %c0_400, %c0_401] : memref<3x24x24xf32, #tpu.memory_space<vmem>>, vector<1x24x24xf32>
    %612 = vector.shape_cast %611 : vector<1x24x24xf32> to vector<24x24xf32>
    %cst_402 = arith.constant dense<0.000000e+00> : vector<8x24xf32>
    %613 = tpu.matmul %603, %612, %cst_402 {dimension_numbers = #tpu.dot_dimension_numbers<[1], [0], [0], [1], [0, 0, 1, 1], [], []>} : vector<8x24xf32>, vector<24x24xf32>, vector<8x24xf32> -> vector<8x24xf32>
    %c1_403 = arith.constant 1 : index
    %c0_404 = arith.constant 0 : index
    %c0_405 = arith.constant 0 : index
    %614 = vector.load %arg26[%c1_403, %c0_404, %c0_405] : memref<3x1x24xf32, #tpu.memory_space<vmem>>, vector<1x1x24xf32>
    %615 = vector.shape_cast %614 : vector<1x1x24xf32> to vector<1x24xf32>
    %616 = vector.broadcast %615 : vector<1x24xf32> to vector<8x24xf32>
    %617 = arith.addf %613, %616 : vector<8x24xf32>
    %c2_406 = arith.constant 2 : index
    %c0_407 = arith.constant 0 : index
    %c0_408 = arith.constant 0 : index
    %618 = vector.load %arg25[%c2_406, %c0_407, %c0_408] : memref<3x24x24xf32, #tpu.memory_space<vmem>>, vector<1x24x24xf32>
    %619 = vector.shape_cast %618 : vector<1x24x24xf32> to vector<24x24xf32>
    %cst_409 = arith.constant dense<0.000000e+00> : vector<8x24xf32>
    %620 = tpu.matmul %603, %619, %cst_409 {dimension_numbers = #tpu.dot_dimension_numbers<[1], [0], [0], [1], [0, 0, 1, 1], [], []>} : vector<8x24xf32>, vector<24x24xf32>, vector<8x24xf32> -> vector<8x24xf32>
    %c2_410 = arith.constant 2 : index
    %c0_411 = arith.constant 0 : index
    %c0_412 = arith.constant 0 : index
    %621 = vector.load %arg26[%c2_410, %c0_411, %c0_412] : memref<3x1x24xf32, #tpu.memory_space<vmem>>, vector<1x1x24xf32>
    %622 = vector.shape_cast %621 : vector<1x1x24xf32> to vector<1x24xf32>
    %623 = vector.broadcast %622 : vector<1x24xf32> to vector<8x24xf32>
    %624 = arith.addf %620, %623 : vector<8x24xf32>
    %c0_413 = arith.constant 0 : index
    %c0_414 = arith.constant 0 : index
    %625 = vector.load %arg27[%c0_413, %c0_414] : memref<1x24xf32, #tpu.memory_space<vmem>>, vector<1x24xf32>
    %c0_415 = arith.constant 0 : index
    %c0_416 = arith.constant 0 : index
    %626 = vector.load %arg28[%c0_415, %c0_416] : memref<1x1xf32, #tpu.memory_space<vmem>>, vector<1x1xf32>
    %627 = vector.extract_strided_slice %610 {offsets = [3, 0], sizes = [1, 24], strides = [1, 1]} : vector<8x24xf32> to vector<1x24xf32>
    %628 = vector.extract_strided_slice %617 {offsets = [0, 0], sizes = [4, 24], strides = [1, 1]} : vector<8x24xf32> to vector<4x24xf32>
    %629 = vector.extract_strided_slice %624 {offsets = [0, 0], sizes = [4, 24], strides = [1, 1]} : vector<8x24xf32> to vector<4x24xf32>
    %cst_417 = arith.constant dense<0.000000e+00> : vector<1x4xf32>
    %630 = tpu.matmul %627, %628, %cst_417 {dimension_numbers = #tpu.dot_dimension_numbers<[1], [1], [0], [0], [0, 0, 1, 0], [], []>} : vector<1x24xf32>, vector<4x24xf32>, vector<1x4xf32> -> vector<1x4xf32>
    %cst_418 = arith.constant dense<0xFF800000> : vector<1xf32>
    %631 = vector.multi_reduction <maximumf>, %630, %cst_418 [1] : vector<1x4xf32> to vector<1xf32>
    %632 = vector.shape_cast %631 : vector<1xf32> to vector<1x1xf32>
    %633 = vector.broadcast %632 : vector<1x1xf32> to vector<1x4xf32>
    %634 = arith.subf %630, %633 : vector<1x4xf32>
    %635 = math.exp %634 : vector<1x4xf32>
    %cst_419 = arith.constant dense<0.000000e+00> : vector<1xf32>
    %636 = vector.multi_reduction <add>, %635, %cst_419 [1] : vector<1x4xf32> to vector<1xf32>
    %637 = vector.shape_cast %636 : vector<1xf32> to vector<1x1xf32>
    %638 = vector.broadcast %637 : vector<1x1xf32> to vector<1x4xf32>
    %639 = arith.divf %635, %638 : vector<1x4xf32>
    %cst_420 = arith.constant dense<0.000000e+00> : vector<1x24xf32>
    %640 = tpu.matmul %639, %629, %cst_420 {dimension_numbers = #tpu.dot_dimension_numbers<[1], [0], [0], [1], [0, 0, 1, 1], [], []>} : vector<1x4xf32>, vector<4x24xf32>, vector<1x24xf32> -> vector<1x24xf32>
    %641 = arith.mulf %640, %625 : vector<1x24xf32>
    %cst_421 = arith.constant dense<0.000000e+00> : vector<1xf32>
    %642 = vector.multi_reduction <add>, %641, %cst_421 [1] : vector<1x24xf32> to vector<1xf32>
    %643 = vector.shape_cast %642 : vector<1xf32> to vector<1x1xf32>
    %644 = arith.addf %643, %626 : vector<1x1xf32>
    %645 = vector.extract_strided_slice %610 {offsets = [7, 0], sizes = [1, 24], strides = [1, 1]} : vector<8x24xf32> to vector<1x24xf32>
    %646 = vector.extract_strided_slice %617 {offsets = [4, 0], sizes = [4, 24], strides = [1, 1]} : vector<8x24xf32> to vector<4x24xf32>
    %647 = vector.extract_strided_slice %624 {offsets = [4, 0], sizes = [4, 24], strides = [1, 1]} : vector<8x24xf32> to vector<4x24xf32>
    %cst_422 = arith.constant dense<0.000000e+00> : vector<1x4xf32>
    %648 = tpu.matmul %645, %646, %cst_422 {dimension_numbers = #tpu.dot_dimension_numbers<[1], [1], [0], [0], [0, 0, 1, 0], [], []>} : vector<1x24xf32>, vector<4x24xf32>, vector<1x4xf32> -> vector<1x4xf32>
    %cst_423 = arith.constant dense<0xFF800000> : vector<1xf32>
    %649 = vector.multi_reduction <maximumf>, %648, %cst_423 [1] : vector<1x4xf32> to vector<1xf32>
    %650 = vector.shape_cast %649 : vector<1xf32> to vector<1x1xf32>
    %651 = vector.broadcast %650 : vector<1x1xf32> to vector<1x4xf32>
    %652 = arith.subf %648, %651 : vector<1x4xf32>
    %653 = math.exp %652 : vector<1x4xf32>
    %cst_424 = arith.constant dense<0.000000e+00> : vector<1xf32>
    %654 = vector.multi_reduction <add>, %653, %cst_424 [1] : vector<1x4xf32> to vector<1xf32>
    %655 = vector.shape_cast %654 : vector<1xf32> to vector<1x1xf32>
    %656 = vector.broadcast %655 : vector<1x1xf32> to vector<1x4xf32>
    %657 = arith.divf %653, %656 : vector<1x4xf32>
    %cst_425 = arith.constant dense<0.000000e+00> : vector<1x24xf32>
    %658 = tpu.matmul %657, %647, %cst_425 {dimension_numbers = #tpu.dot_dimension_numbers<[1], [0], [0], [1], [0, 0, 1, 1], [], []>} : vector<1x4xf32>, vector<4x24xf32>, vector<1x24xf32> -> vector<1x24xf32>
    %659 = arith.mulf %658, %625 : vector<1x24xf32>
    %cst_426 = arith.constant dense<0.000000e+00> : vector<1xf32>
    %660 = vector.multi_reduction <add>, %659, %cst_426 [1] : vector<1x24xf32> to vector<1xf32>
    %661 = vector.shape_cast %660 : vector<1xf32> to vector<1x1xf32>
    %662 = arith.addf %661, %626 : vector<1x1xf32>
    %663 = tpu.concatenate %644, %662 in 0 : vector<1x1xf32>, vector<1x1xf32> -> vector<2x1xf32>
    %c0_427 = arith.constant 0 : index
    %c0_428 = arith.constant 0 : index
    %664 = vector.load %arg29[%c0_427, %c0_428] : memref<2x1xf32, #tpu.memory_space<vmem>>, vector<2x1xf32>
    tpu.vector_store %arg29[%c0_427, %c0_428], %663 {strides = array<i32>} : memref<2x1xf32, #tpu.memory_space<vmem>>, vector<2x1xf32>,
    return
  }
}

</mosaic_0001>

<llo_original>
// kernel: _transformer_forward.1
$region0: #{_transformer_forward.1}
  #allocation0 [shape = 'u32[]', space=smem, size = 0x4, offset = 0x4, fixed_abs, tag = 'smem constant byte address 0x4 - core index']
  #allocation1 [shape = 'u32[144,128]{1,0:T(1,128)}', space=vmem, size = 0x12000, scoped, tag = 'internal scratch']
  #allocation2 [shape = 'f32[1,1]{1,0:T(1,128)S(1)}', space=vmem, size = 0x200, scoped, tag = 'scoped memory for _transformer_forward.1']
  %s0 = inlined_call_operand.smem [shape: u32[30], index: -1, kind: input, shape index: {}]
  %s1 = sld [smem:[%s0]]
  %s2 = scalar_lea.smem %s0, 1
  %s3 = sld [smem:[%s2]]
  %s4 = scalar_lea.smem %s0, 2
  %s5 = sld [smem:[%s4]]
  %s6 = scalar_lea.smem %s0, 3
  %s7 = sld [smem:[%s6]]
  %s8 = scalar_lea.smem %s0, 4
  %s9 = sld [smem:[%s8]]
  %s10 = scalar_lea.smem %s0, 5
  %s11 = sld [smem:[%s10]]
  %s12 = scalar_lea.smem %s0, 6
  %s13 = sld [smem:[%s12]]
  %s14 = scalar_lea.smem %s0, 7
  %s15 = sld [smem:[%s14]]
  %s16 = scalar_lea.smem %s0, 8
  %s17 = sld [smem:[%s16]]
  %s18 = scalar_lea.smem %s0, 9
  %s19 = sld [smem:[%s18]]
  %s20 = scalar_lea.smem %s0, 10
  %s21 = sld [smem:[%s20]]
  %s22 = scalar_lea.smem %s0, 11
  %s23 = sld [smem:[%s22]]
  %s24 = scalar_lea.smem %s0, 12
  %s25 = sld [smem:[%s24]]
  %s26 = scalar_lea.smem %s0, 13
  %s27 = sld [smem:[%s26]]
  %s28 = scalar_lea.smem %s0, 14
  %s29 = sld [smem:[%s28]]
  %s30 = scalar_lea.smem %s0, 15
  %s31 = sld [smem:[%s30]]
  %s32 = scalar_lea.smem %s0, 16
  %s33 = sld [smem:[%s32]]
  %s34 = scalar_lea.smem %s0, 17
  %s35 = sld [smem:[%s34]]
  %s36 = scalar_lea.smem %s0, 18
  %s37 = sld [smem:[%s36]]
  %s38 = scalar_lea.smem %s0, 19
  %s39 = sld [smem:[%s38]]
  %s40 = scalar_lea.smem %s0, 20
  %s41 = sld [smem:[%s40]]
  %s42 = scalar_lea.smem %s0, 21
  %s43 = sld [smem:[%s42]]
  %s44 = scalar_lea.smem %s0, 22
  %s45 = sld [smem:[%s44]]
  %s46 = scalar_lea.smem %s0, 23
  %s47 = sld [smem:[%s46]]
  %s48 = scalar_lea.smem %s0, 24
  %s49 = sld [smem:[%s48]]
  %s50 = scalar_lea.smem %s0, 25
  %s51 = sld [smem:[%s50]]
  %s52 = scalar_lea.smem %s0, 26
  %s53 = sld [smem:[%s52]]
  %s54 = scalar_lea.smem %s0, 27
  %s55 = sld [smem:[%s54]]
  %s56 = scalar_lea.smem %s0, 28
  %s57 = sld [smem:[%s56]]
  %s58 = scalar_lea.smem %s0, 29
  %s59 = sld [smem:[%s58]]
  %s60 = sld [smem:[#allocation0]]
  $region126: #{_transformer_forward.1} parent=0
    _
  %s62 = ssub.s32 1, %s60
  %s63 = scalar_select 0, %s62, %s60
  %v64 = vstv %s57
  %65 = vst [vmem:[#allocation2] sm:$0x1] %v64
  // Predicated region
  $region2: #{_transformer_forward.1} parent=0 // pred_check
    _
  $region3: #{_transformer_forward.1} parent=0 // pred_check_branch
    %67 = sbr.rel (0) target = $region5
  $region4: #{_transformer_forward.1} parent=0 // pred_region
    _
  $region5: #{_transformer_forward.1} parent=0 // pred_fallthru
    _
  // Predicated region
  $region6: #{_transformer_forward.1} parent=0 // pred_check
    _
  $region7: #{_transformer_forward.1} parent=0 // pred_check_branch
    %69 = sbr.rel (0) target = $region9
  $region8: #{_transformer_forward.1} parent=0 // pred_region
    _
  $region9: #{_transformer_forward.1} parent=0 // pred_fallthru
    _
  // Predicated region
  $region10: #{_transformer_forward.1} parent=0 // pred_check
    _
  $region11: #{_transformer_forward.1} parent=0 // pred_check_branch
    %71 = sbr.rel (0) target = $region13
  $region12: #{_transformer_forward.1} parent=0 // pred_region
    _
  $region13: #{_transformer_forward.1} parent=0 // pred_fallthru
    _
  // Predicated region
  $region14: #{_transformer_forward.1} parent=0 // pred_check
    _
  $region15: #{_transformer_forward.1} parent=0 // pred_check_branch
    %73 = sbr.rel (0) target = $region17
  $region16: #{_transformer_forward.1} parent=0 // pred_region
    _
  $region17: #{_transformer_forward.1} parent=0 // pred_fallthru
    _
  // Predicated region
  $region18: #{_transformer_forward.1} parent=0 // pred_check
    _
  $region19: #{_transformer_forward.1} parent=0 // pred_check_branch
    %75 = sbr.rel (0) target = $region21
  $region20: #{_transformer_forward.1} parent=0 // pred_region
    _
  $region21: #{_transformer_forward.1} parent=0 // pred_fallthru
    _
  // Predicated region
  $region22: #{_transformer_forward.1} parent=0 // pred_check
    _
  $region23: #{_transformer_forward.1} parent=0 // pred_check_branch
    %77 = sbr.rel (0) target = $region25
  $region24: #{_transformer_forward.1} parent=0 // pred_region
    _
  $region25: #{_transformer_forward.1} parent=0 // pred_fallthru
    _
  // Predicated region
  $region26: #{_transformer_forward.1} parent=0 // pred_check
    _
  $region27: #{_transformer_forward.1} parent=0 // pred_check_branch
    %79 = sbr.rel (0) target = $region29
  $region28: #{_transformer_forward.1} parent=0 // pred_region
    _
  $region29: #{_transformer_forward.1} parent=0 // pred_fallthru
    _
  // Predicated region
  $region30: #{_transformer_forward.1} parent=0 // pred_check
    _
  $region31: #{_transformer_forward.1} parent=0 // pred_check_branch
    %81 = sbr.rel (0) target = $region33
  $region32: #{_transformer_forward.1} parent=0 // pred_region
    _
  $region33: #{_transformer_forward.1} parent=0 // pred_fallthru
    _
  // Predicated region
  $region34: #{_transformer_forward.1} parent=0 // pred_check
    _
  $region35: #{_transformer_forward.1} parent=0 // pred_check_branch
    %83 = sbr.rel (0) target = $region37
  $region36: #{_transformer_forward.1} parent=0 // pred_region
    _
  $region37: #{_transformer_forward.1} parent=0 // pred_fallthru
    _
  // Predicated region
  $region38: #{_transformer_forward.1} parent=0 // pred_check
    _
  $region39: #{_transformer_forward.1} parent=0 // pred_check_branch
    %85 = sbr.rel (0) target = $region41
  $region40: #{_transformer_forward.1} parent=0 // pred_region
    _
  $region41: #{_transformer_forward.1} parent=0 // pred_fallthru
    _
  // Predicated region
  $region42: #{_transformer_forward.1} parent=0 // pred_check
    _
  $region43: #{_transformer_forward.1} parent=0 // pred_check_branch
    %87 = sbr.rel (0) target = $region45
  $region44: #{_transformer_forward.1} parent=0 // pred_region
    _
  $region45: #{_transformer_forward.1} parent=0 // pred_fallthru
    _
  // Predicated region
  $region46: #{_transformer_forward.1} parent=0 // pred_check
    _
  $region47: #{_transformer_forward.1} parent=0 // pred_check_branch
    %89 = sbr.rel (0) target = $region49
  $region48: #{_transformer_forward.1} parent=0 // pred_region
    _
  $region49: #{_transformer_forward.1} parent=0 // pred_fallthru
    _
  // Predicated region
  $region50: #{_transformer_forward.1} parent=0 // pred_check
    _
  $region51: #{_transformer_forward.1} parent=0 // pred_check_branch
    %91 = sbr.rel (0) target = $region53
  $region52: #{_transformer_forward.1} parent=0 // pred_region
    _
  $region53: #{_transformer_forward.1} parent=0 // pred_fallthru
    _
  // Predicated region
  $region54: #{_transformer_forward.1} parent=0 // pred_check
    _
  $region55: #{_transformer_forward.1} parent=0 // pred_check_branch
    %93 = sbr.rel (0) target = $region57
  $region56: #{_transformer_forward.1} parent=0 // pred_region
    _
  $region57: #{_transformer_forward.1} parent=0 // pred_fallthru
    _
  // Predicated region
  $region58: #{_transformer_forward.1} parent=0 // pred_check
    _
  $region59: #{_transformer_forward.1} parent=0 // pred_check_branch
    %95 = sbr.rel (0) target = $region61
  $region60: #{_transformer_forward.1} parent=0 // pred_region
    _
  $region61: #{_transformer_forward.1} parent=0 // pred_fallthru
    _
  // Predicated region
  $region62: #{_transformer_forward.1} parent=0 // pred_check
    _
  $region63: #{_transformer_forward.1} parent=0 // pred_check_branch
    %97 = sbr.rel (0) target = $region65
  $region64: #{_transformer_forward.1} parent=0 // pred_region
    _
  $region65: #{_transformer_forward.1} parent=0 // pred_fallthru
    _
  // Predicated region
  $region66: #{_transformer_forward.1} parent=0 // pred_check
    _
  $region67: #{_transformer_forward.1} parent=0 // pred_check_branch
    %99 = sbr.rel (0) target = $region69
  $region68: #{_transformer_forward.1} parent=0 // pred_region
    _
  $region69: #{_transformer_forward.1} parent=0 // pred_fallthru
    _
  // Predicated region
  $region70: #{_transformer_forward.1} parent=0 // pred_check
    _
  $region71: #{_transformer_forward.1} parent=0 // pred_check_branch
    %101 = sbr.rel (0) target = $region73
  $region72: #{_transformer_forward.1} parent=0 // pred_region
    _
  $region73: #{_transformer_forward.1} parent=0 // pred_fallthru
    _
  // Predicated region
  $region74: #{_transformer_forward.1} parent=0 // pred_check
    _
  $region75: #{_transformer_forward.1} parent=0 // pred_check_branch
    %103 = sbr.rel (0) target = $region77
  $region76: #{_transformer_forward.1} parent=0 // pred_region
    _
  $region77: #{_transformer_forward.1} parent=0 // pred_fallthru
    _
  // Predicated region
  $region78: #{_transformer_forward.1} parent=0 // pred_check
    _
  $region79: #{_transformer_forward.1} parent=0 // pred_check_branch
    %105 = sbr.rel (0) target = $region81
  $region80: #{_transformer_forward.1} parent=0 // pred_region
    _
  $region81: #{_transformer_forward.1} parent=0 // pred_fallthru
    _
  // Predicated region
  $region82: #{_transformer_forward.1} parent=0 // pred_check
    _
  $region83: #{_transformer_forward.1} parent=0 // pred_check_branch
    %107 = sbr.rel (0) target = $region85
  $region84: #{_transformer_forward.1} parent=0 // pred_region
    _
  $region85: #{_transformer_forward.1} parent=0 // pred_fallthru
    _
  // Predicated region
  $region86: #{_transformer_forward.1} parent=0 // pred_check
    _
  $region87: #{_transformer_forward.1} parent=0 // pred_check_branch
    %109 = sbr.rel (0) target = $region89
  $region88: #{_transformer_forward.1} parent=0 // pred_region
    _
  $region89: #{_transformer_forward.1} parent=0 // pred_fallthru
    _
  // Predicated region
  $region90: #{_transformer_forward.1} parent=0 // pred_check
    _
  $region91: #{_transformer_forward.1} parent=0 // pred_check_branch
    %111 = sbr.rel (0) target = $region93
  $region92: #{_transformer_forward.1} parent=0 // pred_region
    _
  $region93: #{_transformer_forward.1} parent=0 // pred_fallthru
    _
  // Predicated region
  $region94: #{_transformer_forward.1} parent=0 // pred_check
    _
  $region95: #{_transformer_forward.1} parent=0 // pred_check_branch
    %113 = sbr.rel (0) target = $region97
  $region96: #{_transformer_forward.1} parent=0 // pred_region
    _
  $region97: #{_transformer_forward.1} parent=0 // pred_fallthru
    _
  // Predicated region
  $region98: #{_transformer_forward.1} parent=0 // pred_check
    _
  $region99: #{_transformer_forward.1} parent=0 // pred_check_branch
    %115 = sbr.rel (0) target = $region101
  $region100: #{_transformer_forward.1} parent=0 // pred_region
    _
  $region101: #{_transformer_forward.1} parent=0 // pred_fallthru
    _
  // Predicated region
  $region102: #{_transformer_forward.1} parent=0 // pred_check
    _
  $region103: #{_transformer_forward.1} parent=0 // pred_check_branch
    %117 = sbr.rel (0) target = $region105
  $region104: #{_transformer_forward.1} parent=0 // pred_region
    _
  $region105: #{_transformer_forward.1} parent=0 // pred_fallthru
    _
  // Predicated region
  $region106: #{_transformer_forward.1} parent=0 // pred_check
    _
  $region107: #{_transformer_forward.1} parent=0 // pred_check_branch
    %119 = sbr.rel (0) target = $region109
  $region108: #{_transformer_forward.1} parent=0 // pred_region
    _
  $region109: #{_transformer_forward.1} parent=0 // pred_fallthru
    _
  // Predicated region
  $region110: #{_transformer_forward.1} parent=0 // pred_check
    _
  $region111: #{_transformer_forward.1} parent=0 // pred_check_branch
    %121 = sbr.rel (0) target = $region113
  $region112: #{_transformer_forward.1} parent=0 // pred_region
    _
  $region113: #{_transformer_forward.1} parent=0 // pred_fallthru
    _
  // Predicated region
  $region114: #{_transformer_forward.1} parent=0 // pred_check
    _
  $region115: #{_transformer_forward.1} parent=0 // pred_check_branch
    %123 = sbr.rel (0) target = $region117
  $region116: #{_transformer_forward.1} parent=0 // pred_region
    _
  $region117: #{_transformer_forward.1} parent=0 // pred_fallthru
    _
  %v124 = vld [vmem:[%s1] sm:$0xff]
  %v125 = vld [vmem:[%s1 + $0x8] sm:$0xff]
  %v126 = vld [vmem:[%s3] sm:$0x3f]
  %v127 = vld [vmem:[%s5] sm:$0xff]
  %v128 = vld [vmem:[%s5 + $0x8] sm:$0xff]
  %vm129 = vcmask 48128
  %v131 = vsel %vm129, %v124, 0
  %v134 = vsel %vm129, %v125, 0
  %vm136 = vcmask 1045504
  %v138 = vsel %vm136, %v126, 0
  %140 = vmatprep.subr.mxu0 0.0
  %141 = vmatpush1.msra.mxu0 %v138
  %142 = vmatprep.subr.mxu0 0.0
  %143 = vmatpush1.msra.mxu0 0.0
  %144 = vmatprep.subr.mxu0 0.0
  %145 = vmatpush1.msra.mxu0 0.0
  %146 = vmatprep.subr.mxu0 0.0
  %147 = vmatpush1.msra.mxu0 0.0
  %148 = vmatprep.subr.mxu0 0.0
  %149 = vmatpush1.msra.mxu0 0.0
  %150 = vmatprep.subr.mxu0 0.0
  %151 = vmatpush1.msra.mxu0 0.0
  %152 = vmatprep.subr.mxu0 0.0
  %153 = vmatpush1.msra.mxu0 0.0
  %154 = vmatprep.subr.mxu0 0.0
  %155 = vmatpush1.msra.mxu0 0.0
  %156 = vmatprep.subr.mxu0 0.0
  %157 = vmatpush1.msra.mxu0 0.0
  %158 = vmatprep.subr.mxu0 0.0
  %159 = vmatpush1.msra.mxu0 0.0
  %160 = vmatprep.subr.mxu0 0.0
  %161 = vmatpush1.msra.mxu0 0.0
  %162 = vmatprep.subr.mxu0 0.0
  %163 = vmatpush1.msra.mxu0 0.0
  %164 = vmatprep.subr.mxu0 0.0
  %165 = vmatpush1.msra.mxu0 0.0
  %166 = vmatprep.subr.mxu0 0.0
  %167 = vmatpush1.msra.mxu0 0.0
  %168 = vmatprep.subr.mxu0 0.0
  %169 = vmatpush1.msra.mxu0 0.0
  %170 = vmatprep.subr.mxu0 0.0
  %171 = vmatpush1.msra.mxu0 0.0
  %172 = vmatprep.subr.mxu0 0.0
  %173 = vmatpush1.msra.mxu0 0.0
  %174 = vmatprep.subr.mxu0 0.0
  %175 = vmatpush1.msra.mxu0 0.0
  %176 = vmatprep.subr.mxu0 0.0
  %177 = vmatpush1.msra.mxu0 0.0
  %178 = vmatprep.subr.mxu0 0.0
  %179 = vmatpush1.msra.mxu0 0.0
  %180 = vmatprep.subr.mxu0 0.0
  %181 = vmatpush1.msra.mxu0 0.0
  %182 = vmatprep.subr.mxu0 0.0
  %183 = vmatpush1.msra.mxu0 0.0
  %184 = vmatprep.subr.mxu0 0.0
  %185 = vmatpush1.msra.mxu0 0.0
  %186 = vmatprep.subr.mxu0 0.0
  %187 = vmatpush1.msra.mxu0 0.0
  %188 = vmatprep.subr.mxu0 0.0
  %189 = vmatpush1.msra.mxu0 0.0
  %190 = vmatprep.subr.mxu0 0.0
  %191 = vmatpush1.msra.mxu0 0.0
  %192 = vmatprep.subr.mxu0 0.0
  %193 = vmatpush1.msra.mxu0 0.0
  %194 = vmatprep.subr.mxu0 0.0
  %195 = vmatpush1.msra.mxu0 0.0
  %196 = vmatprep.subr.mxu0 0.0
  %197 = vmatpush1.msra.mxu0 0.0
  %198 = vmatprep.subr.mxu0 0.0
  %199 = vmatpush1.msra.mxu0 0.0
  %200 = vmatprep.subr.mxu0 0.0
  %201 = vmatpush1.msra.mxu0 0.0
  %202 = vmatprep.subr.mxu0 0.0
  %203 = vmatpush1.msra.mxu0 0.0
  %204 = vmatprep.mubr.f32.mxu0 0.0
  %205 = vmatmul.mubr.f32.gmra.mrb[0].mxu0 %v131
  %v206 = vpop.f32.mrb[0].mxu0
  %v207 = vadd.f32 %v127, %v206
  %v208 = vpop.f32.mrb[0].mxu0
  %209 = vmatprep.mubr.f32.mxu0 0.0
  %210 = vmatmul.mubr.f32.gmra.mrb[0].mxu0 %v134
  %v211 = vpop.f32.mrb[0].mxu0
  %v212 = vadd.f32 %v128, %v211
  %v213 = vpop.f32.mrb[0].mxu0
  %214 = vdwg.mxu0
  %v215 = vld [vmem:[%s7] sm:$0xff]
  %v216 = vld [vmem:[%s7 + $0x8] sm:$0xff]
  %v217 = vld [vmem:[%s17] sm:$0x1]
  %v218 = vld [vmem:[%s11] sm:$0xff]
  %v219 = vld [vmem:[%s11 + $0x8] sm:$0xff]
  %v220 = vld [vmem:[%s11 + $0x10] sm:$0xff]
  %v221 = vld [vmem:[%s13] sm:$0x1]
  %v223 = vlaneseq
  %v224 = vshrl.u32 %v223, 7
  %v225 = vsub.s32 0, %v224
  %v226 = vrot.slane %v221, %v225
  %vm228 = vcmask 195584
  %v230 = vsel %vm228, %v207, 0
  %v233 = vsel %vm228, %v212, 0
  %235 = vmatprep.subr.mxu0 0.0
  %236 = vmatpush1.msra.mxu0 %v218
  %237 = vmatprep.subr.mxu0 0.0
  %238 = vmatpush1.msra.mxu0 %v219
  %239 = vmatprep.subr.mxu0 0.0
  %240 = vmatpush1.msra.mxu0 %v220
  %241 = vmatprep.subr.mxu0 0.0
  %242 = vmatpush1.msra.mxu0 0.0
  %243 = vmatprep.subr.mxu0 0.0
  %244 = vmatpush1.msra.mxu0 0.0
  %245 = vmatprep.subr.mxu0 0.0
  %246 = vmatpush1.msra.mxu0 0.0
  %247 = vmatprep.subr.mxu0 0.0
  %248 = vmatpush1.msra.mxu0 0.0
  %249 = vmatprep.subr.mxu0 0.0
  %250 = vmatpush1.msra.mxu0 0.0
  %251 = vmatprep.subr.mxu0 0.0
  %252 = vmatpush1.msra.mxu0 0.0
  %253 = vmatprep.subr.mxu0 0.0
  %254 = vmatpush1.msra.mxu0 0.0
  %255 = vmatprep.subr.mxu0 0.0
  %256 = vmatpush1.msra.mxu0 0.0
  %257 = vmatprep.subr.mxu0 0.0
  %258 = vmatpush1.msra.mxu0 0.0
  %259 = vmatprep.subr.mxu0 0.0
  %260 = vmatpush1.msra.mxu0 0.0
  %261 = vmatprep.subr.mxu0 0.0
  %262 = vmatpush1.msra.mxu0 0.0
  %263 = vmatprep.subr.mxu0 0.0
  %264 = vmatpush1.msra.mxu0 0.0
  %265 = vmatprep.subr.mxu0 0.0
  %266 = vmatpush1.msra.mxu0 0.0
  %267 = vmatprep.subr.mxu0 0.0
  %268 = vmatpush1.msra.mxu0 0.0
  %269 = vmatprep.subr.mxu0 0.0
  %270 = vmatpush1.msra.mxu0 0.0
  %271 = vmatprep.subr.mxu0 0.0
  %272 = vmatpush1.msra.mxu0 0.0
  %273 = vmatprep.subr.mxu0 0.0
  %274 = vmatpush1.msra.mxu0 0.0
  %275 = vmatprep.subr.mxu0 0.0
  %276 = vmatpush1.msra.mxu0 0.0
  %277 = vmatprep.subr.mxu0 0.0
  %278 = vmatpush1.msra.mxu0 0.0
  %279 = vmatprep.subr.mxu0 0.0
  %280 = vmatpush1.msra.mxu0 0.0
  %281 = vmatprep.subr.mxu0 0.0
  %282 = vmatpush1.msra.mxu0 0.0
  %283 = vmatprep.subr.mxu0 0.0
  %284 = vmatpush1.msra.mxu0 0.0
  %285 = vmatprep.subr.mxu0 0.0
  %286 = vmatpush1.msra.mxu0 0.0
  %287 = vmatprep.subr.mxu0 0.0
  %288 = vmatpush1.msra.mxu0 0.0
  %289 = vmatprep.subr.mxu0 0.0
  %290 = vmatpush1.msra.mxu0 0.0
  %291 = vmatprep.subr.mxu0 0.0
  %292 = vmatpush1.msra.mxu0 0.0
  %293 = vmatprep.subr.mxu0 0.0
  %294 = vmatpush1.msra.mxu0 0.0
  %295 = vmatprep.subr.mxu0 0.0
  %296 = vmatpush1.msra.mxu0 0.0
  %297 = vmatprep.subr.mxu0 0.0
  %298 = vmatpush1.msra.mxu0 0.0
  %299 = vmatprep.mubr.f32.mxu0 0.0
  %300 = vmatmul.mubr.f32.gmra.mrb[0].mxu0 %v230
  %v301 = vpop.f32.mrb[0].mxu0
  %v302 = vadd.f32 %v226, %v301
  %v303 = vpop.f32.mrb[0].mxu0
  %304 = vmatprep.mubr.f32.mxu0 0.0
  %305 = vmatmul.mubr.f32.gmra.mrb[0].mxu0 %v233
  %v306 = vpop.f32.mrb[0].mxu0
  %v307 = vadd.f32 %v226, %v306
  %v308 = vpop.f32.mrb[0].mxu0
  %309 = vdwg.mxu0
  %s310 = scalar_lea.vmem %s11, 96
  %v311 = vld [vmem:[%s310] sm:$0xff]
  %v312 = vld [vmem:[%s310 + $0x8] sm:$0xff]
  %v313 = vld [vmem:[%s310 + $0x10] sm:$0xff]
  %s314 = scalar_lea.vmem %s13, 4
  %v315 = vld [vmem:[%s314] sm:$0x1]
  %v317 = vlaneseq
  %v318 = vshrl.u32 %v317, 7
  %v319 = vsub.s32 0, %v318
  %v320 = vrot.slane %v315, %v319
  %322 = vmatprep.subr.mxu0 0.0
  %323 = vmatpush1.msra.mxu0 %v311
  %324 = vmatprep.subr.mxu0 0.0
  %325 = vmatpush1.msra.mxu0 %v312
  %326 = vmatprep.subr.mxu0 0.0
  %327 = vmatpush1.msra.mxu0 %v313
  %328 = vmatprep.subr.mxu0 0.0
  %329 = vmatpush1.msra.mxu0 0.0
  %330 = vmatprep.subr.mxu0 0.0
  %331 = vmatpush1.msra.mxu0 0.0
  %332 = vmatprep.subr.mxu0 0.0
  %333 = vmatpush1.msra.mxu0 0.0
  %334 = vmatprep.subr.mxu0 0.0
  %335 = vmatpush1.msra.mxu0 0.0
  %336 = vmatprep.subr.mxu0 0.0
  %337 = vmatpush1.msra.mxu0 0.0
  %338 = vmatprep.subr.mxu0 0.0
  %339 = vmatpush1.msra.mxu0 0.0
  %340 = vmatprep.subr.mxu0 0.0
  %341 = vmatpush1.msra.mxu0 0.0
  %342 = vmatprep.subr.mxu0 0.0
  %343 = vmatpush1.msra.mxu0 0.0
  %344 = vmatprep.subr.mxu0 0.0
  %345 = vmatpush1.msra.mxu0 0.0
  %346 = vmatprep.subr.mxu0 0.0
  %347 = vmatpush1.msra.mxu0 0.0
  %348 = vmatprep.subr.mxu0 0.0
  %349 = vmatpush1.msra.mxu0 0.0
  %350 = vmatprep.subr.mxu0 0.0
  %351 = vmatpush1.msra.mxu0 0.0
  %352 = vmatprep.subr.mxu0 0.0
  %353 = vmatpush1.msra.mxu0 0.0
  %354 = vmatprep.subr.mxu0 0.0
  %355 = vmatpush1.msra.mxu0 0.0
  %356 = vmatprep.subr.mxu0 0.0
  %357 = vmatpush1.msra.mxu0 0.0
  %358 = vmatprep.subr.mxu0 0.0
  %359 = vmatpush1.msra.mxu0 0.0
  %360 = vmatprep.subr.mxu0 0.0
  %361 = vmatpush1.msra.mxu0 0.0
  %362 = vmatprep.subr.mxu0 0.0
  %363 = vmatpush1.msra.mxu0 0.0
  %364 = vmatprep.subr.mxu0 0.0
  %365 = vmatpush1.msra.mxu0 0.0
  %366 = vmatprep.subr.mxu0 0.0
  %367 = vmatpush1.msra.mxu0 0.0
  %368 = vmatprep.subr.mxu0 0.0
  %369 = vmatpush1.msra.mxu0 0.0
  %370 = vmatprep.subr.mxu0 0.0
  %371 = vmatpush1.msra.mxu0 0.0
  %372 = vmatprep.subr.mxu0 0.0
  %373 = vmatpush1.msra.mxu0 0.0
  %374 = vmatprep.subr.mxu0 0.0
  %375 = vmatpush1.msra.mxu0 0.0
  %376 = vmatprep.subr.mxu0 0.0
  %377 = vmatpush1.msra.mxu0 0.0
  %378 = vmatprep.subr.mxu0 0.0
  %379 = vmatpush1.msra.mxu0 0.0
  %380 = vmatprep.subr.mxu0 0.0
  %381 = vmatpush1.msra.mxu0 0.0
  %382 = vmatprep.subr.mxu0 0.0
  %383 = vmatpush1.msra.mxu0 0.0
  %384 = vmatprep.subr.mxu0 0.0
  %385 = vmatpush1.msra.mxu0 0.0
  %386 = vmatprep.mubr.f32.mxu0 0.0
  %387 = vmatmul.mubr.f32.gmra.mrb[0].mxu0 %v230
  %v388 = vpop.f32.mrb[0].mxu0
  %v389 = vadd.f32 %v320, %v388
  %v390 = vpop.f32.mrb[0].mxu0
  %391 = vmatprep.mubr.f32.mxu0 0.0
  %392 = vmatmul.mubr.f32.gmra.mrb[0].mxu0 %v233
  %v393 = vpop.f32.mrb[0].mxu0
  %v394 = vadd.f32 %v320, %v393
  %v395 = vpop.f32.mrb[0].mxu0
  %396 = vdwg.mxu0
  %s397 = scalar_lea.vmem %s11, 192
  %v398 = vld [vmem:[%s397] sm:$0xff]
  %v399 = vld [vmem:[%s397 + $0x8] sm:$0xff]
  %v400 = vld [vmem:[%s397 + $0x10] sm:$0xff]
  %s401 = scalar_lea.vmem %s13, 8
  %v402 = vld [vmem:[%s401] sm:$0x1]
  %v404 = vlaneseq
  %v405 = vshrl.u32 %v404, 7
  %v406 = vsub.s32 0, %v405
  %v407 = vrot.slane %v402, %v406
  %409 = vmatprep.subr.mxu0 0.0
  %410 = vmatpush1.msra.mxu0 %v398
  %411 = vmatprep.subr.mxu0 0.0
  %412 = vmatpush1.msra.mxu0 %v399
  %413 = vmatprep.subr.mxu0 0.0
  %414 = vmatpush1.msra.mxu0 %v400
  %415 = vmatprep.subr.mxu0 0.0
  %416 = vmatpush1.msra.mxu0 0.0
  %417 = vmatprep.subr.mxu0 0.0
  %418 = vmatpush1.msra.mxu0 0.0
  %419 = vmatprep.subr.mxu0 0.0
  %420 = vmatpush1.msra.mxu0 0.0
  %421 = vmatprep.subr.mxu0 0.0
  %422 = vmatpush1.msra.mxu0 0.0
  %423 = vmatprep.subr.mxu0 0.0
  %424 = vmatpush1.msra.mxu0 0.0
  %425 = vmatprep.subr.mxu0 0.0
  %426 = vmatpush1.msra.mxu0 0.0
  %427 = vmatprep.subr.mxu0 0.0
  %428 = vmatpush1.msra.mxu0 0.0
  %429 = vmatprep.subr.mxu0 0.0
  %430 = vmatpush1.msra.mxu0 0.0
  %431 = vmatprep.subr.mxu0 0.0
  %432 = vmatpush1.msra.mxu0 0.0
  %433 = vmatprep.subr.mxu0 0.0
  %434 = vmatpush1.msra.mxu0 0.0
  %435 = vmatprep.subr.mxu0 0.0
  %436 = vmatpush1.msra.mxu0 0.0
  %437 = vmatprep.subr.mxu0 0.0
  %438 = vmatpush1.msra.mxu0 0.0
  %439 = vmatprep.subr.mxu0 0.0
  %440 = vmatpush1.msra.mxu0 0.0
  %441 = vmatprep.subr.mxu0 0.0
  %442 = vmatpush1.msra.mxu0 0.0
  %443 = vmatprep.subr.mxu0 0.0
  %444 = vmatpush1.msra.mxu0 0.0
  %445 = vmatprep.subr.mxu0 0.0
  %446 = vmatpush1.msra.mxu0 0.0
  %447 = vmatprep.subr.mxu0 0.0
  %448 = vmatpush1.msra.mxu0 0.0
  %449 = vmatprep.subr.mxu0 0.0
  %450 = vmatpush1.msra.mxu0 0.0
  %451 = vmatprep.subr.mxu0 0.0
  %452 = vmatpush1.msra.mxu0 0.0
  %453 = vmatprep.subr.mxu0 0.0
  %454 = vmatpush1.msra.mxu0 0.0
  %455 = vmatprep.subr.mxu0 0.0
  %456 = vmatpush1.msra.mxu0 0.0
  %457 = vmatprep.subr.mxu0 0.0
  %458 = vmatpush1.msra.mxu0 0.0
  %459 = vmatprep.subr.mxu0 0.0
  %460 = vmatpush1.msra.mxu0 0.0
  %461 = vmatprep.subr.mxu0 0.0
  %462 = vmatpush1.msra.mxu0 0.0
  %463 = vmatprep.subr.mxu0 0.0
  %464 = vmatpush1.msra.mxu0 0.0
  %465 = vmatprep.subr.mxu0 0.0
  %466 = vmatpush1.msra.mxu0 0.0
  %467 = vmatprep.subr.mxu0 0.0
  %468 = vmatpush1.msra.mxu0 0.0
  %469 = vmatprep.subr.mxu0 0.0
  %470 = vmatpush1.msra.mxu0 0.0
  %471 = vmatprep.subr.mxu0 0.0
  %472 = vmatpush1.msra.mxu0 0.0
  %473 = vmatprep.mubr.f32.mxu0 0.0
  %474 = vmatmul.mubr.f32.gmra.mrb[0].mxu0 %v230
  %v475 = vpop.f32.mrb[0].mxu0
  %v476 = vadd.f32 %v407, %v475
  %v477 = vpop.f32.mrb[0].mxu0
  %478 = vmatprep.mubr.f32.mxu0 0.0
  %479 = vmatmul.mubr.f32.gmra.mrb[0].mxu0 %v233
  %v480 = vpop.f32.mrb[0].mxu0
  %v481 = vadd.f32 %v407, %v480
  %v482 = vpop.f32.mrb[0].mxu0
  %483 = vdwg.mxu0
  %v485 = vsel %vm129, %v302, 0
  %v488 = vsel %vm129, %v307, 0
  %v491 = vsel %vm129, %v389, 0
  %v494 = vsel %vm129, %v394, 0
  %496 = vmatprep.subr.mxu0 0.0
  %497 = vmatpush1.xpose.msra.mxu0 %v491
  %498 = vmatprep.subr.mxu0 0.0
  %499 = vmatpush1.xpose.msra.mxu0 %v494
  %500 = vmatprep.subr.mxu0 0.0
  %501 = vmatpush1.xpose.msra.mxu0 0.0
  %502 = vmatprep.subr.mxu0 0.0
  %503 = vmatpush1.xpose.msra.mxu0 0.0
  %504 = vmatprep.subr.mxu0 0.0
  %505 = vmatpush1.xpose.msra.mxu0 0.0
  %506 = vmatprep.subr.mxu0 0.0
  %507 = vmatpush1.xpose.msra.mxu0 0.0
  %508 = vmatprep.subr.mxu0 0.0
  %509 = vmatpush1.xpose.msra.mxu0 0.0
  %510 = vmatprep.subr.mxu0 0.0
  %511 = vmatpush1.xpose.msra.mxu0 0.0
  %512 = vmatprep.subr.mxu0 0.0
  %513 = vmatpush1.xpose.msra.mxu0 0.0
  %514 = vmatprep.subr.mxu0 0.0
  %515 = vmatpush1.xpose.msra.mxu0 0.0
  %516 = vmatprep.subr.mxu0 0.0
  %517 = vmatpush1.xpose.msra.mxu0 0.0
  %518 = vmatprep.subr.mxu0 0.0
  %519 = vmatpush1.xpose.msra.mxu0 0.0
  %520 = vmatprep.subr.mxu0 0.0
  %521 = vmatpush1.xpose.msra.mxu0 0.0
  %522 = vmatprep.subr.mxu0 0.0
  %523 = vmatpush1.xpose.msra.mxu0 0.0
  %524 = vmatprep.subr.mxu0 0.0
  %525 = vmatpush1.xpose.msra.mxu0 0.0
  %526 = vmatprep.subr.mxu0 0.0
  %527 = vmatpush1.xpose.msra.mxu0 0.0
  %528 = vmatprep.subr.mxu0 0.0
  %529 = vmatpush1.xpose.msra.mxu0 0.0
  %530 = vmatprep.subr.mxu0 0.0
  %531 = vmatpush1.xpose.msra.mxu0 0.0
  %532 = vmatprep.subr.mxu0 0.0
  %533 = vmatpush1.xpose.msra.mxu0 0.0
  %534 = vmatprep.subr.mxu0 0.0
  %535 = vmatpush1.xpose.msra.mxu0 0.0
  %536 = vmatprep.subr.mxu0 0.0
  %537 = vmatpush1.xpose.msra.mxu0 0.0
  %538 = vmatprep.subr.mxu0 0.0
  %539 = vmatpush1.xpose.msra.mxu0 0.0
  %540 = vmatprep.subr.mxu0 0.0
  %541 = vmatpush1.xpose.msra.mxu0 0.0
  %542 = vmatprep.subr.mxu0 0.0
  %543 = vmatpush1.xpose.msra.mxu0 0.0
  %544 = vmatprep.subr.mxu0 0.0
  %545 = vmatpush1.xpose.msra.mxu0 0.0
  %546 = vmatprep.subr.mxu0 0.0
  %547 = vmatpush1.xpose.msra.mxu0 0.0
  %548 = vmatprep.subr.mxu0 0.0
  %549 = vmatpush1.xpose.msra.mxu0 0.0
  %550 = vmatprep.subr.mxu0 0.0
  %551 = vmatpush1.xpose.msra.mxu0 0.0
  %552 = vmatprep.subr.mxu0 0.0
  %553 = vmatpush1.xpose.msra.mxu0 0.0
  %554 = vmatprep.subr.mxu0 0.0
  %555 = vmatpush1.xpose.msra.mxu0 0.0
  %556 = vmatprep.subr.mxu0 0.0
  %557 = vmatpush1.xpose.msra.mxu0 0.0
  %558 = vmatprep.subr.mxu0 0.0
  %559 = vmatpush1.xpose.msra.mxu0 0.0
  %560 = vmatprep.mubr.f32.mxu0 0.0
  %561 = vmatmul.mubr.f32.gmra.mrb[0].mxu0 %v485
  %v562 = vpop.f32.mrb[0].mxu0
  %v563 = vadd.f32 0.0, %v562
  %v564 = vpop.f32.mrb[0].mxu0
  %565 = vmatprep.mubr.f32.mxu0 0.0
  %566 = vmatmul.mubr.f32.gmra.mrb[0].mxu0 %v488
  %v567 = vpop.f32.mrb[0].mxu0
  %v568 = vadd.f32 0.0, %v567
  %v569 = vpop.f32.mrb[0].mxu0
  %570 = vdwg.mxu0
  %v571 = vmul.f32 %v563, 0.4082483
  %v572 = vmul.f32 %v568, 0.4082483
  %v573 = vadd.f32 %v571, %v215
  %v574 = vadd.f32 %v572, %v216
  %vm575 = vcmask 130048
  %v576 = vsel %vm575, %v573, -inf
  %577 = vmax.xlane.f32.xlu0 %v576
  %v578 = vpop.xlane.xlu0 %577
  %v579 = vsel %vm575, %v574, -inf
  %580 = vmax.xlane.f32.xlu0 %v579
  %v581 = vpop.xlane.xlu0 %580
  %v582 = vsub.f32 %v573, %v578
  %v583 = vsub.f32 %v574, %v581
  %v584 = vmul.f32 %v582, 1.442695
  %v585 = vpow.pop %v584
  %v586 = vmul.f32 %v583, 1.442695
  %v587 = vpow.pop %v586
  %v588 = vsel %vm575, %v585, 0.0
  %589 = vadd.xlane.f32.xlu0 %v588
  %v590 = vpop.xlane.xlu0 %589
  %v591 = vsel %vm575, %v587, 0.0
  %592 = vadd.xlane.f32.xlu0 %v591
  %v593 = vpop.xlane.xlu0 %592
  %v594 = vrcp.pop %v590
  %v595 = vmul.f32 %v585, %v594
  %v596 = vrcp.pop %v593
  %v597 = vmul.f32 %v587, %v596
  %v599 = vsel %vm575, %v595, 0
  %v602 = vsel %vm575, %v597, 0
  %604 = vmatprep.subr.mxu0 0.0
  %605 = vmatpush1.msra.mxu0 %v476
  %606 = vmatprep.subr.mxu0 0.0
  %607 = vmatpush1.msra.mxu0 %v481
  %608 = vmatprep.subr.mxu0 0.0
  %609 = vmatpush1.msra.mxu0 0.0
  %610 = vmatprep.subr.mxu0 0.0
  %611 = vmatpush1.msra.mxu0 0.0
  %612 = vmatprep.subr.mxu0 0.0
  %613 = vmatpush1.msra.mxu0 0.0
  %614 = vmatprep.subr.mxu0 0.0
  %615 = vmatpush1.msra.mxu0 0.0
  %616 = vmatprep.subr.mxu0 0.0
  %617 = vmatpush1.msra.mxu0 0.0
  %618 = vmatprep.subr.mxu0 0.0
  %619 = vmatpush1.msra.mxu0 0.0
  %620 = vmatprep.subr.mxu0 0.0
  %621 = vmatpush1.msra.mxu0 0.0
  %622 = vmatprep.subr.mxu0 0.0
  %623 = vmatpush1.msra.mxu0 0.0
  %624 = vmatprep.subr.mxu0 0.0
  %625 = vmatpush1.msra.mxu0 0.0
  %626 = vmatprep.subr.mxu0 0.0
  %627 = vmatpush1.msra.mxu0 0.0
  %628 = vmatprep.subr.mxu0 0.0
  %629 = vmatpush1.msra.mxu0 0.0
  %630 = vmatprep.subr.mxu0 0.0
  %631 = vmatpush1.msra.mxu0 0.0
  %632 = vmatprep.subr.mxu0 0.0
  %633 = vmatpush1.msra.mxu0 0.0
  %634 = vmatprep.subr.mxu0 0.0
  %635 = vmatpush1.msra.mxu0 0.0
  %636 = vmatprep.subr.mxu0 0.0
  %637 = vmatpush1.msra.mxu0 0.0
  %638 = vmatprep.subr.mxu0 0.0
  %639 = vmatpush1.msra.mxu0 0.0
  %640 = vmatprep.subr.mxu0 0.0
  %641 = vmatpush1.msra.mxu0 0.0
  %642 = vmatprep.subr.mxu0 0.0
  %643 = vmatpush1.msra.mxu0 0.0
  %644 = vmatprep.subr.mxu0 0.0
  %645 = vmatpush1.msra.mxu0 0.0
  %646 = vmatprep.subr.mxu0 0.0
  %647 = vmatpush1.msra.mxu0 0.0
  %648 = vmatprep.subr.mxu0 0.0
  %649 = vmatpush1.msra.mxu0 0.0
  %650 = vmatprep.subr.mxu0 0.0
  %651 = vmatpush1.msra.mxu0 0.0
  %652 = vmatprep.subr.mxu0 0.0
  %653 = vmatpush1.msra.mxu0 0.0
  %654 = vmatprep.subr.mxu0 0.0
  %655 = vmatpush1.msra.mxu0 0.0
  %656 = vmatprep.subr.mxu0 0.0
  %657 = vmatpush1.msra.mxu0 0.0
  %658 = vmatprep.subr.mxu0 0.0
  %659 = vmatpush1.msra.mxu0 0.0
  %660 = vmatprep.subr.mxu0 0.0
  %661 = vmatpush1.msra.mxu0 0.0
  %662 = vmatprep.subr.mxu0 0.0
  %663 = vmatpush1.msra.mxu0 0.0
  %664 = vmatprep.subr.mxu0 0.0
  %665 = vmatpush1.msra.mxu0 0.0
  %666 = vmatprep.subr.mxu0 0.0
  %667 = vmatpush1.msra.mxu0 0.0
  %668 = vmatprep.mubr.f32.mxu0 0.0
  %669 = vmatmul.mubr.f32.gmra.mrb[0].mxu0 %v599
  %v670 = vpop.f32.mrb[0].mxu0
  %v671 = vadd.f32 0.0, %v670
  %v672 = vpop.f32.mrb[0].mxu0
  %673 = vmatprep.mubr.f32.mxu0 0.0
  %674 = vmatmul.mubr.f32.gmra.mrb[0].mxu0 %v602
  %v675 = vpop.f32.mrb[0].mxu0
  %v676 = vadd.f32 0.0, %v675
  %v677 = vpop.f32.mrb[0].mxu0
  %678 = vdwg.mxu0
  %v679 = vld [vmem:[%s15] sm:$0x3f]
  %v681 = vsel %vm129, %v671, 0
  %v684 = vsel %vm129, %v676, 0
  %v687 = vsel %vm136, %v679, 0
  %689 = vmatprep.subr.mxu0 0.0
  %690 = vmatpush1.msra.mxu0 %v687
  %691 = vmatprep.subr.mxu0 0.0
  %692 = vmatpush1.msra.mxu0 0.0
  %693 = vmatprep.subr.mxu0 0.0
  %694 = vmatpush1.msra.mxu0 0.0
  %695 = vmatprep.subr.mxu0 0.0
  %696 = vmatpush1.msra.mxu0 0.0
  %697 = vmatprep.subr.mxu0 0.0
  %698 = vmatpush1.msra.mxu0 0.0
  %699 = vmatprep.subr.mxu0 0.0
  %700 = vmatpush1.msra.mxu0 0.0
  %701 = vmatprep.subr.mxu0 0.0
  %702 = vmatpush1.msra.mxu0 0.0
  %703 = vmatprep.subr.mxu0 0.0
  %704 = vmatpush1.msra.mxu0 0.0
  %705 = vmatprep.subr.mxu0 0.0
  %706 = vmatpush1.msra.mxu0 0.0
  %707 = vmatprep.subr.mxu0 0.0
  %708 = vmatpush1.msra.mxu0 0.0
  %709 = vmatprep.subr.mxu0 0.0
  %710 = vmatpush1.msra.mxu0 0.0
  %711 = vmatprep.subr.mxu0 0.0
  %712 = vmatpush1.msra.mxu0 0.0
  %713 = vmatprep.subr.mxu0 0.0
  %714 = vmatpush1.msra.mxu0 0.0
  %715 = vmatprep.subr.mxu0 0.0
  %716 = vmatpush1.msra.mxu0 0.0
  %717 = vmatprep.subr.mxu0 0.0
  %718 = vmatpush1.msra.mxu0 0.0
  %719 = vmatprep.subr.mxu0 0.0
  %720 = vmatpush1.msra.mxu0 0.0
  %721 = vmatprep.subr.mxu0 0.0
  %722 = vmatpush1.msra.mxu0 0.0
  %723 = vmatprep.subr.mxu0 0.0
  %724 = vmatpush1.msra.mxu0 0.0
  %725 = vmatprep.subr.mxu0 0.0
  %726 = vmatpush1.msra.mxu0 0.0
  %727 = vmatprep.subr.mxu0 0.0
  %728 = vmatpush1.msra.mxu0 0.0
  %729 = vmatprep.subr.mxu0 0.0
  %730 = vmatpush1.msra.mxu0 0.0
  %731 = vmatprep.subr.mxu0 0.0
  %732 = vmatpush1.msra.mxu0 0.0
  %733 = vmatprep.subr.mxu0 0.0
  %734 = vmatpush1.msra.mxu0 0.0
  %735 = vmatprep.subr.mxu0 0.0
  %736 = vmatpush1.msra.mxu0 0.0
  %737 = vmatprep.subr.mxu0 0.0
  %738 = vmatpush1.msra.mxu0 0.0
  %739 = vmatprep.subr.mxu0 0.0
  %740 = vmatpush1.msra.mxu0 0.0
  %741 = vmatprep.subr.mxu0 0.0
  %742 = vmatpush1.msra.mxu0 0.0
  %743 = vmatprep.subr.mxu0 0.0
  %744 = vmatpush1.msra.mxu0 0.0
  %745 = vmatprep.subr.mxu0 0.0
  %746 = vmatpush1.msra.mxu0 0.0
  %747 = vmatprep.subr.mxu0 0.0
  %748 = vmatpush1.msra.mxu0 0.0
  %749 = vmatprep.subr.mxu0 0.0
  %750 = vmatpush1.msra.mxu0 0.0
  %751 = vmatprep.subr.mxu0 0.0
  %752 = vmatpush1.msra.mxu0 0.0
  %753 = vmatprep.mubr.f32.mxu0 0.0
  %754 = vmatmul.mubr.f32.gmra.mrb[0].mxu0 %v681
  %v755 = vpop.f32.mrb[0].mxu0
  %v756 = vadd.f32 0.0, %v755
  %v757 = vpop.f32.mrb[0].mxu0
  %758 = vmatprep.mubr.f32.mxu0 0.0
  %759 = vmatmul.mubr.f32.gmra.mrb[0].mxu0 %v684
  %v760 = vpop.f32.mrb[0].mxu0
  %v761 = vadd.f32 0.0, %v760
  %v762 = vpop.f32.mrb[0].mxu0
  %763 = vdwg.mxu0
  %v765 = vlaneseq
  %v766 = vshrl.u32 %v765, 7
  %v767 = vsub.s32 0, %v766
  %v768 = vrot.slane %v217, %v767
  %v770 = vadd.f32 %v768, %v756
  %v771 = vadd.f32 %v768, %v761
  %s772 = scalar_lea.vmem %s11, 24
  %v773 = vld [vmem:[%s772] sm:$0xff]
  %v774 = vld [vmem:[%s772 + $0x8] sm:$0xff]
  %v775 = vld [vmem:[%s772 + $0x10] sm:$0xff]
  %s776 = scalar_lea.vmem %s13, 1
  %v777 = vld [vmem:[%s776] sm:$0x1]
  %v779 = vlaneseq
  %v780 = vshrl.u32 %v779, 7
  %v781 = vsub.s32 0, %v780
  %v782 = vrot.slane %v777, %v781
  %784 = vmatprep.subr.mxu0 0.0
  %785 = vmatpush1.msra.mxu0 %v773
  %786 = vmatprep.subr.mxu0 0.0
  %787 = vmatpush1.msra.mxu0 %v774
  %788 = vmatprep.subr.mxu0 0.0
  %789 = vmatpush1.msra.mxu0 %v775
  %790 = vmatprep.subr.mxu0 0.0
  %791 = vmatpush1.msra.mxu0 0.0
  %792 = vmatprep.subr.mxu0 0.0
  %793 = vmatpush1.msra.mxu0 0.0
  %794 = vmatprep.subr.mxu0 0.0
  %795 = vmatpush1.msra.mxu0 0.0
  %796 = vmatprep.subr.mxu0 0.0
  %797 = vmatpush1.msra.mxu0 0.0
  %798 = vmatprep.subr.mxu0 0.0
  %799 = vmatpush1.msra.mxu0 0.0
  %800 = vmatprep.subr.mxu0 0.0
  %801 = vmatpush1.msra.mxu0 0.0
  %802 = vmatprep.subr.mxu0 0.0
  %803 = vmatpush1.msra.mxu0 0.0
  %804 = vmatprep.subr.mxu0 0.0
  %805 = vmatpush1.msra.mxu0 0.0
  %806 = vmatprep.subr.mxu0 0.0
  %807 = vmatpush1.msra.mxu0 0.0
  %808 = vmatprep.subr.mxu0 0.0
  %809 = vmatpush1.msra.mxu0 0.0
  %810 = vmatprep.subr.mxu0 0.0
  %811 = vmatpush1.msra.mxu0 0.0
  %812 = vmatprep.subr.mxu0 0.0
  %813 = vmatpush1.msra.mxu0 0.0
  %814 = vmatprep.subr.mxu0 0.0
  %815 = vmatpush1.msra.mxu0 0.0
  %816 = vmatprep.subr.mxu0 0.0
  %817 = vmatpush1.msra.mxu0 0.0
  %818 = vmatprep.subr.mxu0 0.0
  %819 = vmatpush1.msra.mxu0 0.0
  %820 = vmatprep.subr.mxu0 0.0
  %821 = vmatpush1.msra.mxu0 0.0
  %822 = vmatprep.subr.mxu0 0.0
  %823 = vmatpush1.msra.mxu0 0.0
  %824 = vmatprep.subr.mxu0 0.0
  %825 = vmatpush1.msra.mxu0 0.0
  %826 = vmatprep.subr.mxu0 0.0
  %827 = vmatpush1.msra.mxu0 0.0
  %828 = vmatprep.subr.mxu0 0.0
  %829 = vmatpush1.msra.mxu0 0.0
  %830 = vmatprep.subr.mxu0 0.0
  %831 = vmatpush1.msra.mxu0 0.0
  %832 = vmatprep.subr.mxu0 0.0
  %833 = vmatpush1.msra.mxu0 0.0
  %834 = vmatprep.subr.mxu0 0.0
  %835 = vmatpush1.msra.mxu0 0.0
  %836 = vmatprep.subr.mxu0 0.0
  %837 = vmatpush1.msra.mxu0 0.0
  %838 = vmatprep.subr.mxu0 0.0
  %839 = vmatpush1.msra.mxu0 0.0
  %840 = vmatprep.subr.mxu0 0.0
  %841 = vmatpush1.msra.mxu0 0.0
  %842 = vmatprep.subr.mxu0 0.0
  %843 = vmatpush1.msra.mxu0 0.0
  %844 = vmatprep.subr.mxu0 0.0
  %845 = vmatpush1.msra.mxu0 0.0
  %846 = vmatprep.subr.mxu0 0.0
  %847 = vmatpush1.msra.mxu0 0.0
  %848 = vmatprep.mubr.f32.mxu0 0.0
  %849 = vmatmul.mubr.f32.gmra.mrb[0].mxu0 %v230
  %v850 = vpop.f32.mrb[0].mxu0
  %v851 = vadd.f32 %v782, %v850
  %v852 = vpop.f32.mrb[0].mxu0
  %853 = vmatprep.mubr.f32.mxu0 0.0
  %854 = vmatmul.mubr.f32.gmra.mrb[0].mxu0 %v233
  %v855 = vpop.f32.mrb[0].mxu0
  %v856 = vadd.f32 %v782, %v855
  %v857 = vpop.f32.mrb[0].mxu0
  %858 = vdwg.mxu0
  %s859 = scalar_lea.vmem %s11, 120
  %v860 = vld [vmem:[%s859] sm:$0xff]
  %v861 = vld [vmem:[%s859 + $0x8] sm:$0xff]
  %v862 = vld [vmem:[%s859 + $0x10] sm:$0xff]
  %s863 = scalar_lea.vmem %s13, 5
  %v864 = vld [vmem:[%s863] sm:$0x1]
  %v866 = vlaneseq
  %v867 = vshrl.u32 %v866, 7
  %v868 = vsub.s32 0, %v867
  %v869 = vrot.slane %v864, %v868
  %871 = vmatprep.subr.mxu0 0.0
  %872 = vmatpush1.msra.mxu0 %v860
  %873 = vmatprep.subr.mxu0 0.0
  %874 = vmatpush1.msra.mxu0 %v861
  %875 = vmatprep.subr.mxu0 0.0
  %876 = vmatpush1.msra.mxu0 %v862
  %877 = vmatprep.subr.mxu0 0.0
  %878 = vmatpush1.msra.mxu0 0.0
  %879 = vmatprep.subr.mxu0 0.0
  %880 = vmatpush1.msra.mxu0 0.0
  %881 = vmatprep.subr.mxu0 0.0
  %882 = vmatpush1.msra.mxu0 0.0
  %883 = vmatprep.subr.mxu0 0.0
  %884 = vmatpush1.msra.mxu0 0.0
  %885 = vmatprep.subr.mxu0 0.0
  %886 = vmatpush1.msra.mxu0 0.0
  %887 = vmatprep.subr.mxu0 0.0
  %888 = vmatpush1.msra.mxu0 0.0
  %889 = vmatprep.subr.mxu0 0.0
  %890 = vmatpush1.msra.mxu0 0.0
  %891 = vmatprep.subr.mxu0 0.0
  %892 = vmatpush1.msra.mxu0 0.0
  %893 = vmatprep.subr.mxu0 0.0
  %894 = vmatpush1.msra.mxu0 0.0
  %895 = vmatprep.subr.mxu0 0.0
  %896 = vmatpush1.msra.mxu0 0.0
  %897 = vmatprep.subr.mxu0 0.0
  %898 = vmatpush1.msra.mxu0 0.0
  %899 = vmatprep.subr.mxu0 0.0
  %900 = vmatpush1.msra.mxu0 0.0
  %901 = vmatprep.subr.mxu0 0.0
  %902 = vmatpush1.msra.mxu0 0.0
  %903 = vmatprep.subr.mxu0 0.0
  %904 = vmatpush1.msra.mxu0 0.0
  %905 = vmatprep.subr.mxu0 0.0
  %906 = vmatpush1.msra.mxu0 0.0
  %907 = vmatprep.subr.mxu0 0.0
  %908 = vmatpush1.msra.mxu0 0.0
  %909 = vmatprep.subr.mxu0 0.0
  %910 = vmatpush1.msra.mxu0 0.0
  %911 = vmatprep.subr.mxu0 0.0
  %912 = vmatpush1.msra.mxu0 0.0
  %913 = vmatprep.subr.mxu0 0.0
  %914 = vmatpush1.msra.mxu0 0.0
  %915 = vmatprep.subr.mxu0 0.0
  %916 = vmatpush1.msra.mxu0 0.0
  %917 = vmatprep.subr.mxu0 0.0
  %918 = vmatpush1.msra.mxu0 0.0
  %919 = vmatprep.subr.mxu0 0.0
  %920 = vmatpush1.msra.mxu0 0.0
  %921 = vmatprep.subr.mxu0 0.0
  %922 = vmatpush1.msra.mxu0 0.0
  %923 = vmatprep.subr.mxu0 0.0
  %924 = vmatpush1.msra.mxu0 0.0
  %925 = vmatprep.subr.mxu0 0.0
  %926 = vmatpush1.msra.mxu0 0.0
  %927 = vmatprep.subr.mxu0 0.0
  %928 = vmatpush1.msra.mxu0 0.0
  %929 = vmatprep.subr.mxu0 0.0
  %930 = vmatpush1.msra.mxu0 0.0
  %931 = vmatprep.subr.mxu0 0.0
  %932 = vmatpush1.msra.mxu0 0.0
  %933 = vmatprep.subr.mxu0 0.0
  %934 = vmatpush1.msra.mxu0 0.0
  %935 = vmatprep.mubr.f32.mxu0 0.0
  %936 = vmatmul.mubr.f32.gmra.mrb[0].mxu0 %v230
  %v937 = vpop.f32.mrb[0].mxu0
  %v938 = vadd.f32 %v869, %v937
  %v939 = vpop.f32.mrb[0].mxu0
  %940 = vmatprep.mubr.f32.mxu0 0.0
  %941 = vmatmul.mubr.f32.gmra.mrb[0].mxu0 %v233
  %v942 = vpop.f32.mrb[0].mxu0
  %v943 = vadd.f32 %v869, %v942
  %v944 = vpop.f32.mrb[0].mxu0
  %945 = vdwg.mxu0
  %s946 = scalar_lea.vmem %s11, 216
  %v947 = vld [vmem:[%s946] sm:$0xff]
  %v948 = vld [vmem:[%s946 + $0x8] sm:$0xff]
  %v949 = vld [vmem:[%s946 + $0x10] sm:$0xff]
  %s950 = scalar_lea.vmem %s13, 9
  %v951 = vld [vmem:[%s950] sm:$0x1]
  %v953 = vlaneseq
  %v954 = vshrl.u32 %v953, 7
  %v955 = vsub.s32 0, %v954
  %v956 = vrot.slane %v951, %v955
  %958 = vmatprep.subr.mxu0 0.0
  %959 = vmatpush1.msra.mxu0 %v947
  %960 = vmatprep.subr.mxu0 0.0
  %961 = vmatpush1.msra.mxu0 %v948
  %962 = vmatprep.subr.mxu0 0.0
  %963 = vmatpush1.msra.mxu0 %v949
  %964 = vmatprep.subr.mxu0 0.0
  %965 = vmatpush1.msra.mxu0 0.0
  %966 = vmatprep.subr.mxu0 0.0
  %967 = vmatpush1.msra.mxu0 0.0
  %968 = vmatprep.subr.mxu0 0.0
  %969 = vmatpush1.msra.mxu0 0.0
  %970 = vmatprep.subr.mxu0 0.0
  %971 = vmatpush1.msra.mxu0 0.0
  %972 = vmatprep.subr.mxu0 0.0
  %973 = vmatpush1.msra.mxu0 0.0
  %974 = vmatprep.subr.mxu0 0.0
  %975 = vmatpush1.msra.mxu0 0.0
  %976 = vmatprep.subr.mxu0 0.0
  %977 = vmatpush1.msra.mxu0 0.0
  %978 = vmatprep.subr.mxu0 0.0
  %979 = vmatpush1.msra.mxu0 0.0
  %980 = vmatprep.subr.mxu0 0.0
  %981 = vmatpush1.msra.mxu0 0.0
  %982 = vmatprep.subr.mxu0 0.0
  %983 = vmatpush1.msra.mxu0 0.0
  %984 = vmatprep.subr.mxu0 0.0
  %985 = vmatpush1.msra.mxu0 0.0
  %986 = vmatprep.subr.mxu0 0.0
  %987 = vmatpush1.msra.mxu0 0.0
  %988 = vmatprep.subr.mxu0 0.0
  %989 = vmatpush1.msra.mxu0 0.0
  %990 = vmatprep.subr.mxu0 0.0
  %991 = vmatpush1.msra.mxu0 0.0
  %992 = vmatprep.subr.mxu0 0.0
  %993 = vmatpush1.msra.mxu0 0.0
  %994 = vmatprep.subr.mxu0 0.0
  %995 = vmatpush1.msra.mxu0 0.0
  %996 = vmatprep.subr.mxu0 0.0
  %997 = vmatpush1.msra.mxu0 0.0
  %998 = vmatprep.subr.mxu0 0.0
  %999 = vmatpush1.msra.mxu0 0.0
  %1000 = vmatprep.subr.mxu0 0.0
  %1001 = vmatpush1.msra.mxu0 0.0
  %1002 = vmatprep.subr.mxu0 0.0
  %1003 = vmatpush1.msra.mxu0 0.0
  %1004 = vmatprep.subr.mxu0 0.0
  %1005 = vmatpush1.msra.mxu0 0.0
  %1006 = vmatprep.subr.mxu0 0.0
  %1007 = vmatpush1.msra.mxu0 0.0
  %1008 = vmatprep.subr.mxu0 0.0
  %1009 = vmatpush1.msra.mxu0 0.0
  %1010 = vmatprep.subr.mxu0 0.0
  %1011 = vmatpush1.msra.mxu0 0.0
  %1012 = vmatprep.subr.mxu0 0.0
  %1013 = vmatpush1.msra.mxu0 0.0
  %1014 = vmatprep.subr.mxu0 0.0
  %1015 = vmatpush1.msra.mxu0 0.0
  %1016 = vmatprep.subr.mxu0 0.0
  %1017 = vmatpush1.msra.mxu0 0.0
  %1018 = vmatprep.subr.mxu0 0.0
  %1019 = vmatpush1.msra.mxu0 0.0
  %1020 = vmatprep.subr.mxu0 0.0
  %1021 = vmatpush1.msra.mxu0 0.0
  %1022 = vmatprep.mubr.f32.mxu0 0.0
  %1023 = vmatmul.mubr.f32.gmra.mrb[0].mxu0 %v230
  %v1024 = vpop.f32.mrb[0].mxu0
  %v1025 = vadd.f32 %v956, %v1024
  %v1026 = vpop.f32.mrb[0].mxu0
  %1027 = vmatprep.mubr.f32.mxu0 0.0
  %1028 = vmatmul.mubr.f32.gmra.mrb[0].mxu0 %v233
  %v1029 = vpop.f32.mrb[0].mxu0
  %v1030 = vadd.f32 %v956, %v1029
  %v1031 = vpop.f32.mrb[0].mxu0
  %1032 = vdwg.mxu0
  %v1034 = vsel %vm129, %v851, 0
  %v1037 = vsel %vm129, %v856, 0
  %v1040 = vsel %vm129, %v938, 0
  %v1043 = vsel %vm129, %v943, 0
  %1045 = vmatprep.subr.mxu0 0.0
  %1046 = vmatpush1.xpose.msra.mxu0 %v1040
  %1047 = vmatprep.subr.mxu0 0.0
  %1048 = vmatpush1.xpose.msra.mxu0 %v1043
  %1049 = vmatprep.subr.mxu0 0.0
  %1050 = vmatpush1.xpose.msra.mxu0 0.0
  %1051 = vmatprep.subr.mxu0 0.0
  %1052 = vmatpush1.xpose.msra.mxu0 0.0
  %1053 = vmatprep.subr.mxu0 0.0
  %1054 = vmatpush1.xpose.msra.mxu0 0.0
  %1055 = vmatprep.subr.mxu0 0.0
  %1056 = vmatpush1.xpose.msra.mxu0 0.0
  %1057 = vmatprep.subr.mxu0 0.0
  %1058 = vmatpush1.xpose.msra.mxu0 0.0
  %1059 = vmatprep.subr.mxu0 0.0
  %1060 = vmatpush1.xpose.msra.mxu0 0.0
  %1061 = vmatprep.subr.mxu0 0.0
  %1062 = vmatpush1.xpose.msra.mxu0 0.0
  %1063 = vmatprep.subr.mxu0 0.0
  %1064 = vmatpush1.xpose.msra.mxu0 0.0
  %1065 = vmatprep.subr.mxu0 0.0
  %1066 = vmatpush1.xpose.msra.mxu0 0.0
  %1067 = vmatprep.subr.mxu0 0.0
  %1068 = vmatpush1.xpose.msra.mxu0 0.0
  %1069 = vmatprep.subr.mxu0 0.0
  %1070 = vmatpush1.xpose.msra.mxu0 0.0
  %1071 = vmatprep.subr.mxu0 0.0
  %1072 = vmatpush1.xpose.msra.mxu0 0.0
  %1073 = vmatprep.subr.mxu0 0.0
  %1074 = vmatpush1.xpose.msra.mxu0 0.0
  %1075 = vmatprep.subr.mxu0 0.0
  %1076 = vmatpush1.xpose.msra.mxu0 0.0
  %1077 = vmatprep.subr.mxu0 0.0
  %1078 = vmatpush1.xpose.msra.mxu0 0.0
  %1079 = vmatprep.subr.mxu0 0.0
  %1080 = vmatpush1.xpose.msra.mxu0 0.0
  %1081 = vmatprep.subr.mxu0 0.0
  %1082 = vmatpush1.xpose.msra.mxu0 0.0
  %1083 = vmatprep.subr.mxu0 0.0
  %1084 = vmatpush1.xpose.msra.mxu0 0.0
  %1085 = vmatprep.subr.mxu0 0.0
  %1086 = vmatpush1.xpose.msra.mxu0 0.0
  %1087 = vmatprep.subr.mxu0 0.0
  %1088 = vmatpush1.xpose.msra.mxu0 0.0
  %1089 = vmatprep.subr.mxu0 0.0
  %1090 = vmatpush1.xpose.msra.mxu0 0.0
  %1091 = vmatprep.subr.mxu0 0.0
  %1092 = vmatpush1.xpose.msra.mxu0 0.0
  %1093 = vmatprep.subr.mxu0 0.0
  %1094 = vmatpush1.xpose.msra.mxu0 0.0
  %1095 = vmatprep.subr.mxu0 0.0
  %1096 = vmatpush1.xpose.msra.mxu0 0.0
  %1097 = vmatprep.subr.mxu0 0.0
  %1098 = vmatpush1.xpose.msra.mxu0 0.0
  %1099 = vmatprep.subr.mxu0 0.0
  %1100 = vmatpush1.xpose.msra.mxu0 0.0
  %1101 = vmatprep.subr.mxu0 0.0
  %1102 = vmatpush1.xpose.msra.mxu0 0.0
  %1103 = vmatprep.subr.mxu0 0.0
  %1104 = vmatpush1.xpose.msra.mxu0 0.0
  %1105 = vmatprep.subr.mxu0 0.0
  %1106 = vmatpush1.xpose.msra.mxu0 0.0
  %1107 = vmatprep.subr.mxu0 0.0
  %1108 = vmatpush1.xpose.msra.mxu0 0.0
  %1109 = vmatprep.mubr.f32.mxu0 0.0
  %1110 = vmatmul.mubr.f32.gmra.mrb[0].mxu0 %v1034
  %v1111 = vpop.f32.mrb[0].mxu0
  %v1112 = vadd.f32 0.0, %v1111
  %v1113 = vpop.f32.mrb[0].mxu0
  %1114 = vmatprep.mubr.f32.mxu0 0.0
  %1115 = vmatmul.mubr.f32.gmra.mrb[0].mxu0 %v1037
  %v1116 = vpop.f32.mrb[0].mxu0
  %v1117 = vadd.f32 0.0, %v1116
  %v1118 = vpop.f32.mrb[0].mxu0
  %1119 = vdwg.mxu0
  %v1120 = vmul.f32 %v1112, 0.4082483
  %v1121 = vmul.f32 %v1117, 0.4082483
  %v1122 = vadd.f32 %v1120, %v215
  %v1123 = vadd.f32 %v1121, %v216
  %v1124 = vsel %vm575, %v1122, -inf
  %1125 = vmax.xlane.f32.xlu0 %v1124
  %v1126 = vpop.xlane.xlu0 %1125
  %v1127 = vsel %vm575, %v1123, -inf
  %1128 = vmax.xlane.f32.xlu0 %v1127
  %v1129 = vpop.xlane.xlu0 %1128
  %v1130 = vsub.f32 %v1122, %v1126
  %v1131 = vsub.f32 %v1123, %v1129
  %v1132 = vmul.f32 %v1130, 1.442695
  %v1133 = vpow.pop %v1132
  %v1134 = vmul.f32 %v1131, 1.442695
  %v1135 = vpow.pop %v1134
  %v1136 = vsel %vm575, %v1133, 0.0
  %1137 = vadd.xlane.f32.xlu0 %v1136
  %v1138 = vpop.xlane.xlu0 %1137
  %v1139 = vsel %vm575, %v1135, 0.0
  %1140 = vadd.xlane.f32.xlu0 %v1139
  %v1141 = vpop.xlane.xlu0 %1140
  %v1142 = vrcp.pop %v1138
  %v1143 = vmul.f32 %v1133, %v1142
  %v1144 = vrcp.pop %v1141
  %v1145 = vmul.f32 %v1135, %v1144
  %v1147 = vsel %vm575, %v1143, 0
  %v1150 = vsel %vm575, %v1145, 0
  %1152 = vmatprep.subr.mxu0 0.0
  %1153 = vmatpush1.msra.mxu0 %v1025
  %1154 = vmatprep.subr.mxu0 0.0
  %1155 = vmatpush1.msra.mxu0 %v1030
  %1156 = vmatprep.subr.mxu0 0.0
  %1157 = vmatpush1.msra.mxu0 0.0
  %1158 = vmatprep.subr.mxu0 0.0
  %1159 = vmatpush1.msra.mxu0 0.0
  %1160 = vmatprep.subr.mxu0 0.0
  %1161 = vmatpush1.msra.mxu0 0.0
  %1162 = vmatprep.subr.mxu0 0.0
  %1163 = vmatpush1.msra.mxu0 0.0
  %1164 = vmatprep.subr.mxu0 0.0
  %1165 = vmatpush1.msra.mxu0 0.0
  %1166 = vmatprep.subr.mxu0 0.0
  %1167 = vmatpush1.msra.mxu0 0.0
  %1168 = vmatprep.subr.mxu0 0.0
  %1169 = vmatpush1.msra.mxu0 0.0
  %1170 = vmatprep.subr.mxu0 0.0
  %1171 = vmatpush1.msra.mxu0 0.0
  %1172 = vmatprep.subr.mxu0 0.0
  %1173 = vmatpush1.msra.mxu0 0.0
  %1174 = vmatprep.subr.mxu0 0.0
  %1175 = vmatpush1.msra.mxu0 0.0
  %1176 = vmatprep.subr.mxu0 0.0
  %1177 = vmatpush1.msra.mxu0 0.0
  %1178 = vmatprep.subr.mxu0 0.0
  %1179 = vmatpush1.msra.mxu0 0.0
  %1180 = vmatprep.subr.mxu0 0.0
  %1181 = vmatpush1.msra.mxu0 0.0
  %1182 = vmatprep.subr.mxu0 0.0
  %1183 = vmatpush1.msra.mxu0 0.0
  %1184 = vmatprep.subr.mxu0 0.0
  %1185 = vmatpush1.msra.mxu0 0.0
  %1186 = vmatprep.subr.mxu0 0.0
  %1187 = vmatpush1.msra.mxu0 0.0
  %1188 = vmatprep.subr.mxu0 0.0
  %1189 = vmatpush1.msra.mxu0 0.0
  %1190 = vmatprep.subr.mxu0 0.0
  %1191 = vmatpush1.msra.mxu0 0.0
  %1192 = vmatprep.subr.mxu0 0.0
  %1193 = vmatpush1.msra.mxu0 0.0
  %1194 = vmatprep.subr.mxu0 0.0
  %1195 = vmatpush1.msra.mxu0 0.0
  %1196 = vmatprep.subr.mxu0 0.0
  %1197 = vmatpush1.msra.mxu0 0.0
  %1198 = vmatprep.subr.mxu0 0.0
  %1199 = vmatpush1.msra.mxu0 0.0
  %1200 = vmatprep.subr.mxu0 0.0
  %1201 = vmatpush1.msra.mxu0 0.0
  %1202 = vmatprep.subr.mxu0 0.0
  %1203 = vmatpush1.msra.mxu0 0.0
  %1204 = vmatprep.subr.mxu0 0.0
  %1205 = vmatpush1.msra.mxu0 0.0
  %1206 = vmatprep.subr.mxu0 0.0
  %1207 = vmatpush1.msra.mxu0 0.0
  %1208 = vmatprep.subr.mxu0 0.0
  %1209 = vmatpush1.msra.mxu0 0.0
  %1210 = vmatprep.subr.mxu0 0.0
  %1211 = vmatpush1.msra.mxu0 0.0
  %1212 = vmatprep.subr.mxu0 0.0
  %1213 = vmatpush1.msra.mxu0 0.0
  %1214 = vmatprep.subr.mxu0 0.0
  %1215 = vmatpush1.msra.mxu0 0.0
  %1216 = vmatprep.mubr.f32.mxu0 0.0
  %1217 = vmatmul.mubr.f32.gmra.mrb[0].mxu0 %v1147
  %v1218 = vpop.f32.mrb[0].mxu0
  %v1219 = vadd.f32 0.0, %v1218
  %v1220 = vpop.f32.mrb[0].mxu0
  %1221 = vmatprep.mubr.f32.mxu0 0.0
  %1222 = vmatmul.mubr.f32.gmra.mrb[0].mxu0 %v1150
  %v1223 = vpop.f32.mrb[0].mxu0
  %v1224 = vadd.f32 0.0, %v1223
  %v1225 = vpop.f32.mrb[0].mxu0
  %1226 = vdwg.mxu0
  %s1227 = scalar_lea.vmem %s15, 8
  %v1228 = vld [vmem:[%s1227] sm:$0x3f]
  %v1230 = vsel %vm129, %v1219, 0
  %v1233 = vsel %vm129, %v1224, 0
  %v1236 = vsel %vm136, %v1228, 0
  %1238 = vmatprep.subr.mxu0 0.0
  %1239 = vmatpush1.msra.mxu0 %v1236
  %1240 = vmatprep.subr.mxu0 0.0
  %1241 = vmatpush1.msra.mxu0 0.0
  %1242 = vmatprep.subr.mxu0 0.0
  %1243 = vmatpush1.msra.mxu0 0.0
  %1244 = vmatprep.subr.mxu0 0.0
  %1245 = vmatpush1.msra.mxu0 0.0
  %1246 = vmatprep.subr.mxu0 0.0
  %1247 = vmatpush1.msra.mxu0 0.0
  %1248 = vmatprep.subr.mxu0 0.0
  %1249 = vmatpush1.msra.mxu0 0.0
  %1250 = vmatprep.subr.mxu0 0.0
  %1251 = vmatpush1.msra.mxu0 0.0
  %1252 = vmatprep.subr.mxu0 0.0
  %1253 = vmatpush1.msra.mxu0 0.0
  %1254 = vmatprep.subr.mxu0 0.0
  %1255 = vmatpush1.msra.mxu0 0.0
  %1256 = vmatprep.subr.mxu0 0.0
  %1257 = vmatpush1.msra.mxu0 0.0
  %1258 = vmatprep.subr.mxu0 0.0
  %1259 = vmatpush1.msra.mxu0 0.0
  %1260 = vmatprep.subr.mxu0 0.0
  %1261 = vmatpush1.msra.mxu0 0.0
  %1262 = vmatprep.subr.mxu0 0.0
  %1263 = vmatpush1.msra.mxu0 0.0
  %1264 = vmatprep.subr.mxu0 0.0
  %1265 = vmatpush1.msra.mxu0 0.0
  %1266 = vmatprep.subr.mxu0 0.0
  %1267 = vmatpush1.msra.mxu0 0.0
  %1268 = vmatprep.subr.mxu0 0.0
  %1269 = vmatpush1.msra.mxu0 0.0
  %1270 = vmatprep.subr.mxu0 0.0
  %1271 = vmatpush1.msra.mxu0 0.0
  %1272 = vmatprep.subr.mxu0 0.0
  %1273 = vmatpush1.msra.mxu0 0.0
  %1274 = vmatprep.subr.mxu0 0.0
  %1275 = vmatpush1.msra.mxu0 0.0
  %1276 = vmatprep.subr.mxu0 0.0
  %1277 = vmatpush1.msra.mxu0 0.0
  %1278 = vmatprep.subr.mxu0 0.0
  %1279 = vmatpush1.msra.mxu0 0.0
  %1280 = vmatprep.subr.mxu0 0.0
  %1281 = vmatpush1.msra.mxu0 0.0
  %1282 = vmatprep.subr.mxu0 0.0
  %1283 = vmatpush1.msra.mxu0 0.0
  %1284 = vmatprep.subr.mxu0 0.0
  %1285 = vmatpush1.msra.mxu0 0.0
  %1286 = vmatprep.subr.mxu0 0.0
  %1287 = vmatpush1.msra.mxu0 0.0
  %1288 = vmatprep.subr.mxu0 0.0
  %1289 = vmatpush1.msra.mxu0 0.0
  %1290 = vmatprep.subr.mxu0 0.0
  %1291 = vmatpush1.msra.mxu0 0.0
  %1292 = vmatprep.subr.mxu0 0.0
  %1293 = vmatpush1.msra.mxu0 0.0
  %1294 = vmatprep.subr.mxu0 0.0
  %1295 = vmatpush1.msra.mxu0 0.0
  %1296 = vmatprep.subr.mxu0 0.0
  %1297 = vmatpush1.msra.mxu0 0.0
  %1298 = vmatprep.subr.mxu0 0.0
  %1299 = vmatpush1.msra.mxu0 0.0
  %1300 = vmatprep.subr.mxu0 0.0
  %1301 = vmatpush1.msra.mxu0 0.0
  %1302 = vmatprep.mubr.f32.mxu0 0.0
  %1303 = vmatmul.mubr.f32.gmra.mrb[0].mxu0 %v1230
  %v1304 = vpop.f32.mrb[0].mxu0
  %v1305 = vadd.f32 0.0, %v1304
  %v1306 = vpop.f32.mrb[0].mxu0
  %1307 = vmatprep.mubr.f32.mxu0 0.0
  %1308 = vmatmul.mubr.f32.gmra.mrb[0].mxu0 %v1233
  %v1309 = vpop.f32.mrb[0].mxu0
  %v1310 = vadd.f32 0.0, %v1309
  %v1311 = vpop.f32.mrb[0].mxu0
  %1312 = vdwg.mxu0
  %v1313 = vadd.f32 %v770, %v1305
  %v1314 = vadd.f32 %v771, %v1310
  %s1315 = scalar_lea.vmem %s11, 48
  %v1316 = vld [vmem:[%s1315] sm:$0xff]
  %v1317 = vld [vmem:[%s1315 + $0x8] sm:$0xff]
  %v1318 = vld [vmem:[%s1315 + $0x10] sm:$0xff]
  %s1319 = scalar_lea.vmem %s13, 2
  %v1320 = vld [vmem:[%s1319] sm:$0x1]
  %v1322 = vlaneseq
  %v1323 = vshrl.u32 %v1322, 7
  %v1324 = vsub.s32 0, %v1323
  %v1325 = vrot.slane %v1320, %v1324
  %1327 = vmatprep.subr.mxu0 0.0
  %1328 = vmatpush1.msra.mxu0 %v1316
  %1329 = vmatprep.subr.mxu0 0.0
  %1330 = vmatpush1.msra.mxu0 %v1317
  %1331 = vmatprep.subr.mxu0 0.0
  %1332 = vmatpush1.msra.mxu0 %v1318
  %1333 = vmatprep.subr.mxu0 0.0
  %1334 = vmatpush1.msra.mxu0 0.0
  %1335 = vmatprep.subr.mxu0 0.0
  %1336 = vmatpush1.msra.mxu0 0.0
  %1337 = vmatprep.subr.mxu0 0.0
  %1338 = vmatpush1.msra.mxu0 0.0
  %1339 = vmatprep.subr.mxu0 0.0
  %1340 = vmatpush1.msra.mxu0 0.0
  %1341 = vmatprep.subr.mxu0 0.0
  %1342 = vmatpush1.msra.mxu0 0.0
  %1343 = vmatprep.subr.mxu0 0.0
  %1344 = vmatpush1.msra.mxu0 0.0
  %1345 = vmatprep.subr.mxu0 0.0
  %1346 = vmatpush1.msra.mxu0 0.0
  %1347 = vmatprep.subr.mxu0 0.0
  %1348 = vmatpush1.msra.mxu0 0.0
  %1349 = vmatprep.subr.mxu0 0.0
  %1350 = vmatpush1.msra.mxu0 0.0
  %1351 = vmatprep.subr.mxu0 0.0
  %1352 = vmatpush1.msra.mxu0 0.0
  %1353 = vmatprep.subr.mxu0 0.0
  %1354 = vmatpush1.msra.mxu0 0.0
  %1355 = vmatprep.subr.mxu0 0.0
  %1356 = vmatpush1.msra.mxu0 0.0
  %1357 = vmatprep.subr.mxu0 0.0
  %1358 = vmatpush1.msra.mxu0 0.0
  %1359 = vmatprep.subr.mxu0 0.0
  %1360 = vmatpush1.msra.mxu0 0.0
  %1361 = vmatprep.subr.mxu0 0.0
  %1362 = vmatpush1.msra.mxu0 0.0
  %1363 = vmatprep.subr.mxu0 0.0
  %1364 = vmatpush1.msra.mxu0 0.0
  %1365 = vmatprep.subr.mxu0 0.0
  %1366 = vmatpush1.msra.mxu0 0.0
  %1367 = vmatprep.subr.mxu0 0.0
  %1368 = vmatpush1.msra.mxu0 0.0
  %1369 = vmatprep.subr.mxu0 0.0
  %1370 = vmatpush1.msra.mxu0 0.0
  %1371 = vmatprep.subr.mxu0 0.0
  %1372 = vmatpush1.msra.mxu0 0.0
  %1373 = vmatprep.subr.mxu0 0.0
  %1374 = vmatpush1.msra.mxu0 0.0
  %1375 = vmatprep.subr.mxu0 0.0
  %1376 = vmatpush1.msra.mxu0 0.0
  %1377 = vmatprep.subr.mxu0 0.0
  %1378 = vmatpush1.msra.mxu0 0.0
  %1379 = vmatprep.subr.mxu0 0.0
  %1380 = vmatpush1.msra.mxu0 0.0
  %1381 = vmatprep.subr.mxu0 0.0
  %1382 = vmatpush1.msra.mxu0 0.0
  %1383 = vmatprep.subr.mxu0 0.0
  %1384 = vmatpush1.msra.mxu0 0.0
  %1385 = vmatprep.subr.mxu0 0.0
  %1386 = vmatpush1.msra.mxu0 0.0
  %1387 = vmatprep.subr.mxu0 0.0
  %1388 = vmatpush1.msra.mxu0 0.0
  %1389 = vmatprep.subr.mxu0 0.0
  %1390 = vmatpush1.msra.mxu0 0.0
  %1391 = vmatprep.mubr.f32.mxu0 0.0
  %1392 = vmatmul.mubr.f32.gmra.mrb[0].mxu0 %v230
  %v1393 = vpop.f32.mrb[0].mxu0
  %v1394 = vadd.f32 %v1325, %v1393
  %v1395 = vpop.f32.mrb[0].mxu0
  %1396 = vmatprep.mubr.f32.mxu0 0.0
  %1397 = vmatmul.mubr.f32.gmra.mrb[0].mxu0 %v233
  %v1398 = vpop.f32.mrb[0].mxu0
  %v1399 = vadd.f32 %v1325, %v1398
  %v1400 = vpop.f32.mrb[0].mxu0
  %1401 = vdwg.mxu0
  %s1402 = scalar_lea.vmem %s11, 144
  %v1403 = vld [vmem:[%s1402] sm:$0xff]
  %v1404 = vld [vmem:[%s1402 + $0x8] sm:$0xff]
  %v1405 = vld [vmem:[%s1402 + $0x10] sm:$0xff]
  %s1406 = scalar_lea.vmem %s13, 6
  %v1407 = vld [vmem:[%s1406] sm:$0x1]
  %v1409 = vlaneseq
  %v1410 = vshrl.u32 %v1409, 7
  %v1411 = vsub.s32 0, %v1410
  %v1412 = vrot.slane %v1407, %v1411
  %1414 = vmatprep.subr.mxu0 0.0
  %1415 = vmatpush1.msra.mxu0 %v1403
  %1416 = vmatprep.subr.mxu0 0.0
  %1417 = vmatpush1.msra.mxu0 %v1404
  %1418 = vmatprep.subr.mxu0 0.0
  %1419 = vmatpush1.msra.mxu0 %v1405
  %1420 = vmatprep.subr.mxu0 0.0
  %1421 = vmatpush1.msra.mxu0 0.0
  %1422 = vmatprep.subr.mxu0 0.0
  %1423 = vmatpush1.msra.mxu0 0.0
  %1424 = vmatprep.subr.mxu0 0.0
  %1425 = vmatpush1.msra.mxu0 0.0
  %1426 = vmatprep.subr.mxu0 0.0
  %1427 = vmatpush1.msra.mxu0 0.0
  %1428 = vmatprep.subr.mxu0 0.0
  %1429 = vmatpush1.msra.mxu0 0.0
  %1430 = vmatprep.subr.mxu0 0.0
  %1431 = vmatpush1.msra.mxu0 0.0
  %1432 = vmatprep.subr.mxu0 0.0
  %1433 = vmatpush1.msra.mxu0 0.0
  %1434 = vmatprep.subr.mxu0 0.0
  %1435 = vmatpush1.msra.mxu0 0.0
  %1436 = vmatprep.subr.mxu0 0.0
  %1437 = vmatpush1.msra.mxu0 0.0
  %1438 = vmatprep.subr.mxu0 0.0
  %1439 = vmatpush1.msra.mxu0 0.0
  %1440 = vmatprep.subr.mxu0 0.0
  %1441 = vmatpush1.msra.mxu0 0.0
  %1442 = vmatprep.subr.mxu0 0.0
  %1443 = vmatpush1.msra.mxu0 0.0
  %1444 = vmatprep.subr.mxu0 0.0
  %1445 = vmatpush1.msra.mxu0 0.0
  %1446 = vmatprep.subr.mxu0 0.0
  %1447 = vmatpush1.msra.mxu0 0.0
  %1448 = vmatprep.subr.mxu0 0.0
  %1449 = vmatpush1.msra.mxu0 0.0
  %1450 = vmatprep.subr.mxu0 0.0
  %1451 = vmatpush1.msra.mxu0 0.0
  %1452 = vmatprep.subr.mxu0 0.0
  %1453 = vmatpush1.msra.mxu0 0.0
  %1454 = vmatprep.subr.mxu0 0.0
  %1455 = vmatpush1.msra.mxu0 0.0
  %1456 = vmatprep.subr.mxu0 0.0
  %1457 = vmatpush1.msra.mxu0 0.0
  %1458 = vmatprep.subr.mxu0 0.0
  %1459 = vmatpush1.msra.mxu0 0.0
  %1460 = vmatprep.subr.mxu0 0.0
  %1461 = vmatpush1.msra.mxu0 0.0
  %1462 = vmatprep.subr.mxu0 0.0
  %1463 = vmatpush1.msra.mxu0 0.0
  %1464 = vmatprep.subr.mxu0 0.0
  %1465 = vmatpush1.msra.mxu0 0.0
  %1466 = vmatprep.subr.mxu0 0.0
  %1467 = vmatpush1.msra.mxu0 0.0
  %1468 = vmatprep.subr.mxu0 0.0
  %1469 = vmatpush1.msra.mxu0 0.0
  %1470 = vmatprep.subr.mxu0 0.0
  %1471 = vmatpush1.msra.mxu0 0.0
  %1472 = vmatprep.subr.mxu0 0.0
  %1473 = vmatpush1.msra.mxu0 0.0
  %1474 = vmatprep.subr.mxu0 0.0
  %1475 = vmatpush1.msra.mxu0 0.0
  %1476 = vmatprep.subr.mxu0 0.0
  %1477 = vmatpush1.msra.mxu0 0.0
  %1478 = vmatprep.mubr.f32.mxu0 0.0
  %1479 = vmatmul.mubr.f32.gmra.mrb[0].mxu0 %v230
  %v1480 = vpop.f32.mrb[0].mxu0
  %v1481 = vadd.f32 %v1412, %v1480
  %v1482 = vpop.f32.mrb[0].mxu0
  %1483 = vmatprep.mubr.f32.mxu0 0.0
  %1484 = vmatmul.mubr.f32.gmra.mrb[0].mxu0 %v233
  %v1485 = vpop.f32.mrb[0].mxu0
  %v1486 = vadd.f32 %v1412, %v1485
  %v1487 = vpop.f32.mrb[0].mxu0
  %1488 = vdwg.mxu0
  %s1489 = scalar_lea.vmem %s11, 240
  %v1490 = vld [vmem:[%s1489] sm:$0xff]
  %v1491 = vld [vmem:[%s1489 + $0x8] sm:$0xff]
  %v1492 = vld [vmem:[%s1489 + $0x10] sm:$0xff]
  %s1493 = scalar_lea.vmem %s13, 10
  %v1494 = vld [vmem:[%s1493] sm:$0x1]
  %v1496 = vlaneseq
  %v1497 = vshrl.u32 %v1496, 7
  %v1498 = vsub.s32 0, %v1497
  %v1499 = vrot.slane %v1494, %v1498
  %1501 = vmatprep.subr.mxu0 0.0
  %1502 = vmatpush1.msra.mxu0 %v1490
  %1503 = vmatprep.subr.mxu0 0.0
  %1504 = vmatpush1.msra.mxu0 %v1491
  %1505 = vmatprep.subr.mxu0 0.0
  %1506 = vmatpush1.msra.mxu0 %v1492
  %1507 = vmatprep.subr.mxu0 0.0
  %1508 = vmatpush1.msra.mxu0 0.0
  %1509 = vmatprep.subr.mxu0 0.0
  %1510 = vmatpush1.msra.mxu0 0.0
  %1511 = vmatprep.subr.mxu0 0.0
  %1512 = vmatpush1.msra.mxu0 0.0
  %1513 = vmatprep.subr.mxu0 0.0
  %1514 = vmatpush1.msra.mxu0 0.0
  %1515 = vmatprep.subr.mxu0 0.0
  %1516 = vmatpush1.msra.mxu0 0.0
  %1517 = vmatprep.subr.mxu0 0.0
  %1518 = vmatpush1.msra.mxu0 0.0
  %1519 = vmatprep.subr.mxu0 0.0
  %1520 = vmatpush1.msra.mxu0 0.0
  %1521 = vmatprep.subr.mxu0 0.0
  %1522 = vmatpush1.msra.mxu0 0.0
  %1523 = vmatprep.subr.mxu0 0.0
  %1524 = vmatpush1.msra.mxu0 0.0
  %1525 = vmatprep.subr.mxu0 0.0
  %1526 = vmatpush1.msra.mxu0 0.0
  %1527 = vmatprep.subr.mxu0 0.0
  %1528 = vmatpush1.msra.mxu0 0.0
  %1529 = vmatprep.subr.mxu0 0.0
  %1530 = vmatpush1.msra.mxu0 0.0
  %1531 = vmatprep.subr.mxu0 0.0
  %1532 = vmatpush1.msra.mxu0 0.0
  %1533 = vmatprep.subr.mxu0 0.0
  %1534 = vmatpush1.msra.mxu0 0.0
  %1535 = vmatprep.subr.mxu0 0.0
  %1536 = vmatpush1.msra.mxu0 0.0
  %1537 = vmatprep.subr.mxu0 0.0
  %1538 = vmatpush1.msra.mxu0 0.0
  %1539 = vmatprep.subr.mxu0 0.0
  %1540 = vmatpush1.msra.mxu0 0.0
  %1541 = vmatprep.subr.mxu0 0.0
  %1542 = vmatpush1.msra.mxu0 0.0
  %1543 = vmatprep.subr.mxu0 0.0
  %1544 = vmatpush1.msra.mxu0 0.0
  %1545 = vmatprep.subr.mxu0 0.0
  %1546 = vmatpush1.msra.mxu0 0.0
  %1547 = vmatprep.subr.mxu0 0.0
  %1548 = vmatpush1.msra.mxu0 0.0
  %1549 = vmatprep.subr.mxu0 0.0
  %1550 = vmatpush1.msra.mxu0 0.0
  %1551 = vmatprep.subr.mxu0 0.0
  %1552 = vmatpush1.msra.mxu0 0.0
  %1553 = vmatprep.subr.mxu0 0.0
  %1554 = vmatpush1.msra.mxu0 0.0
  %1555 = vmatprep.subr.mxu0 0.0
  %1556 = vmatpush1.msra.mxu0 0.0
  %1557 = vmatprep.subr.mxu0 0.0
  %1558 = vmatpush1.msra.mxu0 0.0
  %1559 = vmatprep.subr.mxu0 0.0
  %1560 = vmatpush1.msra.mxu0 0.0
  %1561 = vmatprep.subr.mxu0 0.0
  %1562 = vmatpush1.msra.mxu0 0.0
  %1563 = vmatprep.subr.mxu0 0.0
  %1564 = vmatpush1.msra.mxu0 0.0
  %1565 = vmatprep.mubr.f32.mxu0 0.0
  %1566 = vmatmul.mubr.f32.gmra.mrb[0].mxu0 %v230
  %v1567 = vpop.f32.mrb[0].mxu0
  %v1568 = vadd.f32 %v1499, %v1567
  %v1569 = vpop.f32.mrb[0].mxu0
  %1570 = vmatprep.mubr.f32.mxu0 0.0
  %1571 = vmatmul.mubr.f32.gmra.mrb[0].mxu0 %v233
  %v1572 = vpop.f32.mrb[0].mxu0
  %v1573 = vadd.f32 %v1499, %v1572
  %v1574 = vpop.f32.mrb[0].mxu0
  %1575 = vdwg.mxu0
  %v1577 = vsel %vm129, %v1394, 0
  %v1580 = vsel %vm129, %v1399, 0
  %v1583 = vsel %vm129, %v1481, 0
  %v1586 = vsel %vm129, %v1486, 0
  %1588 = vmatprep.subr.mxu0 0.0
  %1589 = vmatpush1.xpose.msra.mxu0 %v1583
  %1590 = vmatprep.subr.mxu0 0.0
  %1591 = vmatpush1.xpose.msra.mxu0 %v1586
  %1592 = vmatprep.subr.mxu0 0.0
  %1593 = vmatpush1.xpose.msra.mxu0 0.0
  %1594 = vmatprep.subr.mxu0 0.0
  %1595 = vmatpush1.xpose.msra.mxu0 0.0
  %1596 = vmatprep.subr.mxu0 0.0
  %1597 = vmatpush1.xpose.msra.mxu0 0.0
  %1598 = vmatprep.subr.mxu0 0.0
  %1599 = vmatpush1.xpose.msra.mxu0 0.0
  %1600 = vmatprep.subr.mxu0 0.0
  %1601 = vmatpush1.xpose.msra.mxu0 0.0
  %1602 = vmatprep.subr.mxu0 0.0
  %1603 = vmatpush1.xpose.msra.mxu0 0.0
  %1604 = vmatprep.subr.mxu0 0.0
  %1605 = vmatpush1.xpose.msra.mxu0 0.0
  %1606 = vmatprep.subr.mxu0 0.0
  %1607 = vmatpush1.xpose.msra.mxu0 0.0
  %1608 = vmatprep.subr.mxu0 0.0
  %1609 = vmatpush1.xpose.msra.mxu0 0.0
  %1610 = vmatprep.subr.mxu0 0.0
  %1611 = vmatpush1.xpose.msra.mxu0 0.0
  %1612 = vmatprep.subr.mxu0 0.0
  %1613 = vmatpush1.xpose.msra.mxu0 0.0
  %1614 = vmatprep.subr.mxu0 0.0
  %1615 = vmatpush1.xpose.msra.mxu0 0.0
  %1616 = vmatprep.subr.mxu0 0.0
  %1617 = vmatpush1.xpose.msra.mxu0 0.0
  %1618 = vmatprep.subr.mxu0 0.0
  %1619 = vmatpush1.xpose.msra.mxu0 0.0
  %1620 = vmatprep.subr.mxu0 0.0
  %1621 = vmatpush1.xpose.msra.mxu0 0.0
  %1622 = vmatprep.subr.mxu0 0.0
  %1623 = vmatpush1.xpose.msra.mxu0 0.0
  %1624 = vmatprep.subr.mxu0 0.0
  %1625 = vmatpush1.xpose.msra.mxu0 0.0
  %1626 = vmatprep.subr.mxu0 0.0
  %1627 = vmatpush1.xpose.msra.mxu0 0.0
  %1628 = vmatprep.subr.mxu0 0.0
  %1629 = vmatpush1.xpose.msra.mxu0 0.0
  %1630 = vmatprep.subr.mxu0 0.0
  %1631 = vmatpush1.xpose.msra.mxu0 0.0
  %1632 = vmatprep.subr.mxu0 0.0
  %1633 = vmatpush1.xpose.msra.mxu0 0.0
  %1634 = vmatprep.subr.mxu0 0.0
  %1635 = vmatpush1.xpose.msra.mxu0 0.0
  %1636 = vmatprep.subr.mxu0 0.0
  %1637 = vmatpush1.xpose.msra.mxu0 0.0
  %1638 = vmatprep.subr.mxu0 0.0
  %1639 = vmatpush1.xpose.msra.mxu0 0.0
  %1640 = vmatprep.subr.mxu0 0.0
  %1641 = vmatpush1.xpose.msra.mxu0 0.0
  %1642 = vmatprep.subr.mxu0 0.0
  %1643 = vmatpush1.xpose.msra.mxu0 0.0
  %1644 = vmatprep.subr.mxu0 0.0
  %1645 = vmatpush1.xpose.msra.mxu0 0.0
  %1646 = vmatprep.subr.mxu0 0.0
  %1647 = vmatpush1.xpose.msra.mxu0 0.0
  %1648 = vmatprep.subr.mxu0 0.0
  %1649 = vmatpush1.xpose.msra.mxu0 0.0
  %1650 = vmatprep.subr.mxu0 0.0
  %1651 = vmatpush1.xpose.msra.mxu0 0.0
  %1652 = vmatprep.mubr.f32.mxu0 0.0
  %1653 = vmatmul.mubr.f32.gmra.mrb[0].mxu0 %v1577
  %v1654 = vpop.f32.mrb[0].mxu0
  %v1655 = vadd.f32 0.0, %v1654
  %v1656 = vpop.f32.mrb[0].mxu0
  %1657 = vmatprep.mubr.f32.mxu0 0.0
  %1658 = vmatmul.mubr.f32.gmra.mrb[0].mxu0 %v1580
  %v1659 = vpop.f32.mrb[0].mxu0
  %v1660 = vadd.f32 0.0, %v1659
  %v1661 = vpop.f32.mrb[0].mxu0
  %1662 = vdwg.mxu0
  %v1663 = vmul.f32 %v1655, 0.4082483
  %v1664 = vmul.f32 %v1660, 0.4082483
  %v1665 = vadd.f32 %v1663, %v215
  %v1666 = vadd.f32 %v1664, %v216
  %v1667 = vsel %vm575, %v1665, -inf
  %1668 = vmax.xlane.f32.xlu0 %v1667
  %v1669 = vpop.xlane.xlu0 %1668
  %v1670 = vsel %vm575, %v1666, -inf
  %1671 = vmax.xlane.f32.xlu0 %v1670
  %v1672 = vpop.xlane.xlu0 %1671
  %v1673 = vsub.f32 %v1665, %v1669
  %v1674 = vsub.f32 %v1666, %v1672
  %v1675 = vmul.f32 %v1673, 1.442695
  %v1676 = vpow.pop %v1675
  %v1677 = vmul.f32 %v1674, 1.442695
  %v1678 = vpow.pop %v1677
  %v1679 = vsel %vm575, %v1676, 0.0
  %1680 = vadd.xlane.f32.xlu0 %v1679
  %v1681 = vpop.xlane.xlu0 %1680
  %v1682 = vsel %vm575, %v1678, 0.0
  %1683 = vadd.xlane.f32.xlu0 %v1682
  %v1684 = vpop.xlane.xlu0 %1683
  %v1685 = vrcp.pop %v1681
  %v1686 = vmul.f32 %v1676, %v1685
  %v1687 = vrcp.pop %v1684
  %v1688 = vmul.f32 %v1678, %v1687
  %v1690 = vsel %vm575, %v1686, 0
  %v1693 = vsel %vm575, %v1688, 0
  %1695 = vmatprep.subr.mxu0 0.0
  %1696 = vmatpush1.msra.mxu0 %v1568
  %1697 = vmatprep.subr.mxu0 0.0
  %1698 = vmatpush1.msra.mxu0 %v1573
  %1699 = vmatprep.subr.mxu0 0.0
  %1700 = vmatpush1.msra.mxu0 0.0
  %1701 = vmatprep.subr.mxu0 0.0
  %1702 = vmatpush1.msra.mxu0 0.0
  %1703 = vmatprep.subr.mxu0 0.0
  %1704 = vmatpush1.msra.mxu0 0.0
  %1705 = vmatprep.subr.mxu0 0.0
  %1706 = vmatpush1.msra.mxu0 0.0
  %1707 = vmatprep.subr.mxu0 0.0
  %1708 = vmatpush1.msra.mxu0 0.0
  %1709 = vmatprep.subr.mxu0 0.0
  %1710 = vmatpush1.msra.mxu0 0.0
  %1711 = vmatprep.subr.mxu0 0.0
  %1712 = vmatpush1.msra.mxu0 0.0
  %1713 = vmatprep.subr.mxu0 0.0
  %1714 = vmatpush1.msra.mxu0 0.0
  %1715 = vmatprep.subr.mxu0 0.0
  %1716 = vmatpush1.msra.mxu0 0.0
  %1717 = vmatprep.subr.mxu0 0.0
  %1718 = vmatpush1.msra.mxu0 0.0
  %1719 = vmatprep.subr.mxu0 0.0
  %1720 = vmatpush1.msra.mxu0 0.0
  %1721 = vmatprep.subr.mxu0 0.0
  %1722 = vmatpush1.msra.mxu0 0.0
  %1723 = vmatprep.subr.mxu0 0.0
  %1724 = vmatpush1.msra.mxu0 0.0
  %1725 = vmatprep.subr.mxu0 0.0
  %1726 = vmatpush1.msra.mxu0 0.0
  %1727 = vmatprep.subr.mxu0 0.0
  %1728 = vmatpush1.msra.mxu0 0.0
  %1729 = vmatprep.subr.mxu0 0.0
  %1730 = vmatpush1.msra.mxu0 0.0
  %1731 = vmatprep.subr.mxu0 0.0
  %1732 = vmatpush1.msra.mxu0 0.0
  %1733 = vmatprep.subr.mxu0 0.0
  %1734 = vmatpush1.msra.mxu0 0.0
  %1735 = vmatprep.subr.mxu0 0.0
  %1736 = vmatpush1.msra.mxu0 0.0
  %1737 = vmatprep.subr.mxu0 0.0
  %1738 = vmatpush1.msra.mxu0 0.0
  %1739 = vmatprep.subr.mxu0 0.0
  %1740 = vmatpush1.msra.mxu0 0.0
  %1741 = vmatprep.subr.mxu0 0.0
  %1742 = vmatpush1.msra.mxu0 0.0
  %1743 = vmatprep.subr.mxu0 0.0
  %1744 = vmatpush1.msra.mxu0 0.0
  %1745 = vmatprep.subr.mxu0 0.0
  %1746 = vmatpush1.msra.mxu0 0.0
  %1747 = vmatprep.subr.mxu0 0.0
  %1748 = vmatpush1.msra.mxu0 0.0
  %1749 = vmatprep.subr.mxu0 0.0
  %1750 = vmatpush1.msra.mxu0 0.0
  %1751 = vmatprep.subr.mxu0 0.0
  %1752 = vmatpush1.msra.mxu0 0.0
  %1753 = vmatprep.subr.mxu0 0.0
  %1754 = vmatpush1.msra.mxu0 0.0
  %1755 = vmatprep.subr.mxu0 0.0
  %1756 = vmatpush1.msra.mxu0 0.0
  %1757 = vmatprep.subr.mxu0 0.0
  %1758 = vmatpush1.msra.mxu0 0.0
  %1759 = vmatprep.mubr.f32.mxu0 0.0
  %1760 = vmatmul.mubr.f32.gmra.mrb[0].mxu0 %v1690
  %v1761 = vpop.f32.mrb[0].mxu0
  %v1762 = vadd.f32 0.0, %v1761
  %v1763 = vpop.f32.mrb[0].mxu0
  %1764 = vmatprep.mubr.f32.mxu0 0.0
  %1765 = vmatmul.mubr.f32.gmra.mrb[0].mxu0 %v1693
  %v1766 = vpop.f32.mrb[0].mxu0
  %v1767 = vadd.f32 0.0, %v1766
  %v1768 = vpop.f32.mrb[0].mxu0
  %1769 = vdwg.mxu0
  %s1770 = scalar_lea.vmem %s15, 16
  %v1771 = vld [vmem:[%s1770] sm:$0x3f]
  %v1773 = vsel %vm129, %v1762, 0
  %v1776 = vsel %vm129, %v1767, 0
  %v1779 = vsel %vm136, %v1771, 0
  %1781 = vmatprep.subr.mxu0 0.0
  %1782 = vmatpush1.msra.mxu0 %v1779
  %1783 = vmatprep.subr.mxu0 0.0
  %1784 = vmatpush1.msra.mxu0 0.0
  %1785 = vmatprep.subr.mxu0 0.0
  %1786 = vmatpush1.msra.mxu0 0.0
  %1787 = vmatprep.subr.mxu0 0.0
  %1788 = vmatpush1.msra.mxu0 0.0
  %1789 = vmatprep.subr.mxu0 0.0
  %1790 = vmatpush1.msra.mxu0 0.0
  %1791 = vmatprep.subr.mxu0 0.0
  %1792 = vmatpush1.msra.mxu0 0.0
  %1793 = vmatprep.subr.mxu0 0.0
  %1794 = vmatpush1.msra.mxu0 0.0
  %1795 = vmatprep.subr.mxu0 0.0
  %1796 = vmatpush1.msra.mxu0 0.0
  %1797 = vmatprep.subr.mxu0 0.0
  %1798 = vmatpush1.msra.mxu0 0.0
  %1799 = vmatprep.subr.mxu0 0.0
  %1800 = vmatpush1.msra.mxu0 0.0
  %1801 = vmatprep.subr.mxu0 0.0
  %1802 = vmatpush1.msra.mxu0 0.0
  %1803 = vmatprep.subr.mxu0 0.0
  %1804 = vmatpush1.msra.mxu0 0.0
  %1805 = vmatprep.subr.mxu0 0.0
  %1806 = vmatpush1.msra.mxu0 0.0
  %1807 = vmatprep.subr.mxu0 0.0
  %1808 = vmatpush1.msra.mxu0 0.0
  %1809 = vmatprep.subr.mxu0 0.0
  %1810 = vmatpush1.msra.mxu0 0.0
  %1811 = vmatprep.subr.mxu0 0.0
  %1812 = vmatpush1.msra.mxu0 0.0
  %1813 = vmatprep.subr.mxu0 0.0
  %1814 = vmatpush1.msra.mxu0 0.0
  %1815 = vmatprep.subr.mxu0 0.0
  %1816 = vmatpush1.msra.mxu0 0.0
  %1817 = vmatprep.subr.mxu0 0.0
  %1818 = vmatpush1.msra.mxu0 0.0
  %1819 = vmatprep.subr.mxu0 0.0
  %1820 = vmatpush1.msra.mxu0 0.0
  %1821 = vmatprep.subr.mxu0 0.0
  %1822 = vmatpush1.msra.mxu0 0.0
  %1823 = vmatprep.subr.mxu0 0.0
  %1824 = vmatpush1.msra.mxu0 0.0
  %1825 = vmatprep.subr.mxu0 0.0
  %1826 = vmatpush1.msra.mxu0 0.0
  %1827 = vmatprep.subr.mxu0 0.0
  %1828 = vmatpush1.msra.mxu0 0.0
  %1829 = vmatprep.subr.mxu0 0.0
  %1830 = vmatpush1.msra.mxu0 0.0
  %1831 = vmatprep.subr.mxu0 0.0
  %1832 = vmatpush1.msra.mxu0 0.0
  %1833 = vmatprep.subr.mxu0 0.0
  %1834 = vmatpush1.msra.mxu0 0.0
  %1835 = vmatprep.subr.mxu0 0.0
  %1836 = vmatpush1.msra.mxu0 0.0
  %1837 = vmatprep.subr.mxu0 0.0
  %1838 = vmatpush1.msra.mxu0 0.0
  %1839 = vmatprep.subr.mxu0 0.0
  %1840 = vmatpush1.msra.mxu0 0.0
  %1841 = vmatprep.subr.mxu0 0.0
  %1842 = vmatpush1.msra.mxu0 0.0
  %1843 = vmatprep.subr.mxu0 0.0
  %1844 = vmatpush1.msra.mxu0 0.0
  %1845 = vmatprep.mubr.f32.mxu0 0.0
  %1846 = vmatmul.mubr.f32.gmra.mrb[0].mxu0 %v1773
  %v1847 = vpop.f32.mrb[0].mxu0
  %v1848 = vadd.f32 0.0, %v1847
  %v1849 = vpop.f32.mrb[0].mxu0
  %1850 = vmatprep.mubr.f32.mxu0 0.0
  %1851 = vmatmul.mubr.f32.gmra.mrb[0].mxu0 %v1776
  %v1852 = vpop.f32.mrb[0].mxu0
  %v1853 = vadd.f32 0.0, %v1852
  %v1854 = vpop.f32.mrb[0].mxu0
  %1855 = vdwg.mxu0
  %v1856 = vadd.f32 %v1313, %v1848
  %v1857 = vadd.f32 %v1314, %v1853
  %s1858 = scalar_lea.vmem %s11, 72
  %v1859 = vld [vmem:[%s1858] sm:$0xff]
  %v1860 = vld [vmem:[%s1858 + $0x8] sm:$0xff]
  %v1861 = vld [vmem:[%s1858 + $0x10] sm:$0xff]
  %s1862 = scalar_lea.vmem %s13, 3
  %v1863 = vld [vmem:[%s1862] sm:$0x1]
  %v1865 = vlaneseq
  %v1866 = vshrl.u32 %v1865, 7
  %v1867 = vsub.s32 0, %v1866
  %v1868 = vrot.slane %v1863, %v1867
  %1870 = vmatprep.subr.mxu0 0.0
  %1871 = vmatpush1.msra.mxu0 %v1859
  %1872 = vmatprep.subr.mxu0 0.0
  %1873 = vmatpush1.msra.mxu0 %v1860
  %1874 = vmatprep.subr.mxu0 0.0
  %1875 = vmatpush1.msra.mxu0 %v1861
  %1876 = vmatprep.subr.mxu0 0.0
  %1877 = vmatpush1.msra.mxu0 0.0
  %1878 = vmatprep.subr.mxu0 0.0
  %1879 = vmatpush1.msra.mxu0 0.0
  %1880 = vmatprep.subr.mxu0 0.0
  %1881 = vmatpush1.msra.mxu0 0.0
  %1882 = vmatprep.subr.mxu0 0.0
  %1883 = vmatpush1.msra.mxu0 0.0
  %1884 = vmatprep.subr.mxu0 0.0
  %1885 = vmatpush1.msra.mxu0 0.0
  %1886 = vmatprep.subr.mxu0 0.0
  %1887 = vmatpush1.msra.mxu0 0.0
  %1888 = vmatprep.subr.mxu0 0.0
  %1889 = vmatpush1.msra.mxu0 0.0
  %1890 = vmatprep.subr.mxu0 0.0
  %1891 = vmatpush1.msra.mxu0 0.0
  %1892 = vmatprep.subr.mxu0 0.0
  %1893 = vmatpush1.msra.mxu0 0.0
  %1894 = vmatprep.subr.mxu0 0.0
  %1895 = vmatpush1.msra.mxu0 0.0
  %1896 = vmatprep.subr.mxu0 0.0
  %1897 = vmatpush1.msra.mxu0 0.0
  %1898 = vmatprep.subr.mxu0 0.0
  %1899 = vmatpush1.msra.mxu0 0.0
  %1900 = vmatprep.subr.mxu0 0.0
  %1901 = vmatpush1.msra.mxu0 0.0
  %1902 = vmatprep.subr.mxu0 0.0
  %1903 = vmatpush1.msra.mxu0 0.0
  %1904 = vmatprep.subr.mxu0 0.0
  %1905 = vmatpush1.msra.mxu0 0.0
  %1906 = vmatprep.subr.mxu0 0.0
  %1907 = vmatpush1.msra.mxu0 0.0
  %1908 = vmatprep.subr.mxu0 0.0
  %1909 = vmatpush1.msra.mxu0 0.0
  %1910 = vmatprep.subr.mxu0 0.0
  %1911 = vmatpush1.msra.mxu0 0.0
  %1912 = vmatprep.subr.mxu0 0.0
  %1913 = vmatpush1.msra.mxu0 0.0
  %1914 = vmatprep.subr.mxu0 0.0
  %1915 = vmatpush1.msra.mxu0 0.0
  %1916 = vmatprep.subr.mxu0 0.0
  %1917 = vmatpush1.msra.mxu0 0.0
  %1918 = vmatprep.subr.mxu0 0.0
  %1919 = vmatpush1.msra.mxu0 0.0
  %1920 = vmatprep.subr.mxu0 0.0
  %1921 = vmatpush1.msra.mxu0 0.0
  %1922 = vmatprep.subr.mxu0 0.0
  %1923 = vmatpush1.msra.mxu0 0.0
  %1924 = vmatprep.subr.mxu0 0.0
  %1925 = vmatpush1.msra.mxu0 0.0
  %1926 = vmatprep.subr.mxu0 0.0
  %1927 = vmatpush1.msra.mxu0 0.0
  %1928 = vmatprep.subr.mxu0 0.0
  %1929 = vmatpush1.msra.mxu0 0.0
  %1930 = vmatprep.subr.mxu0 0.0
  %1931 = vmatpush1.msra.mxu0 0.0
  %1932 = vmatprep.subr.mxu0 0.0
  %1933 = vmatpush1.msra.mxu0 0.0
  %1934 = vmatprep.mubr.f32.mxu0 0.0
  %1935 = vmatmul.mubr.f32.gmra.mrb[0].mxu0 %v230
  %v1936 = vpop.f32.mrb[0].mxu0
  %v1937 = vadd.f32 %v1868, %v1936
  %v1938 = vpop.f32.mrb[0].mxu0
  %1939 = vmatprep.mubr.f32.mxu0 0.0
  %1940 = vmatmul.mubr.f32.gmra.mrb[0].mxu0 %v233
  %v1941 = vpop.f32.mrb[0].mxu0
  %v1942 = vadd.f32 %v1868, %v1941
  %v1943 = vpop.f32.mrb[0].mxu0
  %1944 = vdwg.mxu0
  %s1945 = scalar_lea.vmem %s11, 168
  %v1946 = vld [vmem:[%s1945] sm:$0xff]
  %v1947 = vld [vmem:[%s1945 + $0x8] sm:$0xff]
  %v1948 = vld [vmem:[%s1945 + $0x10] sm:$0xff]
  %s1949 = scalar_lea.vmem %s13, 7
  %v1950 = vld [vmem:[%s1949] sm:$0x1]
  %v1952 = vlaneseq
  %v1953 = vshrl.u32 %v1952, 7
  %v1954 = vsub.s32 0, %v1953
  %v1955 = vrot.slane %v1950, %v1954
  %1957 = vmatprep.subr.mxu0 0.0
  %1958 = vmatpush1.msra.mxu0 %v1946
  %1959 = vmatprep.subr.mxu0 0.0
  %1960 = vmatpush1.msra.mxu0 %v1947
  %1961 = vmatprep.subr.mxu0 0.0
  %1962 = vmatpush1.msra.mxu0 %v1948
  %1963 = vmatprep.subr.mxu0 0.0
  %1964 = vmatpush1.msra.mxu0 0.0
  %1965 = vmatprep.subr.mxu0 0.0
  %1966 = vmatpush1.msra.mxu0 0.0
  %1967 = vmatprep.subr.mxu0 0.0
  %1968 = vmatpush1.msra.mxu0 0.0
  %1969 = vmatprep.subr.mxu0 0.0
  %1970 = vmatpush1.msra.mxu0 0.0
  %1971 = vmatprep.subr.mxu0 0.0
  %1972 = vmatpush1.msra.mxu0 0.0
  %1973 = vmatprep.subr.mxu0 0.0
  %1974 = vmatpush1.msra.mxu0 0.0
  %1975 = vmatprep.subr.mxu0 0.0
  %1976 = vmatpush1.msra.mxu0 0.0
  %1977 = vmatprep.subr.mxu0 0.0
  %1978 = vmatpush1.msra.mxu0 0.0
  %1979 = vmatprep.subr.mxu0 0.0
  %1980 = vmatpush1.msra.mxu0 0.0
  %1981 = vmatprep.subr.mxu0 0.0
  %1982 = vmatpush1.msra.mxu0 0.0
  %1983 = vmatprep.subr.mxu0 0.0
  %1984 = vmatpush1.msra.mxu0 0.0
  %1985 = vmatprep.subr.mxu0 0.0
  %1986 = vmatpush1.msra.mxu0 0.0
  %1987 = vmatprep.subr.mxu0 0.0
  %1988 = vmatpush1.msra.mxu0 0.0
  %1989 = vmatprep.subr.mxu0 0.0
  %1990 = vmatpush1.msra.mxu0 0.0
  %1991 = vmatprep.subr.mxu0 0.0
  %1992 = vmatpush1.msra.mxu0 0.0
  %1993 = vmatprep.subr.mxu0 0.0
  %1994 = vmatpush1.msra.mxu0 0.0
  %1995 = vmatprep.subr.mxu0 0.0
  %1996 = vmatpush1.msra.mxu0 0.0
  %1997 = vmatprep.subr.mxu0 0.0
  %1998 = vmatpush1.msra.mxu0 0.0
  %1999 = vmatprep.subr.mxu0 0.0
  %2000 = vmatpush1.msra.mxu0 0.0
  %2001 = vmatprep.subr.mxu0 0.0
  %2002 = vmatpush1.msra.mxu0 0.0
  %2003 = vmatprep.subr.mxu0 0.0
  %2004 = vmatpush1.msra.mxu0 0.0
  %2005 = vmatprep.subr.mxu0 0.0
  %2006 = vmatpush1.msra.mxu0 0.0
  %2007 = vmatprep.subr.mxu0 0.0
  %2008 = vmatpush1.msra.mxu0 0.0
  %2009 = vmatprep.subr.mxu0 0.0
  %2010 = vmatpush1.msra.mxu0 0.0
  %2011 = vmatprep.subr.mxu0 0.0
  %2012 = vmatpush1.msra.mxu0 0.0
  %2013 = vmatprep.subr.mxu0 0.0
  %2014 = vmatpush1.msra.mxu0 0.0
  %2015 = vmatprep.subr.mxu0 0.0
  %2016 = vmatpush1.msra.mxu0 0.0
  %2017 = vmatprep.subr.mxu0 0.0
  %2018 = vmatpush1.msra.mxu0 0.0
  %2019 = vmatprep.subr.mxu0 0.0
  %2020 = vmatpush1.msra.mxu0 0.0
  %2021 = vmatprep.mubr.f32.mxu0 0.0
  %2022 = vmatmul.mubr.f32.gmra.mrb[0].mxu0 %v230
  %v2023 = vpop.f32.mrb[0].mxu0
  %v2024 = vadd.f32 %v1955, %v2023
  %v2025 = vpop.f32.mrb[0].mxu0
  %2026 = vmatprep.mubr.f32.mxu0 0.0
  %2027 = vmatmul.mubr.f32.gmra.mrb[0].mxu0 %v233
  %v2028 = vpop.f32.mrb[0].mxu0
  %v2029 = vadd.f32 %v1955, %v2028
  %v2030 = vpop.f32.mrb[0].mxu0
  %2031 = vdwg.mxu0
  %s2032 = scalar_lea.vmem %s11, 264
  %v2033 = vld [vmem:[%s2032] sm:$0xff]
  %v2034 = vld [vmem:[%s2032 + $0x8] sm:$0xff]
  %v2035 = vld [vmem:[%s2032 + $0x10] sm:$0xff]
  %s2036 = scalar_lea.vmem %s13, 11
  %v2037 = vld [vmem:[%s2036] sm:$0x1]
  %v2039 = vlaneseq
  %v2040 = vshrl.u32 %v2039, 7
  %v2041 = vsub.s32 0, %v2040
  %v2042 = vrot.slane %v2037, %v2041
  %2044 = vmatprep.subr.mxu0 0.0
  %2045 = vmatpush1.msra.mxu0 %v2033
  %2046 = vmatprep.subr.mxu0 0.0
  %2047 = vmatpush1.msra.mxu0 %v2034
  %2048 = vmatprep.subr.mxu0 0.0
  %2049 = vmatpush1.msra.mxu0 %v2035
  %2050 = vmatprep.subr.mxu0 0.0
  %2051 = vmatpush1.msra.mxu0 0.0
  %2052 = vmatprep.subr.mxu0 0.0
  %2053 = vmatpush1.msra.mxu0 0.0
  %2054 = vmatprep.subr.mxu0 0.0
  %2055 = vmatpush1.msra.mxu0 0.0
  %2056 = vmatprep.subr.mxu0 0.0
  %2057 = vmatpush1.msra.mxu0 0.0
  %2058 = vmatprep.subr.mxu0 0.0
  %2059 = vmatpush1.msra.mxu0 0.0
  %2060 = vmatprep.subr.mxu0 0.0
  %2061 = vmatpush1.msra.mxu0 0.0
  %2062 = vmatprep.subr.mxu0 0.0
  %2063 = vmatpush1.msra.mxu0 0.0
  %2064 = vmatprep.subr.mxu0 0.0
  %2065 = vmatpush1.msra.mxu0 0.0
  %2066 = vmatprep.subr.mxu0 0.0
  %2067 = vmatpush1.msra.mxu0 0.0
  %2068 = vmatprep.subr.mxu0 0.0
  %2069 = vmatpush1.msra.mxu0 0.0
  %2070 = vmatprep.subr.mxu0 0.0
  %2071 = vmatpush1.msra.mxu0 0.0
  %2072 = vmatprep.subr.mxu0 0.0
  %2073 = vmatpush1.msra.mxu0 0.0
  %2074 = vmatprep.subr.mxu0 0.0
  %2075 = vmatpush1.msra.mxu0 0.0
  %2076 = vmatprep.subr.mxu0 0.0
  %2077 = vmatpush1.msra.mxu0 0.0
  %2078 = vmatprep.subr.mxu0 0.0
  %2079 = vmatpush1.msra.mxu0 0.0
  %2080 = vmatprep.subr.mxu0 0.0
  %2081 = vmatpush1.msra.mxu0 0.0
  %2082 = vmatprep.subr.mxu0 0.0
  %2083 = vmatpush1.msra.mxu0 0.0
  %2084 = vmatprep.subr.mxu0 0.0
  %2085 = vmatpush1.msra.mxu0 0.0
  %2086 = vmatprep.subr.mxu0 0.0
  %2087 = vmatpush1.msra.mxu0 0.0
  %2088 = vmatprep.subr.mxu0 0.0
  %2089 = vmatpush1.msra.mxu0 0.0
  %2090 = vmatprep.subr.mxu0 0.0
  %2091 = vmatpush1.msra.mxu0 0.0
  %2092 = vmatprep.subr.mxu0 0.0
  %2093 = vmatpush1.msra.mxu0 0.0
  %2094 = vmatprep.subr.mxu0 0.0
  %2095 = vmatpush1.msra.mxu0 0.0
  %2096 = vmatprep.subr.mxu0 0.0
  %2097 = vmatpush1.msra.mxu0 0.0
  %2098 = vmatprep.subr.mxu0 0.0
  %2099 = vmatpush1.msra.mxu0 0.0
  %2100 = vmatprep.subr.mxu0 0.0
  %2101 = vmatpush1.msra.mxu0 0.0
  %2102 = vmatprep.subr.mxu0 0.0
  %2103 = vmatpush1.msra.mxu0 0.0
  %2104 = vmatprep.subr.mxu0 0.0
  %2105 = vmatpush1.msra.mxu0 0.0
  %2106 = vmatprep.subr.mxu0 0.0
  %2107 = vmatpush1.msra.mxu0 0.0
  %2108 = vmatprep.mubr.f32.mxu0 0.0
  %2109 = vmatmul.mubr.f32.gmra.mrb[0].mxu0 %v230
  %v2110 = vpop.f32.mrb[0].mxu0
  %v2111 = vadd.f32 %v2042, %v2110
  %v2112 = vpop.f32.mrb[0].mxu0
  %2113 = vmatprep.mubr.f32.mxu0 0.0
  %2114 = vmatmul.mubr.f32.gmra.mrb[0].mxu0 %v233
  %v2115 = vpop.f32.mrb[0].mxu0
  %v2116 = vadd.f32 %v2042, %v2115
  %v2117 = vpop.f32.mrb[0].mxu0
  %2118 = vdwg.mxu0
  %v2120 = vsel %vm129, %v1937, 0
  %v2123 = vsel %vm129, %v1942, 0
  %v2126 = vsel %vm129, %v2024, 0
  %v2129 = vsel %vm129, %v2029, 0
  %2131 = vmatprep.subr.mxu0 0.0
  %2132 = vmatpush1.xpose.msra.mxu0 %v2126
  %2133 = vmatprep.subr.mxu0 0.0
  %2134 = vmatpush1.xpose.msra.mxu0 %v2129
  %2135 = vmatprep.subr.mxu0 0.0
  %2136 = vmatpush1.xpose.msra.mxu0 0.0
  %2137 = vmatprep.subr.mxu0 0.0
  %2138 = vmatpush1.xpose.msra.mxu0 0.0
  %2139 = vmatprep.subr.mxu0 0.0
  %2140 = vmatpush1.xpose.msra.mxu0 0.0
  %2141 = vmatprep.subr.mxu0 0.0
  %2142 = vmatpush1.xpose.msra.mxu0 0.0
  %2143 = vmatprep.subr.mxu0 0.0
  %2144 = vmatpush1.xpose.msra.mxu0 0.0
  %2145 = vmatprep.subr.mxu0 0.0
  %2146 = vmatpush1.xpose.msra.mxu0 0.0
  %2147 = vmatprep.subr.mxu0 0.0
  %2148 = vmatpush1.xpose.msra.mxu0 0.0
  %2149 = vmatprep.subr.mxu0 0.0
  %2150 = vmatpush1.xpose.msra.mxu0 0.0
  %2151 = vmatprep.subr.mxu0 0.0
  %2152 = vmatpush1.xpose.msra.mxu0 0.0
  %2153 = vmatprep.subr.mxu0 0.0
  %2154 = vmatpush1.xpose.msra.mxu0 0.0
  %2155 = vmatprep.subr.mxu0 0.0
  %2156 = vmatpush1.xpose.msra.mxu0 0.0
  %2157 = vmatprep.subr.mxu0 0.0
  %2158 = vmatpush1.xpose.msra.mxu0 0.0
  %2159 = vmatprep.subr.mxu0 0.0
  %2160 = vmatpush1.xpose.msra.mxu0 0.0
  %2161 = vmatprep.subr.mxu0 0.0
  %2162 = vmatpush1.xpose.msra.mxu0 0.0
  %2163 = vmatprep.subr.mxu0 0.0
  %2164 = vmatpush1.xpose.msra.mxu0 0.0
  %2165 = vmatprep.subr.mxu0 0.0
  %2166 = vmatpush1.xpose.msra.mxu0 0.0
  %2167 = vmatprep.subr.mxu0 0.0
  %2168 = vmatpush1.xpose.msra.mxu0 0.0
  %2169 = vmatprep.subr.mxu0 0.0
  %2170 = vmatpush1.xpose.msra.mxu0 0.0
  %2171 = vmatprep.subr.mxu0 0.0
  %2172 = vmatpush1.xpose.msra.mxu0 0.0
  %2173 = vmatprep.subr.mxu0 0.0
  %2174 = vmatpush1.xpose.msra.mxu0 0.0
  %2175 = vmatprep.subr.mxu0 0.0
  %2176 = vmatpush1.xpose.msra.mxu0 0.0
  %2177 = vmatprep.subr.mxu0 0.0
  %2178 = vmatpush1.xpose.msra.mxu0 0.0
  %2179 = vmatprep.subr.mxu0 0.0
  %2180 = vmatpush1.xpose.msra.mxu0 0.0
  %2181 = vmatprep.subr.mxu0 0.0
  %2182 = vmatpush1.xpose.msra.mxu0 0.0
  %2183 = vmatprep.subr.mxu0 0.0
  %2184 = vmatpush1.xpose.msra.mxu0 0.0
  %2185 = vmatprep.subr.mxu0 0.0
  %2186 = vmatpush1.xpose.msra.mxu0 0.0
  %2187 = vmatprep.subr.mxu0 0.0
  %2188 = vmatpush1.xpose.msra.mxu0 0.0
  %2189 = vmatprep.subr.mxu0 0.0
  %2190 = vmatpush1.xpose.msra.mxu0 0.0
  %2191 = vmatprep.subr.mxu0 0.0
  %2192 = vmatpush1.xpose.msra.mxu0 0.0
  %2193 = vmatprep.subr.mxu0 0.0
  %2194 = vmatpush1.xpose.msra.mxu0 0.0
  %2195 = vmatprep.mubr.f32.mxu0 0.0
  %2196 = vmatmul.mubr.f32.gmra.mrb[0].mxu0 %v2120
  %v2197 = vpop.f32.mrb[0].mxu0
  %v2198 = vadd.f32 0.0, %v2197
  %v2199 = vpop.f32.mrb[0].mxu0
  %2200 = vmatprep.mubr.f32.mxu0 0.0
  %2201 = vmatmul.mubr.f32.gmra.mrb[0].mxu0 %v2123
  %v2202 = vpop.f32.mrb[0].mxu0
  %v2203 = vadd.f32 0.0, %v2202
  %v2204 = vpop.f32.mrb[0].mxu0
  %2205 = vdwg.mxu0
  %v2206 = vmul.f32 %v2198, 0.4082483
  %v2207 = vmul.f32 %v2203, 0.4082483
  %v2208 = vadd.f32 %v2206, %v215
  %v2209 = vadd.f32 %v2207, %v216
  %v2210 = vsel %vm575, %v2208, -inf
  %2211 = vmax.xlane.f32.xlu0 %v2210
  %v2212 = vpop.xlane.xlu0 %2211
  %v2213 = vsel %vm575, %v2209, -inf
  %2214 = vmax.xlane.f32.xlu0 %v2213
  %v2215 = vpop.xlane.xlu0 %2214
  %v2216 = vsub.f32 %v2208, %v2212
  %v2217 = vsub.f32 %v2209, %v2215
  %v2218 = vmul.f32 %v2216, 1.442695
  %v2219 = vpow.pop %v2218
  %v2220 = vmul.f32 %v2217, 1.442695
  %v2221 = vpow.pop %v2220
  %v2222 = vsel %vm575, %v2219, 0.0
  %2223 = vadd.xlane.f32.xlu0 %v2222
  %v2224 = vpop.xlane.xlu0 %2223
  %v2225 = vsel %vm575, %v2221, 0.0
  %2226 = vadd.xlane.f32.xlu0 %v2225
  %v2227 = vpop.xlane.xlu0 %2226
  %v2228 = vrcp.pop %v2224
  %v2229 = vmul.f32 %v2219, %v2228
  %v2230 = vrcp.pop %v2227
  %v2231 = vmul.f32 %v2221, %v2230
  %v2233 = vsel %vm575, %v2229, 0
  %v2236 = vsel %vm575, %v2231, 0
  %2238 = vmatprep.subr.mxu0 0.0
  %2239 = vmatpush1.msra.mxu0 %v2111
  %2240 = vmatprep.subr.mxu0 0.0
  %2241 = vmatpush1.msra.mxu0 %v2116
  %2242 = vmatprep.subr.mxu0 0.0
  %2243 = vmatpush1.msra.mxu0 0.0
  %2244 = vmatprep.subr.mxu0 0.0
  %2245 = vmatpush1.msra.mxu0 0.0
  %2246 = vmatprep.subr.mxu0 0.0
  %2247 = vmatpush1.msra.mxu0 0.0
  %2248 = vmatprep.subr.mxu0 0.0
  %2249 = vmatpush1.msra.mxu0 0.0
  %2250 = vmatprep.subr.mxu0 0.0
  %2251 = vmatpush1.msra.mxu0 0.0
  %2252 = vmatprep.subr.mxu0 0.0
  %2253 = vmatpush1.msra.mxu0 0.0
  %2254 = vmatprep.subr.mxu0 0.0
  %2255 = vmatpush1.msra.mxu0 0.0
  %2256 = vmatprep.subr.mxu0 0.0
  %2257 = vmatpush1.msra.mxu0 0.0
  %2258 = vmatprep.subr.mxu0 0.0
  %2259 = vmatpush1.msra.mxu0 0.0
  %2260 = vmatprep.subr.mxu0 0.0
  %2261 = vmatpush1.msra.mxu0 0.0
  %2262 = vmatprep.subr.mxu0 0.0
  %2263 = vmatpush1.msra.mxu0 0.0
  %2264 = vmatprep.subr.mxu0 0.0
  %2265 = vmatpush1.msra.mxu0 0.0
  %2266 = vmatprep.subr.mxu0 0.0
  %2267 = vmatpush1.msra.mxu0 0.0
  %2268 = vmatprep.subr.mxu0 0.0
  %2269 = vmatpush1.msra.mxu0 0.0
  %2270 = vmatprep.subr.mxu0 0.0
  %2271 = vmatpush1.msra.mxu0 0.0
  %2272 = vmatprep.subr.mxu0 0.0
  %2273 = vmatpush1.msra.mxu0 0.0
  %2274 = vmatprep.subr.mxu0 0.0
  %2275 = vmatpush1.msra.mxu0 0.0
  %2276 = vmatprep.subr.mxu0 0.0
  %2277 = vmatpush1.msra.mxu0 0.0
  %2278 = vmatprep.subr.mxu0 0.0
  %2279 = vmatpush1.msra.mxu0 0.0
  %2280 = vmatprep.subr.mxu0 0.0
  %2281 = vmatpush1.msra.mxu0 0.0
  %2282 = vmatprep.subr.mxu0 0.0
  %2283 = vmatpush1.msra.mxu0 0.0
  %2284 = vmatprep.subr.mxu0 0.0
  %2285 = vmatpush1.msra.mxu0 0.0
  %2286 = vmatprep.subr.mxu0 0.0
  %2287 = vmatpush1.msra.mxu0 0.0
  %2288 = vmatprep.subr.mxu0 0.0
  %2289 = vmatpush1.msra.mxu0 0.0
  %2290 = vmatprep.subr.mxu0 0.0
  %2291 = vmatpush1.msra.mxu0 0.0
  %2292 = vmatprep.subr.mxu0 0.0
  %2293 = vmatpush1.msra.mxu0 0.0
  %2294 = vmatprep.subr.mxu0 0.0
  %2295 = vmatpush1.msra.mxu0 0.0
  %2296 = vmatprep.subr.mxu0 0.0
  %2297 = vmatpush1.msra.mxu0 0.0
  %2298 = vmatprep.subr.mxu0 0.0
  %2299 = vmatpush1.msra.mxu0 0.0
  %2300 = vmatprep.subr.mxu0 0.0
  %2301 = vmatpush1.msra.mxu0 0.0
  %2302 = vmatprep.mubr.f32.mxu0 0.0
  %2303 = vmatmul.mubr.f32.gmra.mrb[0].mxu0 %v2233
  %v2304 = vpop.f32.mrb[0].mxu0
  %v2305 = vadd.f32 0.0, %v2304
  %v2306 = vpop.f32.mrb[0].mxu0
  %2307 = vmatprep.mubr.f32.mxu0 0.0
  %2308 = vmatmul.mubr.f32.gmra.mrb[0].mxu0 %v2236
  %v2309 = vpop.f32.mrb[0].mxu0
  %v2310 = vadd.f32 0.0, %v2309
  %v2311 = vpop.f32.mrb[0].mxu0
  %2312 = vdwg.mxu0
  %s2313 = scalar_lea.vmem %s15, 24
  %v2314 = vld [vmem:[%s2313] sm:$0x3f]
  %v2316 = vsel %vm129, %v2305, 0
  %v2319 = vsel %vm129, %v2310, 0
  %v2322 = vsel %vm136, %v2314, 0
  %2324 = vmatprep.subr.mxu0 0.0
  %2325 = vmatpush1.msra.mxu0 %v2322
  %2326 = vmatprep.subr.mxu0 0.0
  %2327 = vmatpush1.msra.mxu0 0.0
  %2328 = vmatprep.subr.mxu0 0.0
  %2329 = vmatpush1.msra.mxu0 0.0
  %2330 = vmatprep.subr.mxu0 0.0
  %2331 = vmatpush1.msra.mxu0 0.0
  %2332 = vmatprep.subr.mxu0 0.0
  %2333 = vmatpush1.msra.mxu0 0.0
  %2334 = vmatprep.subr.mxu0 0.0
  %2335 = vmatpush1.msra.mxu0 0.0
  %2336 = vmatprep.subr.mxu0 0.0
  %2337 = vmatpush1.msra.mxu0 0.0
  %2338 = vmatprep.subr.mxu0 0.0
  %2339 = vmatpush1.msra.mxu0 0.0
  %2340 = vmatprep.subr.mxu0 0.0
  %2341 = vmatpush1.msra.mxu0 0.0
  %2342 = vmatprep.subr.mxu0 0.0
  %2343 = vmatpush1.msra.mxu0 0.0
  %2344 = vmatprep.subr.mxu0 0.0
  %2345 = vmatpush1.msra.mxu0 0.0
  %2346 = vmatprep.subr.mxu0 0.0
  %2347 = vmatpush1.msra.mxu0 0.0
  %2348 = vmatprep.subr.mxu0 0.0
  %2349 = vmatpush1.msra.mxu0 0.0
  %2350 = vmatprep.subr.mxu0 0.0
  %2351 = vmatpush1.msra.mxu0 0.0
  %2352 = vmatprep.subr.mxu0 0.0
  %2353 = vmatpush1.msra.mxu0 0.0
  %2354 = vmatprep.subr.mxu0 0.0
  %2355 = vmatpush1.msra.mxu0 0.0
  %2356 = vmatprep.subr.mxu0 0.0
  %2357 = vmatpush1.msra.mxu0 0.0
  %2358 = vmatprep.subr.mxu0 0.0
  %2359 = vmatpush1.msra.mxu0 0.0
  %2360 = vmatprep.subr.mxu0 0.0
  %2361 = vmatpush1.msra.mxu0 0.0
  %2362 = vmatprep.subr.mxu0 0.0
  %2363 = vmatpush1.msra.mxu0 0.0
  %2364 = vmatprep.subr.mxu0 0.0
  %2365 = vmatpush1.msra.mxu0 0.0
  %2366 = vmatprep.subr.mxu0 0.0
  %2367 = vmatpush1.msra.mxu0 0.0
  %2368 = vmatprep.subr.mxu0 0.0
  %2369 = vmatpush1.msra.mxu0 0.0
  %2370 = vmatprep.subr.mxu0 0.0
  %2371 = vmatpush1.msra.mxu0 0.0
  %2372 = vmatprep.subr.mxu0 0.0
  %2373 = vmatpush1.msra.mxu0 0.0
  %2374 = vmatprep.subr.mxu0 0.0
  %2375 = vmatpush1.msra.mxu0 0.0
  %2376 = vmatprep.subr.mxu0 0.0
  %2377 = vmatpush1.msra.mxu0 0.0
  %2378 = vmatprep.subr.mxu0 0.0
  %2379 = vmatpush1.msra.mxu0 0.0
  %2380 = vmatprep.subr.mxu0 0.0
  %2381 = vmatpush1.msra.mxu0 0.0
  %2382 = vmatprep.subr.mxu0 0.0
  %2383 = vmatpush1.msra.mxu0 0.0
  %2384 = vmatprep.subr.mxu0 0.0
  %2385 = vmatpush1.msra.mxu0 0.0
  %2386 = vmatprep.subr.mxu0 0.0
  %2387 = vmatpush1.msra.mxu0 0.0
  %2388 = vmatprep.mubr.f32.mxu0 0.0
  %2389 = vmatmul.mubr.f32.gmra.mrb[0].mxu0 %v2316
  %v2390 = vpop.f32.mrb[0].mxu0
  %v2391 = vadd.f32 0.0, %v2390
  %v2392 = vpop.f32.mrb[0].mxu0
  %2393 = vmatprep.mubr.f32.mxu0 0.0
  %2394 = vmatmul.mubr.f32.gmra.mrb[0].mxu0 %v2319
  %v2395 = vpop.f32.mrb[0].mxu0
  %v2396 = vadd.f32 0.0, %v2395
  %v2397 = vpop.f32.mrb[0].mxu0
  %2398 = vdwg.mxu0
  %v2399 = vadd.f32 %v1856, %v2391
  %v2400 = vadd.f32 %v1857, %v2396
  %v2401 = vadd.f32 %v207, %v2399
  %v2402 = vadd.f32 %v212, %v2400
  %v2403 = vld [vmem:[%s23] sm:$0x1]
  %s2404 = scalar_lea.vmem %s23, 1
  %v2405 = vld [vmem:[%s2404] sm:$0x1]
  %v2406 = vsel %vm228, %v2401, 0.0
  %2407 = vadd.xlane.f32.xlu0 %v2406
  %v2408 = vpop.xlane.xlu0 %2407
  %v2409 = vsel %vm228, %v2402, 0.0
  %2410 = vadd.xlane.f32.xlu0 %v2409
  %v2411 = vpop.xlane.xlu0 %2410
  %v2412 = vrcp.pop 24.0
  %v2413 = vmul.f32 %v2408, %v2412
  %v2414 = vmul.f32 %v2411, %v2412
  %v2415 = vsub.f32 %v2401, %v2413
  %v2416 = vsub.f32 %v2402, %v2414
  %v2417 = vmul.f32 %v2415, %v2415
  %v2418 = vmul.f32 %v2416, %v2416
  %v2419 = vsel %vm228, %v2417, 0.0
  %2420 = vadd.xlane.f32.xlu0 %v2419
  %v2421 = vpop.xlane.xlu0 %2420
  %v2422 = vsel %vm228, %v2418, 0.0
  %2423 = vadd.xlane.f32.xlu0 %v2422
  %v2424 = vpop.xlane.xlu0 %2423
  %v2425 = vmul.f32 %v2421, %v2412
  %v2426 = vmul.f32 %v2424, %v2412
  %v2427 = vadd.f32 %v2425, 1e-05
  %v2428 = vadd.f32 %v2426, 1e-05
  %v2429 = vrsqrt.pop %v2427
  %v2430 = vrsqrt.pop %v2428
  %v2431 = vmul.f32 %v2415, %v2429
  %v2432 = vmul.f32 %v2416, %v2430
  %v2434 = vlaneseq
  %v2435 = vshrl.u32 %v2434, 7
  %v2436 = vsub.s32 0, %v2435
  %v2437 = vrot.slane %v2403, %v2436
  %v2439 = vmul.f32 %v2431, %v2437
  %v2440 = vmul.f32 %v2432, %v2437
  %v2442 = vlaneseq
  %v2443 = vshrl.u32 %v2442, 7
  %v2444 = vsub.s32 0, %v2443
  %v2445 = vrot.slane %v2405, %v2444
  %v2447 = vadd.f32 %v2439, %v2445
  %v2448 = vadd.f32 %v2440, %v2445
  %v2449 = vld [vmem:[%s19] sm:$0xff]
  %v2450 = vld [vmem:[%s19 + $0x8] sm:$0xff]
  %v2451 = vld [vmem:[%s19 + $0x10] sm:$0xff]
  %v2452 = vld [vmem:[%s21] sm:$0x1]
  %v2454 = vlaneseq
  %v2455 = vshrl.u32 %v2454, 7
  %v2456 = vsub.s32 0, %v2455
  %v2457 = vrot.slane %v2452, %v2456
  %v2460 = vsel %vm228, %v2447, 0
  %v2463 = vsel %vm228, %v2448, 0
  %2465 = vmatprep.subr.mxu0 0.0
  %2466 = vmatpush1.msra.mxu0 %v2449
  %2467 = vmatprep.subr.mxu0 0.0
  %2468 = vmatpush1.msra.mxu0 %v2450
  %2469 = vmatprep.subr.mxu0 0.0
  %2470 = vmatpush1.msra.mxu0 %v2451
  %2471 = vmatprep.subr.mxu0 0.0
  %2472 = vmatpush1.msra.mxu0 0.0
  %2473 = vmatprep.subr.mxu0 0.0
  %2474 = vmatpush1.msra.mxu0 0.0
  %2475 = vmatprep.subr.mxu0 0.0
  %2476 = vmatpush1.msra.mxu0 0.0
  %2477 = vmatprep.subr.mxu0 0.0
  %2478 = vmatpush1.msra.mxu0 0.0
  %2479 = vmatprep.subr.mxu0 0.0
  %2480 = vmatpush1.msra.mxu0 0.0
  %2481 = vmatprep.subr.mxu0 0.0
  %2482 = vmatpush1.msra.mxu0 0.0
  %2483 = vmatprep.subr.mxu0 0.0
  %2484 = vmatpush1.msra.mxu0 0.0
  %2485 = vmatprep.subr.mxu0 0.0
  %2486 = vmatpush1.msra.mxu0 0.0
  %2487 = vmatprep.subr.mxu0 0.0
  %2488 = vmatpush1.msra.mxu0 0.0
  %2489 = vmatprep.subr.mxu0 0.0
  %2490 = vmatpush1.msra.mxu0 0.0
  %2491 = vmatprep.subr.mxu0 0.0
  %2492 = vmatpush1.msra.mxu0 0.0
  %2493 = vmatprep.subr.mxu0 0.0
  %2494 = vmatpush1.msra.mxu0 0.0
  %2495 = vmatprep.subr.mxu0 0.0
  %2496 = vmatpush1.msra.mxu0 0.0
  %2497 = vmatprep.subr.mxu0 0.0
  %2498 = vmatpush1.msra.mxu0 0.0
  %2499 = vmatprep.subr.mxu0 0.0
  %2500 = vmatpush1.msra.mxu0 0.0
  %2501 = vmatprep.subr.mxu0 0.0
  %2502 = vmatpush1.msra.mxu0 0.0
  %2503 = vmatprep.subr.mxu0 0.0
  %2504 = vmatpush1.msra.mxu0 0.0
  %2505 = vmatprep.subr.mxu0 0.0
  %2506 = vmatpush1.msra.mxu0 0.0
  %2507 = vmatprep.subr.mxu0 0.0
  %2508 = vmatpush1.msra.mxu0 0.0
  %2509 = vmatprep.subr.mxu0 0.0
  %2510 = vmatpush1.msra.mxu0 0.0
  %2511 = vmatprep.subr.mxu0 0.0
  %2512 = vmatpush1.msra.mxu0 0.0
  %2513 = vmatprep.subr.mxu0 0.0
  %2514 = vmatpush1.msra.mxu0 0.0
  %2515 = vmatprep.subr.mxu0 0.0
  %2516 = vmatpush1.msra.mxu0 0.0
  %2517 = vmatprep.subr.mxu0 0.0
  %2518 = vmatpush1.msra.mxu0 0.0
  %2519 = vmatprep.subr.mxu0 0.0
  %2520 = vmatpush1.msra.mxu0 0.0
  %2521 = vmatprep.subr.mxu0 0.0
  %2522 = vmatpush1.msra.mxu0 0.0
  %2523 = vmatprep.subr.mxu0 0.0
  %2524 = vmatpush1.msra.mxu0 0.0
  %2525 = vmatprep.subr.mxu0 0.0
  %2526 = vmatpush1.msra.mxu0 0.0
  %2527 = vmatprep.subr.mxu0 0.0
  %2528 = vmatpush1.msra.mxu0 0.0
  %2529 = vmatprep.mubr.f32.mxu0 0.0
  %2530 = vmatmul.mubr.f32.gmra.mrb[0].mxu0 %v2460
  %v2531 = vpop.f32.mrb[0].mxu0
  %v2532 = vadd.f32 %v2457, %v2531
  %v2533 = vpop.f32.mrb[0].mxu0
  %2534 = vmatprep.mubr.f32.mxu0 0.0
  %2535 = vmatmul.mubr.f32.gmra.mrb[0].mxu0 %v2463
  %v2536 = vpop.f32.mrb[0].mxu0
  %v2537 = vadd.f32 %v2457, %v2536
  %v2538 = vpop.f32.mrb[0].mxu0
  %2539 = vdwg.mxu0
  %v2540 = vmul.f32 %v2532, 0.5
  %v2541 = vmul.f32 %v2537, 0.5
  %v2542 = vmul.f32 %v2532, 0.70710677
  %v2543 = vmul.f32 %v2537, 0.70710677
  %vm2544 = vcmp.ge.f32.partialorder %v2542, 0.0
  %vm2545 = vcmp.ge.f32.partialorder %v2543, 0.0
  %v2546 = vsel %vm2544, 1.0, -1.0
  %v2547 = vsel %vm2545, 1.0, -1.0
  %v2548 = vand.u32 2147483647, %v2542
  %v2549 = vand.u32 2147483647, %v2543
  %v2550 = vmul.f32 %v2548, 0.3275911
  %v2551 = vmul.f32 %v2549, 0.3275911
  %v2552 = vadd.f32 %v2550, 1.0
  %v2553 = vadd.f32 %v2551, 1.0
  %v2554 = vrcp.pop %v2552
  %v2555 = vmul.f32 1.0, %v2554
  %v2556 = vrcp.pop %v2553
  %v2557 = vmul.f32 1.0, %v2556
  %v2558 = vmul.f32 %v2555, 1.0614054
  %v2559 = vmul.f32 %v2557, 1.0614054
  %v2560 = vadd.f32 %v2558, -1.4531521
  %v2561 = vadd.f32 %v2559, -1.4531521
  %v2562 = vmul.f32 %v2560, %v2555
  %v2563 = vmul.f32 %v2561, %v2557
  %v2564 = vadd.f32 %v2562, 1.4214138
  %v2565 = vadd.f32 %v2563, 1.4214138
  %v2566 = vmul.f32 %v2564, %v2555
  %v2567 = vmul.f32 %v2565, %v2557
  %v2568 = vadd.f32 %v2566, -0.28449672
  %v2569 = vadd.f32 %v2567, -0.28449672
  %v2570 = vmul.f32 %v2568, %v2555
  %v2571 = vmul.f32 %v2569, %v2557
  %v2572 = vadd.f32 %v2570, 0.2548296
  %v2573 = vadd.f32 %v2571, 0.2548296
  %v2574 = vmul.f32 %v2572, %v2555
  %v2575 = vmul.f32 %v2573, %v2557
  %v2576 = vsub.f32 0.0, %v2548
  %v2577 = vsub.f32 0.0, %v2549
  %v2578 = vmul.f32 %v2576, %v2548
  %v2579 = vmul.f32 %v2577, %v2549
  %v2580 = vmul.f32 %v2578, 1.442695
  %v2581 = vpow.pop %v2580
  %v2582 = vmul.f32 %v2579, 1.442695
  %v2583 = vpow.pop %v2582
  %v2584 = vmul.f32 %v2574, %v2581
  %v2585 = vmul.f32 %v2575, %v2583
  %v2586 = vsub.f32 1.0, %v2584
  %v2587 = vsub.f32 1.0, %v2585
  %v2588 = vmul.f32 %v2546, %v2586
  %v2589 = vmul.f32 %v2547, %v2587
  %v2590 = vadd.f32 %v2588, 1.0
  %v2591 = vadd.f32 %v2589, 1.0
  %v2592 = vmul.f32 %v2540, %v2590
  %v2593 = vmul.f32 %v2541, %v2591
  %s2594 = scalar_lea.vmem %s19, 24
  %v2595 = vld [vmem:[%s2594] sm:$0xff]
  %v2596 = vld [vmem:[%s2594 + $0x8] sm:$0xff]
  %v2597 = vld [vmem:[%s2594 + $0x10] sm:$0xff]
  %s2598 = scalar_lea.vmem %s21, 1
  %v2599 = vld [vmem:[%s2598] sm:$0x1]
  %v2601 = vlaneseq
  %v2602 = vshrl.u32 %v2601, 7
  %v2603 = vsub.s32 0, %v2602
  %v2604 = vrot.slane %v2599, %v2603
  %v2607 = vsel %vm228, %v2592, 0
  %v2610 = vsel %vm228, %v2593, 0
  %2612 = vmatprep.subr.mxu0 0.0
  %2613 = vmatpush1.msra.mxu0 %v2595
  %2614 = vmatprep.subr.mxu0 0.0
  %2615 = vmatpush1.msra.mxu0 %v2596
  %2616 = vmatprep.subr.mxu0 0.0
  %2617 = vmatpush1.msra.mxu0 %v2597
  %2618 = vmatprep.subr.mxu0 0.0
  %2619 = vmatpush1.msra.mxu0 0.0
  %2620 = vmatprep.subr.mxu0 0.0
  %2621 = vmatpush1.msra.mxu0 0.0
  %2622 = vmatprep.subr.mxu0 0.0
  %2623 = vmatpush1.msra.mxu0 0.0
  %2624 = vmatprep.subr.mxu0 0.0
  %2625 = vmatpush1.msra.mxu0 0.0
  %2626 = vmatprep.subr.mxu0 0.0
  %2627 = vmatpush1.msra.mxu0 0.0
  %2628 = vmatprep.subr.mxu0 0.0
  %2629 = vmatpush1.msra.mxu0 0.0
  %2630 = vmatprep.subr.mxu0 0.0
  %2631 = vmatpush1.msra.mxu0 0.0
  %2632 = vmatprep.subr.mxu0 0.0
  %2633 = vmatpush1.msra.mxu0 0.0
  %2634 = vmatprep.subr.mxu0 0.0
  %2635 = vmatpush1.msra.mxu0 0.0
  %2636 = vmatprep.subr.mxu0 0.0
  %2637 = vmatpush1.msra.mxu0 0.0
  %2638 = vmatprep.subr.mxu0 0.0
  %2639 = vmatpush1.msra.mxu0 0.0
  %2640 = vmatprep.subr.mxu0 0.0
  %2641 = vmatpush1.msra.mxu0 0.0
  %2642 = vmatprep.subr.mxu0 0.0
  %2643 = vmatpush1.msra.mxu0 0.0
  %2644 = vmatprep.subr.mxu0 0.0
  %2645 = vmatpush1.msra.mxu0 0.0
  %2646 = vmatprep.subr.mxu0 0.0
  %2647 = vmatpush1.msra.mxu0 0.0
  %2648 = vmatprep.subr.mxu0 0.0
  %2649 = vmatpush1.msra.mxu0 0.0
  %2650 = vmatprep.subr.mxu0 0.0
  %2651 = vmatpush1.msra.mxu0 0.0
  %2652 = vmatprep.subr.mxu0 0.0
  %2653 = vmatpush1.msra.mxu0 0.0
  %2654 = vmatprep.subr.mxu0 0.0
  %2655 = vmatpush1.msra.mxu0 0.0
  %2656 = vmatprep.subr.mxu0 0.0
  %2657 = vmatpush1.msra.mxu0 0.0
  %2658 = vmatprep.subr.mxu0 0.0
  %2659 = vmatpush1.msra.mxu0 0.0
  %2660 = vmatprep.subr.mxu0 0.0
  %2661 = vmatpush1.msra.mxu0 0.0
  %2662 = vmatprep.subr.mxu0 0.0
  %2663 = vmatpush1.msra.mxu0 0.0
  %2664 = vmatprep.subr.mxu0 0.0
  %2665 = vmatpush1.msra.mxu0 0.0
  %2666 = vmatprep.subr.mxu0 0.0
  %2667 = vmatpush1.msra.mxu0 0.0
  %2668 = vmatprep.subr.mxu0 0.0
  %2669 = vmatpush1.msra.mxu0 0.0
  %2670 = vmatprep.subr.mxu0 0.0
  %2671 = vmatpush1.msra.mxu0 0.0
  %2672 = vmatprep.subr.mxu0 0.0
  %2673 = vmatpush1.msra.mxu0 0.0
  %2674 = vmatprep.subr.mxu0 0.0
  %2675 = vmatpush1.msra.mxu0 0.0
  %2676 = vmatprep.mubr.f32.mxu0 0.0
  %2677 = vmatmul.mubr.f32.gmra.mrb[0].mxu0 %v2607
  %v2678 = vpop.f32.mrb[0].mxu0
  %v2679 = vadd.f32 %v2604, %v2678
  %v2680 = vpop.f32.mrb[0].mxu0
  %2681 = vmatprep.mubr.f32.mxu0 0.0
  %2682 = vmatmul.mubr.f32.gmra.mrb[0].mxu0 %v2610
  %v2683 = vpop.f32.mrb[0].mxu0
  %v2684 = vadd.f32 %v2604, %v2683
  %v2685 = vpop.f32.mrb[0].mxu0
  %2686 = vdwg.mxu0
  %v2687 = vadd.f32 %v2447, %v2679
  %v2688 = vadd.f32 %v2448, %v2684
  %s2689 = scalar_lea.vmem %s23, 2
  %v2690 = vld [vmem:[%s2689] sm:$0x1]
  %s2691 = scalar_lea.vmem %s23, 3
  %v2692 = vld [vmem:[%s2691] sm:$0x1]
  %v2693 = vsel %vm228, %v2687, 0.0
  %2694 = vadd.xlane.f32.xlu0 %v2693
  %v2695 = vpop.xlane.xlu0 %2694
  %v2696 = vsel %vm228, %v2688, 0.0
  %2697 = vadd.xlane.f32.xlu0 %v2696
  %v2698 = vpop.xlane.xlu0 %2697
  %v2699 = vmul.f32 %v2695, %v2412
  %v2700 = vmul.f32 %v2698, %v2412
  %v2701 = vsub.f32 %v2687, %v2699
  %v2702 = vsub.f32 %v2688, %v2700
  %v2703 = vmul.f32 %v2701, %v2701
  %v2704 = vmul.f32 %v2702, %v2702
  %v2705 = vsel %vm228, %v2703, 0.0
  %2706 = vadd.xlane.f32.xlu0 %v2705
  %v2707 = vpop.xlane.xlu0 %2706
  %v2708 = vsel %vm228, %v2704, 0.0
  %2709 = vadd.xlane.f32.xlu0 %v2708
  %v2710 = vpop.xlane.xlu0 %2709
  %v2711 = vmul.f32 %v2707, %v2412
  %v2712 = vmul.f32 %v2710, %v2412
  %v2713 = vadd.f32 %v2711, 1e-05
  %v2714 = vadd.f32 %v2712, 1e-05
  %v2715 = vrsqrt.pop %v2713
  %v2716 = vrsqrt.pop %v2714
  %v2717 = vmul.f32 %v2701, %v2715
  %v2718 = vmul.f32 %v2702, %v2716
  %v2720 = vlaneseq
  %v2721 = vshrl.u32 %v2720, 7
  %v2722 = vsub.s32 0, %v2721
  %v2723 = vrot.slane %v2690, %v2722
  %v2725 = vmul.f32 %v2717, %v2723
  %v2726 = vmul.f32 %v2718, %v2723
  %v2728 = vlaneseq
  %v2729 = vshrl.u32 %v2728, 7
  %v2730 = vsub.s32 0, %v2729
  %v2731 = vrot.slane %v2692, %v2730
  %v2733 = vadd.f32 %v2725, %v2731
  %v2734 = vadd.f32 %v2726, %v2731
  %v2735 = vld [vmem:[%s29] sm:$0xff]
  %v2736 = vld [vmem:[%s29 + $0x8] sm:$0xff]
  %v2738 = vsel %vm575, %v2735, 0
  %v2741 = vsel %vm575, %v2736, 0
  %2743 = vmatprep.subr.mxu0 0.0
  %2744 = vmatpush1.msra.mxu0 %v2733
  %2745 = vmatprep.subr.mxu0 0.0
  %2746 = vmatpush1.msra.mxu0 %v2734
  %2747 = vmatprep.subr.mxu0 0.0
  %2748 = vmatpush1.msra.mxu0 0.0
  %2749 = vmatprep.subr.mxu0 0.0
  %2750 = vmatpush1.msra.mxu0 0.0
  %2751 = vmatprep.subr.mxu0 0.0
  %2752 = vmatpush1.msra.mxu0 0.0
  %2753 = vmatprep.subr.mxu0 0.0
  %2754 = vmatpush1.msra.mxu0 0.0
  %2755 = vmatprep.subr.mxu0 0.0
  %2756 = vmatpush1.msra.mxu0 0.0
  %2757 = vmatprep.subr.mxu0 0.0
  %2758 = vmatpush1.msra.mxu0 0.0
  %2759 = vmatprep.subr.mxu0 0.0
  %2760 = vmatpush1.msra.mxu0 0.0
  %2761 = vmatprep.subr.mxu0 0.0
  %2762 = vmatpush1.msra.mxu0 0.0
  %2763 = vmatprep.subr.mxu0 0.0
  %2764 = vmatpush1.msra.mxu0 0.0
  %2765 = vmatprep.subr.mxu0 0.0
  %2766 = vmatpush1.msra.mxu0 0.0
  %2767 = vmatprep.subr.mxu0 0.0
  %2768 = vmatpush1.msra.mxu0 0.0
  %2769 = vmatprep.subr.mxu0 0.0
  %2770 = vmatpush1.msra.mxu0 0.0
  %2771 = vmatprep.subr.mxu0 0.0
  %2772 = vmatpush1.msra.mxu0 0.0
  %2773 = vmatprep.subr.mxu0 0.0
  %2774 = vmatpush1.msra.mxu0 0.0
  %2775 = vmatprep.subr.mxu0 0.0
  %2776 = vmatpush1.msra.mxu0 0.0
  %2777 = vmatprep.subr.mxu0 0.0
  %2778 = vmatpush1.msra.mxu0 0.0
  %2779 = vmatprep.subr.mxu0 0.0
  %2780 = vmatpush1.msra.mxu0 0.0
  %2781 = vmatprep.subr.mxu0 0.0
  %2782 = vmatpush1.msra.mxu0 0.0
  %2783 = vmatprep.subr.mxu0 0.0
  %2784 = vmatpush1.msra.mxu0 0.0
  %2785 = vmatprep.subr.mxu0 0.0
  %2786 = vmatpush1.msra.mxu0 0.0
  %2787 = vmatprep.subr.mxu0 0.0
  %2788 = vmatpush1.msra.mxu0 0.0
  %2789 = vmatprep.subr.mxu0 0.0
  %2790 = vmatpush1.msra.mxu0 0.0
  %2791 = vmatprep.subr.mxu0 0.0
  %2792 = vmatpush1.msra.mxu0 0.0
  %2793 = vmatprep.subr.mxu0 0.0
  %2794 = vmatpush1.msra.mxu0 0.0
  %2795 = vmatprep.subr.mxu0 0.0
  %2796 = vmatpush1.msra.mxu0 0.0
  %2797 = vmatprep.subr.mxu0 0.0
  %2798 = vmatpush1.msra.mxu0 0.0
  %2799 = vmatprep.subr.mxu0 0.0
  %2800 = vmatpush1.msra.mxu0 0.0
  %2801 = vmatprep.subr.mxu0 0.0
  %2802 = vmatpush1.msra.mxu0 0.0
  %2803 = vmatprep.subr.mxu0 0.0
  %2804 = vmatpush1.msra.mxu0 0.0
  %2805 = vmatprep.subr.mxu0 0.0
  %2806 = vmatpush1.msra.mxu0 0.0
  %2807 = vmatprep.mubr.f32.mxu0 0.0
  %2808 = vmatmul.mubr.f32.gmra.mrb[0].mxu0 %v2738
  %v2809 = vpop.f32.mrb[0].mxu0
  %v2810 = vadd.f32 0.0, %v2809
  %v2811 = vpop.f32.mrb[0].mxu0
  %2812 = vmatprep.mubr.f32.mxu0 0.0
  %2813 = vmatmul.mubr.f32.gmra.mrb[0].mxu0 %v2741
  %v2814 = vpop.f32.mrb[0].mxu0
  %v2815 = vadd.f32 0.0, %v2814
  %v2816 = vpop.f32.mrb[0].mxu0
  %2817 = vdwg.mxu0
  %v2818 = vld [vmem:[%s31] sm:$0xff]
  %v2819 = vld [vmem:[%s31 + $0x8] sm:$0xff]
  %v2821 = vsel %vm575, %v2818, 0
  %v2824 = vsel %vm575, %v2819, 0
  %2826 = vmatprep.subr.mxu0 0.0
  %2827 = vmatpush1.msra.mxu0 %v2733
  %2828 = vmatprep.subr.mxu0 0.0
  %2829 = vmatpush1.msra.mxu0 %v2734
  %2830 = vmatprep.subr.mxu0 0.0
  %2831 = vmatpush1.msra.mxu0 0.0
  %2832 = vmatprep.subr.mxu0 0.0
  %2833 = vmatpush1.msra.mxu0 0.0
  %2834 = vmatprep.subr.mxu0 0.0
  %2835 = vmatpush1.msra.mxu0 0.0
  %2836 = vmatprep.subr.mxu0 0.0
  %2837 = vmatpush1.msra.mxu0 0.0
  %2838 = vmatprep.subr.mxu0 0.0
  %2839 = vmatpush1.msra.mxu0 0.0
  %2840 = vmatprep.subr.mxu0 0.0
  %2841 = vmatpush1.msra.mxu0 0.0
  %2842 = vmatprep.subr.mxu0 0.0
  %2843 = vmatpush1.msra.mxu0 0.0
  %2844 = vmatprep.subr.mxu0 0.0
  %2845 = vmatpush1.msra.mxu0 0.0
  %2846 = vmatprep.subr.mxu0 0.0
  %2847 = vmatpush1.msra.mxu0 0.0
  %2848 = vmatprep.subr.mxu0 0.0
  %2849 = vmatpush1.msra.mxu0 0.0
  %2850 = vmatprep.subr.mxu0 0.0
  %2851 = vmatpush1.msra.mxu0 0.0
  %2852 = vmatprep.subr.mxu0 0.0
  %2853 = vmatpush1.msra.mxu0 0.0
  %2854 = vmatprep.subr.mxu0 0.0
  %2855 = vmatpush1.msra.mxu0 0.0
  %2856 = vmatprep.subr.mxu0 0.0
  %2857 = vmatpush1.msra.mxu0 0.0
  %2858 = vmatprep.subr.mxu0 0.0
  %2859 = vmatpush1.msra.mxu0 0.0
  %2860 = vmatprep.subr.mxu0 0.0
  %2861 = vmatpush1.msra.mxu0 0.0
  %2862 = vmatprep.subr.mxu0 0.0
  %2863 = vmatpush1.msra.mxu0 0.0
  %2864 = vmatprep.subr.mxu0 0.0
  %2865 = vmatpush1.msra.mxu0 0.0
  %2866 = vmatprep.subr.mxu0 0.0
  %2867 = vmatpush1.msra.mxu0 0.0
  %2868 = vmatprep.subr.mxu0 0.0
  %2869 = vmatpush1.msra.mxu0 0.0
  %2870 = vmatprep.subr.mxu0 0.0
  %2871 = vmatpush1.msra.mxu0 0.0
  %2872 = vmatprep.subr.mxu0 0.0
  %2873 = vmatpush1.msra.mxu0 0.0
  %2874 = vmatprep.subr.mxu0 0.0
  %2875 = vmatpush1.msra.mxu0 0.0
  %2876 = vmatprep.subr.mxu0 0.0
  %2877 = vmatpush1.msra.mxu0 0.0
  %2878 = vmatprep.subr.mxu0 0.0
  %2879 = vmatpush1.msra.mxu0 0.0
  %2880 = vmatprep.subr.mxu0 0.0
  %2881 = vmatpush1.msra.mxu0 0.0
  %2882 = vmatprep.subr.mxu0 0.0
  %2883 = vmatpush1.msra.mxu0 0.0
  %2884 = vmatprep.subr.mxu0 0.0
  %2885 = vmatpush1.msra.mxu0 0.0
  %2886 = vmatprep.subr.mxu0 0.0
  %2887 = vmatpush1.msra.mxu0 0.0
  %2888 = vmatprep.subr.mxu0 0.0
  %2889 = vmatpush1.msra.mxu0 0.0
  %2890 = vmatprep.mubr.f32.mxu0 0.0
  %2891 = vmatmul.mubr.f32.gmra.mrb[0].mxu0 %v2821
  %v2892 = vpop.f32.mrb[0].mxu0
  %v2893 = vadd.f32 0.0, %v2892
  %v2894 = vpop.f32.mrb[0].mxu0
  %2895 = vmatprep.mubr.f32.mxu0 0.0
  %2896 = vmatmul.mubr.f32.gmra.mrb[0].mxu0 %v2824
  %v2897 = vpop.f32.mrb[0].mxu0
  %v2898 = vadd.f32 0.0, %v2897
  %v2899 = vpop.f32.mrb[0].mxu0
  %2900 = vdwg.mxu0
  %v2901 = vld [vmem:[%s25] sm:$0xff]
  %v2902 = vld [vmem:[%s25 + $0x8] sm:$0xff]
  %v2903 = vld [vmem:[%s25 + $0x10] sm:$0xff]
  %s2904 = scalar_lea.vmem %s25, 24
  %v2905 = vld [vmem:[%s2904] sm:$0xff]
  %v2906 = vld [vmem:[%s2904 + $0x8] sm:$0xff]
  %v2907 = vld [vmem:[%s2904 + $0x10] sm:$0xff]
  %v2909 = vsel %vm228, %v2733, 0
  %v2912 = vsel %vm228, %v2734, 0
  %2914 = vmatprep.subr.mxu0 0.0
  %2915 = vmatpush1.msra.mxu0 %v2905
  %2916 = vmatprep.subr.mxu0 0.0
  %2917 = vmatpush1.msra.mxu0 %v2906
  %2918 = vmatprep.subr.mxu0 0.0
  %2919 = vmatpush1.msra.mxu0 %v2907
  %2920 = vmatprep.subr.mxu0 0.0
  %2921 = vmatpush1.msra.mxu0 0.0
  %2922 = vmatprep.subr.mxu0 0.0
  %2923 = vmatpush1.msra.mxu0 0.0
  %2924 = vmatprep.subr.mxu0 0.0
  %2925 = vmatpush1.msra.mxu0 0.0
  %2926 = vmatprep.subr.mxu0 0.0
  %2927 = vmatpush1.msra.mxu0 0.0
  %2928 = vmatprep.subr.mxu0 0.0
  %2929 = vmatpush1.msra.mxu0 0.0
  %2930 = vmatprep.subr.mxu0 0.0
  %2931 = vmatpush1.msra.mxu0 0.0
  %2932 = vmatprep.subr.mxu0 0.0
  %2933 = vmatpush1.msra.mxu0 0.0
  %2934 = vmatprep.subr.mxu0 0.0
  %2935 = vmatpush1.msra.mxu0 0.0
  %2936 = vmatprep.subr.mxu0 0.0
  %2937 = vmatpush1.msra.mxu0 0.0
  %2938 = vmatprep.subr.mxu0 0.0
  %2939 = vmatpush1.msra.mxu0 0.0
  %2940 = vmatprep.subr.mxu0 0.0
  %2941 = vmatpush1.msra.mxu0 0.0
  %2942 = vmatprep.subr.mxu0 0.0
  %2943 = vmatpush1.msra.mxu0 0.0
  %2944 = vmatprep.subr.mxu0 0.0
  %2945 = vmatpush1.msra.mxu0 0.0
  %2946 = vmatprep.subr.mxu0 0.0
  %2947 = vmatpush1.msra.mxu0 0.0
  %2948 = vmatprep.subr.mxu0 0.0
  %2949 = vmatpush1.msra.mxu0 0.0
  %2950 = vmatprep.subr.mxu0 0.0
  %2951 = vmatpush1.msra.mxu0 0.0
  %2952 = vmatprep.subr.mxu0 0.0
  %2953 = vmatpush1.msra.mxu0 0.0
  %2954 = vmatprep.subr.mxu0 0.0
  %2955 = vmatpush1.msra.mxu0 0.0
  %2956 = vmatprep.subr.mxu0 0.0
  %2957 = vmatpush1.msra.mxu0 0.0
  %2958 = vmatprep.subr.mxu0 0.0
  %2959 = vmatpush1.msra.mxu0 0.0
  %2960 = vmatprep.subr.mxu0 0.0
  %2961 = vmatpush1.msra.mxu0 0.0
  %2962 = vmatprep.subr.mxu0 0.0
  %2963 = vmatpush1.msra.mxu0 0.0
  %2964 = vmatprep.subr.mxu0 0.0
  %2965 = vmatpush1.msra.mxu0 0.0
  %2966 = vmatprep.subr.mxu0 0.0
  %2967 = vmatpush1.msra.mxu0 0.0
  %2968 = vmatprep.subr.mxu0 0.0
  %2969 = vmatpush1.msra.mxu0 0.0
  %2970 = vmatprep.subr.mxu0 0.0
  %2971 = vmatpush1.msra.mxu0 0.0
  %2972 = vmatprep.subr.mxu0 0.0
  %2973 = vmatpush1.msra.mxu0 0.0
  %2974 = vmatprep.subr.mxu0 0.0
  %2975 = vmatpush1.msra.mxu0 0.0
  %2976 = vmatprep.subr.mxu0 0.0
  %2977 = vmatpush1.msra.mxu0 0.0
  %2978 = vmatprep.mubr.f32.mxu0 0.0
  %2979 = vmatmul.mubr.f32.gmra.mrb[0].mxu0 %v2909
  %v2980 = vpop.f32.mrb[0].mxu0
  %v2981 = vadd.f32 0.0, %v2980
  %v2982 = vpop.f32.mrb[0].mxu0
  %2983 = vmatprep.mubr.f32.mxu0 0.0
  %2984 = vmatmul.mubr.f32.gmra.mrb[0].mxu0 %v2912
  %v2985 = vpop.f32.mrb[0].mxu0
  %v2986 = vadd.f32 0.0, %v2985
  %v2987 = vpop.f32.mrb[0].mxu0
  %2988 = vdwg.mxu0
  %v2990 = vsel %vm228, %v2810, 0
  %v2993 = vsel %vm228, %v2815, 0
  %2995 = vmatprep.subr.mxu0 0.0
  %2996 = vmatpush1.msra.mxu0 %v2901
  %2997 = vmatprep.subr.mxu0 0.0
  %2998 = vmatpush1.msra.mxu0 %v2902
  %2999 = vmatprep.subr.mxu0 0.0
  %3000 = vmatpush1.msra.mxu0 %v2903
  %3001 = vmatprep.subr.mxu0 0.0
  %3002 = vmatpush1.msra.mxu0 0.0
  %3003 = vmatprep.subr.mxu0 0.0
  %3004 = vmatpush1.msra.mxu0 0.0
  %3005 = vmatprep.subr.mxu0 0.0
  %3006 = vmatpush1.msra.mxu0 0.0
  %3007 = vmatprep.subr.mxu0 0.0
  %3008 = vmatpush1.msra.mxu0 0.0
  %3009 = vmatprep.subr.mxu0 0.0
  %3010 = vmatpush1.msra.mxu0 0.0
  %3011 = vmatprep.subr.mxu0 0.0
  %3012 = vmatpush1.msra.mxu0 0.0
  %3013 = vmatprep.subr.mxu0 0.0
  %3014 = vmatpush1.msra.mxu0 0.0
  %3015 = vmatprep.subr.mxu0 0.0
  %3016 = vmatpush1.msra.mxu0 0.0
  %3017 = vmatprep.subr.mxu0 0.0
  %3018 = vmatpush1.msra.mxu0 0.0
  %3019 = vmatprep.subr.mxu0 0.0
  %3020 = vmatpush1.msra.mxu0 0.0
  %3021 = vmatprep.subr.mxu0 0.0
  %3022 = vmatpush1.msra.mxu0 0.0
  %3023 = vmatprep.subr.mxu0 0.0
  %3024 = vmatpush1.msra.mxu0 0.0
  %3025 = vmatprep.subr.mxu0 0.0
  %3026 = vmatpush1.msra.mxu0 0.0
  %3027 = vmatprep.subr.mxu0 0.0
  %3028 = vmatpush1.msra.mxu0 0.0
  %3029 = vmatprep.subr.mxu0 0.0
  %3030 = vmatpush1.msra.mxu0 0.0
  %3031 = vmatprep.subr.mxu0 0.0
  %3032 = vmatpush1.msra.mxu0 0.0
  %3033 = vmatprep.subr.mxu0 0.0
  %3034 = vmatpush1.msra.mxu0 0.0
  %3035 = vmatprep.subr.mxu0 0.0
  %3036 = vmatpush1.msra.mxu0 0.0
  %3037 = vmatprep.subr.mxu0 0.0
  %3038 = vmatpush1.msra.mxu0 0.0
  %3039 = vmatprep.subr.mxu0 0.0
  %3040 = vmatpush1.msra.mxu0 0.0
  %3041 = vmatprep.subr.mxu0 0.0
  %3042 = vmatpush1.msra.mxu0 0.0
  %3043 = vmatprep.subr.mxu0 0.0
  %3044 = vmatpush1.msra.mxu0 0.0
  %3045 = vmatprep.subr.mxu0 0.0
  %3046 = vmatpush1.msra.mxu0 0.0
  %3047 = vmatprep.subr.mxu0 0.0
  %3048 = vmatpush1.msra.mxu0 0.0
  %3049 = vmatprep.subr.mxu0 0.0
  %3050 = vmatpush1.msra.mxu0 0.0
  %3051 = vmatprep.subr.mxu0 0.0
  %3052 = vmatpush1.msra.mxu0 0.0
  %3053 = vmatprep.subr.mxu0 0.0
  %3054 = vmatpush1.msra.mxu0 0.0
  %3055 = vmatprep.subr.mxu0 0.0
  %3056 = vmatpush1.msra.mxu0 0.0
  %3057 = vmatprep.subr.mxu0 0.0
  %3058 = vmatpush1.msra.mxu0 0.0
  %3059 = vmatprep.mubr.f32.mxu0 0.0
  %3060 = vmatmul.mubr.f32.gmra.mrb[0].mxu0 %v2990
  %v3061 = vpop.f32.mrb[0].mxu0
  %v3062 = vadd.f32 %v2981, %v3061
  %v3063 = vpop.f32.mrb[0].mxu0
  %3064 = vmatprep.mubr.f32.mxu0 0.0
  %3065 = vmatmul.mubr.f32.gmra.mrb[0].mxu0 %v2993
  %v3066 = vpop.f32.mrb[0].mxu0
  %v3067 = vadd.f32 %v2986, %v3066
  %v3068 = vpop.f32.mrb[0].mxu0
  %3069 = vdwg.mxu0
  %s3070 = scalar_lea.vmem %s25, 48
  %v3071 = vld [vmem:[%s3070] sm:$0xff]
  %v3072 = vld [vmem:[%s3070 + $0x8] sm:$0xff]
  %v3073 = vld [vmem:[%s3070 + $0x10] sm:$0xff]
  %v3075 = vsel %vm228, %v2893, 0
  %v3078 = vsel %vm228, %v2898, 0
  %3080 = vmatprep.subr.mxu0 0.0
  %3081 = vmatpush1.msra.mxu0 %v3071
  %3082 = vmatprep.subr.mxu0 0.0
  %3083 = vmatpush1.msra.mxu0 %v3072
  %3084 = vmatprep.subr.mxu0 0.0
  %3085 = vmatpush1.msra.mxu0 %v3073
  %3086 = vmatprep.subr.mxu0 0.0
  %3087 = vmatpush1.msra.mxu0 0.0
  %3088 = vmatprep.subr.mxu0 0.0
  %3089 = vmatpush1.msra.mxu0 0.0
  %3090 = vmatprep.subr.mxu0 0.0
  %3091 = vmatpush1.msra.mxu0 0.0
  %3092 = vmatprep.subr.mxu0 0.0
  %3093 = vmatpush1.msra.mxu0 0.0
  %3094 = vmatprep.subr.mxu0 0.0
  %3095 = vmatpush1.msra.mxu0 0.0
  %3096 = vmatprep.subr.mxu0 0.0
  %3097 = vmatpush1.msra.mxu0 0.0
  %3098 = vmatprep.subr.mxu0 0.0
  %3099 = vmatpush1.msra.mxu0 0.0
  %3100 = vmatprep.subr.mxu0 0.0
  %3101 = vmatpush1.msra.mxu0 0.0
  %3102 = vmatprep.subr.mxu0 0.0
  %3103 = vmatpush1.msra.mxu0 0.0
  %3104 = vmatprep.subr.mxu0 0.0
  %3105 = vmatpush1.msra.mxu0 0.0
  %3106 = vmatprep.subr.mxu0 0.0
  %3107 = vmatpush1.msra.mxu0 0.0
  %3108 = vmatprep.subr.mxu0 0.0
  %3109 = vmatpush1.msra.mxu0 0.0
  %3110 = vmatprep.subr.mxu0 0.0
  %3111 = vmatpush1.msra.mxu0 0.0
  %3112 = vmatprep.subr.mxu0 0.0
  %3113 = vmatpush1.msra.mxu0 0.0
  %3114 = vmatprep.subr.mxu0 0.0
  %3115 = vmatpush1.msra.mxu0 0.0
  %3116 = vmatprep.subr.mxu0 0.0
  %3117 = vmatpush1.msra.mxu0 0.0
  %3118 = vmatprep.subr.mxu0 0.0
  %3119 = vmatpush1.msra.mxu0 0.0
  %3120 = vmatprep.subr.mxu0 0.0
  %3121 = vmatpush1.msra.mxu0 0.0
  %3122 = vmatprep.subr.mxu0 0.0
  %3123 = vmatpush1.msra.mxu0 0.0
  %3124 = vmatprep.subr.mxu0 0.0
  %3125 = vmatpush1.msra.mxu0 0.0
  %3126 = vmatprep.subr.mxu0 0.0
  %3127 = vmatpush1.msra.mxu0 0.0
  %3128 = vmatprep.subr.mxu0 0.0
  %3129 = vmatpush1.msra.mxu0 0.0
  %3130 = vmatprep.subr.mxu0 0.0
  %3131 = vmatpush1.msra.mxu0 0.0
  %3132 = vmatprep.subr.mxu0 0.0
  %3133 = vmatpush1.msra.mxu0 0.0
  %3134 = vmatprep.subr.mxu0 0.0
  %3135 = vmatpush1.msra.mxu0 0.0
  %3136 = vmatprep.subr.mxu0 0.0
  %3137 = vmatpush1.msra.mxu0 0.0
  %3138 = vmatprep.subr.mxu0 0.0
  %3139 = vmatpush1.msra.mxu0 0.0
  %3140 = vmatprep.subr.mxu0 0.0
  %3141 = vmatpush1.msra.mxu0 0.0
  %3142 = vmatprep.subr.mxu0 0.0
  %3143 = vmatpush1.msra.mxu0 0.0
  %3144 = vmatprep.mubr.f32.mxu0 0.0
  %3145 = vmatmul.mubr.f32.gmra.mrb[0].mxu0 %v3075
  %v3146 = vpop.f32.mrb[0].mxu0
  %v3147 = vadd.f32 0.0, %v3146
  %v3148 = vpop.f32.mrb[0].mxu0
  %3149 = vmatprep.mubr.f32.mxu0 0.0
  %3150 = vmatmul.mubr.f32.gmra.mrb[0].mxu0 %v3078
  %v3151 = vpop.f32.mrb[0].mxu0
  %v3152 = vadd.f32 0.0, %v3151
  %v3153 = vpop.f32.mrb[0].mxu0
  %3154 = vdwg.mxu0
  %v3155 = vadd.f32 %v3062, %v3147
  %v3156 = vadd.f32 %v3067, %v3152
  %v3157 = vld [vmem:[%s27] sm:$0x1]
  %v3159 = vlaneseq
  %v3160 = vshrl.u32 %v3159, 7
  %v3161 = vsub.s32 0, %v3160
  %v3162 = vrot.slane %v3157, %v3161
  %v3164 = vadd.f32 %v3155, %v3162
  %v3165 = vadd.f32 %v3156, %v3162
  %vm3166 = vcmp.gt.f32.partialorder %v3164, 0.0
  %vm3167 = vcmp.gt.f32.partialorder %v3165, 0.0
  %v3168 = vmin.f32 %v3164, 0.0
  %v3169 = vmin.f32 %v3165, 0.0
  %v3170 = vmul.f32 %v3168, 1.442695
  %v3171 = vpow.pop %v3170
  %v3172 = vmul.f32 %v3169, 1.442695
  %v3173 = vpow.pop %v3172
  %v3174 = vsub.f32 %v3171, 1.0
  %v3175 = vsub.f32 %v3173, 1.0
  %v3176 = vsel %vm3166, %v3164, %v3174
  %v3177 = vsel %vm3167, %v3165, %v3175
  %v3178 = vld [vmem:[%s33] sm:$0xff]
  %v3180 = vsel %vm575, %v3178, 0
  %3182 = vmatprep.subr.mxu0 0.0
  %3183 = vmatpush1.msra.mxu0 %v3176
  %3184 = vmatprep.subr.mxu0 0.0
  %3185 = vmatpush1.msra.mxu0 %v3177
  %3186 = vmatprep.subr.mxu0 0.0
  %3187 = vmatpush1.msra.mxu0 0.0
  %3188 = vmatprep.subr.mxu0 0.0
  %3189 = vmatpush1.msra.mxu0 0.0
  %3190 = vmatprep.subr.mxu0 0.0
  %3191 = vmatpush1.msra.mxu0 0.0
  %3192 = vmatprep.subr.mxu0 0.0
  %3193 = vmatpush1.msra.mxu0 0.0
  %3194 = vmatprep.subr.mxu0 0.0
  %3195 = vmatpush1.msra.mxu0 0.0
  %3196 = vmatprep.subr.mxu0 0.0
  %3197 = vmatpush1.msra.mxu0 0.0
  %3198 = vmatprep.subr.mxu0 0.0
  %3199 = vmatpush1.msra.mxu0 0.0
  %3200 = vmatprep.subr.mxu0 0.0
  %3201 = vmatpush1.msra.mxu0 0.0
  %3202 = vmatprep.subr.mxu0 0.0
  %3203 = vmatpush1.msra.mxu0 0.0
  %3204 = vmatprep.subr.mxu0 0.0
  %3205 = vmatpush1.msra.mxu0 0.0
  %3206 = vmatprep.subr.mxu0 0.0
  %3207 = vmatpush1.msra.mxu0 0.0
  %3208 = vmatprep.subr.mxu0 0.0
  %3209 = vmatpush1.msra.mxu0 0.0
  %3210 = vmatprep.subr.mxu0 0.0
  %3211 = vmatpush1.msra.mxu0 0.0
  %3212 = vmatprep.subr.mxu0 0.0
  %3213 = vmatpush1.msra.mxu0 0.0
  %3214 = vmatprep.subr.mxu0 0.0
  %3215 = vmatpush1.msra.mxu0 0.0
  %3216 = vmatprep.subr.mxu0 0.0
  %3217 = vmatpush1.msra.mxu0 0.0
  %3218 = vmatprep.subr.mxu0 0.0
  %3219 = vmatpush1.msra.mxu0 0.0
  %3220 = vmatprep.subr.mxu0 0.0
  %3221 = vmatpush1.msra.mxu0 0.0
  %3222 = vmatprep.subr.mxu0 0.0
  %3223 = vmatpush1.msra.mxu0 0.0
  %3224 = vmatprep.subr.mxu0 0.0
  %3225 = vmatpush1.msra.mxu0 0.0
  %3226 = vmatprep.subr.mxu0 0.0
  %3227 = vmatpush1.msra.mxu0 0.0
  %3228 = vmatprep.subr.mxu0 0.0
  %3229 = vmatpush1.msra.mxu0 0.0
  %3230 = vmatprep.subr.mxu0 0.0
  %3231 = vmatpush1.msra.mxu0 0.0
  %3232 = vmatprep.subr.mxu0 0.0
  %3233 = vmatpush1.msra.mxu0 0.0
  %3234 = vmatprep.subr.mxu0 0.0
  %3235 = vmatpush1.msra.mxu0 0.0
  %3236 = vmatprep.subr.mxu0 0.0
  %3237 = vmatpush1.msra.mxu0 0.0
  %3238 = vmatprep.subr.mxu0 0.0
  %3239 = vmatpush1.msra.mxu0 0.0
  %3240 = vmatprep.subr.mxu0 0.0
  %3241 = vmatpush1.msra.mxu0 0.0
  %3242 = vmatprep.subr.mxu0 0.0
  %3243 = vmatpush1.msra.mxu0 0.0
  %3244 = vmatprep.subr.mxu0 0.0
  %3245 = vmatpush1.msra.mxu0 0.0
  %3246 = vmatprep.mubr.f32.mxu0 0.0
  %3247 = vmatmul.mubr.f32.gmra.mrb[0].mxu0 %v3180
  %v3248 = vpop.f32.mrb[0].mxu0
  %v3249 = vadd.f32 0.0, %v3248
  %v3250 = vpop.f32.mrb[0].mxu0
  %3251 = vdwg.mxu0
  %s3252 = scalar_lea.vmem %s33, 8
  %v3253 = vld [vmem:[%s3252] sm:$0xff]
  %v3255 = vsel %vm575, %v3253, 0
  %3257 = vmatprep.subr.mxu0 0.0
  %3258 = vmatpush1.msra.mxu0 %v3176
  %3259 = vmatprep.subr.mxu0 0.0
  %3260 = vmatpush1.msra.mxu0 %v3177
  %3261 = vmatprep.subr.mxu0 0.0
  %3262 = vmatpush1.msra.mxu0 0.0
  %3263 = vmatprep.subr.mxu0 0.0
  %3264 = vmatpush1.msra.mxu0 0.0
  %3265 = vmatprep.subr.mxu0 0.0
  %3266 = vmatpush1.msra.mxu0 0.0
  %3267 = vmatprep.subr.mxu0 0.0
  %3268 = vmatpush1.msra.mxu0 0.0
  %3269 = vmatprep.subr.mxu0 0.0
  %3270 = vmatpush1.msra.mxu0 0.0
  %3271 = vmatprep.subr.mxu0 0.0
  %3272 = vmatpush1.msra.mxu0 0.0
  %3273 = vmatprep.subr.mxu0 0.0
  %3274 = vmatpush1.msra.mxu0 0.0
  %3275 = vmatprep.subr.mxu0 0.0
  %3276 = vmatpush1.msra.mxu0 0.0
  %3277 = vmatprep.subr.mxu0 0.0
  %3278 = vmatpush1.msra.mxu0 0.0
  %3279 = vmatprep.subr.mxu0 0.0
  %3280 = vmatpush1.msra.mxu0 0.0
  %3281 = vmatprep.subr.mxu0 0.0
  %3282 = vmatpush1.msra.mxu0 0.0
  %3283 = vmatprep.subr.mxu0 0.0
  %3284 = vmatpush1.msra.mxu0 0.0
  %3285 = vmatprep.subr.mxu0 0.0
  %3286 = vmatpush1.msra.mxu0 0.0
  %3287 = vmatprep.subr.mxu0 0.0
  %3288 = vmatpush1.msra.mxu0 0.0
  %3289 = vmatprep.subr.mxu0 0.0
  %3290 = vmatpush1.msra.mxu0 0.0
  %3291 = vmatprep.subr.mxu0 0.0
  %3292 = vmatpush1.msra.mxu0 0.0
  %3293 = vmatprep.subr.mxu0 0.0
  %3294 = vmatpush1.msra.mxu0 0.0
  %3295 = vmatprep.subr.mxu0 0.0
  %3296 = vmatpush1.msra.mxu0 0.0
  %3297 = vmatprep.subr.mxu0 0.0
  %3298 = vmatpush1.msra.mxu0 0.0
  %3299 = vmatprep.subr.mxu0 0.0
  %3300 = vmatpush1.msra.mxu0 0.0
  %3301 = vmatprep.subr.mxu0 0.0
  %3302 = vmatpush1.msra.mxu0 0.0
  %3303 = vmatprep.subr.mxu0 0.0
  %3304 = vmatpush1.msra.mxu0 0.0
  %3305 = vmatprep.subr.mxu0 0.0
  %3306 = vmatpush1.msra.mxu0 0.0
  %3307 = vmatprep.subr.mxu0 0.0
  %3308 = vmatpush1.msra.mxu0 0.0
  %3309 = vmatprep.subr.mxu0 0.0
  %3310 = vmatpush1.msra.mxu0 0.0
  %3311 = vmatprep.subr.mxu0 0.0
  %3312 = vmatpush1.msra.mxu0 0.0
  %3313 = vmatprep.subr.mxu0 0.0
  %3314 = vmatpush1.msra.mxu0 0.0
  %3315 = vmatprep.subr.mxu0 0.0
  %3316 = vmatpush1.msra.mxu0 0.0
  %3317 = vmatprep.subr.mxu0 0.0
  %3318 = vmatpush1.msra.mxu0 0.0
  %3319 = vmatprep.subr.mxu0 0.0
  %3320 = vmatpush1.msra.mxu0 0.0
  %3321 = vmatprep.mubr.f32.mxu0 0.0
  %3322 = vmatmul.mubr.f32.gmra.mrb[0].mxu0 %v3255
  %v3323 = vpop.f32.mrb[0].mxu0
  %v3324 = vadd.f32 0.0, %v3323
  %v3325 = vpop.f32.mrb[0].mxu0
  %3326 = vdwg.mxu0
  %s3327 = scalar_lea.vmem %s33, 16
  %v3328 = vld [vmem:[%s3327] sm:$0xff]
  %v3330 = vsel %vm575, %v3328, 0
  %3332 = vmatprep.subr.mxu0 0.0
  %3333 = vmatpush1.msra.mxu0 %v3176
  %3334 = vmatprep.subr.mxu0 0.0
  %3335 = vmatpush1.msra.mxu0 %v3177
  %3336 = vmatprep.subr.mxu0 0.0
  %3337 = vmatpush1.msra.mxu0 0.0
  %3338 = vmatprep.subr.mxu0 0.0
  %3339 = vmatpush1.msra.mxu0 0.0
  %3340 = vmatprep.subr.mxu0 0.0
  %3341 = vmatpush1.msra.mxu0 0.0
  %3342 = vmatprep.subr.mxu0 0.0
  %3343 = vmatpush1.msra.mxu0 0.0
  %3344 = vmatprep.subr.mxu0 0.0
  %3345 = vmatpush1.msra.mxu0 0.0
  %3346 = vmatprep.subr.mxu0 0.0
  %3347 = vmatpush1.msra.mxu0 0.0
  %3348 = vmatprep.subr.mxu0 0.0
  %3349 = vmatpush1.msra.mxu0 0.0
  %3350 = vmatprep.subr.mxu0 0.0
  %3351 = vmatpush1.msra.mxu0 0.0
  %3352 = vmatprep.subr.mxu0 0.0
  %3353 = vmatpush1.msra.mxu0 0.0
  %3354 = vmatprep.subr.mxu0 0.0
  %3355 = vmatpush1.msra.mxu0 0.0
  %3356 = vmatprep.subr.mxu0 0.0
  %3357 = vmatpush1.msra.mxu0 0.0
  %3358 = vmatprep.subr.mxu0 0.0
  %3359 = vmatpush1.msra.mxu0 0.0
  %3360 = vmatprep.subr.mxu0 0.0
  %3361 = vmatpush1.msra.mxu0 0.0
  %3362 = vmatprep.subr.mxu0 0.0
  %3363 = vmatpush1.msra.mxu0 0.0
  %3364 = vmatprep.subr.mxu0 0.0
  %3365 = vmatpush1.msra.mxu0 0.0
  %3366 = vmatprep.subr.mxu0 0.0
  %3367 = vmatpush1.msra.mxu0 0.0
  %3368 = vmatprep.subr.mxu0 0.0
  %3369 = vmatpush1.msra.mxu0 0.0
  %3370 = vmatprep.subr.mxu0 0.0
  %3371 = vmatpush1.msra.mxu0 0.0
  %3372 = vmatprep.subr.mxu0 0.0
  %3373 = vmatpush1.msra.mxu0 0.0
  %3374 = vmatprep.subr.mxu0 0.0
  %3375 = vmatpush1.msra.mxu0 0.0
  %3376 = vmatprep.subr.mxu0 0.0
  %3377 = vmatpush1.msra.mxu0 0.0
  %3378 = vmatprep.subr.mxu0 0.0
  %3379 = vmatpush1.msra.mxu0 0.0
  %3380 = vmatprep.subr.mxu0 0.0
  %3381 = vmatpush1.msra.mxu0 0.0
  %3382 = vmatprep.subr.mxu0 0.0
  %3383 = vmatpush1.msra.mxu0 0.0
  %3384 = vmatprep.subr.mxu0 0.0
  %3385 = vmatpush1.msra.mxu0 0.0
  %3386 = vmatprep.subr.mxu0 0.0
  %3387 = vmatpush1.msra.mxu0 0.0
  %3388 = vmatprep.subr.mxu0 0.0
  %3389 = vmatpush1.msra.mxu0 0.0
  %3390 = vmatprep.subr.mxu0 0.0
  %3391 = vmatpush1.msra.mxu0 0.0
  %3392 = vmatprep.subr.mxu0 0.0
  %3393 = vmatpush1.msra.mxu0 0.0
  %3394 = vmatprep.subr.mxu0 0.0
  %3395 = vmatpush1.msra.mxu0 0.0
  %3396 = vmatprep.mubr.f32.mxu0 0.0
  %3397 = vmatmul.mubr.f32.gmra.mrb[0].mxu0 %v3330
  %v3398 = vpop.f32.mrb[0].mxu0
  %v3399 = vadd.f32 0.0, %v3398
  %v3400 = vpop.f32.mrb[0].mxu0
  %3401 = vdwg.mxu0
  %v3402 = vmax.f32 %v3249, %v3324
  %v3403 = vmax.f32 %v3402, %v3399
  %v3404 = vld [vmem:[%s9] sm:$0xff]
  %v3405 = vld [vmem:[%s41] sm:$0x1]
  %v3406 = vld [vmem:[%s35] sm:$0xff]
  %v3407 = vld [vmem:[%s35 + $0x8] sm:$0xff]
  %v3408 = vld [vmem:[%s35 + $0x10] sm:$0xff]
  %v3409 = vld [vmem:[%s37] sm:$0x1]
  %v3411 = vlaneseq
  %v3412 = vshrl.u32 %v3411, 7
  %v3413 = vsub.s32 0, %v3412
  %v3414 = vrot.slane %v3409, %v3413
  %v3417 = vsel %vm228, %v3403, 0
  %3419 = vmatprep.subr.mxu0 0.0
  %3420 = vmatpush1.msra.mxu0 %v3406
  %3421 = vmatprep.subr.mxu0 0.0
  %3422 = vmatpush1.msra.mxu0 %v3407
  %3423 = vmatprep.subr.mxu0 0.0
  %3424 = vmatpush1.msra.mxu0 %v3408
  %3425 = vmatprep.subr.mxu0 0.0
  %3426 = vmatpush1.msra.mxu0 0.0
  %3427 = vmatprep.subr.mxu0 0.0
  %3428 = vmatpush1.msra.mxu0 0.0
  %3429 = vmatprep.subr.mxu0 0.0
  %3430 = vmatpush1.msra.mxu0 0.0
  %3431 = vmatprep.subr.mxu0 0.0
  %3432 = vmatpush1.msra.mxu0 0.0
  %3433 = vmatprep.subr.mxu0 0.0
  %3434 = vmatpush1.msra.mxu0 0.0
  %3435 = vmatprep.subr.mxu0 0.0
  %3436 = vmatpush1.msra.mxu0 0.0
  %3437 = vmatprep.subr.mxu0 0.0
  %3438 = vmatpush1.msra.mxu0 0.0
  %3439 = vmatprep.subr.mxu0 0.0
  %3440 = vmatpush1.msra.mxu0 0.0
  %3441 = vmatprep.subr.mxu0 0.0
  %3442 = vmatpush1.msra.mxu0 0.0
  %3443 = vmatprep.subr.mxu0 0.0
  %3444 = vmatpush1.msra.mxu0 0.0
  %3445 = vmatprep.subr.mxu0 0.0
  %3446 = vmatpush1.msra.mxu0 0.0
  %3447 = vmatprep.subr.mxu0 0.0
  %3448 = vmatpush1.msra.mxu0 0.0
  %3449 = vmatprep.subr.mxu0 0.0
  %3450 = vmatpush1.msra.mxu0 0.0
  %3451 = vmatprep.subr.mxu0 0.0
  %3452 = vmatpush1.msra.mxu0 0.0
  %3453 = vmatprep.subr.mxu0 0.0
  %3454 = vmatpush1.msra.mxu0 0.0
  %3455 = vmatprep.subr.mxu0 0.0
  %3456 = vmatpush1.msra.mxu0 0.0
  %3457 = vmatprep.subr.mxu0 0.0
  %3458 = vmatpush1.msra.mxu0 0.0
  %3459 = vmatprep.subr.mxu0 0.0
  %3460 = vmatpush1.msra.mxu0 0.0
  %3461 = vmatprep.subr.mxu0 0.0
  %3462 = vmatpush1.msra.mxu0 0.0
  %3463 = vmatprep.subr.mxu0 0.0
  %3464 = vmatpush1.msra.mxu0 0.0
  %3465 = vmatprep.subr.mxu0 0.0
  %3466 = vmatpush1.msra.mxu0 0.0
  %3467 = vmatprep.subr.mxu0 0.0
  %3468 = vmatpush1.msra.mxu0 0.0
  %3469 = vmatprep.subr.mxu0 0.0
  %3470 = vmatpush1.msra.mxu0 0.0
  %3471 = vmatprep.subr.mxu0 0.0
  %3472 = vmatpush1.msra.mxu0 0.0
  %3473 = vmatprep.subr.mxu0 0.0
  %3474 = vmatpush1.msra.mxu0 0.0
  %3475 = vmatprep.subr.mxu0 0.0
  %3476 = vmatpush1.msra.mxu0 0.0
  %3477 = vmatprep.subr.mxu0 0.0
  %3478 = vmatpush1.msra.mxu0 0.0
  %3479 = vmatprep.subr.mxu0 0.0
  %3480 = vmatpush1.msra.mxu0 0.0
  %3481 = vmatprep.subr.mxu0 0.0
  %3482 = vmatpush1.msra.mxu0 0.0
  %3483 = vmatprep.mubr.f32.mxu0 0.0
  %3484 = vmatmul.mubr.f32.gmra.mrb[0].mxu0 %v3417
  %v3485 = vpop.f32.mrb[0].mxu0
  %v3486 = vadd.f32 %v3414, %v3485
  %v3487 = vpop.f32.mrb[0].mxu0
  %3488 = vdwg.mxu0
  %s3489 = scalar_lea.vmem %s35, 96
  %v3490 = vld [vmem:[%s3489] sm:$0xff]
  %v3491 = vld [vmem:[%s3489 + $0x8] sm:$0xff]
  %v3492 = vld [vmem:[%s3489 + $0x10] sm:$0xff]
  %s3493 = scalar_lea.vmem %s37, 4
  %v3494 = vld [vmem:[%s3493] sm:$0x1]
  %v3496 = vlaneseq
  %v3497 = vshrl.u32 %v3496, 7
  %v3498 = vsub.s32 0, %v3497
  %v3499 = vrot.slane %v3494, %v3498
  %3501 = vmatprep.subr.mxu0 0.0
  %3502 = vmatpush1.msra.mxu0 %v3490
  %3503 = vmatprep.subr.mxu0 0.0
  %3504 = vmatpush1.msra.mxu0 %v3491
  %3505 = vmatprep.subr.mxu0 0.0
  %3506 = vmatpush1.msra.mxu0 %v3492
  %3507 = vmatprep.subr.mxu0 0.0
  %3508 = vmatpush1.msra.mxu0 0.0
  %3509 = vmatprep.subr.mxu0 0.0
  %3510 = vmatpush1.msra.mxu0 0.0
  %3511 = vmatprep.subr.mxu0 0.0
  %3512 = vmatpush1.msra.mxu0 0.0
  %3513 = vmatprep.subr.mxu0 0.0
  %3514 = vmatpush1.msra.mxu0 0.0
  %3515 = vmatprep.subr.mxu0 0.0
  %3516 = vmatpush1.msra.mxu0 0.0
  %3517 = vmatprep.subr.mxu0 0.0
  %3518 = vmatpush1.msra.mxu0 0.0
  %3519 = vmatprep.subr.mxu0 0.0
  %3520 = vmatpush1.msra.mxu0 0.0
  %3521 = vmatprep.subr.mxu0 0.0
  %3522 = vmatpush1.msra.mxu0 0.0
  %3523 = vmatprep.subr.mxu0 0.0
  %3524 = vmatpush1.msra.mxu0 0.0
  %3525 = vmatprep.subr.mxu0 0.0
  %3526 = vmatpush1.msra.mxu0 0.0
  %3527 = vmatprep.subr.mxu0 0.0
  %3528 = vmatpush1.msra.mxu0 0.0
  %3529 = vmatprep.subr.mxu0 0.0
  %3530 = vmatpush1.msra.mxu0 0.0
  %3531 = vmatprep.subr.mxu0 0.0
  %3532 = vmatpush1.msra.mxu0 0.0
  %3533 = vmatprep.subr.mxu0 0.0
  %3534 = vmatpush1.msra.mxu0 0.0
  %3535 = vmatprep.subr.mxu0 0.0
  %3536 = vmatpush1.msra.mxu0 0.0
  %3537 = vmatprep.subr.mxu0 0.0
  %3538 = vmatpush1.msra.mxu0 0.0
  %3539 = vmatprep.subr.mxu0 0.0
  %3540 = vmatpush1.msra.mxu0 0.0
  %3541 = vmatprep.subr.mxu0 0.0
  %3542 = vmatpush1.msra.mxu0 0.0
  %3543 = vmatprep.subr.mxu0 0.0
  %3544 = vmatpush1.msra.mxu0 0.0
  %3545 = vmatprep.subr.mxu0 0.0
  %3546 = vmatpush1.msra.mxu0 0.0
  %3547 = vmatprep.subr.mxu0 0.0
  %3548 = vmatpush1.msra.mxu0 0.0
  %3549 = vmatprep.subr.mxu0 0.0
  %3550 = vmatpush1.msra.mxu0 0.0
  %3551 = vmatprep.subr.mxu0 0.0
  %3552 = vmatpush1.msra.mxu0 0.0
  %3553 = vmatprep.subr.mxu0 0.0
  %3554 = vmatpush1.msra.mxu0 0.0
  %3555 = vmatprep.subr.mxu0 0.0
  %3556 = vmatpush1.msra.mxu0 0.0
  %3557 = vmatprep.subr.mxu0 0.0
  %3558 = vmatpush1.msra.mxu0 0.0
  %3559 = vmatprep.subr.mxu0 0.0
  %3560 = vmatpush1.msra.mxu0 0.0
  %3561 = vmatprep.subr.mxu0 0.0
  %3562 = vmatpush1.msra.mxu0 0.0
  %3563 = vmatprep.subr.mxu0 0.0
  %3564 = vmatpush1.msra.mxu0 0.0
  %3565 = vmatprep.mubr.f32.mxu0 0.0
  %3566 = vmatmul.mubr.f32.gmra.mrb[0].mxu0 %v3417
  %v3567 = vpop.f32.mrb[0].mxu0
  %v3568 = vadd.f32 %v3499, %v3567
  %v3569 = vpop.f32.mrb[0].mxu0
  %3570 = vdwg.mxu0
  %s3571 = scalar_lea.vmem %s35, 192
  %v3572 = vld [vmem:[%s3571] sm:$0xff]
  %v3573 = vld [vmem:[%s3571 + $0x8] sm:$0xff]
  %v3574 = vld [vmem:[%s3571 + $0x10] sm:$0xff]
  %s3575 = scalar_lea.vmem %s37, 8
  %v3576 = vld [vmem:[%s3575] sm:$0x1]
  %v3578 = vlaneseq
  %v3579 = vshrl.u32 %v3578, 7
  %v3580 = vsub.s32 0, %v3579
  %v3581 = vrot.slane %v3576, %v3580
  %3583 = vmatprep.subr.mxu0 0.0
  %3584 = vmatpush1.msra.mxu0 %v3572
  %3585 = vmatprep.subr.mxu0 0.0
  %3586 = vmatpush1.msra.mxu0 %v3573
  %3587 = vmatprep.subr.mxu0 0.0
  %3588 = vmatpush1.msra.mxu0 %v3574
  %3589 = vmatprep.subr.mxu0 0.0
  %3590 = vmatpush1.msra.mxu0 0.0
  %3591 = vmatprep.subr.mxu0 0.0
  %3592 = vmatpush1.msra.mxu0 0.0
  %3593 = vmatprep.subr.mxu0 0.0
  %3594 = vmatpush1.msra.mxu0 0.0
  %3595 = vmatprep.subr.mxu0 0.0
  %3596 = vmatpush1.msra.mxu0 0.0
  %3597 = vmatprep.subr.mxu0 0.0
  %3598 = vmatpush1.msra.mxu0 0.0
  %3599 = vmatprep.subr.mxu0 0.0
  %3600 = vmatpush1.msra.mxu0 0.0
  %3601 = vmatprep.subr.mxu0 0.0
  %3602 = vmatpush1.msra.mxu0 0.0
  %3603 = vmatprep.subr.mxu0 0.0
  %3604 = vmatpush1.msra.mxu0 0.0
  %3605 = vmatprep.subr.mxu0 0.0
  %3606 = vmatpush1.msra.mxu0 0.0
  %3607 = vmatprep.subr.mxu0 0.0
  %3608 = vmatpush1.msra.mxu0 0.0
  %3609 = vmatprep.subr.mxu0 0.0
  %3610 = vmatpush1.msra.mxu0 0.0
  %3611 = vmatprep.subr.mxu0 0.0
  %3612 = vmatpush1.msra.mxu0 0.0
  %3613 = vmatprep.subr.mxu0 0.0
  %3614 = vmatpush1.msra.mxu0 0.0
  %3615 = vmatprep.subr.mxu0 0.0
  %3616 = vmatpush1.msra.mxu0 0.0
  %3617 = vmatprep.subr.mxu0 0.0
  %3618 = vmatpush1.msra.mxu0 0.0
  %3619 = vmatprep.subr.mxu0 0.0
  %3620 = vmatpush1.msra.mxu0 0.0
  %3621 = vmatprep.subr.mxu0 0.0
  %3622 = vmatpush1.msra.mxu0 0.0
  %3623 = vmatprep.subr.mxu0 0.0
  %3624 = vmatpush1.msra.mxu0 0.0
  %3625 = vmatprep.subr.mxu0 0.0
  %3626 = vmatpush1.msra.mxu0 0.0
  %3627 = vmatprep.subr.mxu0 0.0
  %3628 = vmatpush1.msra.mxu0 0.0
  %3629 = vmatprep.subr.mxu0 0.0
  %3630 = vmatpush1.msra.mxu0 0.0
  %3631 = vmatprep.subr.mxu0 0.0
  %3632 = vmatpush1.msra.mxu0 0.0
  %3633 = vmatprep.subr.mxu0 0.0
  %3634 = vmatpush1.msra.mxu0 0.0
  %3635 = vmatprep.subr.mxu0 0.0
  %3636 = vmatpush1.msra.mxu0 0.0
  %3637 = vmatprep.subr.mxu0 0.0
  %3638 = vmatpush1.msra.mxu0 0.0
  %3639 = vmatprep.subr.mxu0 0.0
  %3640 = vmatpush1.msra.mxu0 0.0
  %3641 = vmatprep.subr.mxu0 0.0
  %3642 = vmatpush1.msra.mxu0 0.0
  %3643 = vmatprep.subr.mxu0 0.0
  %3644 = vmatpush1.msra.mxu0 0.0
  %3645 = vmatprep.subr.mxu0 0.0
  %3646 = vmatpush1.msra.mxu0 0.0
  %3647 = vmatprep.mubr.f32.mxu0 0.0
  %3648 = vmatmul.mubr.f32.gmra.mrb[0].mxu0 %v3417
  %v3649 = vpop.f32.mrb[0].mxu0
  %v3650 = vadd.f32 %v3581, %v3649
  %v3651 = vpop.f32.mrb[0].mxu0
  %3652 = vdwg.mxu0
  %v3654 = vsel %vm129, %v3486, 0
  %v3657 = vsel %vm129, %v3568, 0
  %3659 = vmatprep.subr.mxu0 0.0
  %3660 = vmatpush1.xpose.msra.mxu0 %v3657
  %3661 = vmatprep.subr.mxu0 0.0
  %3662 = vmatpush1.xpose.msra.mxu0 0.0
  %3663 = vmatprep.subr.mxu0 0.0
  %3664 = vmatpush1.xpose.msra.mxu0 0.0
  %3665 = vmatprep.subr.mxu0 0.0
  %3666 = vmatpush1.xpose.msra.mxu0 0.0
  %3667 = vmatprep.subr.mxu0 0.0
  %3668 = vmatpush1.xpose.msra.mxu0 0.0
  %3669 = vmatprep.subr.mxu0 0.0
  %3670 = vmatpush1.xpose.msra.mxu0 0.0
  %3671 = vmatprep.subr.mxu0 0.0
  %3672 = vmatpush1.xpose.msra.mxu0 0.0
  %3673 = vmatprep.subr.mxu0 0.0
  %3674 = vmatpush1.xpose.msra.mxu0 0.0
  %3675 = vmatprep.subr.mxu0 0.0
  %3676 = vmatpush1.xpose.msra.mxu0 0.0
  %3677 = vmatprep.subr.mxu0 0.0
  %3678 = vmatpush1.xpose.msra.mxu0 0.0
  %3679 = vmatprep.subr.mxu0 0.0
  %3680 = vmatpush1.xpose.msra.mxu0 0.0
  %3681 = vmatprep.subr.mxu0 0.0
  %3682 = vmatpush1.xpose.msra.mxu0 0.0
  %3683 = vmatprep.subr.mxu0 0.0
  %3684 = vmatpush1.xpose.msra.mxu0 0.0
  %3685 = vmatprep.subr.mxu0 0.0
  %3686 = vmatpush1.xpose.msra.mxu0 0.0
  %3687 = vmatprep.subr.mxu0 0.0
  %3688 = vmatpush1.xpose.msra.mxu0 0.0
  %3689 = vmatprep.subr.mxu0 0.0
  %3690 = vmatpush1.xpose.msra.mxu0 0.0
  %3691 = vmatprep.subr.mxu0 0.0
  %3692 = vmatpush1.xpose.msra.mxu0 0.0
  %3693 = vmatprep.subr.mxu0 0.0
  %3694 = vmatpush1.xpose.msra.mxu0 0.0
  %3695 = vmatprep.subr.mxu0 0.0
  %3696 = vmatpush1.xpose.msra.mxu0 0.0
  %3697 = vmatprep.subr.mxu0 0.0
  %3698 = vmatpush1.xpose.msra.mxu0 0.0
  %3699 = vmatprep.subr.mxu0 0.0
  %3700 = vmatpush1.xpose.msra.mxu0 0.0
  %3701 = vmatprep.subr.mxu0 0.0
  %3702 = vmatpush1.xpose.msra.mxu0 0.0
  %3703 = vmatprep.subr.mxu0 0.0
  %3704 = vmatpush1.xpose.msra.mxu0 0.0
  %3705 = vmatprep.subr.mxu0 0.0
  %3706 = vmatpush1.xpose.msra.mxu0 0.0
  %3707 = vmatprep.subr.mxu0 0.0
  %3708 = vmatpush1.xpose.msra.mxu0 0.0
  %3709 = vmatprep.subr.mxu0 0.0
  %3710 = vmatpush1.xpose.msra.mxu0 0.0
  %3711 = vmatprep.subr.mxu0 0.0
  %3712 = vmatpush1.xpose.msra.mxu0 0.0
  %3713 = vmatprep.subr.mxu0 0.0
  %3714 = vmatpush1.xpose.msra.mxu0 0.0
  %3715 = vmatprep.subr.mxu0 0.0
  %3716 = vmatpush1.xpose.msra.mxu0 0.0
  %3717 = vmatprep.subr.mxu0 0.0
  %3718 = vmatpush1.xpose.msra.mxu0 0.0
  %3719 = vmatprep.subr.mxu0 0.0
  %3720 = vmatpush1.xpose.msra.mxu0 0.0
  %3721 = vmatprep.subr.mxu0 0.0
  %3722 = vmatpush1.xpose.msra.mxu0 0.0
  %3723 = vmatprep.mubr.f32.mxu0 0.0
  %3724 = vmatmul.mubr.f32.gmra.mrb[0].mxu0 %v3654
  %v3725 = vpop.f32.mrb[0].mxu0
  %v3726 = vadd.f32 0.0, %v3725
  %v3727 = vpop.f32.mrb[0].mxu0
  %3728 = vdwg.mxu0
  %v3729 = vmul.f32 %v3726, 0.4082483
  %v3730 = vadd.f32 %v3729, %v3404
  %vm3731 = vcmask 64512
  %v3732 = vsel %vm3731, %v3730, -inf
  %3733 = vmax.xlane.f32.xlu0 %v3732
  %v3734 = vpop.xlane.xlu0 %3733
  %v3735 = vsub.f32 %v3730, %v3734
  %v3736 = vmul.f32 %v3735, 1.442695
  %v3737 = vpow.pop %v3736
  %v3738 = vsel %vm3731, %v3737, 0.0
  %3739 = vadd.xlane.f32.xlu0 %v3738
  %v3740 = vpop.xlane.xlu0 %3739
  %v3741 = vrcp.pop %v3740
  %v3742 = vmul.f32 %v3737, %v3741
  %v3744 = vsel %vm3731, %v3742, 0
  %3746 = vmatprep.subr.mxu0 0.0
  %3747 = vmatpush1.msra.mxu0 %v3650
  %3748 = vmatprep.subr.mxu0 0.0
  %3749 = vmatpush1.msra.mxu0 0.0
  %3750 = vmatprep.subr.mxu0 0.0
  %3751 = vmatpush1.msra.mxu0 0.0
  %3752 = vmatprep.subr.mxu0 0.0
  %3753 = vmatpush1.msra.mxu0 0.0
  %3754 = vmatprep.subr.mxu0 0.0
  %3755 = vmatpush1.msra.mxu0 0.0
  %3756 = vmatprep.subr.mxu0 0.0
  %3757 = vmatpush1.msra.mxu0 0.0
  %3758 = vmatprep.subr.mxu0 0.0
  %3759 = vmatpush1.msra.mxu0 0.0
  %3760 = vmatprep.subr.mxu0 0.0
  %3761 = vmatpush1.msra.mxu0 0.0
  %3762 = vmatprep.subr.mxu0 0.0
  %3763 = vmatpush1.msra.mxu0 0.0
  %3764 = vmatprep.subr.mxu0 0.0
  %3765 = vmatpush1.msra.mxu0 0.0
  %3766 = vmatprep.subr.mxu0 0.0
  %3767 = vmatpush1.msra.mxu0 0.0
  %3768 = vmatprep.subr.mxu0 0.0
  %3769 = vmatpush1.msra.mxu0 0.0
  %3770 = vmatprep.subr.mxu0 0.0
  %3771 = vmatpush1.msra.mxu0 0.0
  %3772 = vmatprep.subr.mxu0 0.0
  %3773 = vmatpush1.msra.mxu0 0.0
  %3774 = vmatprep.subr.mxu0 0.0
  %3775 = vmatpush1.msra.mxu0 0.0
  %3776 = vmatprep.subr.mxu0 0.0
  %3777 = vmatpush1.msra.mxu0 0.0
  %3778 = vmatprep.subr.mxu0 0.0
  %3779 = vmatpush1.msra.mxu0 0.0
  %3780 = vmatprep.subr.mxu0 0.0
  %3781 = vmatpush1.msra.mxu0 0.0
  %3782 = vmatprep.subr.mxu0 0.0
  %3783 = vmatpush1.msra.mxu0 0.0
  %3784 = vmatprep.subr.mxu0 0.0
  %3785 = vmatpush1.msra.mxu0 0.0
  %3786 = vmatprep.subr.mxu0 0.0
  %3787 = vmatpush1.msra.mxu0 0.0
  %3788 = vmatprep.subr.mxu0 0.0
  %3789 = vmatpush1.msra.mxu0 0.0
  %3790 = vmatprep.subr.mxu0 0.0
  %3791 = vmatpush1.msra.mxu0 0.0
  %3792 = vmatprep.subr.mxu0 0.0
  %3793 = vmatpush1.msra.mxu0 0.0
  %3794 = vmatprep.subr.mxu0 0.0
  %3795 = vmatpush1.msra.mxu0 0.0
  %3796 = vmatprep.subr.mxu0 0.0
  %3797 = vmatpush1.msra.mxu0 0.0
  %3798 = vmatprep.subr.mxu0 0.0
  %3799 = vmatpush1.msra.mxu0 0.0
  %3800 = vmatprep.subr.mxu0 0.0
  %3801 = vmatpush1.msra.mxu0 0.0
  %3802 = vmatprep.subr.mxu0 0.0
  %3803 = vmatpush1.msra.mxu0 0.0
  %3804 = vmatprep.subr.mxu0 0.0
  %3805 = vmatpush1.msra.mxu0 0.0
  %3806 = vmatprep.subr.mxu0 0.0
  %3807 = vmatpush1.msra.mxu0 0.0
  %3808 = vmatprep.subr.mxu0 0.0
  %3809 = vmatpush1.msra.mxu0 0.0
  %3810 = vmatprep.mubr.f32.mxu0 0.0
  %3811 = vmatmul.mubr.f32.gmra.mrb[0].mxu0 %v3744
  %v3812 = vpop.f32.mrb[0].mxu0
  %v3813 = vadd.f32 0.0, %v3812
  %v3814 = vpop.f32.mrb[0].mxu0
  %3815 = vdwg.mxu0
  %v3816 = vld [vmem:[%s39] sm:$0x3f]
  %v3818 = vsel %vm129, %v3813, 0
  %v3821 = vsel %vm136, %v3816, 0
  %3823 = vmatprep.subr.mxu0 0.0
  %3824 = vmatpush1.msra.mxu0 %v3821
  %3825 = vmatprep.subr.mxu0 0.0
  %3826 = vmatpush1.msra.mxu0 0.0
  %3827 = vmatprep.subr.mxu0 0.0
  %3828 = vmatpush1.msra.mxu0 0.0
  %3829 = vmatprep.subr.mxu0 0.0
  %3830 = vmatpush1.msra.mxu0 0.0
  %3831 = vmatprep.subr.mxu0 0.0
  %3832 = vmatpush1.msra.mxu0 0.0
  %3833 = vmatprep.subr.mxu0 0.0
  %3834 = vmatpush1.msra.mxu0 0.0
  %3835 = vmatprep.subr.mxu0 0.0
  %3836 = vmatpush1.msra.mxu0 0.0
  %3837 = vmatprep.subr.mxu0 0.0
  %3838 = vmatpush1.msra.mxu0 0.0
  %3839 = vmatprep.subr.mxu0 0.0
  %3840 = vmatpush1.msra.mxu0 0.0
  %3841 = vmatprep.subr.mxu0 0.0
  %3842 = vmatpush1.msra.mxu0 0.0
  %3843 = vmatprep.subr.mxu0 0.0
  %3844 = vmatpush1.msra.mxu0 0.0
  %3845 = vmatprep.subr.mxu0 0.0
  %3846 = vmatpush1.msra.mxu0 0.0
  %3847 = vmatprep.subr.mxu0 0.0
  %3848 = vmatpush1.msra.mxu0 0.0
  %3849 = vmatprep.subr.mxu0 0.0
  %3850 = vmatpush1.msra.mxu0 0.0
  %3851 = vmatprep.subr.mxu0 0.0
  %3852 = vmatpush1.msra.mxu0 0.0
  %3853 = vmatprep.subr.mxu0 0.0
  %3854 = vmatpush1.msra.mxu0 0.0
  %3855 = vmatprep.subr.mxu0 0.0
  %3856 = vmatpush1.msra.mxu0 0.0
  %3857 = vmatprep.subr.mxu0 0.0
  %3858 = vmatpush1.msra.mxu0 0.0
  %3859 = vmatprep.subr.mxu0 0.0
  %3860 = vmatpush1.msra.mxu0 0.0
  %3861 = vmatprep.subr.mxu0 0.0
  %3862 = vmatpush1.msra.mxu0 0.0
  %3863 = vmatprep.subr.mxu0 0.0
  %3864 = vmatpush1.msra.mxu0 0.0
  %3865 = vmatprep.subr.mxu0 0.0
  %3866 = vmatpush1.msra.mxu0 0.0
  %3867 = vmatprep.subr.mxu0 0.0
  %3868 = vmatpush1.msra.mxu0 0.0
  %3869 = vmatprep.subr.mxu0 0.0
  %3870 = vmatpush1.msra.mxu0 0.0
  %3871 = vmatprep.subr.mxu0 0.0
  %3872 = vmatpush1.msra.mxu0 0.0
  %3873 = vmatprep.subr.mxu0 0.0
  %3874 = vmatpush1.msra.mxu0 0.0
  %3875 = vmatprep.subr.mxu0 0.0
  %3876 = vmatpush1.msra.mxu0 0.0
  %3877 = vmatprep.subr.mxu0 0.0
  %3878 = vmatpush1.msra.mxu0 0.0
  %3879 = vmatprep.subr.mxu0 0.0
  %3880 = vmatpush1.msra.mxu0 0.0
  %3881 = vmatprep.subr.mxu0 0.0
  %3882 = vmatpush1.msra.mxu0 0.0
  %3883 = vmatprep.subr.mxu0 0.0
  %3884 = vmatpush1.msra.mxu0 0.0
  %3885 = vmatprep.subr.mxu0 0.0
  %3886 = vmatpush1.msra.mxu0 0.0
  %3887 = vmatprep.mubr.f32.mxu0 0.0
  %3888 = vmatmul.mubr.f32.gmra.mrb[0].mxu0 %v3818
  %v3889 = vpop.f32.mrb[0].mxu0
  %v3890 = vadd.f32 0.0, %v3889
  %v3891 = vpop.f32.mrb[0].mxu0
  %3892 = vdwg.mxu0
  %v3894 = vlaneseq
  %v3895 = vshrl.u32 %v3894, 7
  %v3896 = vsub.s32 0, %v3895
  %v3897 = vrot.slane %v3405, %v3896
  %v3899 = vadd.f32 %v3897, %v3890
  %s3900 = scalar_lea.vmem %s35, 24
  %v3901 = vld [vmem:[%s3900] sm:$0xff]
  %v3902 = vld [vmem:[%s3900 + $0x8] sm:$0xff]
  %v3903 = vld [vmem:[%s3900 + $0x10] sm:$0xff]
  %s3904 = scalar_lea.vmem %s37, 1
  %v3905 = vld [vmem:[%s3904] sm:$0x1]
  %v3907 = vlaneseq
  %v3908 = vshrl.u32 %v3907, 7
  %v3909 = vsub.s32 0, %v3908
  %v3910 = vrot.slane %v3905, %v3909
  %3912 = vmatprep.subr.mxu0 0.0
  %3913 = vmatpush1.msra.mxu0 %v3901
  %3914 = vmatprep.subr.mxu0 0.0
  %3915 = vmatpush1.msra.mxu0 %v3902
  %3916 = vmatprep.subr.mxu0 0.0
  %3917 = vmatpush1.msra.mxu0 %v3903
  %3918 = vmatprep.subr.mxu0 0.0
  %3919 = vmatpush1.msra.mxu0 0.0
  %3920 = vmatprep.subr.mxu0 0.0
  %3921 = vmatpush1.msra.mxu0 0.0
  %3922 = vmatprep.subr.mxu0 0.0
  %3923 = vmatpush1.msra.mxu0 0.0
  %3924 = vmatprep.subr.mxu0 0.0
  %3925 = vmatpush1.msra.mxu0 0.0
  %3926 = vmatprep.subr.mxu0 0.0
  %3927 = vmatpush1.msra.mxu0 0.0
  %3928 = vmatprep.subr.mxu0 0.0
  %3929 = vmatpush1.msra.mxu0 0.0
  %3930 = vmatprep.subr.mxu0 0.0
  %3931 = vmatpush1.msra.mxu0 0.0
  %3932 = vmatprep.subr.mxu0 0.0
  %3933 = vmatpush1.msra.mxu0 0.0
  %3934 = vmatprep.subr.mxu0 0.0
  %3935 = vmatpush1.msra.mxu0 0.0
  %3936 = vmatprep.subr.mxu0 0.0
  %3937 = vmatpush1.msra.mxu0 0.0
  %3938 = vmatprep.subr.mxu0 0.0
  %3939 = vmatpush1.msra.mxu0 0.0
  %3940 = vmatprep.subr.mxu0 0.0
  %3941 = vmatpush1.msra.mxu0 0.0
  %3942 = vmatprep.subr.mxu0 0.0
  %3943 = vmatpush1.msra.mxu0 0.0
  %3944 = vmatprep.subr.mxu0 0.0
  %3945 = vmatpush1.msra.mxu0 0.0
  %3946 = vmatprep.subr.mxu0 0.0
  %3947 = vmatpush1.msra.mxu0 0.0
  %3948 = vmatprep.subr.mxu0 0.0
  %3949 = vmatpush1.msra.mxu0 0.0
  %3950 = vmatprep.subr.mxu0 0.0
  %3951 = vmatpush1.msra.mxu0 0.0
  %3952 = vmatprep.subr.mxu0 0.0
  %3953 = vmatpush1.msra.mxu0 0.0
  %3954 = vmatprep.subr.mxu0 0.0
  %3955 = vmatpush1.msra.mxu0 0.0
  %3956 = vmatprep.subr.mxu0 0.0
  %3957 = vmatpush1.msra.mxu0 0.0
  %3958 = vmatprep.subr.mxu0 0.0
  %3959 = vmatpush1.msra.mxu0 0.0
  %3960 = vmatprep.subr.mxu0 0.0
  %3961 = vmatpush1.msra.mxu0 0.0
  %3962 = vmatprep.subr.mxu0 0.0
  %3963 = vmatpush1.msra.mxu0 0.0
  %3964 = vmatprep.subr.mxu0 0.0
  %3965 = vmatpush1.msra.mxu0 0.0
  %3966 = vmatprep.subr.mxu0 0.0
  %3967 = vmatpush1.msra.mxu0 0.0
  %3968 = vmatprep.subr.mxu0 0.0
  %3969 = vmatpush1.msra.mxu0 0.0
  %3970 = vmatprep.subr.mxu0 0.0
  %3971 = vmatpush1.msra.mxu0 0.0
  %3972 = vmatprep.subr.mxu0 0.0
  %3973 = vmatpush1.msra.mxu0 0.0
  %3974 = vmatprep.subr.mxu0 0.0
  %3975 = vmatpush1.msra.mxu0 0.0
  %3976 = vmatprep.mubr.f32.mxu0 0.0
  %3977 = vmatmul.mubr.f32.gmra.mrb[0].mxu0 %v3417
  %v3978 = vpop.f32.mrb[0].mxu0
  %v3979 = vadd.f32 %v3910, %v3978
  %v3980 = vpop.f32.mrb[0].mxu0
  %3981 = vdwg.mxu0
  %s3982 = scalar_lea.vmem %s35, 120
  %v3983 = vld [vmem:[%s3982] sm:$0xff]
  %v3984 = vld [vmem:[%s3982 + $0x8] sm:$0xff]
  %v3985 = vld [vmem:[%s3982 + $0x10] sm:$0xff]
  %s3986 = scalar_lea.vmem %s37, 5
  %v3987 = vld [vmem:[%s3986] sm:$0x1]
  %v3989 = vlaneseq
  %v3990 = vshrl.u32 %v3989, 7
  %v3991 = vsub.s32 0, %v3990
  %v3992 = vrot.slane %v3987, %v3991
  %3994 = vmatprep.subr.mxu0 0.0
  %3995 = vmatpush1.msra.mxu0 %v3983
  %3996 = vmatprep.subr.mxu0 0.0
  %3997 = vmatpush1.msra.mxu0 %v3984
  %3998 = vmatprep.subr.mxu0 0.0
  %3999 = vmatpush1.msra.mxu0 %v3985
  %4000 = vmatprep.subr.mxu0 0.0
  %4001 = vmatpush1.msra.mxu0 0.0
  %4002 = vmatprep.subr.mxu0 0.0
  %4003 = vmatpush1.msra.mxu0 0.0
  %4004 = vmatprep.subr.mxu0 0.0
  %4005 = vmatpush1.msra.mxu0 0.0
  %4006 = vmatprep.subr.mxu0 0.0
  %4007 = vmatpush1.msra.mxu0 0.0
  %4008 = vmatprep.subr.mxu0 0.0
  %4009 = vmatpush1.msra.mxu0 0.0
  %4010 = vmatprep.subr.mxu0 0.0
  %4011 = vmatpush1.msra.mxu0 0.0
  %4012 = vmatprep.subr.mxu0 0.0
  %4013 = vmatpush1.msra.mxu0 0.0
  %4014 = vmatprep.subr.mxu0 0.0
  %4015 = vmatpush1.msra.mxu0 0.0
  %4016 = vmatprep.subr.mxu0 0.0
  %4017 = vmatpush1.msra.mxu0 0.0
  %4018 = vmatprep.subr.mxu0 0.0
  %4019 = vmatpush1.msra.mxu0 0.0
  %4020 = vmatprep.subr.mxu0 0.0
  %4021 = vmatpush1.msra.mxu0 0.0
  %4022 = vmatprep.subr.mxu0 0.0
  %4023 = vmatpush1.msra.mxu0 0.0
  %4024 = vmatprep.subr.mxu0 0.0
  %4025 = vmatpush1.msra.mxu0 0.0
  %4026 = vmatprep.subr.mxu0 0.0
  %4027 = vmatpush1.msra.mxu0 0.0
  %4028 = vmatprep.subr.mxu0 0.0
  %4029 = vmatpush1.msra.mxu0 0.0
  %4030 = vmatprep.subr.mxu0 0.0
  %4031 = vmatpush1.msra.mxu0 0.0
  %4032 = vmatprep.subr.mxu0 0.0
  %4033 = vmatpush1.msra.mxu0 0.0
  %4034 = vmatprep.subr.mxu0 0.0
  %4035 = vmatpush1.msra.mxu0 0.0
  %4036 = vmatprep.subr.mxu0 0.0
  %4037 = vmatpush1.msra.mxu0 0.0
  %4038 = vmatprep.subr.mxu0 0.0
  %4039 = vmatpush1.msra.mxu0 0.0
  %4040 = vmatprep.subr.mxu0 0.0
  %4041 = vmatpush1.msra.mxu0 0.0
  %4042 = vmatprep.subr.mxu0 0.0
  %4043 = vmatpush1.msra.mxu0 0.0
  %4044 = vmatprep.subr.mxu0 0.0
  %4045 = vmatpush1.msra.mxu0 0.0
  %4046 = vmatprep.subr.mxu0 0.0
  %4047 = vmatpush1.msra.mxu0 0.0
  %4048 = vmatprep.subr.mxu0 0.0
  %4049 = vmatpush1.msra.mxu0 0.0
  %4050 = vmatprep.subr.mxu0 0.0
  %4051 = vmatpush1.msra.mxu0 0.0
  %4052 = vmatprep.subr.mxu0 0.0
  %4053 = vmatpush1.msra.mxu0 0.0
  %4054 = vmatprep.subr.mxu0 0.0
  %4055 = vmatpush1.msra.mxu0 0.0
  %4056 = vmatprep.subr.mxu0 0.0
  %4057 = vmatpush1.msra.mxu0 0.0
  %4058 = vmatprep.mubr.f32.mxu0 0.0
  %4059 = vmatmul.mubr.f32.gmra.mrb[0].mxu0 %v3417
  %v4060 = vpop.f32.mrb[0].mxu0
  %v4061 = vadd.f32 %v3992, %v4060
  %v4062 = vpop.f32.mrb[0].mxu0
  %4063 = vdwg.mxu0
  %s4064 = scalar_lea.vmem %s35, 216
  %v4065 = vld [vmem:[%s4064] sm:$0xff]
  %v4066 = vld [vmem:[%s4064 + $0x8] sm:$0xff]
  %v4067 = vld [vmem:[%s4064 + $0x10] sm:$0xff]
  %s4068 = scalar_lea.vmem %s37, 9
  %v4069 = vld [vmem:[%s4068] sm:$0x1]
  %v4071 = vlaneseq
  %v4072 = vshrl.u32 %v4071, 7
  %v4073 = vsub.s32 0, %v4072
  %v4074 = vrot.slane %v4069, %v4073
  %4076 = vmatprep.subr.mxu0 0.0
  %4077 = vmatpush1.msra.mxu0 %v4065
  %4078 = vmatprep.subr.mxu0 0.0
  %4079 = vmatpush1.msra.mxu0 %v4066
  %4080 = vmatprep.subr.mxu0 0.0
  %4081 = vmatpush1.msra.mxu0 %v4067
  %4082 = vmatprep.subr.mxu0 0.0
  %4083 = vmatpush1.msra.mxu0 0.0
  %4084 = vmatprep.subr.mxu0 0.0
  %4085 = vmatpush1.msra.mxu0 0.0
  %4086 = vmatprep.subr.mxu0 0.0
  %4087 = vmatpush1.msra.mxu0 0.0
  %4088 = vmatprep.subr.mxu0 0.0
  %4089 = vmatpush1.msra.mxu0 0.0
  %4090 = vmatprep.subr.mxu0 0.0
  %4091 = vmatpush1.msra.mxu0 0.0
  %4092 = vmatprep.subr.mxu0 0.0
  %4093 = vmatpush1.msra.mxu0 0.0
  %4094 = vmatprep.subr.mxu0 0.0
  %4095 = vmatpush1.msra.mxu0 0.0
  %4096 = vmatprep.subr.mxu0 0.0
  %4097 = vmatpush1.msra.mxu0 0.0
  %4098 = vmatprep.subr.mxu0 0.0
  %4099 = vmatpush1.msra.mxu0 0.0
  %4100 = vmatprep.subr.mxu0 0.0
  %4101 = vmatpush1.msra.mxu0 0.0
  %4102 = vmatprep.subr.mxu0 0.0
  %4103 = vmatpush1.msra.mxu0 0.0
  %4104 = vmatprep.subr.mxu0 0.0
  %4105 = vmatpush1.msra.mxu0 0.0
  %4106 = vmatprep.subr.mxu0 0.0
  %4107 = vmatpush1.msra.mxu0 0.0
  %4108 = vmatprep.subr.mxu0 0.0
  %4109 = vmatpush1.msra.mxu0 0.0
  %4110 = vmatprep.subr.mxu0 0.0
  %4111 = vmatpush1.msra.mxu0 0.0
  %4112 = vmatprep.subr.mxu0 0.0
  %4113 = vmatpush1.msra.mxu0 0.0
  %4114 = vmatprep.subr.mxu0 0.0
  %4115 = vmatpush1.msra.mxu0 0.0
  %4116 = vmatprep.subr.mxu0 0.0
  %4117 = vmatpush1.msra.mxu0 0.0
  %4118 = vmatprep.subr.mxu0 0.0
  %4119 = vmatpush1.msra.mxu0 0.0
  %4120 = vmatprep.subr.mxu0 0.0
  %4121 = vmatpush1.msra.mxu0 0.0
  %4122 = vmatprep.subr.mxu0 0.0
  %4123 = vmatpush1.msra.mxu0 0.0
  %4124 = vmatprep.subr.mxu0 0.0
  %4125 = vmatpush1.msra.mxu0 0.0
  %4126 = vmatprep.subr.mxu0 0.0
  %4127 = vmatpush1.msra.mxu0 0.0
  %4128 = vmatprep.subr.mxu0 0.0
  %4129 = vmatpush1.msra.mxu0 0.0
  %4130 = vmatprep.subr.mxu0 0.0
  %4131 = vmatpush1.msra.mxu0 0.0
  %4132 = vmatprep.subr.mxu0 0.0
  %4133 = vmatpush1.msra.mxu0 0.0
  %4134 = vmatprep.subr.mxu0 0.0
  %4135 = vmatpush1.msra.mxu0 0.0
  %4136 = vmatprep.subr.mxu0 0.0
  %4137 = vmatpush1.msra.mxu0 0.0
  %4138 = vmatprep.subr.mxu0 0.0
  %4139 = vmatpush1.msra.mxu0 0.0
  %4140 = vmatprep.mubr.f32.mxu0 0.0
  %4141 = vmatmul.mubr.f32.gmra.mrb[0].mxu0 %v3417
  %v4142 = vpop.f32.mrb[0].mxu0
  %v4143 = vadd.f32 %v4074, %v4142
  %v4144 = vpop.f32.mrb[0].mxu0
  %4145 = vdwg.mxu0
  %v4147 = vsel %vm129, %v3979, 0
  %v4150 = vsel %vm129, %v4061, 0
  %4152 = vmatprep.subr.mxu0 0.0
  %4153 = vmatpush1.xpose.msra.mxu0 %v4150
  %4154 = vmatprep.subr.mxu0 0.0
  %4155 = vmatpush1.xpose.msra.mxu0 0.0
  %4156 = vmatprep.subr.mxu0 0.0
  %4157 = vmatpush1.xpose.msra.mxu0 0.0
  %4158 = vmatprep.subr.mxu0 0.0
  %4159 = vmatpush1.xpose.msra.mxu0 0.0
  %4160 = vmatprep.subr.mxu0 0.0
  %4161 = vmatpush1.xpose.msra.mxu0 0.0
  %4162 = vmatprep.subr.mxu0 0.0
  %4163 = vmatpush1.xpose.msra.mxu0 0.0
  %4164 = vmatprep.subr.mxu0 0.0
  %4165 = vmatpush1.xpose.msra.mxu0 0.0
  %4166 = vmatprep.subr.mxu0 0.0
  %4167 = vmatpush1.xpose.msra.mxu0 0.0
  %4168 = vmatprep.subr.mxu0 0.0
  %4169 = vmatpush1.xpose.msra.mxu0 0.0
  %4170 = vmatprep.subr.mxu0 0.0
  %4171 = vmatpush1.xpose.msra.mxu0 0.0
  %4172 = vmatprep.subr.mxu0 0.0
  %4173 = vmatpush1.xpose.msra.mxu0 0.0
  %4174 = vmatprep.subr.mxu0 0.0
  %4175 = vmatpush1.xpose.msra.mxu0 0.0
  %4176 = vmatprep.subr.mxu0 0.0
  %4177 = vmatpush1.xpose.msra.mxu0 0.0
  %4178 = vmatprep.subr.mxu0 0.0
  %4179 = vmatpush1.xpose.msra.mxu0 0.0
  %4180 = vmatprep.subr.mxu0 0.0
  %4181 = vmatpush1.xpose.msra.mxu0 0.0
  %4182 = vmatprep.subr.mxu0 0.0
  %4183 = vmatpush1.xpose.msra.mxu0 0.0
  %4184 = vmatprep.subr.mxu0 0.0
  %4185 = vmatpush1.xpose.msra.mxu0 0.0
  %4186 = vmatprep.subr.mxu0 0.0
  %4187 = vmatpush1.xpose.msra.mxu0 0.0
  %4188 = vmatprep.subr.mxu0 0.0
  %4189 = vmatpush1.xpose.msra.mxu0 0.0
  %4190 = vmatprep.subr.mxu0 0.0
  %4191 = vmatpush1.xpose.msra.mxu0 0.0
  %4192 = vmatprep.subr.mxu0 0.0
  %4193 = vmatpush1.xpose.msra.mxu0 0.0
  %4194 = vmatprep.subr.mxu0 0.0
  %4195 = vmatpush1.xpose.msra.mxu0 0.0
  %4196 = vmatprep.subr.mxu0 0.0
  %4197 = vmatpush1.xpose.msra.mxu0 0.0
  %4198 = vmatprep.subr.mxu0 0.0
  %4199 = vmatpush1.xpose.msra.mxu0 0.0
  %4200 = vmatprep.subr.mxu0 0.0
  %4201 = vmatpush1.xpose.msra.mxu0 0.0
  %4202 = vmatprep.subr.mxu0 0.0
  %4203 = vmatpush1.xpose.msra.mxu0 0.0
  %4204 = vmatprep.subr.mxu0 0.0
  %4205 = vmatpush1.xpose.msra.mxu0 0.0
  %4206 = vmatprep.subr.mxu0 0.0
  %4207 = vmatpush1.xpose.msra.mxu0 0.0
  %4208 = vmatprep.subr.mxu0 0.0
  %4209 = vmatpush1.xpose.msra.mxu0 0.0
  %4210 = vmatprep.subr.mxu0 0.0
  %4211 = vmatpush1.xpose.msra.mxu0 0.0
  %4212 = vmatprep.subr.mxu0 0.0
  %4213 = vmatpush1.xpose.msra.mxu0 0.0
  %4214 = vmatprep.subr.mxu0 0.0
  %4215 = vmatpush1.xpose.msra.mxu0 0.0
  %4216 = vmatprep.mubr.f32.mxu0 0.0
  %4217 = vmatmul.mubr.f32.gmra.mrb[0].mxu0 %v4147
  %v4218 = vpop.f32.mrb[0].mxu0
  %v4219 = vadd.f32 0.0, %v4218
  %v4220 = vpop.f32.mrb[0].mxu0
  %4221 = vdwg.mxu0
  %v4222 = vmul.f32 %v4219, 0.4082483
  %v4223 = vadd.f32 %v4222, %v3404
  %v4224 = vsel %vm3731, %v4223, -inf
  %4225 = vmax.xlane.f32.xlu0 %v4224
  %v4226 = vpop.xlane.xlu0 %4225
  %v4227 = vsub.f32 %v4223, %v4226
  %v4228 = vmul.f32 %v4227, 1.442695
  %v4229 = vpow.pop %v4228
  %v4230 = vsel %vm3731, %v4229, 0.0
  %4231 = vadd.xlane.f32.xlu0 %v4230
  %v4232 = vpop.xlane.xlu0 %4231
  %v4233 = vrcp.pop %v4232
  %v4234 = vmul.f32 %v4229, %v4233
  %v4236 = vsel %vm3731, %v4234, 0
  %4238 = vmatprep.subr.mxu0 0.0
  %4239 = vmatpush1.msra.mxu0 %v4143
  %4240 = vmatprep.subr.mxu0 0.0
  %4241 = vmatpush1.msra.mxu0 0.0
  %4242 = vmatprep.subr.mxu0 0.0
  %4243 = vmatpush1.msra.mxu0 0.0
  %4244 = vmatprep.subr.mxu0 0.0
  %4245 = vmatpush1.msra.mxu0 0.0
  %4246 = vmatprep.subr.mxu0 0.0
  %4247 = vmatpush1.msra.mxu0 0.0
  %4248 = vmatprep.subr.mxu0 0.0
  %4249 = vmatpush1.msra.mxu0 0.0
  %4250 = vmatprep.subr.mxu0 0.0
  %4251 = vmatpush1.msra.mxu0 0.0
  %4252 = vmatprep.subr.mxu0 0.0
  %4253 = vmatpush1.msra.mxu0 0.0
  %4254 = vmatprep.subr.mxu0 0.0
  %4255 = vmatpush1.msra.mxu0 0.0
  %4256 = vmatprep.subr.mxu0 0.0
  %4257 = vmatpush1.msra.mxu0 0.0
  %4258 = vmatprep.subr.mxu0 0.0
  %4259 = vmatpush1.msra.mxu0 0.0
  %4260 = vmatprep.subr.mxu0 0.0
  %4261 = vmatpush1.msra.mxu0 0.0
  %4262 = vmatprep.subr.mxu0 0.0
  %4263 = vmatpush1.msra.mxu0 0.0
  %4264 = vmatprep.subr.mxu0 0.0
  %4265 = vmatpush1.msra.mxu0 0.0
  %4266 = vmatprep.subr.mxu0 0.0
  %4267 = vmatpush1.msra.mxu0 0.0
  %4268 = vmatprep.subr.mxu0 0.0
  %4269 = vmatpush1.msra.mxu0 0.0
  %4270 = vmatprep.subr.mxu0 0.0
  %4271 = vmatpush1.msra.mxu0 0.0
  %4272 = vmatprep.subr.mxu0 0.0
  %4273 = vmatpush1.msra.mxu0 0.0
  %4274 = vmatprep.subr.mxu0 0.0
  %4275 = vmatpush1.msra.mxu0 0.0
  %4276 = vmatprep.subr.mxu0 0.0
  %4277 = vmatpush1.msra.mxu0 0.0
  %4278 = vmatprep.subr.mxu0 0.0
  %4279 = vmatpush1.msra.mxu0 0.0
  %4280 = vmatprep.subr.mxu0 0.0
  %4281 = vmatpush1.msra.mxu0 0.0
  %4282 = vmatprep.subr.mxu0 0.0
  %4283 = vmatpush1.msra.mxu0 0.0
  %4284 = vmatprep.subr.mxu0 0.0
  %4285 = vmatpush1.msra.mxu0 0.0
  %4286 = vmatprep.subr.mxu0 0.0
  %4287 = vmatpush1.msra.mxu0 0.0
  %4288 = vmatprep.subr.mxu0 0.0
  %4289 = vmatpush1.msra.mxu0 0.0
  %4290 = vmatprep.subr.mxu0 0.0
  %4291 = vmatpush1.msra.mxu0 0.0
  %4292 = vmatprep.subr.mxu0 0.0
  %4293 = vmatpush1.msra.mxu0 0.0
  %4294 = vmatprep.subr.mxu0 0.0
  %4295 = vmatpush1.msra.mxu0 0.0
  %4296 = vmatprep.subr.mxu0 0.0
  %4297 = vmatpush1.msra.mxu0 0.0
  %4298 = vmatprep.subr.mxu0 0.0
  %4299 = vmatpush1.msra.mxu0 0.0
  %4300 = vmatprep.subr.mxu0 0.0
  %4301 = vmatpush1.msra.mxu0 0.0
  %4302 = vmatprep.mubr.f32.mxu0 0.0
  %4303 = vmatmul.mubr.f32.gmra.mrb[0].mxu0 %v4236
  %v4304 = vpop.f32.mrb[0].mxu0
  %v4305 = vadd.f32 0.0, %v4304
  %v4306 = vpop.f32.mrb[0].mxu0
  %4307 = vdwg.mxu0
  %s4308 = scalar_lea.vmem %s39, 8
  %v4309 = vld [vmem:[%s4308] sm:$0x3f]
  %v4311 = vsel %vm129, %v4305, 0
  %v4314 = vsel %vm136, %v4309, 0
  %4316 = vmatprep.subr.mxu0 0.0
  %4317 = vmatpush1.msra.mxu0 %v4314
  %4318 = vmatprep.subr.mxu0 0.0
  %4319 = vmatpush1.msra.mxu0 0.0
  %4320 = vmatprep.subr.mxu0 0.0
  %4321 = vmatpush1.msra.mxu0 0.0
  %4322 = vmatprep.subr.mxu0 0.0
  %4323 = vmatpush1.msra.mxu0 0.0
  %4324 = vmatprep.subr.mxu0 0.0
  %4325 = vmatpush1.msra.mxu0 0.0
  %4326 = vmatprep.subr.mxu0 0.0
  %4327 = vmatpush1.msra.mxu0 0.0
  %4328 = vmatprep.subr.mxu0 0.0
  %4329 = vmatpush1.msra.mxu0 0.0
  %4330 = vmatprep.subr.mxu0 0.0
  %4331 = vmatpush1.msra.mxu0 0.0
  %4332 = vmatprep.subr.mxu0 0.0
  %4333 = vmatpush1.msra.mxu0 0.0
  %4334 = vmatprep.subr.mxu0 0.0
  %4335 = vmatpush1.msra.mxu0 0.0
  %4336 = vmatprep.subr.mxu0 0.0
  %4337 = vmatpush1.msra.mxu0 0.0
  %4338 = vmatprep.subr.mxu0 0.0
  %4339 = vmatpush1.msra.mxu0 0.0
  %4340 = vmatprep.subr.mxu0 0.0
  %4341 = vmatpush1.msra.mxu0 0.0
  %4342 = vmatprep.subr.mxu0 0.0
  %4343 = vmatpush1.msra.mxu0 0.0
  %4344 = vmatprep.subr.mxu0 0.0
  %4345 = vmatpush1.msra.mxu0 0.0
  %4346 = vmatprep.subr.mxu0 0.0
  %4347 = vmatpush1.msra.mxu0 0.0
  %4348 = vmatprep.subr.mxu0 0.0
  %4349 = vmatpush1.msra.mxu0 0.0
  %4350 = vmatprep.subr.mxu0 0.0
  %4351 = vmatpush1.msra.mxu0 0.0
  %4352 = vmatprep.subr.mxu0 0.0
  %4353 = vmatpush1.msra.mxu0 0.0
  %4354 = vmatprep.subr.mxu0 0.0
  %4355 = vmatpush1.msra.mxu0 0.0
  %4356 = vmatprep.subr.mxu0 0.0
  %4357 = vmatpush1.msra.mxu0 0.0
  %4358 = vmatprep.subr.mxu0 0.0
  %4359 = vmatpush1.msra.mxu0 0.0
  %4360 = vmatprep.subr.mxu0 0.0
  %4361 = vmatpush1.msra.mxu0 0.0
  %4362 = vmatprep.subr.mxu0 0.0
  %4363 = vmatpush1.msra.mxu0 0.0
  %4364 = vmatprep.subr.mxu0 0.0
  %4365 = vmatpush1.msra.mxu0 0.0
  %4366 = vmatprep.subr.mxu0 0.0
  %4367 = vmatpush1.msra.mxu0 0.0
  %4368 = vmatprep.subr.mxu0 0.0
  %4369 = vmatpush1.msra.mxu0 0.0
  %4370 = vmatprep.subr.mxu0 0.0
  %4371 = vmatpush1.msra.mxu0 0.0
  %4372 = vmatprep.subr.mxu0 0.0
  %4373 = vmatpush1.msra.mxu0 0.0
  %4374 = vmatprep.subr.mxu0 0.0
  %4375 = vmatpush1.msra.mxu0 0.0
  %4376 = vmatprep.subr.mxu0 0.0
  %4377 = vmatpush1.msra.mxu0 0.0
  %4378 = vmatprep.subr.mxu0 0.0
  %4379 = vmatpush1.msra.mxu0 0.0
  %4380 = vmatprep.mubr.f32.mxu0 0.0
  %4381 = vmatmul.mubr.f32.gmra.mrb[0].mxu0 %v4311
  %v4382 = vpop.f32.mrb[0].mxu0
  %v4383 = vadd.f32 0.0, %v4382
  %v4384 = vpop.f32.mrb[0].mxu0
  %4385 = vdwg.mxu0
  %v4386 = vadd.f32 %v3899, %v4383
  %s4387 = scalar_lea.vmem %s35, 48
  %v4388 = vld [vmem:[%s4387] sm:$0xff]
  %v4389 = vld [vmem:[%s4387 + $0x8] sm:$0xff]
  %v4390 = vld [vmem:[%s4387 + $0x10] sm:$0xff]
  %s4391 = scalar_lea.vmem %s37, 2
  %v4392 = vld [vmem:[%s4391] sm:$0x1]
  %v4394 = vlaneseq
  %v4395 = vshrl.u32 %v4394, 7
  %v4396 = vsub.s32 0, %v4395
  %v4397 = vrot.slane %v4392, %v4396
  %4399 = vmatprep.subr.mxu0 0.0
  %4400 = vmatpush1.msra.mxu0 %v4388
  %4401 = vmatprep.subr.mxu0 0.0
  %4402 = vmatpush1.msra.mxu0 %v4389
  %4403 = vmatprep.subr.mxu0 0.0
  %4404 = vmatpush1.msra.mxu0 %v4390
  %4405 = vmatprep.subr.mxu0 0.0
  %4406 = vmatpush1.msra.mxu0 0.0
  %4407 = vmatprep.subr.mxu0 0.0
  %4408 = vmatpush1.msra.mxu0 0.0
  %4409 = vmatprep.subr.mxu0 0.0
  %4410 = vmatpush1.msra.mxu0 0.0
  %4411 = vmatprep.subr.mxu0 0.0
  %4412 = vmatpush1.msra.mxu0 0.0
  %4413 = vmatprep.subr.mxu0 0.0
  %4414 = vmatpush1.msra.mxu0 0.0
  %4415 = vmatprep.subr.mxu0 0.0
  %4416 = vmatpush1.msra.mxu0 0.0
  %4417 = vmatprep.subr.mxu0 0.0
  %4418 = vmatpush1.msra.mxu0 0.0
  %4419 = vmatprep.subr.mxu0 0.0
  %4420 = vmatpush1.msra.mxu0 0.0
  %4421 = vmatprep.subr.mxu0 0.0
  %4422 = vmatpush1.msra.mxu0 0.0
  %4423 = vmatprep.subr.mxu0 0.0
  %4424 = vmatpush1.msra.mxu0 0.0
  %4425 = vmatprep.subr.mxu0 0.0
  %4426 = vmatpush1.msra.mxu0 0.0
  %4427 = vmatprep.subr.mxu0 0.0
  %4428 = vmatpush1.msra.mxu0 0.0
  %4429 = vmatprep.subr.mxu0 0.0
  %4430 = vmatpush1.msra.mxu0 0.0
  %4431 = vmatprep.subr.mxu0 0.0
  %4432 = vmatpush1.msra.mxu0 0.0
  %4433 = vmatprep.subr.mxu0 0.0
  %4434 = vmatpush1.msra.mxu0 0.0
  %4435 = vmatprep.subr.mxu0 0.0
  %4436 = vmatpush1.msra.mxu0 0.0
  %4437 = vmatprep.subr.mxu0 0.0
  %4438 = vmatpush1.msra.mxu0 0.0
  %4439 = vmatprep.subr.mxu0 0.0
  %4440 = vmatpush1.msra.mxu0 0.0
  %4441 = vmatprep.subr.mxu0 0.0
  %4442 = vmatpush1.msra.mxu0 0.0
  %4443 = vmatprep.subr.mxu0 0.0
  %4444 = vmatpush1.msra.mxu0 0.0
  %4445 = vmatprep.subr.mxu0 0.0
  %4446 = vmatpush1.msra.mxu0 0.0
  %4447 = vmatprep.subr.mxu0 0.0
  %4448 = vmatpush1.msra.mxu0 0.0
  %4449 = vmatprep.subr.mxu0 0.0
  %4450 = vmatpush1.msra.mxu0 0.0
  %4451 = vmatprep.subr.mxu0 0.0
  %4452 = vmatpush1.msra.mxu0 0.0
  %4453 = vmatprep.subr.mxu0 0.0
  %4454 = vmatpush1.msra.mxu0 0.0
  %4455 = vmatprep.subr.mxu0 0.0
  %4456 = vmatpush1.msra.mxu0 0.0
  %4457 = vmatprep.subr.mxu0 0.0
  %4458 = vmatpush1.msra.mxu0 0.0
  %4459 = vmatprep.subr.mxu0 0.0
  %4460 = vmatpush1.msra.mxu0 0.0
  %4461 = vmatprep.subr.mxu0 0.0
  %4462 = vmatpush1.msra.mxu0 0.0
  %4463 = vmatprep.mubr.f32.mxu0 0.0
  %4464 = vmatmul.mubr.f32.gmra.mrb[0].mxu0 %v3417
  %v4465 = vpop.f32.mrb[0].mxu0
  %v4466 = vadd.f32 %v4397, %v4465
  %v4467 = vpop.f32.mrb[0].mxu0
  %4468 = vdwg.mxu0
  %s4469 = scalar_lea.vmem %s35, 144
  %v4470 = vld [vmem:[%s4469] sm:$0xff]
  %v4471 = vld [vmem:[%s4469 + $0x8] sm:$0xff]
  %v4472 = vld [vmem:[%s4469 + $0x10] sm:$0xff]
  %s4473 = scalar_lea.vmem %s37, 6
  %v4474 = vld [vmem:[%s4473] sm:$0x1]
  %v4476 = vlaneseq
  %v4477 = vshrl.u32 %v4476, 7
  %v4478 = vsub.s32 0, %v4477
  %v4479 = vrot.slane %v4474, %v4478
  %4481 = vmatprep.subr.mxu0 0.0
  %4482 = vmatpush1.msra.mxu0 %v4470
  %4483 = vmatprep.subr.mxu0 0.0
  %4484 = vmatpush1.msra.mxu0 %v4471
  %4485 = vmatprep.subr.mxu0 0.0
  %4486 = vmatpush1.msra.mxu0 %v4472
  %4487 = vmatprep.subr.mxu0 0.0
  %4488 = vmatpush1.msra.mxu0 0.0
  %4489 = vmatprep.subr.mxu0 0.0
  %4490 = vmatpush1.msra.mxu0 0.0
  %4491 = vmatprep.subr.mxu0 0.0
  %4492 = vmatpush1.msra.mxu0 0.0
  %4493 = vmatprep.subr.mxu0 0.0
  %4494 = vmatpush1.msra.mxu0 0.0
  %4495 = vmatprep.subr.mxu0 0.0
  %4496 = vmatpush1.msra.mxu0 0.0
  %4497 = vmatprep.subr.mxu0 0.0
  %4498 = vmatpush1.msra.mxu0 0.0
  %4499 = vmatprep.subr.mxu0 0.0
  %4500 = vmatpush1.msra.mxu0 0.0
  %4501 = vmatprep.subr.mxu0 0.0
  %4502 = vmatpush1.msra.mxu0 0.0
  %4503 = vmatprep.subr.mxu0 0.0
  %4504 = vmatpush1.msra.mxu0 0.0
  %4505 = vmatprep.subr.mxu0 0.0
  %4506 = vmatpush1.msra.mxu0 0.0
  %4507 = vmatprep.subr.mxu0 0.0
  %4508 = vmatpush1.msra.mxu0 0.0
  %4509 = vmatprep.subr.mxu0 0.0
  %4510 = vmatpush1.msra.mxu0 0.0
  %4511 = vmatprep.subr.mxu0 0.0
  %4512 = vmatpush1.msra.mxu0 0.0
  %4513 = vmatprep.subr.mxu0 0.0
  %4514 = vmatpush1.msra.mxu0 0.0
  %4515 = vmatprep.subr.mxu0 0.0
  %4516 = vmatpush1.msra.mxu0 0.0
  %4517 = vmatprep.subr.mxu0 0.0
  %4518 = vmatpush1.msra.mxu0 0.0
  %4519 = vmatprep.subr.mxu0 0.0
  %4520 = vmatpush1.msra.mxu0 0.0
  %4521 = vmatprep.subr.mxu0 0.0
  %4522 = vmatpush1.msra.mxu0 0.0
  %4523 = vmatprep.subr.mxu0 0.0
  %4524 = vmatpush1.msra.mxu0 0.0
  %4525 = vmatprep.subr.mxu0 0.0
  %4526 = vmatpush1.msra.mxu0 0.0
  %4527 = vmatprep.subr.mxu0 0.0
  %4528 = vmatpush1.msra.mxu0 0.0
  %4529 = vmatprep.subr.mxu0 0.0
  %4530 = vmatpush1.msra.mxu0 0.0
  %4531 = vmatprep.subr.mxu0 0.0
  %4532 = vmatpush1.msra.mxu0 0.0
  %4533 = vmatprep.subr.mxu0 0.0
  %4534 = vmatpush1.msra.mxu0 0.0
  %4535 = vmatprep.subr.mxu0 0.0
  %4536 = vmatpush1.msra.mxu0 0.0
  %4537 = vmatprep.subr.mxu0 0.0
  %4538 = vmatpush1.msra.mxu0 0.0
  %4539 = vmatprep.subr.mxu0 0.0
  %4540 = vmatpush1.msra.mxu0 0.0
  %4541 = vmatprep.subr.mxu0 0.0
  %4542 = vmatpush1.msra.mxu0 0.0
  %4543 = vmatprep.subr.mxu0 0.0
  %4544 = vmatpush1.msra.mxu0 0.0
  %4545 = vmatprep.mubr.f32.mxu0 0.0
  %4546 = vmatmul.mubr.f32.gmra.mrb[0].mxu0 %v3417
  %v4547 = vpop.f32.mrb[0].mxu0
  %v4548 = vadd.f32 %v4479, %v4547
  %v4549 = vpop.f32.mrb[0].mxu0
  %4550 = vdwg.mxu0
  %s4551 = scalar_lea.vmem %s35, 240
  %v4552 = vld [vmem:[%s4551] sm:$0xff]
  %v4553 = vld [vmem:[%s4551 + $0x8] sm:$0xff]
  %v4554 = vld [vmem:[%s4551 + $0x10] sm:$0xff]
  %s4555 = scalar_lea.vmem %s37, 10
  %v4556 = vld [vmem:[%s4555] sm:$0x1]
  %v4558 = vlaneseq
  %v4559 = vshrl.u32 %v4558, 7
  %v4560 = vsub.s32 0, %v4559
  %v4561 = vrot.slane %v4556, %v4560
  %4563 = vmatprep.subr.mxu0 0.0
  %4564 = vmatpush1.msra.mxu0 %v4552
  %4565 = vmatprep.subr.mxu0 0.0
  %4566 = vmatpush1.msra.mxu0 %v4553
  %4567 = vmatprep.subr.mxu0 0.0
  %4568 = vmatpush1.msra.mxu0 %v4554
  %4569 = vmatprep.subr.mxu0 0.0
  %4570 = vmatpush1.msra.mxu0 0.0
  %4571 = vmatprep.subr.mxu0 0.0
  %4572 = vmatpush1.msra.mxu0 0.0
  %4573 = vmatprep.subr.mxu0 0.0
  %4574 = vmatpush1.msra.mxu0 0.0
  %4575 = vmatprep.subr.mxu0 0.0
  %4576 = vmatpush1.msra.mxu0 0.0
  %4577 = vmatprep.subr.mxu0 0.0
  %4578 = vmatpush1.msra.mxu0 0.0
  %4579 = vmatprep.subr.mxu0 0.0
  %4580 = vmatpush1.msra.mxu0 0.0
  %4581 = vmatprep.subr.mxu0 0.0
  %4582 = vmatpush1.msra.mxu0 0.0
  %4583 = vmatprep.subr.mxu0 0.0
  %4584 = vmatpush1.msra.mxu0 0.0
  %4585 = vmatprep.subr.mxu0 0.0
  %4586 = vmatpush1.msra.mxu0 0.0
  %4587 = vmatprep.subr.mxu0 0.0
  %4588 = vmatpush1.msra.mxu0 0.0
  %4589 = vmatprep.subr.mxu0 0.0
  %4590 = vmatpush1.msra.mxu0 0.0
  %4591 = vmatprep.subr.mxu0 0.0
  %4592 = vmatpush1.msra.mxu0 0.0
  %4593 = vmatprep.subr.mxu0 0.0
  %4594 = vmatpush1.msra.mxu0 0.0
  %4595 = vmatprep.subr.mxu0 0.0
  %4596 = vmatpush1.msra.mxu0 0.0
  %4597 = vmatprep.subr.mxu0 0.0
  %4598 = vmatpush1.msra.mxu0 0.0
  %4599 = vmatprep.subr.mxu0 0.0
  %4600 = vmatpush1.msra.mxu0 0.0
  %4601 = vmatprep.subr.mxu0 0.0
  %4602 = vmatpush1.msra.mxu0 0.0
  %4603 = vmatprep.subr.mxu0 0.0
  %4604 = vmatpush1.msra.mxu0 0.0
  %4605 = vmatprep.subr.mxu0 0.0
  %4606 = vmatpush1.msra.mxu0 0.0
  %4607 = vmatprep.subr.mxu0 0.0
  %4608 = vmatpush1.msra.mxu0 0.0
  %4609 = vmatprep.subr.mxu0 0.0
  %4610 = vmatpush1.msra.mxu0 0.0
  %4611 = vmatprep.subr.mxu0 0.0
  %4612 = vmatpush1.msra.mxu0 0.0
  %4613 = vmatprep.subr.mxu0 0.0
  %4614 = vmatpush1.msra.mxu0 0.0
  %4615 = vmatprep.subr.mxu0 0.0
  %4616 = vmatpush1.msra.mxu0 0.0
  %4617 = vmatprep.subr.mxu0 0.0
  %4618 = vmatpush1.msra.mxu0 0.0
  %4619 = vmatprep.subr.mxu0 0.0
  %4620 = vmatpush1.msra.mxu0 0.0
  %4621 = vmatprep.subr.mxu0 0.0
  %4622 = vmatpush1.msra.mxu0 0.0
  %4623 = vmatprep.subr.mxu0 0.0
  %4624 = vmatpush1.msra.mxu0 0.0
  %4625 = vmatprep.subr.mxu0 0.0
  %4626 = vmatpush1.msra.mxu0 0.0
  %4627 = vmatprep.mubr.f32.mxu0 0.0
  %4628 = vmatmul.mubr.f32.gmra.mrb[0].mxu0 %v3417
  %v4629 = vpop.f32.mrb[0].mxu0
  %v4630 = vadd.f32 %v4561, %v4629
  %v4631 = vpop.f32.mrb[0].mxu0
  %4632 = vdwg.mxu0
  %v4634 = vsel %vm129, %v4466, 0
  %v4637 = vsel %vm129, %v4548, 0
  %4639 = vmatprep.subr.mxu0 0.0
  %4640 = vmatpush1.xpose.msra.mxu0 %v4637
  %4641 = vmatprep.subr.mxu0 0.0
  %4642 = vmatpush1.xpose.msra.mxu0 0.0
  %4643 = vmatprep.subr.mxu0 0.0
  %4644 = vmatpush1.xpose.msra.mxu0 0.0
  %4645 = vmatprep.subr.mxu0 0.0
  %4646 = vmatpush1.xpose.msra.mxu0 0.0
  %4647 = vmatprep.subr.mxu0 0.0
  %4648 = vmatpush1.xpose.msra.mxu0 0.0
  %4649 = vmatprep.subr.mxu0 0.0
  %4650 = vmatpush1.xpose.msra.mxu0 0.0
  %4651 = vmatprep.subr.mxu0 0.0
  %4652 = vmatpush1.xpose.msra.mxu0 0.0
  %4653 = vmatprep.subr.mxu0 0.0
  %4654 = vmatpush1.xpose.msra.mxu0 0.0
  %4655 = vmatprep.subr.mxu0 0.0
  %4656 = vmatpush1.xpose.msra.mxu0 0.0
  %4657 = vmatprep.subr.mxu0 0.0
  %4658 = vmatpush1.xpose.msra.mxu0 0.0
  %4659 = vmatprep.subr.mxu0 0.0
  %4660 = vmatpush1.xpose.msra.mxu0 0.0
  %4661 = vmatprep.subr.mxu0 0.0
  %4662 = vmatpush1.xpose.msra.mxu0 0.0
  %4663 = vmatprep.subr.mxu0 0.0
  %4664 = vmatpush1.xpose.msra.mxu0 0.0
  %4665 = vmatprep.subr.mxu0 0.0
  %4666 = vmatpush1.xpose.msra.mxu0 0.0
  %4667 = vmatprep.subr.mxu0 0.0
  %4668 = vmatpush1.xpose.msra.mxu0 0.0
  %4669 = vmatprep.subr.mxu0 0.0
  %4670 = vmatpush1.xpose.msra.mxu0 0.0
  %4671 = vmatprep.subr.mxu0 0.0
  %4672 = vmatpush1.xpose.msra.mxu0 0.0
  %4673 = vmatprep.subr.mxu0 0.0
  %4674 = vmatpush1.xpose.msra.mxu0 0.0
  %4675 = vmatprep.subr.mxu0 0.0
  %4676 = vmatpush1.xpose.msra.mxu0 0.0
  %4677 = vmatprep.subr.mxu0 0.0
  %4678 = vmatpush1.xpose.msra.mxu0 0.0
  %4679 = vmatprep.subr.mxu0 0.0
  %4680 = vmatpush1.xpose.msra.mxu0 0.0
  %4681 = vmatprep.subr.mxu0 0.0
  %4682 = vmatpush1.xpose.msra.mxu0 0.0
  %4683 = vmatprep.subr.mxu0 0.0
  %4684 = vmatpush1.xpose.msra.mxu0 0.0
  %4685 = vmatprep.subr.mxu0 0.0
  %4686 = vmatpush1.xpose.msra.mxu0 0.0
  %4687 = vmatprep.subr.mxu0 0.0
  %4688 = vmatpush1.xpose.msra.mxu0 0.0
  %4689 = vmatprep.subr.mxu0 0.0
  %4690 = vmatpush1.xpose.msra.mxu0 0.0
  %4691 = vmatprep.subr.mxu0 0.0
  %4692 = vmatpush1.xpose.msra.mxu0 0.0
  %4693 = vmatprep.subr.mxu0 0.0
  %4694 = vmatpush1.xpose.msra.mxu0 0.0
  %4695 = vmatprep.subr.mxu0 0.0
  %4696 = vmatpush1.xpose.msra.mxu0 0.0
  %4697 = vmatprep.subr.mxu0 0.0
  %4698 = vmatpush1.xpose.msra.mxu0 0.0
  %4699 = vmatprep.subr.mxu0 0.0
  %4700 = vmatpush1.xpose.msra.mxu0 0.0
  %4701 = vmatprep.subr.mxu0 0.0
  %4702 = vmatpush1.xpose.msra.mxu0 0.0
  %4703 = vmatprep.mubr.f32.mxu0 0.0
  %4704 = vmatmul.mubr.f32.gmra.mrb[0].mxu0 %v4634
  %v4705 = vpop.f32.mrb[0].mxu0
  %v4706 = vadd.f32 0.0, %v4705
  %v4707 = vpop.f32.mrb[0].mxu0
  %4708 = vdwg.mxu0
  %v4709 = vmul.f32 %v4706, 0.4082483
  %v4710 = vadd.f32 %v4709, %v3404
  %v4711 = vsel %vm3731, %v4710, -inf
  %4712 = vmax.xlane.f32.xlu0 %v4711
  %v4713 = vpop.xlane.xlu0 %4712
  %v4714 = vsub.f32 %v4710, %v4713
  %v4715 = vmul.f32 %v4714, 1.442695
  %v4716 = vpow.pop %v4715
  %v4717 = vsel %vm3731, %v4716, 0.0
  %4718 = vadd.xlane.f32.xlu0 %v4717
  %v4719 = vpop.xlane.xlu0 %4718
  %v4720 = vrcp.pop %v4719
  %v4721 = vmul.f32 %v4716, %v4720
  %v4723 = vsel %vm3731, %v4721, 0
  %4725 = vmatprep.subr.mxu0 0.0
  %4726 = vmatpush1.msra.mxu0 %v4630
  %4727 = vmatprep.subr.mxu0 0.0
  %4728 = vmatpush1.msra.mxu0 0.0
  %4729 = vmatprep.subr.mxu0 0.0
  %4730 = vmatpush1.msra.mxu0 0.0
  %4731 = vmatprep.subr.mxu0 0.0
  %4732 = vmatpush1.msra.mxu0 0.0
  %4733 = vmatprep.subr.mxu0 0.0
  %4734 = vmatpush1.msra.mxu0 0.0
  %4735 = vmatprep.subr.mxu0 0.0
  %4736 = vmatpush1.msra.mxu0 0.0
  %4737 = vmatprep.subr.mxu0 0.0
  %4738 = vmatpush1.msra.mxu0 0.0
  %4739 = vmatprep.subr.mxu0 0.0
  %4740 = vmatpush1.msra.mxu0 0.0
  %4741 = vmatprep.subr.mxu0 0.0
  %4742 = vmatpush1.msra.mxu0 0.0
  %4743 = vmatprep.subr.mxu0 0.0
  %4744 = vmatpush1.msra.mxu0 0.0
  %4745 = vmatprep.subr.mxu0 0.0
  %4746 = vmatpush1.msra.mxu0 0.0
  %4747 = vmatprep.subr.mxu0 0.0
  %4748 = vmatpush1.msra.mxu0 0.0
  %4749 = vmatprep.subr.mxu0 0.0
  %4750 = vmatpush1.msra.mxu0 0.0
  %4751 = vmatprep.subr.mxu0 0.0
  %4752 = vmatpush1.msra.mxu0 0.0
  %4753 = vmatprep.subr.mxu0 0.0
  %4754 = vmatpush1.msra.mxu0 0.0
  %4755 = vmatprep.subr.mxu0 0.0
  %4756 = vmatpush1.msra.mxu0 0.0
  %4757 = vmatprep.subr.mxu0 0.0
  %4758 = vmatpush1.msra.mxu0 0.0
  %4759 = vmatprep.subr.mxu0 0.0
  %4760 = vmatpush1.msra.mxu0 0.0
  %4761 = vmatprep.subr.mxu0 0.0
  %4762 = vmatpush1.msra.mxu0 0.0
  %4763 = vmatprep.subr.mxu0 0.0
  %4764 = vmatpush1.msra.mxu0 0.0
  %4765 = vmatprep.subr.mxu0 0.0
  %4766 = vmatpush1.msra.mxu0 0.0
  %4767 = vmatprep.subr.mxu0 0.0
  %4768 = vmatpush1.msra.mxu0 0.0
  %4769 = vmatprep.subr.mxu0 0.0
  %4770 = vmatpush1.msra.mxu0 0.0
  %4771 = vmatprep.subr.mxu0 0.0
  %4772 = vmatpush1.msra.mxu0 0.0
  %4773 = vmatprep.subr.mxu0 0.0
  %4774 = vmatpush1.msra.mxu0 0.0
  %4775 = vmatprep.subr.mxu0 0.0
  %4776 = vmatpush1.msra.mxu0 0.0
  %4777 = vmatprep.subr.mxu0 0.0
  %4778 = vmatpush1.msra.mxu0 0.0
  %4779 = vmatprep.subr.mxu0 0.0
  %4780 = vmatpush1.msra.mxu0 0.0
  %4781 = vmatprep.subr.mxu0 0.0
  %4782 = vmatpush1.msra.mxu0 0.0
  %4783 = vmatprep.subr.mxu0 0.0
  %4784 = vmatpush1.msra.mxu0 0.0
  %4785 = vmatprep.subr.mxu0 0.0
  %4786 = vmatpush1.msra.mxu0 0.0
  %4787 = vmatprep.subr.mxu0 0.0
  %4788 = vmatpush1.msra.mxu0 0.0
  %4789 = vmatprep.mubr.f32.mxu0 0.0
  %4790 = vmatmul.mubr.f32.gmra.mrb[0].mxu0 %v4723
  %v4791 = vpop.f32.mrb[0].mxu0
  %v4792 = vadd.f32 0.0, %v4791
  %v4793 = vpop.f32.mrb[0].mxu0
  %4794 = vdwg.mxu0
  %s4795 = scalar_lea.vmem %s39, 16
  %v4796 = vld [vmem:[%s4795] sm:$0x3f]
  %v4798 = vsel %vm129, %v4792, 0
  %v4801 = vsel %vm136, %v4796, 0
  %4803 = vmatprep.subr.mxu0 0.0
  %4804 = vmatpush1.msra.mxu0 %v4801
  %4805 = vmatprep.subr.mxu0 0.0
  %4806 = vmatpush1.msra.mxu0 0.0
  %4807 = vmatprep.subr.mxu0 0.0
  %4808 = vmatpush1.msra.mxu0 0.0
  %4809 = vmatprep.subr.mxu0 0.0
  %4810 = vmatpush1.msra.mxu0 0.0
  %4811 = vmatprep.subr.mxu0 0.0
  %4812 = vmatpush1.msra.mxu0 0.0
  %4813 = vmatprep.subr.mxu0 0.0
  %4814 = vmatpush1.msra.mxu0 0.0
  %4815 = vmatprep.subr.mxu0 0.0
  %4816 = vmatpush1.msra.mxu0 0.0
  %4817 = vmatprep.subr.mxu0 0.0
  %4818 = vmatpush1.msra.mxu0 0.0
  %4819 = vmatprep.subr.mxu0 0.0
  %4820 = vmatpush1.msra.mxu0 0.0
  %4821 = vmatprep.subr.mxu0 0.0
  %4822 = vmatpush1.msra.mxu0 0.0
  %4823 = vmatprep.subr.mxu0 0.0
  %4824 = vmatpush1.msra.mxu0 0.0
  %4825 = vmatprep.subr.mxu0 0.0
  %4826 = vmatpush1.msra.mxu0 0.0
  %4827 = vmatprep.subr.mxu0 0.0
  %4828 = vmatpush1.msra.mxu0 0.0
  %4829 = vmatprep.subr.mxu0 0.0
  %4830 = vmatpush1.msra.mxu0 0.0
  %4831 = vmatprep.subr.mxu0 0.0
  %4832 = vmatpush1.msra.mxu0 0.0
  %4833 = vmatprep.subr.mxu0 0.0
  %4834 = vmatpush1.msra.mxu0 0.0
  %4835 = vmatprep.subr.mxu0 0.0
  %4836 = vmatpush1.msra.mxu0 0.0
  %4837 = vmatprep.subr.mxu0 0.0
  %4838 = vmatpush1.msra.mxu0 0.0
  %4839 = vmatprep.subr.mxu0 0.0
  %4840 = vmatpush1.msra.mxu0 0.0
  %4841 = vmatprep.subr.mxu0 0.0
  %4842 = vmatpush1.msra.mxu0 0.0
  %4843 = vmatprep.subr.mxu0 0.0
  %4844 = vmatpush1.msra.mxu0 0.0
  %4845 = vmatprep.subr.mxu0 0.0
  %4846 = vmatpush1.msra.mxu0 0.0
  %4847 = vmatprep.subr.mxu0 0.0
  %4848 = vmatpush1.msra.mxu0 0.0
  %4849 = vmatprep.subr.mxu0 0.0
  %4850 = vmatpush1.msra.mxu0 0.0
  %4851 = vmatprep.subr.mxu0 0.0
  %4852 = vmatpush1.msra.mxu0 0.0
  %4853 = vmatprep.subr.mxu0 0.0
  %4854 = vmatpush1.msra.mxu0 0.0
  %4855 = vmatprep.subr.mxu0 0.0
  %4856 = vmatpush1.msra.mxu0 0.0
  %4857 = vmatprep.subr.mxu0 0.0
  %4858 = vmatpush1.msra.mxu0 0.0
  %4859 = vmatprep.subr.mxu0 0.0
  %4860 = vmatpush1.msra.mxu0 0.0
  %4861 = vmatprep.subr.mxu0 0.0
  %4862 = vmatpush1.msra.mxu0 0.0
  %4863 = vmatprep.subr.mxu0 0.0
  %4864 = vmatpush1.msra.mxu0 0.0
  %4865 = vmatprep.subr.mxu0 0.0
  %4866 = vmatpush1.msra.mxu0 0.0
  %4867 = vmatprep.mubr.f32.mxu0 0.0
  %4868 = vmatmul.mubr.f32.gmra.mrb[0].mxu0 %v4798
  %v4869 = vpop.f32.mrb[0].mxu0
  %v4870 = vadd.f32 0.0, %v4869
  %v4871 = vpop.f32.mrb[0].mxu0
  %4872 = vdwg.mxu0
  %v4873 = vadd.f32 %v4386, %v4870
  %s4874 = scalar_lea.vmem %s35, 72
  %v4875 = vld [vmem:[%s4874] sm:$0xff]
  %v4876 = vld [vmem:[%s4874 + $0x8] sm:$0xff]
  %v4877 = vld [vmem:[%s4874 + $0x10] sm:$0xff]
  %s4878 = scalar_lea.vmem %s37, 3
  %v4879 = vld [vmem:[%s4878] sm:$0x1]
  %v4881 = vlaneseq
  %v4882 = vshrl.u32 %v4881, 7
  %v4883 = vsub.s32 0, %v4882
  %v4884 = vrot.slane %v4879, %v4883
  %4886 = vmatprep.subr.mxu0 0.0
  %4887 = vmatpush1.msra.mxu0 %v4875
  %4888 = vmatprep.subr.mxu0 0.0
  %4889 = vmatpush1.msra.mxu0 %v4876
  %4890 = vmatprep.subr.mxu0 0.0
  %4891 = vmatpush1.msra.mxu0 %v4877
  %4892 = vmatprep.subr.mxu0 0.0
  %4893 = vmatpush1.msra.mxu0 0.0
  %4894 = vmatprep.subr.mxu0 0.0
  %4895 = vmatpush1.msra.mxu0 0.0
  %4896 = vmatprep.subr.mxu0 0.0
  %4897 = vmatpush1.msra.mxu0 0.0
  %4898 = vmatprep.subr.mxu0 0.0
  %4899 = vmatpush1.msra.mxu0 0.0
  %4900 = vmatprep.subr.mxu0 0.0
  %4901 = vmatpush1.msra.mxu0 0.0
  %4902 = vmatprep.subr.mxu0 0.0
  %4903 = vmatpush1.msra.mxu0 0.0
  %4904 = vmatprep.subr.mxu0 0.0
  %4905 = vmatpush1.msra.mxu0 0.0
  %4906 = vmatprep.subr.mxu0 0.0
  %4907 = vmatpush1.msra.mxu0 0.0
  %4908 = vmatprep.subr.mxu0 0.0
  %4909 = vmatpush1.msra.mxu0 0.0
  %4910 = vmatprep.subr.mxu0 0.0
  %4911 = vmatpush1.msra.mxu0 0.0
  %4912 = vmatprep.subr.mxu0 0.0
  %4913 = vmatpush1.msra.mxu0 0.0
  %4914 = vmatprep.subr.mxu0 0.0
  %4915 = vmatpush1.msra.mxu0 0.0
  %4916 = vmatprep.subr.mxu0 0.0
  %4917 = vmatpush1.msra.mxu0 0.0
  %4918 = vmatprep.subr.mxu0 0.0
  %4919 = vmatpush1.msra.mxu0 0.0
  %4920 = vmatprep.subr.mxu0 0.0
  %4921 = vmatpush1.msra.mxu0 0.0
  %4922 = vmatprep.subr.mxu0 0.0
  %4923 = vmatpush1.msra.mxu0 0.0
  %4924 = vmatprep.subr.mxu0 0.0
  %4925 = vmatpush1.msra.mxu0 0.0
  %4926 = vmatprep.subr.mxu0 0.0
  %4927 = vmatpush1.msra.mxu0 0.0
  %4928 = vmatprep.subr.mxu0 0.0
  %4929 = vmatpush1.msra.mxu0 0.0
  %4930 = vmatprep.subr.mxu0 0.0
  %4931 = vmatpush1.msra.mxu0 0.0
  %4932 = vmatprep.subr.mxu0 0.0
  %4933 = vmatpush1.msra.mxu0 0.0
  %4934 = vmatprep.subr.mxu0 0.0
  %4935 = vmatpush1.msra.mxu0 0.0
  %4936 = vmatprep.subr.mxu0 0.0
  %4937 = vmatpush1.msra.mxu0 0.0
  %4938 = vmatprep.subr.mxu0 0.0
  %4939 = vmatpush1.msra.mxu0 0.0
  %4940 = vmatprep.subr.mxu0 0.0
  %4941 = vmatpush1.msra.mxu0 0.0
  %4942 = vmatprep.subr.mxu0 0.0
  %4943 = vmatpush1.msra.mxu0 0.0
  %4944 = vmatprep.subr.mxu0 0.0
  %4945 = vmatpush1.msra.mxu0 0.0
  %4946 = vmatprep.subr.mxu0 0.0
  %4947 = vmatpush1.msra.mxu0 0.0
  %4948 = vmatprep.subr.mxu0 0.0
  %4949 = vmatpush1.msra.mxu0 0.0
  %4950 = vmatprep.mubr.f32.mxu0 0.0
  %4951 = vmatmul.mubr.f32.gmra.mrb[0].mxu0 %v3417
  %v4952 = vpop.f32.mrb[0].mxu0
  %v4953 = vadd.f32 %v4884, %v4952
  %v4954 = vpop.f32.mrb[0].mxu0
  %4955 = vdwg.mxu0
  %s4956 = scalar_lea.vmem %s35, 168
  %v4957 = vld [vmem:[%s4956] sm:$0xff]
  %v4958 = vld [vmem:[%s4956 + $0x8] sm:$0xff]
  %v4959 = vld [vmem:[%s4956 + $0x10] sm:$0xff]
  %s4960 = scalar_lea.vmem %s37, 7
  %v4961 = vld [vmem:[%s4960] sm:$0x1]
  %v4963 = vlaneseq
  %v4964 = vshrl.u32 %v4963, 7
  %v4965 = vsub.s32 0, %v4964
  %v4966 = vrot.slane %v4961, %v4965
  %4968 = vmatprep.subr.mxu0 0.0
  %4969 = vmatpush1.msra.mxu0 %v4957
  %4970 = vmatprep.subr.mxu0 0.0
  %4971 = vmatpush1.msra.mxu0 %v4958
  %4972 = vmatprep.subr.mxu0 0.0
  %4973 = vmatpush1.msra.mxu0 %v4959
  %4974 = vmatprep.subr.mxu0 0.0
  %4975 = vmatpush1.msra.mxu0 0.0
  %4976 = vmatprep.subr.mxu0 0.0
  %4977 = vmatpush1.msra.mxu0 0.0
  %4978 = vmatprep.subr.mxu0 0.0
  %4979 = vmatpush1.msra.mxu0 0.0
  %4980 = vmatprep.subr.mxu0 0.0
  %4981 = vmatpush1.msra.mxu0 0.0
  %4982 = vmatprep.subr.mxu0 0.0
  %4983 = vmatpush1.msra.mxu0 0.0
  %4984 = vmatprep.subr.mxu0 0.0
  %4985 = vmatpush1.msra.mxu0 0.0
  %4986 = vmatprep.subr.mxu0 0.0
  %4987 = vmatpush1.msra.mxu0 0.0
  %4988 = vmatprep.subr.mxu0 0.0
  %4989 = vmatpush1.msra.mxu0 0.0
  %4990 = vmatprep.subr.mxu0 0.0
  %4991 = vmatpush1.msra.mxu0 0.0
  %4992 = vmatprep.subr.mxu0 0.0
  %4993 = vmatpush1.msra.mxu0 0.0
  %4994 = vmatprep.subr.mxu0 0.0
  %4995 = vmatpush1.msra.mxu0 0.0
  %4996 = vmatprep.subr.mxu0 0.0
  %4997 = vmatpush1.msra.mxu0 0.0
  %4998 = vmatprep.subr.mxu0 0.0
  %4999 = vmatpush1.msra.mxu0 0.0
  %5000 = vmatprep.subr.mxu0 0.0
  %5001 = vmatpush1.msra.mxu0 0.0
  %5002 = vmatprep.subr.mxu0 0.0
  %5003 = vmatpush1.msra.mxu0 0.0
  %5004 = vmatprep.subr.mxu0 0.0
  %5005 = vmatpush1.msra.mxu0 0.0
  %5006 = vmatprep.subr.mxu0 0.0
  %5007 = vmatpush1.msra.mxu0 0.0
  %5008 = vmatprep.subr.mxu0 0.0
  %5009 = vmatpush1.msra.mxu0 0.0
  %5010 = vmatprep.subr.mxu0 0.0
  %5011 = vmatpush1.msra.mxu0 0.0
  %5012 = vmatprep.subr.mxu0 0.0
  %5013 = vmatpush1.msra.mxu0 0.0
  %5014 = vmatprep.subr.mxu0 0.0
  %5015 = vmatpush1.msra.mxu0 0.0
  %5016 = vmatprep.subr.mxu0 0.0
  %5017 = vmatpush1.msra.mxu0 0.0
  %5018 = vmatprep.subr.mxu0 0.0
  %5019 = vmatpush1.msra.mxu0 0.0
  %5020 = vmatprep.subr.mxu0 0.0
  %5021 = vmatpush1.msra.mxu0 0.0
  %5022 = vmatprep.subr.mxu0 0.0
  %5023 = vmatpush1.msra.mxu0 0.0
  %5024 = vmatprep.subr.mxu0 0.0
  %5025 = vmatpush1.msra.mxu0 0.0
  %5026 = vmatprep.subr.mxu0 0.0
  %5027 = vmatpush1.msra.mxu0 0.0
  %5028 = vmatprep.subr.mxu0 0.0
  %5029 = vmatpush1.msra.mxu0 0.0
  %5030 = vmatprep.subr.mxu0 0.0
  %5031 = vmatpush1.msra.mxu0 0.0
  %5032 = vmatprep.mubr.f32.mxu0 0.0
  %5033 = vmatmul.mubr.f32.gmra.mrb[0].mxu0 %v3417
  %v5034 = vpop.f32.mrb[0].mxu0
  %v5035 = vadd.f32 %v4966, %v5034
  %v5036 = vpop.f32.mrb[0].mxu0
  %5037 = vdwg.mxu0
  %s5038 = scalar_lea.vmem %s35, 264
  %v5039 = vld [vmem:[%s5038] sm:$0xff]
  %v5040 = vld [vmem:[%s5038 + $0x8] sm:$0xff]
  %v5041 = vld [vmem:[%s5038 + $0x10] sm:$0xff]
  %s5042 = scalar_lea.vmem %s37, 11
  %v5043 = vld [vmem:[%s5042] sm:$0x1]
  %v5045 = vlaneseq
  %v5046 = vshrl.u32 %v5045, 7
  %v5047 = vsub.s32 0, %v5046
  %v5048 = vrot.slane %v5043, %v5047
  %5050 = vmatprep.subr.mxu0 0.0
  %5051 = vmatpush1.msra.mxu0 %v5039
  %5052 = vmatprep.subr.mxu0 0.0
  %5053 = vmatpush1.msra.mxu0 %v5040
  %5054 = vmatprep.subr.mxu0 0.0
  %5055 = vmatpush1.msra.mxu0 %v5041
  %5056 = vmatprep.subr.mxu0 0.0
  %5057 = vmatpush1.msra.mxu0 0.0
  %5058 = vmatprep.subr.mxu0 0.0
  %5059 = vmatpush1.msra.mxu0 0.0
  %5060 = vmatprep.subr.mxu0 0.0
  %5061 = vmatpush1.msra.mxu0 0.0
  %5062 = vmatprep.subr.mxu0 0.0
  %5063 = vmatpush1.msra.mxu0 0.0
  %5064 = vmatprep.subr.mxu0 0.0
  %5065 = vmatpush1.msra.mxu0 0.0
  %5066 = vmatprep.subr.mxu0 0.0
  %5067 = vmatpush1.msra.mxu0 0.0
  %5068 = vmatprep.subr.mxu0 0.0
  %5069 = vmatpush1.msra.mxu0 0.0
  %5070 = vmatprep.subr.mxu0 0.0
  %5071 = vmatpush1.msra.mxu0 0.0
  %5072 = vmatprep.subr.mxu0 0.0
  %5073 = vmatpush1.msra.mxu0 0.0
  %5074 = vmatprep.subr.mxu0 0.0
  %5075 = vmatpush1.msra.mxu0 0.0
  %5076 = vmatprep.subr.mxu0 0.0
  %5077 = vmatpush1.msra.mxu0 0.0
  %5078 = vmatprep.subr.mxu0 0.0
  %5079 = vmatpush1.msra.mxu0 0.0
  %5080 = vmatprep.subr.mxu0 0.0
  %5081 = vmatpush1.msra.mxu0 0.0
  %5082 = vmatprep.subr.mxu0 0.0
  %5083 = vmatpush1.msra.mxu0 0.0
  %5084 = vmatprep.subr.mxu0 0.0
  %5085 = vmatpush1.msra.mxu0 0.0
  %5086 = vmatprep.subr.mxu0 0.0
  %5087 = vmatpush1.msra.mxu0 0.0
  %5088 = vmatprep.subr.mxu0 0.0
  %5089 = vmatpush1.msra.mxu0 0.0
  %5090 = vmatprep.subr.mxu0 0.0
  %5091 = vmatpush1.msra.mxu0 0.0
  %5092 = vmatprep.subr.mxu0 0.0
  %5093 = vmatpush1.msra.mxu0 0.0
  %5094 = vmatprep.subr.mxu0 0.0
  %5095 = vmatpush1.msra.mxu0 0.0
  %5096 = vmatprep.subr.mxu0 0.0
  %5097 = vmatpush1.msra.mxu0 0.0
  %5098 = vmatprep.subr.mxu0 0.0
  %5099 = vmatpush1.msra.mxu0 0.0
  %5100 = vmatprep.subr.mxu0 0.0
  %5101 = vmatpush1.msra.mxu0 0.0
  %5102 = vmatprep.subr.mxu0 0.0
  %5103 = vmatpush1.msra.mxu0 0.0
  %5104 = vmatprep.subr.mxu0 0.0
  %5105 = vmatpush1.msra.mxu0 0.0
  %5106 = vmatprep.subr.mxu0 0.0
  %5107 = vmatpush1.msra.mxu0 0.0
  %5108 = vmatprep.subr.mxu0 0.0
  %5109 = vmatpush1.msra.mxu0 0.0
  %5110 = vmatprep.subr.mxu0 0.0
  %5111 = vmatpush1.msra.mxu0 0.0
  %5112 = vmatprep.subr.mxu0 0.0
  %5113 = vmatpush1.msra.mxu0 0.0
  %5114 = vmatprep.mubr.f32.mxu0 0.0
  %5115 = vmatmul.mubr.f32.gmra.mrb[0].mxu0 %v3417
  %v5116 = vpop.f32.mrb[0].mxu0
  %v5117 = vadd.f32 %v5048, %v5116
  %v5118 = vpop.f32.mrb[0].mxu0
  %5119 = vdwg.mxu0
  %v5121 = vsel %vm129, %v4953, 0
  %v5124 = vsel %vm129, %v5035, 0
  %5126 = vmatprep.subr.mxu0 0.0
  %5127 = vmatpush1.xpose.msra.mxu0 %v5124
  %5128 = vmatprep.subr.mxu0 0.0
  %5129 = vmatpush1.xpose.msra.mxu0 0.0
  %5130 = vmatprep.subr.mxu0 0.0
  %5131 = vmatpush1.xpose.msra.mxu0 0.0
  %5132 = vmatprep.subr.mxu0 0.0
  %5133 = vmatpush1.xpose.msra.mxu0 0.0
  %5134 = vmatprep.subr.mxu0 0.0
  %5135 = vmatpush1.xpose.msra.mxu0 0.0
  %5136 = vmatprep.subr.mxu0 0.0
  %5137 = vmatpush1.xpose.msra.mxu0 0.0
  %5138 = vmatprep.subr.mxu0 0.0
  %5139 = vmatpush1.xpose.msra.mxu0 0.0
  %5140 = vmatprep.subr.mxu0 0.0
  %5141 = vmatpush1.xpose.msra.mxu0 0.0
  %5142 = vmatprep.subr.mxu0 0.0
  %5143 = vmatpush1.xpose.msra.mxu0 0.0
  %5144 = vmatprep.subr.mxu0 0.0
  %5145 = vmatpush1.xpose.msra.mxu0 0.0
  %5146 = vmatprep.subr.mxu0 0.0
  %5147 = vmatpush1.xpose.msra.mxu0 0.0
  %5148 = vmatprep.subr.mxu0 0.0
  %5149 = vmatpush1.xpose.msra.mxu0 0.0
  %5150 = vmatprep.subr.mxu0 0.0
  %5151 = vmatpush1.xpose.msra.mxu0 0.0
  %5152 = vmatprep.subr.mxu0 0.0
  %5153 = vmatpush1.xpose.msra.mxu0 0.0
  %5154 = vmatprep.subr.mxu0 0.0
  %5155 = vmatpush1.xpose.msra.mxu0 0.0
  %5156 = vmatprep.subr.mxu0 0.0
  %5157 = vmatpush1.xpose.msra.mxu0 0.0
  %5158 = vmatprep.subr.mxu0 0.0
  %5159 = vmatpush1.xpose.msra.mxu0 0.0
  %5160 = vmatprep.subr.mxu0 0.0
  %5161 = vmatpush1.xpose.msra.mxu0 0.0
  %5162 = vmatprep.subr.mxu0 0.0
  %5163 = vmatpush1.xpose.msra.mxu0 0.0
  %5164 = vmatprep.subr.mxu0 0.0
  %5165 = vmatpush1.xpose.msra.mxu0 0.0
  %5166 = vmatprep.subr.mxu0 0.0
  %5167 = vmatpush1.xpose.msra.mxu0 0.0
  %5168 = vmatprep.subr.mxu0 0.0
  %5169 = vmatpush1.xpose.msra.mxu0 0.0
  %5170 = vmatprep.subr.mxu0 0.0
  %5171 = vmatpush1.xpose.msra.mxu0 0.0
  %5172 = vmatprep.subr.mxu0 0.0
  %5173 = vmatpush1.xpose.msra.mxu0 0.0
  %5174 = vmatprep.subr.mxu0 0.0
  %5175 = vmatpush1.xpose.msra.mxu0 0.0
  %5176 = vmatprep.subr.mxu0 0.0
  %5177 = vmatpush1.xpose.msra.mxu0 0.0
  %5178 = vmatprep.subr.mxu0 0.0
  %5179 = vmatpush1.xpose.msra.mxu0 0.0
  %5180 = vmatprep.subr.mxu0 0.0
  %5181 = vmatpush1.xpose.msra.mxu0 0.0
  %5182 = vmatprep.subr.mxu0 0.0
  %5183 = vmatpush1.xpose.msra.mxu0 0.0
  %5184 = vmatprep.subr.mxu0 0.0
  %5185 = vmatpush1.xpose.msra.mxu0 0.0
  %5186 = vmatprep.subr.mxu0 0.0
  %5187 = vmatpush1.xpose.msra.mxu0 0.0
  %5188 = vmatprep.subr.mxu0 0.0
  %5189 = vmatpush1.xpose.msra.mxu0 0.0
  %5190 = vmatprep.mubr.f32.mxu0 0.0
  %5191 = vmatmul.mubr.f32.gmra.mrb[0].mxu0 %v5121
  %v5192 = vpop.f32.mrb[0].mxu0
  %v5193 = vadd.f32 0.0, %v5192
  %v5194 = vpop.f32.mrb[0].mxu0
  %5195 = vdwg.mxu0
  %v5196 = vmul.f32 %v5193, 0.4082483
  %v5197 = vadd.f32 %v5196, %v3404
  %v5198 = vsel %vm3731, %v5197, -inf
  %5199 = vmax.xlane.f32.xlu0 %v5198
  %v5200 = vpop.xlane.xlu0 %5199
  %v5201 = vsub.f32 %v5197, %v5200
  %v5202 = vmul.f32 %v5201, 1.442695
  %v5203 = vpow.pop %v5202
  %v5204 = vsel %vm3731, %v5203, 0.0
  %5205 = vadd.xlane.f32.xlu0 %v5204
  %v5206 = vpop.xlane.xlu0 %5205
  %v5207 = vrcp.pop %v5206
  %v5208 = vmul.f32 %v5203, %v5207
  %v5210 = vsel %vm3731, %v5208, 0
  %5212 = vmatprep.subr.mxu0 0.0
  %5213 = vmatpush1.msra.mxu0 %v5117
  %5214 = vmatprep.subr.mxu0 0.0
  %5215 = vmatpush1.msra.mxu0 0.0
  %5216 = vmatprep.subr.mxu0 0.0
  %5217 = vmatpush1.msra.mxu0 0.0
  %5218 = vmatprep.subr.mxu0 0.0
  %5219 = vmatpush1.msra.mxu0 0.0
  %5220 = vmatprep.subr.mxu0 0.0
  %5221 = vmatpush1.msra.mxu0 0.0
  %5222 = vmatprep.subr.mxu0 0.0
  %5223 = vmatpush1.msra.mxu0 0.0
  %5224 = vmatprep.subr.mxu0 0.0
  %5225 = vmatpush1.msra.mxu0 0.0
  %5226 = vmatprep.subr.mxu0 0.0
  %5227 = vmatpush1.msra.mxu0 0.0
  %5228 = vmatprep.subr.mxu0 0.0
  %5229 = vmatpush1.msra.mxu0 0.0
  %5230 = vmatprep.subr.mxu0 0.0
  %5231 = vmatpush1.msra.mxu0 0.0
  %5232 = vmatprep.subr.mxu0 0.0
  %5233 = vmatpush1.msra.mxu0 0.0
  %5234 = vmatprep.subr.mxu0 0.0
  %5235 = vmatpush1.msra.mxu0 0.0
  %5236 = vmatprep.subr.mxu0 0.0
  %5237 = vmatpush1.msra.mxu0 0.0
  %5238 = vmatprep.subr.mxu0 0.0
  %5239 = vmatpush1.msra.mxu0 0.0
  %5240 = vmatprep.subr.mxu0 0.0
  %5241 = vmatpush1.msra.mxu0 0.0
  %5242 = vmatprep.subr.mxu0 0.0
  %5243 = vmatpush1.msra.mxu0 0.0
  %5244 = vmatprep.subr.mxu0 0.0
  %5245 = vmatpush1.msra.mxu0 0.0
  %5246 = vmatprep.subr.mxu0 0.0
  %5247 = vmatpush1.msra.mxu0 0.0
  %5248 = vmatprep.subr.mxu0 0.0
  %5249 = vmatpush1.msra.mxu0 0.0
  %5250 = vmatprep.subr.mxu0 0.0
  %5251 = vmatpush1.msra.mxu0 0.0
  %5252 = vmatprep.subr.mxu0 0.0
  %5253 = vmatpush1.msra.mxu0 0.0
  %5254 = vmatprep.subr.mxu0 0.0
  %5255 = vmatpush1.msra.mxu0 0.0
  %5256 = vmatprep.subr.mxu0 0.0
  %5257 = vmatpush1.msra.mxu0 0.0
  %5258 = vmatprep.subr.mxu0 0.0
  %5259 = vmatpush1.msra.mxu0 0.0
  %5260 = vmatprep.subr.mxu0 0.0
  %5261 = vmatpush1.msra.mxu0 0.0
  %5262 = vmatprep.subr.mxu0 0.0
  %5263 = vmatpush1.msra.mxu0 0.0
  %5264 = vmatprep.subr.mxu0 0.0
  %5265 = vmatpush1.msra.mxu0 0.0
  %5266 = vmatprep.subr.mxu0 0.0
  %5267 = vmatpush1.msra.mxu0 0.0
  %5268 = vmatprep.subr.mxu0 0.0
  %5269 = vmatpush1.msra.mxu0 0.0
  %5270 = vmatprep.subr.mxu0 0.0
  %5271 = vmatpush1.msra.mxu0 0.0
  %5272 = vmatprep.subr.mxu0 0.0
  %5273 = vmatpush1.msra.mxu0 0.0
  %5274 = vmatprep.subr.mxu0 0.0
  %5275 = vmatpush1.msra.mxu0 0.0
  %5276 = vmatprep.mubr.f32.mxu0 0.0
  %5277 = vmatmul.mubr.f32.gmra.mrb[0].mxu0 %v5210
  %v5278 = vpop.f32.mrb[0].mxu0
  %v5279 = vadd.f32 0.0, %v5278
  %v5280 = vpop.f32.mrb[0].mxu0
  %5281 = vdwg.mxu0
  %s5282 = scalar_lea.vmem %s39, 24
  %v5283 = vld [vmem:[%s5282] sm:$0x3f]
  %v5285 = vsel %vm129, %v5279, 0
  %v5288 = vsel %vm136, %v5283, 0
  %5290 = vmatprep.subr.mxu0 0.0
  %5291 = vmatpush1.msra.mxu0 %v5288
  %5292 = vmatprep.subr.mxu0 0.0
  %5293 = vmatpush1.msra.mxu0 0.0
  %5294 = vmatprep.subr.mxu0 0.0
  %5295 = vmatpush1.msra.mxu0 0.0
  %5296 = vmatprep.subr.mxu0 0.0
  %5297 = vmatpush1.msra.mxu0 0.0
  %5298 = vmatprep.subr.mxu0 0.0
  %5299 = vmatpush1.msra.mxu0 0.0
  %5300 = vmatprep.subr.mxu0 0.0
  %5301 = vmatpush1.msra.mxu0 0.0
  %5302 = vmatprep.subr.mxu0 0.0
  %5303 = vmatpush1.msra.mxu0 0.0
  %5304 = vmatprep.subr.mxu0 0.0
  %5305 = vmatpush1.msra.mxu0 0.0
  %5306 = vmatprep.subr.mxu0 0.0
  %5307 = vmatpush1.msra.mxu0 0.0
  %5308 = vmatprep.subr.mxu0 0.0
  %5309 = vmatpush1.msra.mxu0 0.0
  %5310 = vmatprep.subr.mxu0 0.0
  %5311 = vmatpush1.msra.mxu0 0.0
  %5312 = vmatprep.subr.mxu0 0.0
  %5313 = vmatpush1.msra.mxu0 0.0
  %5314 = vmatprep.subr.mxu0 0.0
  %5315 = vmatpush1.msra.mxu0 0.0
  %5316 = vmatprep.subr.mxu0 0.0
  %5317 = vmatpush1.msra.mxu0 0.0
  %5318 = vmatprep.subr.mxu0 0.0
  %5319 = vmatpush1.msra.mxu0 0.0
  %5320 = vmatprep.subr.mxu0 0.0
  %5321 = vmatpush1.msra.mxu0 0.0
  %5322 = vmatprep.subr.mxu0 0.0
  %5323 = vmatpush1.msra.mxu0 0.0
  %5324 = vmatprep.subr.mxu0 0.0
  %5325 = vmatpush1.msra.mxu0 0.0
  %5326 = vmatprep.subr.mxu0 0.0
  %5327 = vmatpush1.msra.mxu0 0.0
  %5328 = vmatprep.subr.mxu0 0.0
  %5329 = vmatpush1.msra.mxu0 0.0
  %5330 = vmatprep.subr.mxu0 0.0
  %5331 = vmatpush1.msra.mxu0 0.0
  %5332 = vmatprep.subr.mxu0 0.0
  %5333 = vmatpush1.msra.mxu0 0.0
  %5334 = vmatprep.subr.mxu0 0.0
  %5335 = vmatpush1.msra.mxu0 0.0
  %5336 = vmatprep.subr.mxu0 0.0
  %5337 = vmatpush1.msra.mxu0 0.0
  %5338 = vmatprep.subr.mxu0 0.0
  %5339 = vmatpush1.msra.mxu0 0.0
  %5340 = vmatprep.subr.mxu0 0.0
  %5341 = vmatpush1.msra.mxu0 0.0
  %5342 = vmatprep.subr.mxu0 0.0
  %5343 = vmatpush1.msra.mxu0 0.0
  %5344 = vmatprep.subr.mxu0 0.0
  %5345 = vmatpush1.msra.mxu0 0.0
  %5346 = vmatprep.subr.mxu0 0.0
  %5347 = vmatpush1.msra.mxu0 0.0
  %5348 = vmatprep.subr.mxu0 0.0
  %5349 = vmatpush1.msra.mxu0 0.0
  %5350 = vmatprep.subr.mxu0 0.0
  %5351 = vmatpush1.msra.mxu0 0.0
  %5352 = vmatprep.subr.mxu0 0.0
  %5353 = vmatpush1.msra.mxu0 0.0
  %5354 = vmatprep.mubr.f32.mxu0 0.0
  %5355 = vmatmul.mubr.f32.gmra.mrb[0].mxu0 %v5285
  %v5356 = vpop.f32.mrb[0].mxu0
  %v5357 = vadd.f32 0.0, %v5356
  %v5358 = vpop.f32.mrb[0].mxu0
  %5359 = vdwg.mxu0
  %v5360 = vadd.f32 %v4873, %v5357
  %v5361 = vadd.f32 %v3403, %v5360
  %v5362 = vld [vmem:[%s47] sm:$0x1]
  %s5363 = scalar_lea.vmem %s47, 1
  %v5364 = vld [vmem:[%s5363] sm:$0x1]
  %v5365 = vsel %vm228, %v5361, 0.0
  %5366 = vadd.xlane.f32.xlu0 %v5365
  %v5367 = vpop.xlane.xlu0 %5366
  %v5368 = vmul.f32 %v5367, %v2412
  %v5369 = vsub.f32 %v5361, %v5368
  %v5370 = vmul.f32 %v5369, %v5369
  %v5371 = vsel %vm228, %v5370, 0.0
  %5372 = vadd.xlane.f32.xlu0 %v5371
  %v5373 = vpop.xlane.xlu0 %5372
  %v5374 = vmul.f32 %v5373, %v2412
  %v5375 = vadd.f32 %v5374, 1e-05
  %v5376 = vrsqrt.pop %v5375
  %v5377 = vmul.f32 %v5369, %v5376
  %v5379 = vlaneseq
  %v5380 = vshrl.u32 %v5379, 7
  %v5381 = vsub.s32 0, %v5380
  %v5382 = vrot.slane %v5362, %v5381
  %v5384 = vmul.f32 %v5377, %v5382
  %v5386 = vlaneseq
  %v5387 = vshrl.u32 %v5386, 7
  %v5388 = vsub.s32 0, %v5387
  %v5389 = vrot.slane %v5364, %v5388
  %v5391 = vadd.f32 %v5384, %v5389
  %v5392 = vld [vmem:[%s43] sm:$0xff]
  %v5393 = vld [vmem:[%s43 + $0x8] sm:$0xff]
  %v5394 = vld [vmem:[%s43 + $0x10] sm:$0xff]
  %v5395 = vld [vmem:[%s45] sm:$0x1]
  %v5397 = vlaneseq
  %v5398 = vshrl.u32 %v5397, 7
  %v5399 = vsub.s32 0, %v5398
  %v5400 = vrot.slane %v5395, %v5399
  %v5403 = vsel %vm228, %v5391, 0
  %5405 = vmatprep.subr.mxu0 0.0
  %5406 = vmatpush1.msra.mxu0 %v5392
  %5407 = vmatprep.subr.mxu0 0.0
  %5408 = vmatpush1.msra.mxu0 %v5393
  %5409 = vmatprep.subr.mxu0 0.0
  %5410 = vmatpush1.msra.mxu0 %v5394
  %5411 = vmatprep.subr.mxu0 0.0
  %5412 = vmatpush1.msra.mxu0 0.0
  %5413 = vmatprep.subr.mxu0 0.0
  %5414 = vmatpush1.msra.mxu0 0.0
  %5415 = vmatprep.subr.mxu0 0.0
  %5416 = vmatpush1.msra.mxu0 0.0
  %5417 = vmatprep.subr.mxu0 0.0
  %5418 = vmatpush1.msra.mxu0 0.0
  %5419 = vmatprep.subr.mxu0 0.0
  %5420 = vmatpush1.msra.mxu0 0.0
  %5421 = vmatprep.subr.mxu0 0.0
  %5422 = vmatpush1.msra.mxu0 0.0
  %5423 = vmatprep.subr.mxu0 0.0
  %5424 = vmatpush1.msra.mxu0 0.0
  %5425 = vmatprep.subr.mxu0 0.0
  %5426 = vmatpush1.msra.mxu0 0.0
  %5427 = vmatprep.subr.mxu0 0.0
  %5428 = vmatpush1.msra.mxu0 0.0
  %5429 = vmatprep.subr.mxu0 0.0
  %5430 = vmatpush1.msra.mxu0 0.0
  %5431 = vmatprep.subr.mxu0 0.0
  %5432 = vmatpush1.msra.mxu0 0.0
  %5433 = vmatprep.subr.mxu0 0.0
  %5434 = vmatpush1.msra.mxu0 0.0
  %5435 = vmatprep.subr.mxu0 0.0
  %5436 = vmatpush1.msra.mxu0 0.0
  %5437 = vmatprep.subr.mxu0 0.0
  %5438 = vmatpush1.msra.mxu0 0.0
  %5439 = vmatprep.subr.mxu0 0.0
  %5440 = vmatpush1.msra.mxu0 0.0
  %5441 = vmatprep.subr.mxu0 0.0
  %5442 = vmatpush1.msra.mxu0 0.0
  %5443 = vmatprep.subr.mxu0 0.0
  %5444 = vmatpush1.msra.mxu0 0.0
  %5445 = vmatprep.subr.mxu0 0.0
  %5446 = vmatpush1.msra.mxu0 0.0
  %5447 = vmatprep.subr.mxu0 0.0
  %5448 = vmatpush1.msra.mxu0 0.0
  %5449 = vmatprep.subr.mxu0 0.0
  %5450 = vmatpush1.msra.mxu0 0.0
  %5451 = vmatprep.subr.mxu0 0.0
  %5452 = vmatpush1.msra.mxu0 0.0
  %5453 = vmatprep.subr.mxu0 0.0
  %5454 = vmatpush1.msra.mxu0 0.0
  %5455 = vmatprep.subr.mxu0 0.0
  %5456 = vmatpush1.msra.mxu0 0.0
  %5457 = vmatprep.subr.mxu0 0.0
  %5458 = vmatpush1.msra.mxu0 0.0
  %5459 = vmatprep.subr.mxu0 0.0
  %5460 = vmatpush1.msra.mxu0 0.0
  %5461 = vmatprep.subr.mxu0 0.0
  %5462 = vmatpush1.msra.mxu0 0.0
  %5463 = vmatprep.subr.mxu0 0.0
  %5464 = vmatpush1.msra.mxu0 0.0
  %5465 = vmatprep.subr.mxu0 0.0
  %5466 = vmatpush1.msra.mxu0 0.0
  %5467 = vmatprep.subr.mxu0 0.0
  %5468 = vmatpush1.msra.mxu0 0.0
  %5469 = vmatprep.mubr.f32.mxu0 0.0
  %5470 = vmatmul.mubr.f32.gmra.mrb[0].mxu0 %v5403
  %v5471 = vpop.f32.mrb[0].mxu0
  %v5472 = vadd.f32 %v5400, %v5471
  %v5473 = vpop.f32.mrb[0].mxu0
  %5474 = vdwg.mxu0
  %v5475 = vmul.f32 %v5472, 0.5
  %v5476 = vmul.f32 %v5472, 0.70710677
  %vm5477 = vcmp.ge.f32.partialorder %v5476, 0.0
  %v5478 = vsel %vm5477, 1.0, -1.0
  %v5479 = vand.u32 2147483647, %v5476
  %v5480 = vmul.f32 %v5479, 0.3275911
  %v5481 = vadd.f32 %v5480, 1.0
  %v5482 = vrcp.pop %v5481
  %v5483 = vmul.f32 1.0, %v5482
  %v5484 = vmul.f32 %v5483, 1.0614054
  %v5485 = vadd.f32 %v5484, -1.4531521
  %v5486 = vmul.f32 %v5485, %v5483
  %v5487 = vadd.f32 %v5486, 1.4214138
  %v5488 = vmul.f32 %v5487, %v5483
  %v5489 = vadd.f32 %v5488, -0.28449672
  %v5490 = vmul.f32 %v5489, %v5483
  %v5491 = vadd.f32 %v5490, 0.2548296
  %v5492 = vmul.f32 %v5491, %v5483
  %v5493 = vsub.f32 0.0, %v5479
  %v5494 = vmul.f32 %v5493, %v5479
  %v5495 = vmul.f32 %v5494, 1.442695
  %v5496 = vpow.pop %v5495
  %v5497 = vmul.f32 %v5492, %v5496
  %v5498 = vsub.f32 1.0, %v5497
  %v5499 = vmul.f32 %v5478, %v5498
  %v5500 = vadd.f32 %v5499, 1.0
  %v5501 = vmul.f32 %v5475, %v5500
  %s5502 = scalar_lea.vmem %s43, 24
  %v5503 = vld [vmem:[%s5502] sm:$0xff]
  %v5504 = vld [vmem:[%s5502 + $0x8] sm:$0xff]
  %v5505 = vld [vmem:[%s5502 + $0x10] sm:$0xff]
  %s5506 = scalar_lea.vmem %s45, 1
  %v5507 = vld [vmem:[%s5506] sm:$0x1]
  %v5509 = vlaneseq
  %v5510 = vshrl.u32 %v5509, 7
  %v5511 = vsub.s32 0, %v5510
  %v5512 = vrot.slane %v5507, %v5511
  %v5515 = vsel %vm228, %v5501, 0
  %5517 = vmatprep.subr.mxu0 0.0
  %5518 = vmatpush1.msra.mxu0 %v5503
  %5519 = vmatprep.subr.mxu0 0.0
  %5520 = vmatpush1.msra.mxu0 %v5504
  %5521 = vmatprep.subr.mxu0 0.0
  %5522 = vmatpush1.msra.mxu0 %v5505
  %5523 = vmatprep.subr.mxu0 0.0
  %5524 = vmatpush1.msra.mxu0 0.0
  %5525 = vmatprep.subr.mxu0 0.0
  %5526 = vmatpush1.msra.mxu0 0.0
  %5527 = vmatprep.subr.mxu0 0.0
  %5528 = vmatpush1.msra.mxu0 0.0
  %5529 = vmatprep.subr.mxu0 0.0
  %5530 = vmatpush1.msra.mxu0 0.0
  %5531 = vmatprep.subr.mxu0 0.0
  %5532 = vmatpush1.msra.mxu0 0.0
  %5533 = vmatprep.subr.mxu0 0.0
  %5534 = vmatpush1.msra.mxu0 0.0
  %5535 = vmatprep.subr.mxu0 0.0
  %5536 = vmatpush1.msra.mxu0 0.0
  %5537 = vmatprep.subr.mxu0 0.0
  %5538 = vmatpush1.msra.mxu0 0.0
  %5539 = vmatprep.subr.mxu0 0.0
  %5540 = vmatpush1.msra.mxu0 0.0
  %5541 = vmatprep.subr.mxu0 0.0
  %5542 = vmatpush1.msra.mxu0 0.0
  %5543 = vmatprep.subr.mxu0 0.0
  %5544 = vmatpush1.msra.mxu0 0.0
  %5545 = vmatprep.subr.mxu0 0.0
  %5546 = vmatpush1.msra.mxu0 0.0
  %5547 = vmatprep.subr.mxu0 0.0
  %5548 = vmatpush1.msra.mxu0 0.0
  %5549 = vmatprep.subr.mxu0 0.0
  %5550 = vmatpush1.msra.mxu0 0.0
  %5551 = vmatprep.subr.mxu0 0.0
  %5552 = vmatpush1.msra.mxu0 0.0
  %5553 = vmatprep.subr.mxu0 0.0
  %5554 = vmatpush1.msra.mxu0 0.0
  %5555 = vmatprep.subr.mxu0 0.0
  %5556 = vmatpush1.msra.mxu0 0.0
  %5557 = vmatprep.subr.mxu0 0.0
  %5558 = vmatpush1.msra.mxu0 0.0
  %5559 = vmatprep.subr.mxu0 0.0
  %5560 = vmatpush1.msra.mxu0 0.0
  %5561 = vmatprep.subr.mxu0 0.0
  %5562 = vmatpush1.msra.mxu0 0.0
  %5563 = vmatprep.subr.mxu0 0.0
  %5564 = vmatpush1.msra.mxu0 0.0
  %5565 = vmatprep.subr.mxu0 0.0
  %5566 = vmatpush1.msra.mxu0 0.0
  %5567 = vmatprep.subr.mxu0 0.0
  %5568 = vmatpush1.msra.mxu0 0.0
  %5569 = vmatprep.subr.mxu0 0.0
  %5570 = vmatpush1.msra.mxu0 0.0
  %5571 = vmatprep.subr.mxu0 0.0
  %5572 = vmatpush1.msra.mxu0 0.0
  %5573 = vmatprep.subr.mxu0 0.0
  %5574 = vmatpush1.msra.mxu0 0.0
  %5575 = vmatprep.subr.mxu0 0.0
  %5576 = vmatpush1.msra.mxu0 0.0
  %5577 = vmatprep.subr.mxu0 0.0
  %5578 = vmatpush1.msra.mxu0 0.0
  %5579 = vmatprep.subr.mxu0 0.0
  %5580 = vmatpush1.msra.mxu0 0.0
  %5581 = vmatprep.mubr.f32.mxu0 0.0
  %5582 = vmatmul.mubr.f32.gmra.mrb[0].mxu0 %v5515
  %v5583 = vpop.f32.mrb[0].mxu0
  %v5584 = vadd.f32 %v5512, %v5583
  %v5585 = vpop.f32.mrb[0].mxu0
  %5586 = vdwg.mxu0
  %v5587 = vadd.f32 %v5391, %v5584
  %s5588 = scalar_lea.vmem %s47, 2
  %v5589 = vld [vmem:[%s5588] sm:$0x1]
  %s5590 = scalar_lea.vmem %s47, 3
  %v5591 = vld [vmem:[%s5590] sm:$0x1]
  %v5592 = vsel %vm228, %v5587, 0.0
  %5593 = vadd.xlane.f32.xlu0 %v5592
  %v5594 = vpop.xlane.xlu0 %5593
  %v5595 = vmul.f32 %v5594, %v2412
  %v5596 = vsub.f32 %v5587, %v5595
  %v5597 = vmul.f32 %v5596, %v5596
  %v5598 = vsel %vm228, %v5597, 0.0
  %5599 = vadd.xlane.f32.xlu0 %v5598
  %v5600 = vpop.xlane.xlu0 %5599
  %v5601 = vmul.f32 %v5600, %v2412
  %v5602 = vadd.f32 %v5601, 1e-05
  %v5603 = vrsqrt.pop %v5602
  %v5604 = vmul.f32 %v5596, %v5603
  %v5606 = vlaneseq
  %v5607 = vshrl.u32 %v5606, 7
  %v5608 = vsub.s32 0, %v5607
  %v5609 = vrot.slane %v5589, %v5608
  %v5611 = vmul.f32 %v5604, %v5609
  %v5613 = vlaneseq
  %v5614 = vshrl.u32 %v5613, 7
  %v5615 = vsub.s32 0, %v5614
  %v5616 = vrot.slane %v5591, %v5615
  %v5618 = vadd.f32 %v5611, %v5616
  %v5619 = vld [vmem:[%s49] sm:$0x1]
  %s5620 = scalar_lea.vmem %s49, 1
  %v5621 = vld [vmem:[%s5620] sm:$0x1]
  %v5622 = vsel %vm228, %v5618, 0.0
  %5623 = vadd.xlane.f32.xlu0 %v5622
  %v5624 = vpop.xlane.xlu0 %5623
  %v5625 = vmul.f32 %v5624, %v2412
  %v5626 = vsub.f32 %v5618, %v5625
  %v5627 = vmul.f32 %v5626, %v5626
  %v5628 = vsel %vm228, %v5627, 0.0
  %5629 = vadd.xlane.f32.xlu0 %v5628
  %v5630 = vpop.xlane.xlu0 %5629
  %v5631 = vmul.f32 %v5630, %v2412
  %v5632 = vadd.f32 %v5631, 1e-05
  %v5633 = vrsqrt.pop %v5632
  %v5634 = vmul.f32 %v5626, %v5633
  %v5636 = vlaneseq
  %v5637 = vshrl.u32 %v5636, 7
  %v5638 = vsub.s32 0, %v5637
  %v5639 = vrot.slane %v5619, %v5638
  %v5641 = vmul.f32 %v5634, %v5639
  %v5643 = vlaneseq
  %v5644 = vshrl.u32 %v5643, 7
  %v5645 = vsub.s32 0, %v5644
  %v5646 = vrot.slane %v5621, %v5645
  %v5648 = vadd.f32 %v5641, %v5646
  %v5649 = vld [vmem:[%s51] sm:$0xff]
  %v5650 = vld [vmem:[%s51 + $0x8] sm:$0xff]
  %v5651 = vld [vmem:[%s51 + $0x10] sm:$0xff]
  %v5652 = vld [vmem:[%s53] sm:$0x1]
  %v5654 = vlaneseq
  %v5655 = vshrl.u32 %v5654, 7
  %v5656 = vsub.s32 0, %v5655
  %v5657 = vrot.slane %v5652, %v5656
  %v5660 = vsel %vm228, %v5648, 0
  %5662 = vmatprep.subr.mxu0 0.0
  %5663 = vmatpush1.msra.mxu0 %v5649
  %5664 = vmatprep.subr.mxu0 0.0
  %5665 = vmatpush1.msra.mxu0 %v5650
  %5666 = vmatprep.subr.mxu0 0.0
  %5667 = vmatpush1.msra.mxu0 %v5651
  %5668 = vmatprep.subr.mxu0 0.0
  %5669 = vmatpush1.msra.mxu0 0.0
  %5670 = vmatprep.subr.mxu0 0.0
  %5671 = vmatpush1.msra.mxu0 0.0
  %5672 = vmatprep.subr.mxu0 0.0
  %5673 = vmatpush1.msra.mxu0 0.0
  %5674 = vmatprep.subr.mxu0 0.0
  %5675 = vmatpush1.msra.mxu0 0.0
  %5676 = vmatprep.subr.mxu0 0.0
  %5677 = vmatpush1.msra.mxu0 0.0
  %5678 = vmatprep.subr.mxu0 0.0
  %5679 = vmatpush1.msra.mxu0 0.0
  %5680 = vmatprep.subr.mxu0 0.0
  %5681 = vmatpush1.msra.mxu0 0.0
  %5682 = vmatprep.subr.mxu0 0.0
  %5683 = vmatpush1.msra.mxu0 0.0
  %5684 = vmatprep.subr.mxu0 0.0
  %5685 = vmatpush1.msra.mxu0 0.0
  %5686 = vmatprep.subr.mxu0 0.0
  %5687 = vmatpush1.msra.mxu0 0.0
  %5688 = vmatprep.subr.mxu0 0.0
  %5689 = vmatpush1.msra.mxu0 0.0
  %5690 = vmatprep.subr.mxu0 0.0
  %5691 = vmatpush1.msra.mxu0 0.0
  %5692 = vmatprep.subr.mxu0 0.0
  %5693 = vmatpush1.msra.mxu0 0.0
  %5694 = vmatprep.subr.mxu0 0.0
  %5695 = vmatpush1.msra.mxu0 0.0
  %5696 = vmatprep.subr.mxu0 0.0
  %5697 = vmatpush1.msra.mxu0 0.0
  %5698 = vmatprep.subr.mxu0 0.0
  %5699 = vmatpush1.msra.mxu0 0.0
  %5700 = vmatprep.subr.mxu0 0.0
  %5701 = vmatpush1.msra.mxu0 0.0
  %5702 = vmatprep.subr.mxu0 0.0
  %5703 = vmatpush1.msra.mxu0 0.0
  %5704 = vmatprep.subr.mxu0 0.0
  %5705 = vmatpush1.msra.mxu0 0.0
  %5706 = vmatprep.subr.mxu0 0.0
  %5707 = vmatpush1.msra.mxu0 0.0
  %5708 = vmatprep.subr.mxu0 0.0
  %5709 = vmatpush1.msra.mxu0 0.0
  %5710 = vmatprep.subr.mxu0 0.0
  %5711 = vmatpush1.msra.mxu0 0.0
  %5712 = vmatprep.subr.mxu0 0.0
  %5713 = vmatpush1.msra.mxu0 0.0
  %5714 = vmatprep.subr.mxu0 0.0
  %5715 = vmatpush1.msra.mxu0 0.0
  %5716 = vmatprep.subr.mxu0 0.0
  %5717 = vmatpush1.msra.mxu0 0.0
  %5718 = vmatprep.subr.mxu0 0.0
  %5719 = vmatpush1.msra.mxu0 0.0
  %5720 = vmatprep.subr.mxu0 0.0
  %5721 = vmatpush1.msra.mxu0 0.0
  %5722 = vmatprep.subr.mxu0 0.0
  %5723 = vmatpush1.msra.mxu0 0.0
  %5724 = vmatprep.subr.mxu0 0.0
  %5725 = vmatpush1.msra.mxu0 0.0
  %5726 = vmatprep.mubr.f32.mxu0 0.0
  %5727 = vmatmul.mubr.f32.gmra.mrb[0].mxu0 %v5660
  %v5728 = vpop.f32.mrb[0].mxu0
  %v5729 = vadd.f32 %v5657, %v5728
  %v5730 = vpop.f32.mrb[0].mxu0
  %5731 = vdwg.mxu0
  %s5732 = scalar_lea.vmem %s51, 24
  %v5733 = vld [vmem:[%s5732] sm:$0xff]
  %v5734 = vld [vmem:[%s5732 + $0x8] sm:$0xff]
  %v5735 = vld [vmem:[%s5732 + $0x10] sm:$0xff]
  %s5736 = scalar_lea.vmem %s53, 1
  %v5737 = vld [vmem:[%s5736] sm:$0x1]
  %v5739 = vlaneseq
  %v5740 = vshrl.u32 %v5739, 7
  %v5741 = vsub.s32 0, %v5740
  %v5742 = vrot.slane %v5737, %v5741
  %5744 = vmatprep.subr.mxu0 0.0
  %5745 = vmatpush1.msra.mxu0 %v5733
  %5746 = vmatprep.subr.mxu0 0.0
  %5747 = vmatpush1.msra.mxu0 %v5734
  %5748 = vmatprep.subr.mxu0 0.0
  %5749 = vmatpush1.msra.mxu0 %v5735
  %5750 = vmatprep.subr.mxu0 0.0
  %5751 = vmatpush1.msra.mxu0 0.0
  %5752 = vmatprep.subr.mxu0 0.0
  %5753 = vmatpush1.msra.mxu0 0.0
  %5754 = vmatprep.subr.mxu0 0.0
  %5755 = vmatpush1.msra.mxu0 0.0
  %5756 = vmatprep.subr.mxu0 0.0
  %5757 = vmatpush1.msra.mxu0 0.0
  %5758 = vmatprep.subr.mxu0 0.0
  %5759 = vmatpush1.msra.mxu0 0.0
  %5760 = vmatprep.subr.mxu0 0.0
  %5761 = vmatpush1.msra.mxu0 0.0
  %5762 = vmatprep.subr.mxu0 0.0
  %5763 = vmatpush1.msra.mxu0 0.0
  %5764 = vmatprep.subr.mxu0 0.0
  %5765 = vmatpush1.msra.mxu0 0.0
  %5766 = vmatprep.subr.mxu0 0.0
  %5767 = vmatpush1.msra.mxu0 0.0
  %5768 = vmatprep.subr.mxu0 0.0
  %5769 = vmatpush1.msra.mxu0 0.0
  %5770 = vmatprep.subr.mxu0 0.0
  %5771 = vmatpush1.msra.mxu0 0.0
  %5772 = vmatprep.subr.mxu0 0.0
  %5773 = vmatpush1.msra.mxu0 0.0
  %5774 = vmatprep.subr.mxu0 0.0
  %5775 = vmatpush1.msra.mxu0 0.0
  %5776 = vmatprep.subr.mxu0 0.0
  %5777 = vmatpush1.msra.mxu0 0.0
  %5778 = vmatprep.subr.mxu0 0.0
  %5779 = vmatpush1.msra.mxu0 0.0
  %5780 = vmatprep.subr.mxu0 0.0
  %5781 = vmatpush1.msra.mxu0 0.0
  %5782 = vmatprep.subr.mxu0 0.0
  %5783 = vmatpush1.msra.mxu0 0.0
  %5784 = vmatprep.subr.mxu0 0.0
  %5785 = vmatpush1.msra.mxu0 0.0
  %5786 = vmatprep.subr.mxu0 0.0
  %5787 = vmatpush1.msra.mxu0 0.0
  %5788 = vmatprep.subr.mxu0 0.0
  %5789 = vmatpush1.msra.mxu0 0.0
  %5790 = vmatprep.subr.mxu0 0.0
  %5791 = vmatpush1.msra.mxu0 0.0
  %5792 = vmatprep.subr.mxu0 0.0
  %5793 = vmatpush1.msra.mxu0 0.0
  %5794 = vmatprep.subr.mxu0 0.0
  %5795 = vmatpush1.msra.mxu0 0.0
  %5796 = vmatprep.subr.mxu0 0.0
  %5797 = vmatpush1.msra.mxu0 0.0
  %5798 = vmatprep.subr.mxu0 0.0
  %5799 = vmatpush1.msra.mxu0 0.0
  %5800 = vmatprep.subr.mxu0 0.0
  %5801 = vmatpush1.msra.mxu0 0.0
  %5802 = vmatprep.subr.mxu0 0.0
  %5803 = vmatpush1.msra.mxu0 0.0
  %5804 = vmatprep.subr.mxu0 0.0
  %5805 = vmatpush1.msra.mxu0 0.0
  %5806 = vmatprep.subr.mxu0 0.0
  %5807 = vmatpush1.msra.mxu0 0.0
  %5808 = vmatprep.mubr.f32.mxu0 0.0
  %5809 = vmatmul.mubr.f32.gmra.mrb[0].mxu0 %v5660
  %v5810 = vpop.f32.mrb[0].mxu0
  %v5811 = vadd.f32 %v5742, %v5810
  %v5812 = vpop.f32.mrb[0].mxu0
  %5813 = vdwg.mxu0
  %s5814 = scalar_lea.vmem %s51, 48
  %v5815 = vld [vmem:[%s5814] sm:$0xff]
  %v5816 = vld [vmem:[%s5814 + $0x8] sm:$0xff]
  %v5817 = vld [vmem:[%s5814 + $0x10] sm:$0xff]
  %s5818 = scalar_lea.vmem %s53, 2
  %v5819 = vld [vmem:[%s5818] sm:$0x1]
  %v5821 = vlaneseq
  %v5822 = vshrl.u32 %v5821, 7
  %v5823 = vsub.s32 0, %v5822
  %v5824 = vrot.slane %v5819, %v5823
  %5826 = vmatprep.subr.mxu0 0.0
  %5827 = vmatpush1.msra.mxu0 %v5815
  %5828 = vmatprep.subr.mxu0 0.0
  %5829 = vmatpush1.msra.mxu0 %v5816
  %5830 = vmatprep.subr.mxu0 0.0
  %5831 = vmatpush1.msra.mxu0 %v5817
  %5832 = vmatprep.subr.mxu0 0.0
  %5833 = vmatpush1.msra.mxu0 0.0
  %5834 = vmatprep.subr.mxu0 0.0
  %5835 = vmatpush1.msra.mxu0 0.0
  %5836 = vmatprep.subr.mxu0 0.0
  %5837 = vmatpush1.msra.mxu0 0.0
  %5838 = vmatprep.subr.mxu0 0.0
  %5839 = vmatpush1.msra.mxu0 0.0
  %5840 = vmatprep.subr.mxu0 0.0
  %5841 = vmatpush1.msra.mxu0 0.0
  %5842 = vmatprep.subr.mxu0 0.0
  %5843 = vmatpush1.msra.mxu0 0.0
  %5844 = vmatprep.subr.mxu0 0.0
  %5845 = vmatpush1.msra.mxu0 0.0
  %5846 = vmatprep.subr.mxu0 0.0
  %5847 = vmatpush1.msra.mxu0 0.0
  %5848 = vmatprep.subr.mxu0 0.0
  %5849 = vmatpush1.msra.mxu0 0.0
  %5850 = vmatprep.subr.mxu0 0.0
  %5851 = vmatpush1.msra.mxu0 0.0
  %5852 = vmatprep.subr.mxu0 0.0
  %5853 = vmatpush1.msra.mxu0 0.0
  %5854 = vmatprep.subr.mxu0 0.0
  %5855 = vmatpush1.msra.mxu0 0.0
  %5856 = vmatprep.subr.mxu0 0.0
  %5857 = vmatpush1.msra.mxu0 0.0
  %5858 = vmatprep.subr.mxu0 0.0
  %5859 = vmatpush1.msra.mxu0 0.0
  %5860 = vmatprep.subr.mxu0 0.0
  %5861 = vmatpush1.msra.mxu0 0.0
  %5862 = vmatprep.subr.mxu0 0.0
  %5863 = vmatpush1.msra.mxu0 0.0
  %5864 = vmatprep.subr.mxu0 0.0
  %5865 = vmatpush1.msra.mxu0 0.0
  %5866 = vmatprep.subr.mxu0 0.0
  %5867 = vmatpush1.msra.mxu0 0.0
  %5868 = vmatprep.subr.mxu0 0.0
  %5869 = vmatpush1.msra.mxu0 0.0
  %5870 = vmatprep.subr.mxu0 0.0
  %5871 = vmatpush1.msra.mxu0 0.0
  %5872 = vmatprep.subr.mxu0 0.0
  %5873 = vmatpush1.msra.mxu0 0.0
  %5874 = vmatprep.subr.mxu0 0.0
  %5875 = vmatpush1.msra.mxu0 0.0
  %5876 = vmatprep.subr.mxu0 0.0
  %5877 = vmatpush1.msra.mxu0 0.0
  %5878 = vmatprep.subr.mxu0 0.0
  %5879 = vmatpush1.msra.mxu0 0.0
  %5880 = vmatprep.subr.mxu0 0.0
  %5881 = vmatpush1.msra.mxu0 0.0
  %5882 = vmatprep.subr.mxu0 0.0
  %5883 = vmatpush1.msra.mxu0 0.0
  %5884 = vmatprep.subr.mxu0 0.0
  %5885 = vmatpush1.msra.mxu0 0.0
  %5886 = vmatprep.subr.mxu0 0.0
  %5887 = vmatpush1.msra.mxu0 0.0
  %5888 = vmatprep.subr.mxu0 0.0
  %5889 = vmatpush1.msra.mxu0 0.0
  %5890 = vmatprep.mubr.f32.mxu0 0.0
  %5891 = vmatmul.mubr.f32.gmra.mrb[0].mxu0 %v5660
  %v5892 = vpop.f32.mrb[0].mxu0
  %v5893 = vadd.f32 %v5824, %v5892
  %v5894 = vpop.f32.mrb[0].mxu0
  %5895 = vdwg.mxu0
  %v5896 = vld [vmem:[%s55] sm:$0x1]
  %v5897 = vld [vmem:[#allocation2] sm:$0x1]
  %v5899 = vrot.slane %v5729, 3
  %v5900 = vsel %vm228, %v5899, 0
  %v5903 = vsel %vm228, %v5811, 0
  %5905 = vmatprep.subr.mxu0 0.0
  %5906 = vmatpush1.xpose.msra.mxu0 %v5903
  %5907 = vmatprep.subr.mxu0 0.0
  %5908 = vmatpush1.xpose.msra.mxu0 0.0
  %5909 = vmatprep.subr.mxu0 0.0
  %5910 = vmatpush1.xpose.msra.mxu0 0.0
  %5911 = vmatprep.subr.mxu0 0.0
  %5912 = vmatpush1.xpose.msra.mxu0 0.0
  %5913 = vmatprep.subr.mxu0 0.0
  %5914 = vmatpush1.xpose.msra.mxu0 0.0
  %5915 = vmatprep.subr.mxu0 0.0
  %5916 = vmatpush1.xpose.msra.mxu0 0.0
  %5917 = vmatprep.subr.mxu0 0.0
  %5918 = vmatpush1.xpose.msra.mxu0 0.0
  %5919 = vmatprep.subr.mxu0 0.0
  %5920 = vmatpush1.xpose.msra.mxu0 0.0
  %5921 = vmatprep.subr.mxu0 0.0
  %5922 = vmatpush1.xpose.msra.mxu0 0.0
  %5923 = vmatprep.subr.mxu0 0.0
  %5924 = vmatpush1.xpose.msra.mxu0 0.0
  %5925 = vmatprep.subr.mxu0 0.0
  %5926 = vmatpush1.xpose.msra.mxu0 0.0
  %5927 = vmatprep.subr.mxu0 0.0
  %5928 = vmatpush1.xpose.msra.mxu0 0.0
  %5929 = vmatprep.subr.mxu0 0.0
  %5930 = vmatpush1.xpose.msra.mxu0 0.0
  %5931 = vmatprep.subr.mxu0 0.0
  %5932 = vmatpush1.xpose.msra.mxu0 0.0
  %5933 = vmatprep.subr.mxu0 0.0
  %5934 = vmatpush1.xpose.msra.mxu0 0.0
  %5935 = vmatprep.subr.mxu0 0.0
  %5936 = vmatpush1.xpose.msra.mxu0 0.0
  %5937 = vmatprep.subr.mxu0 0.0
  %5938 = vmatpush1.xpose.msra.mxu0 0.0
  %5939 = vmatprep.subr.mxu0 0.0
  %5940 = vmatpush1.xpose.msra.mxu0 0.0
  %5941 = vmatprep.subr.mxu0 0.0
  %5942 = vmatpush1.xpose.msra.mxu0 0.0
  %5943 = vmatprep.subr.mxu0 0.0
  %5944 = vmatpush1.xpose.msra.mxu0 0.0
  %5945 = vmatprep.subr.mxu0 0.0
  %5946 = vmatpush1.xpose.msra.mxu0 0.0
  %5947 = vmatprep.subr.mxu0 0.0
  %5948 = vmatpush1.xpose.msra.mxu0 0.0
  %5949 = vmatprep.subr.mxu0 0.0
  %5950 = vmatpush1.xpose.msra.mxu0 0.0
  %5951 = vmatprep.subr.mxu0 0.0
  %5952 = vmatpush1.xpose.msra.mxu0 0.0
  %5953 = vmatprep.subr.mxu0 0.0
  %5954 = vmatpush1.xpose.msra.mxu0 0.0
  %5955 = vmatprep.subr.mxu0 0.0
  %5956 = vmatpush1.xpose.msra.mxu0 0.0
  %5957 = vmatprep.subr.mxu0 0.0
  %5958 = vmatpush1.xpose.msra.mxu0 0.0
  %5959 = vmatprep.subr.mxu0 0.0
  %5960 = vmatpush1.xpose.msra.mxu0 0.0
  %5961 = vmatprep.subr.mxu0 0.0
  %5962 = vmatpush1.xpose.msra.mxu0 0.0
  %5963 = vmatprep.subr.mxu0 0.0
  %5964 = vmatpush1.xpose.msra.mxu0 0.0
  %5965 = vmatprep.subr.mxu0 0.0
  %5966 = vmatpush1.xpose.msra.mxu0 0.0
  %5967 = vmatprep.subr.mxu0 0.0
  %5968 = vmatpush1.xpose.msra.mxu0 0.0
  %5969 = vmatprep.mubr.f32.mxu0 0.0
  %5970 = vmatmul.mubr.f32.gmra.mrb[0].mxu0 %v5900
  %v5971 = vpop.f32.mrb[0].mxu0
  %v5972 = vadd.f32 0.0, %v5971
  %v5973 = vpop.f32.mrb[0].mxu0
  %5974 = vdwg.mxu0
  %vm5975 = vcmask 24576
  %v5976 = vsel %vm5975, %v5972, -inf
  %5977 = vmax.xlane.f32.xlu0 %v5976
  %v5978 = vpop.xlane.xlu0 %5977
  %v5979 = vsub.f32 %v5972, %v5978
  %v5980 = vmul.f32 %v5979, 1.442695
  %v5981 = vpow.pop %v5980
  %v5982 = vsel %vm5975, %v5981, 0.0
  %5983 = vadd.xlane.f32.xlu0 %v5982
  %v5984 = vpop.xlane.xlu0 %5983
  %v5985 = vrcp.pop %v5984
  %v5986 = vmul.f32 %v5981, %v5985
  %vm5987 = vcmask 31744
  %v5989 = vsel %vm5987, %v5986, 0
  %vm5991 = vcmask 1043456
  %v5993 = vsel %vm5991, %v5893, 0
  %5995 = vmatprep.subr.mxu0 0.0
  %5996 = vmatpush1.msra.mxu0 %v5993
  %5997 = vmatprep.subr.mxu0 0.0
  %5998 = vmatpush1.msra.mxu0 0.0
  %5999 = vmatprep.subr.mxu0 0.0
  %6000 = vmatpush1.msra.mxu0 0.0
  %6001 = vmatprep.subr.mxu0 0.0
  %6002 = vmatpush1.msra.mxu0 0.0
  %6003 = vmatprep.subr.mxu0 0.0
  %6004 = vmatpush1.msra.mxu0 0.0
  %6005 = vmatprep.subr.mxu0 0.0
  %6006 = vmatpush1.msra.mxu0 0.0
  %6007 = vmatprep.subr.mxu0 0.0
  %6008 = vmatpush1.msra.mxu0 0.0
  %6009 = vmatprep.subr.mxu0 0.0
  %6010 = vmatpush1.msra.mxu0 0.0
  %6011 = vmatprep.subr.mxu0 0.0
  %6012 = vmatpush1.msra.mxu0 0.0
  %6013 = vmatprep.subr.mxu0 0.0
  %6014 = vmatpush1.msra.mxu0 0.0
  %6015 = vmatprep.subr.mxu0 0.0
  %6016 = vmatpush1.msra.mxu0 0.0
  %6017 = vmatprep.subr.mxu0 0.0
  %6018 = vmatpush1.msra.mxu0 0.0
  %6019 = vmatprep.subr.mxu0 0.0
  %6020 = vmatpush1.msra.mxu0 0.0
  %6021 = vmatprep.subr.mxu0 0.0
  %6022 = vmatpush1.msra.mxu0 0.0
  %6023 = vmatprep.subr.mxu0 0.0
  %6024 = vmatpush1.msra.mxu0 0.0
  %6025 = vmatprep.subr.mxu0 0.0
  %6026 = vmatpush1.msra.mxu0 0.0
  %6027 = vmatprep.subr.mxu0 0.0
  %6028 = vmatpush1.msra.mxu0 0.0
  %6029 = vmatprep.subr.mxu0 0.0
  %6030 = vmatpush1.msra.mxu0 0.0
  %6031 = vmatprep.subr.mxu0 0.0
  %6032 = vmatpush1.msra.mxu0 0.0
  %6033 = vmatprep.subr.mxu0 0.0
  %6034 = vmatpush1.msra.mxu0 0.0
  %6035 = vmatprep.subr.mxu0 0.0
  %6036 = vmatpush1.msra.mxu0 0.0
  %6037 = vmatprep.subr.mxu0 0.0
  %6038 = vmatpush1.msra.mxu0 0.0
  %6039 = vmatprep.subr.mxu0 0.0
  %6040 = vmatpush1.msra.mxu0 0.0
  %6041 = vmatprep.subr.mxu0 0.0
  %6042 = vmatpush1.msra.mxu0 0.0
  %6043 = vmatprep.subr.mxu0 0.0
  %6044 = vmatpush1.msra.mxu0 0.0
  %6045 = vmatprep.subr.mxu0 0.0
  %6046 = vmatpush1.msra.mxu0 0.0
  %6047 = vmatprep.subr.mxu0 0.0
  %6048 = vmatpush1.msra.mxu0 0.0
  %6049 = vmatprep.subr.mxu0 0.0
  %6050 = vmatpush1.msra.mxu0 0.0
  %6051 = vmatprep.subr.mxu0 0.0
  %6052 = vmatpush1.msra.mxu0 0.0
  %6053 = vmatprep.subr.mxu0 0.0
  %6054 = vmatpush1.msra.mxu0 0.0
  %6055 = vmatprep.subr.mxu0 0.0
  %6056 = vmatpush1.msra.mxu0 0.0
  %6057 = vmatprep.subr.mxu0 0.0
  %6058 = vmatpush1.msra.mxu0 0.0
  %6059 = vmatprep.mubr.f32.mxu0 0.0
  %6060 = vmatmul.mubr.f32.gmra.mrb[0].mxu0 %v5989
  %v6061 = vpop.f32.mrb[0].mxu0
  %v6062 = vadd.f32 0.0, %v6061
  %v6063 = vpop.f32.mrb[0].mxu0
  %6064 = vdwg.mxu0
  %v6065 = vmul.f32 %v6062, %v5896
  %vm6066 = vcmask 188416
  %v6067 = vsel %vm6066, %v6065, 0.0
  %6068 = vadd.xlane.f32.xlu0 %v6067
  %v6069 = vpop.xlane.xlu0 %6068
  %v6070 = vadd.f32 %v6069, %v5897
  %v6071 = vrot.slane %v5729, 7
  %v6072 = vrot.slane %v5811, 4
  %v6073 = vsel %vm228, %v6071, 0
  %v6075 = vsel %vm228, %v6072, 0
  %6077 = vmatprep.subr.mxu0 0.0
  %6078 = vmatpush1.xpose.msra.mxu0 %v6075
  %6079 = vmatprep.subr.mxu0 0.0
  %6080 = vmatpush1.xpose.msra.mxu0 0.0
  %6081 = vmatprep.subr.mxu0 0.0
  %6082 = vmatpush1.xpose.msra.mxu0 0.0
  %6083 = vmatprep.subr.mxu0 0.0
  %6084 = vmatpush1.xpose.msra.mxu0 0.0
  %6085 = vmatprep.subr.mxu0 0.0
  %6086 = vmatpush1.xpose.msra.mxu0 0.0
  %6087 = vmatprep.subr.mxu0 0.0
  %6088 = vmatpush1.xpose.msra.mxu0 0.0
  %6089 = vmatprep.subr.mxu0 0.0
  %6090 = vmatpush1.xpose.msra.mxu0 0.0
  %6091 = vmatprep.subr.mxu0 0.0
  %6092 = vmatpush1.xpose.msra.mxu0 0.0
  %6093 = vmatprep.subr.mxu0 0.0
  %6094 = vmatpush1.xpose.msra.mxu0 0.0
  %6095 = vmatprep.subr.mxu0 0.0
  %6096 = vmatpush1.xpose.msra.mxu0 0.0
  %6097 = vmatprep.subr.mxu0 0.0
  %6098 = vmatpush1.xpose.msra.mxu0 0.0
  %6099 = vmatprep.subr.mxu0 0.0
  %6100 = vmatpush1.xpose.msra.mxu0 0.0
  %6101 = vmatprep.subr.mxu0 0.0
  %6102 = vmatpush1.xpose.msra.mxu0 0.0
  %6103 = vmatprep.subr.mxu0 0.0
  %6104 = vmatpush1.xpose.msra.mxu0 0.0
  %6105 = vmatprep.subr.mxu0 0.0
  %6106 = vmatpush1.xpose.msra.mxu0 0.0
  %6107 = vmatprep.subr.mxu0 0.0
  %6108 = vmatpush1.xpose.msra.mxu0 0.0
  %6109 = vmatprep.subr.mxu0 0.0
  %6110 = vmatpush1.xpose.msra.mxu0 0.0
  %6111 = vmatprep.subr.mxu0 0.0
  %6112 = vmatpush1.xpose.msra.mxu0 0.0
  %6113 = vmatprep.subr.mxu0 0.0
  %6114 = vmatpush1.xpose.msra.mxu0 0.0
  %6115 = vmatprep.subr.mxu0 0.0
  %6116 = vmatpush1.xpose.msra.mxu0 0.0
  %6117 = vmatprep.subr.mxu0 0.0
  %6118 = vmatpush1.xpose.msra.mxu0 0.0
  %6119 = vmatprep.subr.mxu0 0.0
  %6120 = vmatpush1.xpose.msra.mxu0 0.0
  %6121 = vmatprep.subr.mxu0 0.0
  %6122 = vmatpush1.xpose.msra.mxu0 0.0
  %6123 = vmatprep.subr.mxu0 0.0
  %6124 = vmatpush1.xpose.msra.mxu0 0.0
  %6125 = vmatprep.subr.mxu0 0.0
  %6126 = vmatpush1.xpose.msra.mxu0 0.0
  %6127 = vmatprep.subr.mxu0 0.0
  %6128 = vmatpush1.xpose.msra.mxu0 0.0
  %6129 = vmatprep.subr.mxu0 0.0
  %6130 = vmatpush1.xpose.msra.mxu0 0.0
  %6131 = vmatprep.subr.mxu0 0.0
  %6132 = vmatpush1.xpose.msra.mxu0 0.0
  %6133 = vmatprep.subr.mxu0 0.0
  %6134 = vmatpush1.xpose.msra.mxu0 0.0
  %6135 = vmatprep.subr.mxu0 0.0
  %6136 = vmatpush1.xpose.msra.mxu0 0.0
  %6137 = vmatprep.subr.mxu0 0.0
  %6138 = vmatpush1.xpose.msra.mxu0 0.0
  %6139 = vmatprep.subr.mxu0 0.0
  %6140 = vmatpush1.xpose.msra.mxu0 0.0
  %6141 = vmatprep.mubr.f32.mxu0 0.0
  %6142 = vmatmul.mubr.f32.gmra.mrb[0].mxu0 %v6073
  %v6143 = vpop.f32.mrb[0].mxu0
  %v6144 = vadd.f32 0.0, %v6143
  %v6145 = vpop.f32.mrb[0].mxu0
  %6146 = vdwg.mxu0
  %v6147 = vsel %vm5975, %v6144, -inf
  %6148 = vmax.xlane.f32.xlu0 %v6147
  %v6149 = vpop.xlane.xlu0 %6148
  %v6150 = vsub.f32 %v6144, %v6149
  %v6151 = vmul.f32 %v6150, 1.442695
  %v6152 = vpow.pop %v6151
  %v6153 = vsel %vm5975, %v6152, 0.0
  %6154 = vadd.xlane.f32.xlu0 %v6153
  %v6155 = vpop.xlane.xlu0 %6154
  %v6156 = vrcp.pop %v6155
  %v6157 = vmul.f32 %v6152, %v6156
  %v6158 = vrot.slane %v5893, 4
  %v6160 = vsel %vm5987, %v6157, 0
  %v6162 = vsel %vm5991, %v6158, 0
  %6164 = vmatprep.subr.mxu0 0.0
  %6165 = vmatpush1.msra.mxu0 %v6162
  %6166 = vmatprep.subr.mxu0 0.0
  %6167 = vmatpush1.msra.mxu0 0.0
  %6168 = vmatprep.subr.mxu0 0.0
  %6169 = vmatpush1.msra.mxu0 0.0
  %6170 = vmatprep.subr.mxu0 0.0
  %6171 = vmatpush1.msra.mxu0 0.0
  %6172 = vmatprep.subr.mxu0 0.0
  %6173 = vmatpush1.msra.mxu0 0.0
  %6174 = vmatprep.subr.mxu0 0.0
  %6175 = vmatpush1.msra.mxu0 0.0
  %6176 = vmatprep.subr.mxu0 0.0
  %6177 = vmatpush1.msra.mxu0 0.0
  %6178 = vmatprep.subr.mxu0 0.0
  %6179 = vmatpush1.msra.mxu0 0.0
  %6180 = vmatprep.subr.mxu0 0.0
  %6181 = vmatpush1.msra.mxu0 0.0
  %6182 = vmatprep.subr.mxu0 0.0
  %6183 = vmatpush1.msra.mxu0 0.0
  %6184 = vmatprep.subr.mxu0 0.0
  %6185 = vmatpush1.msra.mxu0 0.0
  %6186 = vmatprep.subr.mxu0 0.0
  %6187 = vmatpush1.msra.mxu0 0.0
  %6188 = vmatprep.subr.mxu0 0.0
  %6189 = vmatpush1.msra.mxu0 0.0
  %6190 = vmatprep.subr.mxu0 0.0
  %6191 = vmatpush1.msra.mxu0 0.0
  %6192 = vmatprep.subr.mxu0 0.0
  %6193 = vmatpush1.msra.mxu0 0.0
  %6194 = vmatprep.subr.mxu0 0.0
  %6195 = vmatpush1.msra.mxu0 0.0
  %6196 = vmatprep.subr.mxu0 0.0
  %6197 = vmatpush1.msra.mxu0 0.0
  %6198 = vmatprep.subr.mxu0 0.0
  %6199 = vmatpush1.msra.mxu0 0.0
  %6200 = vmatprep.subr.mxu0 0.0
  %6201 = vmatpush1.msra.mxu0 0.0
  %6202 = vmatprep.subr.mxu0 0.0
  %6203 = vmatpush1.msra.mxu0 0.0
  %6204 = vmatprep.subr.mxu0 0.0
  %6205 = vmatpush1.msra.mxu0 0.0
  %6206 = vmatprep.subr.mxu0 0.0
  %6207 = vmatpush1.msra.mxu0 0.0
  %6208 = vmatprep.subr.mxu0 0.0
  %6209 = vmatpush1.msra.mxu0 0.0
  %6210 = vmatprep.subr.mxu0 0.0
  %6211 = vmatpush1.msra.mxu0 0.0
  %6212 = vmatprep.subr.mxu0 0.0
  %6213 = vmatpush1.msra.mxu0 0.0
  %6214 = vmatprep.subr.mxu0 0.0
  %6215 = vmatpush1.msra.mxu0 0.0
  %6216 = vmatprep.subr.mxu0 0.0
  %6217 = vmatpush1.msra.mxu0 0.0
  %6218 = vmatprep.subr.mxu0 0.0
  %6219 = vmatpush1.msra.mxu0 0.0
  %6220 = vmatprep.subr.mxu0 0.0
  %6221 = vmatpush1.msra.mxu0 0.0
  %6222 = vmatprep.subr.mxu0 0.0
  %6223 = vmatpush1.msra.mxu0 0.0
  %6224 = vmatprep.subr.mxu0 0.0
  %6225 = vmatpush1.msra.mxu0 0.0
  %6226 = vmatprep.subr.mxu0 0.0
  %6227 = vmatpush1.msra.mxu0 0.0
  %6228 = vmatprep.mubr.f32.mxu0 0.0
  %6229 = vmatmul.mubr.f32.gmra.mrb[0].mxu0 %v6160
  %v6230 = vpop.f32.mrb[0].mxu0
  %v6231 = vadd.f32 0.0, %v6230
  %v6232 = vpop.f32.mrb[0].mxu0
  %6233 = vdwg.mxu0
  %v6234 = vmul.f32 %v6231, %v5896
  %v6235 = vsel %vm6066, %v6234, 0.0
  %6236 = vadd.xlane.f32.xlu0 %v6235
  %v6237 = vpop.xlane.xlu0 %6236
  %v6238 = vadd.f32 %v6237, %v5897
  %v6240 = vrot.slane %v6238, 7
  %vm6242 = vcmask 1040384
  %v6243 = vsel %vm6242, %v6070, %v6240
  %vm6244 = vcmask 1024
  %6245 = vst.msk [vmem:[%s59] sm:$0x3] %vm6244, %v6243
  // Predicated region
  $region118: #{_transformer_forward.1} parent=0 // pred_check
    _
  $region119: #{_transformer_forward.1} parent=0 // pred_check_branch
    %6247 = sbr.rel (0) target = $region121
  $region120: #{_transformer_forward.1} parent=0 // pred_region
    _
  $region121: #{_transformer_forward.1} parent=0 // pred_fallthru
    _
  // Predicated region
  $region122: #{_transformer_forward.1} parent=0 // pred_check
    _
  $region123: #{_transformer_forward.1} parent=0 // pred_check_branch
    %6249 = sbr.rel (0) target = $region125
  $region124: #{_transformer_forward.1} parent=0 // pred_region
    _
  $region125: #{_transformer_forward.1} parent=0 // pred_fallthru
    _

</llo_original>
